<compile_context>
chip_gen: v7x
topology: tpu7x:2x2x1
jax: 0.10.0
libtpu: 0.0.40
codegen_flags: <defaults>
</compile_context>

<pallas_src>
import functools

import numpy as np

import jax
import jax.numpy as jnp
from jax.experimental import pallas as pl
from jax.experimental.pallas import tpu as pltpu

F32 = jnp.float32
_VMEM = pl.BlockSpec(memory_space=pltpu.MemorySpace.VMEM)


# ----------------------------- in-kernel im2col -------------------------------

def _im2col_vmem(x, masks, kk, W):
    """In-VMEM im2col via lane rotations + precomputed boundary masks.

    x:     (C, rows) channels-major activation; rows = B*H*W flattened b-major, then y, then x.
    masks: (kk*kk, rows) 0/1 f32 validity masks per tap (precomputed outside the kernel).
    Returns (kk*kk*C, rows), tap-major / channel-minor rows (matches the weight column layout
    built in prepare_params).
    """
    rows = x.shape[-1]
    p = kk // 2
    taps = []
    t = 0
    for dy in range(kk):
        for dx in range(kk):
            off = (dy - p) * W + (dx - p)          # source-pixel offset for this tap
            if off == 0:
                shifted = x                         # centre tap: always valid, no mask needed
            else:
                # want out[j] = x[j + off]; pltpu.roll follows jnp.roll semantics
                shifted = pltpu.roll(x, shift=(-off) % rows, axis=1) * masks[t:t + 1, :]
            taps.append(shifted)
            t += 1
    return jnp.concatenate(taps, axis=0)


# ----------------------------- fused timestep kernel ---------------------------

def _stack_step_kernel(*refs, num_layers, nh, W, k):
    """Whole StackRNN timestep (all layers + adapters + merge + conv_last) in one kernel.

    All activations are channels-major (C, B*H*W); rows = B*H*W on the 128-lane axis.
    """
    it = iter(refs)
    # ---- inputs
    x_ref = next(it)                                   # (cin_pad, rows)  zero-padded layer-0 input
    mem_ref = next(it)                                 # (nh, rows)
    h_refs = [next(it) for _ in range(num_layers)]     # (nh, rows) each
    c_refs = [next(it) for _ in range(num_layers)]
    wg_refs = [next(it) for _ in range(num_layers)]    # fused [Wx|Wh|Wm] gate weights
    wom_refs = [next(it) for _ in range(num_layers)]   # fused conv_o + in-cell conv_last
    aw_ref, ab_ref = next(it), next(it)                # adapter 1x1 conv
    mw_ref, mb_ref, clw_ref = next(it), next(it), next(it)
    seg_ref = next(it)                                 # (rows, rows) block-diag segment-sum
    maskc_ref = next(it)                               # (k*k, rows)  cell-conv boundary masks
    maskm_ref = next(it)                               # (9, rows)    merge-conv boundary masks
    # ---- outputs
    out_ref = next(it)
    hout_refs = [next(it) for _ in range(num_layers)]
    cout_refs = [next(it) for _ in range(num_layers)]
    memout_ref = next(it)
    dcn_refs = [next(it) for _ in range(num_layers)]
    dmn_refs = [next(it) for _ in range(num_layers)]

    maskc = maskc_ref[...]
    maskm = maskm_ref[...]
    seg = seg_ref[...]
    aw = aw_ref[...]
    ab = ab_ref[...]

    def adapter_norm(d):
        # adapter 1x1 conv (+bias) then F.normalize over the spatial axis.
        y = jnp.dot(aw, d, preferred_element_type=jnp.float32) + ab
        # per-(batch, channel) sum of squares over the hw pixels via block-diagonal matmul
        ss = jnp.dot(y * y, seg, preferred_element_type=jnp.float32)
        # x / max(||x||, 1e-12) == x * rsqrt(max(||x||^2, 1e-24))   (rsqrt on the EUP)
        return y * jax.lax.rsqrt(jnp.maximum(ss, 1e-24))

    x_in = x_ref[...]
    memory = mem_ref[...]
    h_copy = None
    for i in range(num_layers):
        h_prev = h_refs[i][...]
        c_prev = c_refs[i][...]

        # One fused matmul emits the already-summed pre-activations for all 7 gates.
        a = _im2col_vmem(jnp.concatenate([x_in, h_prev, memory], axis=0), maskc, k, W)
        pre = jnp.dot(wg_refs[i][...], a, preferred_element_type=jnp.float32)   # (7nh, rows)

        i_t = jax.nn.sigmoid(pre[0:nh])
        f_t = jax.nn.sigmoid(pre[nh:2 * nh] + 1.0)       # forget bias = 1.0
        g_t = jnp.tanh(pre[2 * nh:3 * nh])
        dc = i_t * g_t
        c_new = f_t * c_prev + dc

        i_tp = jax.nn.sigmoid(pre[3 * nh:4 * nh])
        f_tp = jax.nn.sigmoid(pre[4 * nh:5 * nh] + 1.0)
        g_tp = jnp.tanh(pre[5 * nh:6 * nh])
        dm = i_tp * g_tp
        m_new = f_tp * memory + dm

        # conv_o(3x3) and the in-cell conv_last(1x1, embedded at centre tap) as one matmul.
        amem = _im2col_vmem(jnp.concatenate([c_new, m_new], axis=0), maskc, k, W)
        om = jnp.dot(wom_refs[i][...], amem, preferred_element_type=jnp.float32)  # (2nh, rows)
        o_t = jax.nn.sigmoid(pre[6 * nh:7 * nh] + om[0:nh])
        h_new = o_t * jnp.tanh(om[nh:2 * nh])

        hout_refs[i][...] = h_new
        cout_refs[i][...] = c_new
        dcn_refs[i][...] = adapter_norm(dc)
        dmn_refs[i][...] = adapter_norm(dm)

        memory = m_new
        x_in = h_new
        if i == 0:
            h_copy = h_new

    memout_ref[...] = memory

    # merge = BasicConv2d (3x3 conv + bias + ReLU), then conv_last (1x1, no bias).
    acat = _im2col_vmem(jnp.concatenate([h_copy, x_in], axis=0), maskm, 3, W)
    y = jnp.dot(mw_ref[...], acat, preferred_element_type=jnp.float32) + mb_ref[...]
    y = jnp.maximum(y, 0.0)
    out_ref[...] = jnp.dot(clw_ref[...], y, preferred_element_type=jnp.float32)


# ------------------------ trace-time constants (numpy) -------------------------

def _tap_masks_np(B, H, W, k):
    """(k*k, B*H*W) 0/1 validity mask for each conv tap (same padding, stride 1)."""
    p = k // 2
    rows = B * H * W
    j = np.arange(rows)
    y = (j // W) % H
    x = j % W
    m = []
    for dy in range(k):
        for dx in range(k):
            m.append(((y + dy - p >= 0) & (y + dy - p < H) &
                      (x + dx - p >= 0) & (x + dx - p < W)).astype(np.float32))
    return np.stack(m, axis=0)


def _seg_matrix_np(B, hw):
    """(rows, rows) block-diagonal ones: seg[j', j] = 1 iff same (batch) spatial segment."""
    j = np.arange(B * hw)
    return (j[:, None] // hw == j[None, :] // hw).astype(np.float32)


# ------------------------------ forward wrapper --------------------------------

def _stack_rnn_forward_impl(kp, in_nchw, memory_nchw, h_nchw, c_nchw, filter_size):
    B, channel, H, W = in_nchw.shape
    num_layers = len(h_nchw)
    nh = h_nchw[0].shape[1]
    rows = B * H * W
    hw = H * W
    k = filter_size
    assert k % 2 == 1, "same-padding im2col assumes an odd filter size"
    cin_pad = -(-channel // 8) * 8   # zero-pad layer-0 input channels to 8-sublane alignment

    to_cm = lambda t: jnp.transpose(t, (1, 0, 2, 3)).reshape(t.shape[1], rows)
    from_cm = lambda t: jnp.transpose(t.reshape(t.shape[0], B, H, W), (1, 0, 2, 3))

    x_cm = jnp.pad(to_cm(in_nchw), ((0, cin_pad - channel), (0, 0)))
    mem_cm = to_cm(memory_nchw)
    h_cm = [to_cm(h) for h in h_nchw]
    c_cm = [to_cm(c) for c in c_nchw]

    # Compile-time constants: boundary masks + block-diagonal segment-sum matrix.
    maskc = jnp.asarray(_tap_masks_np(B, H, W, k))
    maskm = jnp.asarray(_tap_masks_np(B, H, W, 3))
    seg = jnp.asarray(_seg_matrix_np(B, hw))

    inputs = ([x_cm, mem_cm] + h_cm + c_cm
              + list(kp["w_gate"]) + list(kp["w_om"])
              + [kp["adapter_w"], kp["adapter_b"],
                 kp["merge_w"], kp["merge_b"], kp["conv_last_w"],
                 seg, maskc, maskm])

    nhr = jax.ShapeDtypeStruct((nh, rows), F32)
    out_shape = ([jax.ShapeDtypeStruct((channel, rows), F32)]
                 + [nhr] * num_layers          # h_t
                 + [nhr] * num_layers          # c_t
                 + [nhr]                       # memory
                 + [nhr] * num_layers          # delta_c (adapter + normalize)
                 + [nhr] * num_layers)         # delta_m (adapter + normalize)

    kern = functools.partial(_stack_step_kernel, num_layers=num_layers, nh=nh, W=W, k=k)
    results = pl.pallas_call(
        kern,
        out_shape=tuple(out_shape),
        in_specs=[_VMEM] * len(inputs),
        out_specs=(_VMEM,) * len(out_shape),
    )(*inputs)

    out_cm = results[0]
    h_new = list(results[1:1 + num_layers])
    c_new = list(results[1 + num_layers:1 + 2 * num_layers])
    mem_new = results[1 + 2 * num_layers]
    dcn = list(results[2 + 2 * num_layers:2 + 3 * num_layers])
    dmn = list(results[2 + 3 * num_layers:2 + 4 * num_layers])

    # (nh, B*hw) -> (B, nh, hw), matching PyTorch's .view(B, C, -1) on the adapter output.
    to_bchw = lambda t: jnp.transpose(t.reshape(nh, B, hw), (1, 0, 2))
    delta_c_list = [to_bchw(d) for d in dcn]
    delta_m_list = [to_bchw(d) for d in dmn]

    return (from_cm(out_cm), delta_c_list, delta_m_list,
            from_cm(mem_new), [from_cm(h) for h in h_new], [from_cm(c) for c in c_new])


# Single jit over the whole step: layout glue at the boundary fuses in XLA around the one kernel.
stack_rnn_forward = jax.jit(_stack_rnn_forward_impl, static_argnums=(5,))


# ------------------------------- parameters ------------------------------------

def init_params(key, num_layers, num_hidden, channel, filter_size):
    """Random parameters in PyTorch layout: conv weights are (Cout, Cin, k, k)."""
    keys = iter(jax.random.split(key, 5 * num_layers + 10))

    def w(cout, cin, kk):
        return 0.05 * jax.random.normal(next(keys), (cout, cin, kk, kk), F32)

    def b(c):
        return 0.01 * jax.random.normal(next(keys), (c,), F32)

    cells = []
    for i in range(num_layers):
        cin = channel if i == 0 else num_hidden
        cells.append(dict(
            wx=w(7 * num_hidden, cin, filter_size),
            wh=w(4 * num_hidden, num_hidden, filter_size),
            wm=w(3 * num_hidden, num_hidden, filter_size),
            wo=w(num_hidden, 2 * num_hidden, filter_size),
            wcl=w(num_hidden, 2 * num_hidden, 1),
        ))
    return dict(
        cells=cells,
        merge_w=w(num_hidden, 2 * num_hidden, 3),
        merge_b=b(num_hidden),
        conv_last_w=w(channel, num_hidden, 1),
        adapter_w=w(num_hidden, num_hidden, 1),
        adapter_b=b(num_hidden),
    )


def prepare_params(raw, num_hidden, filter_size):
    """Reformat PyTorch-layout weights into the fused kernel matmul layouts (done once).

    Per layer:
      w_gate: (7nh, k*k*(cin_pad + 2nh))  one block weight emitting the summed pre-activations
              i_x+i_h, f_x+f_h, g_x+g_h, i_x'+i_m, f_x'+f_m, g_x'+g_m, o_x+o_h.
      w_om:   (2nh, k*k*2nh)              conv_o(3x3) stacked over conv_last(1x1, centre tap).
    Column ordering is tap-major, channel-minor, matching _im2col_vmem.
    """
    k = filter_size
    nh = num_hidden

    def taps(wt):   # (Cout, Cin, k, k) -> (Cout, k*k, Cin)
        co, ci, kk, _ = wt.shape
        return jnp.transpose(wt, (0, 2, 3, 1)).reshape(co, kk * kk, ci)

    def wfmt(wt):   # (Cout, Cin, kk, kk) -> (Cout, kk*kk*Cin), tap-major columns
        co, ci, kk, _ = wt.shape
        return jnp.transpose(wt, (0, 2, 3, 1)).reshape(co, kk * kk * ci)

    def build_w_gate(cp, cin, cin_pad):
        ctot = cin_pad + 2 * nh
        wg = jnp.zeros((7 * nh, k * k, ctot), F32)
        wx_t, wh_t, wm_t = taps(cp["wx"]), taps(cp["wh"]), taps(cp["wm"])
        wg = wg.at[:, :, 0:cin].set(wx_t)                                      # x -> blocks 0..6
        wg = wg.at[0:3 * nh, :, cin_pad:cin_pad + nh].set(wh_t[0:3 * nh])      # i_h,f_h,g_h -> 0,1,2
        wg = wg.at[6 * nh:7 * nh, :, cin_pad:cin_pad + nh].set(wh_t[3 * nh:])  # o_h -> 6
        wg = wg.at[3 * nh:6 * nh, :, cin_pad + nh:cin_pad + 2 * nh].set(wm_t)  # i_m,f_m,g_m -> 3,4,5
        return wg.reshape(7 * nh, k * k * ctot)

    ctr = (k // 2) * k + (k // 2)   # centre-tap index
    w_gate, w_om = [], []
    for cp in raw["cells"]:
        cin = cp["wx"].shape[1]
        cin_pad = -(-cin // 8) * 8
        w_gate.append(build_w_gate(cp, cin, cin_pad))
        wo = wfmt(cp["wo"])                                     # (nh, k*k*2nh)
        wcl = cp["wcl"].reshape(nh, 2 * nh)                     # 1x1 conv on cat(c, m)
        wcl_pad = jnp.zeros((nh, k * k * 2 * nh), F32)
        wcl_pad = wcl_pad.at[:, ctr * 2 * nh:(ctr + 1) * 2 * nh].set(wcl)
        w_om.append(jnp.concatenate([wo, wcl_pad], axis=0))     # (2nh, k*k*2nh)

    out_channel = raw["conv_last_w"].shape[0]
    return dict(
        w_gate=w_gate,
        w_om=w_om,
        merge_w=wfmt(raw["merge_w"]),                           # (nh, 9*2nh)
        merge_b=raw["merge_b"].reshape(nh, 1),
        conv_last_w=raw["conv_last_w"].reshape(out_channel, nh),
        adapter_w=raw["adapter_w"].reshape(nh, nh),
        adapter_b=raw["adapter_b"].reshape(nh, 1),
    )


# ---------------------------------- main ----------------------------------------

if __name__ == "__main__":
    # Module config: in_shape=(2,1,16,16), patch_size=2 -> channel=4, height=width=8.
    B, C, H, W = 2, 1, 16, 16
    patch_size = 2
    num_layers = 2
    num_hidden = 32
    filter_size = 3
    channel = patch_size * patch_size * C           # 4
    hh, ww = H // patch_size, W // patch_size       # 8, 8

    key = jax.random.PRNGKey(0)
    kparam, kin, kh, kc, km = jax.random.split(key, 5)
    raw_params = init_params(kparam, num_layers, num_hidden, channel, filter_size)
    params = prepare_params(raw_params, num_hidden, filter_size)

    # Inputs in PyTorch NCHW layout (the forward handles layout internally).
    in_tensor = jax.random.normal(kin, (B, channel, hh, ww), F32)
    h_t = [jax.random.normal(jax.random.fold_in(kh, i), (B, num_hidden, hh, ww), F32)
           for i in range(num_layers)]
    c_t = [jax.random.normal(jax.random.fold_in(kc, i), (B, num_hidden, hh, ww), F32)
           for i in range(num_layers)]
    memory = jax.random.normal(km, (B, num_hidden, hh, ww), F32)

    out = stack_rnn_forward(params, in_tensor, memory, h_t, c_t, filter_size)
    jax.block_until_ready(out)
    print("KERNEL_OK")
</pallas_src>

<mosaic_0001>
module attributes {stable_mosaic.version = 11 : i64} {
  func.func @_stack_step_kernel(%arg0: memref<8x128xf32, #tpu.memory_space<vmem>>, %arg1: memref<32x128xf32, #tpu.memory_space<vmem>>, %arg2: memref<32x128xf32, #tpu.memory_space<vmem>>, %arg3: memref<32x128xf32, #tpu.memory_space<vmem>>, %arg4: memref<32x128xf32, #tpu.memory_space<vmem>>, %arg5: memref<32x128xf32, #tpu.memory_space<vmem>>, %arg6: memref<224x648xf32, #tpu.memory_space<vmem>>, %arg7: memref<224x864xf32, #tpu.memory_space<vmem>>, %arg8: memref<64x576xf32, #tpu.memory_space<vmem>>, %arg9: memref<64x576xf32, #tpu.memory_space<vmem>>, %arg10: memref<32x32xf32, #tpu.memory_space<vmem>>, %arg11: memref<32x1xf32, #tpu.memory_space<vmem>>, %arg12: memref<32x576xf32, #tpu.memory_space<vmem>>, %arg13: memref<32x1xf32, #tpu.memory_space<vmem>>, %arg14: memref<4x32xf32, #tpu.memory_space<vmem>>, %arg15: memref<128x128xf32, #tpu.memory_space<vmem>>, %arg16: memref<9x128xf32, #tpu.memory_space<vmem>>, %arg17: memref<9x128xf32, #tpu.memory_space<vmem>>, %arg18: memref<4x128xf32, #tpu.memory_space<vmem>>, %arg19: memref<32x128xf32, #tpu.memory_space<vmem>>, %arg20: memref<32x128xf32, #tpu.memory_space<vmem>>, %arg21: memref<32x128xf32, #tpu.memory_space<vmem>>, %arg22: memref<32x128xf32, #tpu.memory_space<vmem>>, %arg23: memref<32x128xf32, #tpu.memory_space<vmem>>, %arg24: memref<32x128xf32, #tpu.memory_space<vmem>>, %arg25: memref<32x128xf32, #tpu.memory_space<vmem>>, %arg26: memref<32x128xf32, #tpu.memory_space<vmem>>, %arg27: memref<32x128xf32, #tpu.memory_space<vmem>>) attributes {dimension_semantics = [], scalar_prefetch = 0 : i64, scratch_operands = 0 : i64, tpu.core_type = #tpu.core_type<tc>} {
    %c0 = arith.constant 0 : index
    %c0_0 = arith.constant 0 : index
    %0 = vector.load %arg16[%c0, %c0_0] : memref<9x128xf32, #tpu.memory_space<vmem>>, vector<9x128xf32>
    %c0_1 = arith.constant 0 : index
    %c0_2 = arith.constant 0 : index
    %1 = vector.load %arg17[%c0_1, %c0_2] : memref<9x128xf32, #tpu.memory_space<vmem>>, vector<9x128xf32>
    %c0_3 = arith.constant 0 : index
    %c0_4 = arith.constant 0 : index
    %2 = vector.load %arg15[%c0_3, %c0_4] : memref<128x128xf32, #tpu.memory_space<vmem>>, vector<128x128xf32>
    %c0_5 = arith.constant 0 : index
    %c0_6 = arith.constant 0 : index
    %3 = vector.load %arg10[%c0_5, %c0_6] : memref<32x32xf32, #tpu.memory_space<vmem>>, vector<32x32xf32>
    %c0_7 = arith.constant 0 : index
    %c0_8 = arith.constant 0 : index
    %4 = vector.load %arg11[%c0_7, %c0_8] : memref<32x1xf32, #tpu.memory_space<vmem>>, vector<32x1xf32>
    %c0_9 = arith.constant 0 : index
    %c0_10 = arith.constant 0 : index
    %5 = vector.load %arg0[%c0_9, %c0_10] : memref<8x128xf32, #tpu.memory_space<vmem>>, vector<8x128xf32>
    %c0_11 = arith.constant 0 : index
    %c0_12 = arith.constant 0 : index
    %6 = vector.load %arg1[%c0_11, %c0_12] : memref<32x128xf32, #tpu.memory_space<vmem>>, vector<32x128xf32>
    %c0_13 = arith.constant 0 : index
    %c0_14 = arith.constant 0 : index
    %7 = vector.load %arg2[%c0_13, %c0_14] : memref<32x128xf32, #tpu.memory_space<vmem>>, vector<32x128xf32>
    %c0_15 = arith.constant 0 : index
    %c0_16 = arith.constant 0 : index
    %8 = vector.load %arg4[%c0_15, %c0_16] : memref<32x128xf32, #tpu.memory_space<vmem>>, vector<32x128xf32>
    %9 = tpu.concatenate %5, %7, %6 in 0 : vector<8x128xf32>, vector<32x128xf32>, vector<32x128xf32> -> vector<72x128xf32>
    %c9_i32 = arith.constant 9 : i32
    %10 = tpu.dynamic_rotate %9 by %c9_i32 dim 1 : vector<72x128xf32>, i32 -> vector<72x128xf32>
    %11 = vector.extract_strided_slice %0 {offsets = [0, 0], sizes = [1, 128], strides = [1, 1]} : vector<9x128xf32> to vector<1x128xf32>
    %12 = vector.broadcast %11 : vector<1x128xf32> to vector<72x128xf32>
    %13 = arith.mulf %10, %12 : vector<72x128xf32>
    %c8_i32 = arith.constant 8 : i32
    %14 = tpu.dynamic_rotate %9 by %c8_i32 dim 1 : vector<72x128xf32>, i32 -> vector<72x128xf32>
    %15 = vector.extract_strided_slice %0 {offsets = [1, 0], sizes = [1, 128], strides = [1, 1]} : vector<9x128xf32> to vector<1x128xf32>
    %16 = vector.broadcast %15 : vector<1x128xf32> to vector<72x128xf32>
    %17 = arith.mulf %14, %16 : vector<72x128xf32>
    %c7_i32 = arith.constant 7 : i32
    %18 = tpu.dynamic_rotate %9 by %c7_i32 dim 1 : vector<72x128xf32>, i32 -> vector<72x128xf32>
    %19 = vector.extract_strided_slice %0 {offsets = [2, 0], sizes = [1, 128], strides = [1, 1]} : vector<9x128xf32> to vector<1x128xf32>
    %20 = vector.broadcast %19 : vector<1x128xf32> to vector<72x128xf32>
    %21 = arith.mulf %18, %20 : vector<72x128xf32>
    %c1_i32 = arith.constant 1 : i32
    %22 = tpu.dynamic_rotate %9 by %c1_i32 dim 1 : vector<72x128xf32>, i32 -> vector<72x128xf32>
    %23 = vector.extract_strided_slice %0 {offsets = [3, 0], sizes = [1, 128], strides = [1, 1]} : vector<9x128xf32> to vector<1x128xf32>
    %24 = vector.broadcast %23 : vector<1x128xf32> to vector<72x128xf32>
    %25 = arith.mulf %22, %24 : vector<72x128xf32>
    %c127_i32 = arith.constant 127 : i32
    %26 = tpu.dynamic_rotate %9 by %c127_i32 dim 1 : vector<72x128xf32>, i32 -> vector<72x128xf32>
    %27 = vector.extract_strided_slice %0 {offsets = [5, 0], sizes = [1, 128], strides = [1, 1]} : vector<9x128xf32> to vector<1x128xf32>
    %28 = vector.broadcast %27 : vector<1x128xf32> to vector<72x128xf32>
    %29 = arith.mulf %26, %28 : vector<72x128xf32>
    %c121_i32 = arith.constant 121 : i32
    %30 = tpu.dynamic_rotate %9 by %c121_i32 dim 1 : vector<72x128xf32>, i32 -> vector<72x128xf32>
    %31 = vector.extract_strided_slice %0 {offsets = [6, 0], sizes = [1, 128], strides = [1, 1]} : vector<9x128xf32> to vector<1x128xf32>
    %32 = vector.broadcast %31 : vector<1x128xf32> to vector<72x128xf32>
    %33 = arith.mulf %30, %32 : vector<72x128xf32>
    %c120_i32 = arith.constant 120 : i32
    %34 = tpu.dynamic_rotate %9 by %c120_i32 dim 1 : vector<72x128xf32>, i32 -> vector<72x128xf32>
    %35 = vector.extract_strided_slice %0 {offsets = [7, 0], sizes = [1, 128], strides = [1, 1]} : vector<9x128xf32> to vector<1x128xf32>
    %36 = vector.broadcast %35 : vector<1x128xf32> to vector<72x128xf32>
    %37 = arith.mulf %34, %36 : vector<72x128xf32>
    %c119_i32 = arith.constant 119 : i32
    %38 = tpu.dynamic_rotate %9 by %c119_i32 dim 1 : vector<72x128xf32>, i32 -> vector<72x128xf32>
    %39 = vector.extract_strided_slice %0 {offsets = [8, 0], sizes = [1, 128], strides = [1, 1]} : vector<9x128xf32> to vector<1x128xf32>
    %40 = vector.broadcast %39 : vector<1x128xf32> to vector<72x128xf32>
    %41 = arith.mulf %38, %40 : vector<72x128xf32>
    %42 = tpu.concatenate %13, %17, %21, %25, %9, %29, %33, %37, %41 in 0 : vector<72x128xf32>, vector<72x128xf32>, vector<72x128xf32>, vector<72x128xf32>, vector<72x128xf32>, vector<72x128xf32>, vector<72x128xf32>, vector<72x128xf32>, vector<72x128xf32> -> vector<648x128xf32>
    %c0_17 = arith.constant 0 : index
    %c0_18 = arith.constant 0 : index
    %43 = vector.load %arg6[%c0_17, %c0_18] : memref<224x648xf32, #tpu.memory_space<vmem>>, vector<224x648xf32>
    %cst = arith.constant dense<0.000000e+00> : vector<224x128xf32>
    %44 = tpu.matmul %43, %42, %cst {dimension_numbers = #tpu.dot_dimension_numbers<[1], [0], [0], [1], [0, 0, 1, 1], [], []>} : vector<224x648xf32>, vector<648x128xf32>, vector<224x128xf32> -> vector<224x128xf32>
    %45 = vector.extract_strided_slice %44 {offsets = [0, 0], sizes = [32, 128], strides = [1, 1]} : vector<224x128xf32> to vector<32x128xf32>
    %46 = arith.negf %45 : vector<32x128xf32>
    %47 = math.exp %46 : vector<32x128xf32>
    %cst_19 = arith.constant 1.000000e+00 : f32
    %48 = vector.broadcast %cst_19 : f32 to vector<32x128xf32>
    %49 = arith.addf %48, %47 : vector<32x128xf32>
    %50 = arith.divf %48, %49 : vector<32x128xf32>
    %51 = vector.extract_strided_slice %44 {offsets = [32, 0], sizes = [32, 128], strides = [1, 1]} : vector<224x128xf32> to vector<32x128xf32>
    %cst_20 = arith.constant 1.000000e+00 : f32
    %52 = vector.broadcast %cst_20 : f32 to vector<32x128xf32>
    %53 = arith.addf %51, %52 : vector<32x128xf32>
    %54 = arith.negf %53 : vector<32x128xf32>
    %55 = math.exp %54 : vector<32x128xf32>
    %cst_21 = arith.constant 1.000000e+00 : f32
    %56 = vector.broadcast %cst_21 : f32 to vector<32x128xf32>
    %57 = arith.addf %56, %55 : vector<32x128xf32>
    %58 = arith.divf %56, %57 : vector<32x128xf32>
    %59 = vector.extract_strided_slice %44 {offsets = [64, 0], sizes = [32, 128], strides = [1, 1]} : vector<224x128xf32> to vector<32x128xf32>
    %60 = math.tanh %59 : vector<32x128xf32>
    %61 = arith.mulf %50, %60 : vector<32x128xf32>
    %62 = arith.mulf %58, %8 : vector<32x128xf32>
    %63 = arith.addf %62, %61 : vector<32x128xf32>
    %64 = vector.extract_strided_slice %44 {offsets = [96, 0], sizes = [32, 128], strides = [1, 1]} : vector<224x128xf32> to vector<32x128xf32>
    %65 = arith.negf %64 : vector<32x128xf32>
    %66 = math.exp %65 : vector<32x128xf32>
    %cst_22 = arith.constant 1.000000e+00 : f32
    %67 = vector.broadcast %cst_22 : f32 to vector<32x128xf32>
    %68 = arith.addf %67, %66 : vector<32x128xf32>
    %69 = arith.divf %67, %68 : vector<32x128xf32>
    %70 = vector.extract_strided_slice %44 {offsets = [128, 0], sizes = [32, 128], strides = [1, 1]} : vector<224x128xf32> to vector<32x128xf32>
    %cst_23 = arith.constant 1.000000e+00 : f32
    %71 = vector.broadcast %cst_23 : f32 to vector<32x128xf32>
    %72 = arith.addf %70, %71 : vector<32x128xf32>
    %73 = arith.negf %72 : vector<32x128xf32>
    %74 = math.exp %73 : vector<32x128xf32>
    %cst_24 = arith.constant 1.000000e+00 : f32
    %75 = vector.broadcast %cst_24 : f32 to vector<32x128xf32>
    %76 = arith.addf %75, %74 : vector<32x128xf32>
    %77 = arith.divf %75, %76 : vector<32x128xf32>
    %78 = vector.extract_strided_slice %44 {offsets = [160, 0], sizes = [32, 128], strides = [1, 1]} : vector<224x128xf32> to vector<32x128xf32>
    %79 = math.tanh %78 : vector<32x128xf32>
    %80 = arith.mulf %69, %79 : vector<32x128xf32>
    %81 = arith.mulf %77, %6 : vector<32x128xf32>
    %82 = arith.addf %81, %80 : vector<32x128xf32>
    %83 = tpu.concatenate %63, %82 in 0 : vector<32x128xf32>, vector<32x128xf32> -> vector<64x128xf32>
    %c9_i32_25 = arith.constant 9 : i32
    %84 = tpu.dynamic_rotate %83 by %c9_i32_25 dim 1 : vector<64x128xf32>, i32 -> vector<64x128xf32>
    %85 = vector.extract_strided_slice %0 {offsets = [0, 0], sizes = [1, 128], strides = [1, 1]} : vector<9x128xf32> to vector<1x128xf32>
    %86 = vector.broadcast %85 : vector<1x128xf32> to vector<64x128xf32>
    %87 = arith.mulf %84, %86 : vector<64x128xf32>
    %c8_i32_26 = arith.constant 8 : i32
    %88 = tpu.dynamic_rotate %83 by %c8_i32_26 dim 1 : vector<64x128xf32>, i32 -> vector<64x128xf32>
    %89 = vector.extract_strided_slice %0 {offsets = [1, 0], sizes = [1, 128], strides = [1, 1]} : vector<9x128xf32> to vector<1x128xf32>
    %90 = vector.broadcast %89 : vector<1x128xf32> to vector<64x128xf32>
    %91 = arith.mulf %88, %90 : vector<64x128xf32>
    %c7_i32_27 = arith.constant 7 : i32
    %92 = tpu.dynamic_rotate %83 by %c7_i32_27 dim 1 : vector<64x128xf32>, i32 -> vector<64x128xf32>
    %93 = vector.extract_strided_slice %0 {offsets = [2, 0], sizes = [1, 128], strides = [1, 1]} : vector<9x128xf32> to vector<1x128xf32>
    %94 = vector.broadcast %93 : vector<1x128xf32> to vector<64x128xf32>
    %95 = arith.mulf %92, %94 : vector<64x128xf32>
    %c1_i32_28 = arith.constant 1 : i32
    %96 = tpu.dynamic_rotate %83 by %c1_i32_28 dim 1 : vector<64x128xf32>, i32 -> vector<64x128xf32>
    %97 = vector.extract_strided_slice %0 {offsets = [3, 0], sizes = [1, 128], strides = [1, 1]} : vector<9x128xf32> to vector<1x128xf32>
    %98 = vector.broadcast %97 : vector<1x128xf32> to vector<64x128xf32>
    %99 = arith.mulf %96, %98 : vector<64x128xf32>
    %c127_i32_29 = arith.constant 127 : i32
    %100 = tpu.dynamic_rotate %83 by %c127_i32_29 dim 1 : vector<64x128xf32>, i32 -> vector<64x128xf32>
    %101 = vector.extract_strided_slice %0 {offsets = [5, 0], sizes = [1, 128], strides = [1, 1]} : vector<9x128xf32> to vector<1x128xf32>
    %102 = vector.broadcast %101 : vector<1x128xf32> to vector<64x128xf32>
    %103 = arith.mulf %100, %102 : vector<64x128xf32>
    %c121_i32_30 = arith.constant 121 : i32
    %104 = tpu.dynamic_rotate %83 by %c121_i32_30 dim 1 : vector<64x128xf32>, i32 -> vector<64x128xf32>
    %105 = vector.extract_strided_slice %0 {offsets = [6, 0], sizes = [1, 128], strides = [1, 1]} : vector<9x128xf32> to vector<1x128xf32>
    %106 = vector.broadcast %105 : vector<1x128xf32> to vector<64x128xf32>
    %107 = arith.mulf %104, %106 : vector<64x128xf32>
    %c120_i32_31 = arith.constant 120 : i32
    %108 = tpu.dynamic_rotate %83 by %c120_i32_31 dim 1 : vector<64x128xf32>, i32 -> vector<64x128xf32>
    %109 = vector.extract_strided_slice %0 {offsets = [7, 0], sizes = [1, 128], strides = [1, 1]} : vector<9x128xf32> to vector<1x128xf32>
    %110 = vector.broadcast %109 : vector<1x128xf32> to vector<64x128xf32>
    %111 = arith.mulf %108, %110 : vector<64x128xf32>
    %c119_i32_32 = arith.constant 119 : i32
    %112 = tpu.dynamic_rotate %83 by %c119_i32_32 dim 1 : vector<64x128xf32>, i32 -> vector<64x128xf32>
    %113 = vector.extract_strided_slice %0 {offsets = [8, 0], sizes = [1, 128], strides = [1, 1]} : vector<9x128xf32> to vector<1x128xf32>
    %114 = vector.broadcast %113 : vector<1x128xf32> to vector<64x128xf32>
    %115 = arith.mulf %112, %114 : vector<64x128xf32>
    %116 = tpu.concatenate %87, %91, %95, %99, %83, %103, %107, %111, %115 in 0 : vector<64x128xf32>, vector<64x128xf32>, vector<64x128xf32>, vector<64x128xf32>, vector<64x128xf32>, vector<64x128xf32>, vector<64x128xf32>, vector<64x128xf32>, vector<64x128xf32> -> vector<576x128xf32>
    %c0_33 = arith.constant 0 : index
    %c0_34 = arith.constant 0 : index
    %117 = vector.load %arg8[%c0_33, %c0_34] : memref<64x576xf32, #tpu.memory_space<vmem>>, vector<64x576xf32>
    %cst_35 = arith.constant dense<0.000000e+00> : vector<64x128xf32>
    %118 = tpu.matmul %117, %116, %cst_35 {dimension_numbers = #tpu.dot_dimension_numbers<[1], [0], [0], [1], [0, 0, 1, 1], [], []>} : vector<64x576xf32>, vector<576x128xf32>, vector<64x128xf32> -> vector<64x128xf32>
    %119 = vector.extract_strided_slice %44 {offsets = [192, 0], sizes = [32, 128], strides = [1, 1]} : vector<224x128xf32> to vector<32x128xf32>
    %120 = vector.extract_strided_slice %118 {offsets = [0, 0], sizes = [32, 128], strides = [1, 1]} : vector<64x128xf32> to vector<32x128xf32>
    %121 = arith.addf %119, %120 : vector<32x128xf32>
    %122 = arith.negf %121 : vector<32x128xf32>
    %123 = math.exp %122 : vector<32x128xf32>
    %cst_36 = arith.constant 1.000000e+00 : f32
    %124 = vector.broadcast %cst_36 : f32 to vector<32x128xf32>
    %125 = arith.addf %124, %123 : vector<32x128xf32>
    %126 = arith.divf %124, %125 : vector<32x128xf32>
    %127 = vector.extract_strided_slice %118 {offsets = [32, 0], sizes = [32, 128], strides = [1, 1]} : vector<64x128xf32> to vector<32x128xf32>
    %128 = math.tanh %127 : vector<32x128xf32>
    %129 = arith.mulf %126, %128 : vector<32x128xf32>
    %c0_37 = arith.constant 0 : index
    %c0_38 = arith.constant 0 : index
    %130 = vector.load %arg19[%c0_37, %c0_38] : memref<32x128xf32, #tpu.memory_space<vmem>>, vector<32x128xf32>
    tpu.vector_store %arg19[%c0_37, %c0_38], %129 {strides = array<i32>} : memref<32x128xf32, #tpu.memory_space<vmem>>, vector<32x128xf32>,
    %c0_39 = arith.constant 0 : index
    %c0_40 = arith.constant 0 : index
    %131 = vector.load %arg21[%c0_39, %c0_40] : memref<32x128xf32, #tpu.memory_space<vmem>>, vector<32x128xf32>
    tpu.vector_store %arg21[%c0_39, %c0_40], %63 {strides = array<i32>} : memref<32x128xf32, #tpu.memory_space<vmem>>, vector<32x128xf32>,
    %cst_41 = arith.constant dense<0.000000e+00> : vector<32x128xf32>
    %132 = tpu.matmul %3, %61, %cst_41 {dimension_numbers = #tpu.dot_dimension_numbers<[1], [0], [0], [1], [0, 0, 1, 1], [], []>} : vector<32x32xf32>, vector<32x128xf32>, vector<32x128xf32> -> vector<32x128xf32>
    %133 = vector.broadcast %4 : vector<32x1xf32> to vector<32x128xf32>
    %134 = arith.addf %132, %133 : vector<32x128xf32>
    %135 = arith.mulf %134, %134 : vector<32x128xf32>
    %cst_42 = arith.constant dense<0.000000e+00> : vector<32x128xf32>
    %136 = tpu.matmul %135, %2, %cst_42 {dimension_numbers = #tpu.dot_dimension_numbers<[1], [0], [0], [1], [0, 0, 1, 1], [], []>} : vector<32x128xf32>, vector<128x128xf32>, vector<32x128xf32> -> vector<32x128xf32>
    %cst_43 = arith.constant 1.000000e-24 : f32
    %137 = vector.broadcast %cst_43 : f32 to vector<32x128xf32>
    %138 = arith.maximumf %136, %137 : vector<32x128xf32>
    %139 = math.rsqrt %138 : vector<32x128xf32>
    %140 = arith.mulf %134, %139 : vector<32x128xf32>
    %c0_44 = arith.constant 0 : index
    %c0_45 = arith.constant 0 : index
    %141 = vector.load %arg24[%c0_44, %c0_45] : memref<32x128xf32, #tpu.memory_space<vmem>>, vector<32x128xf32>
    tpu.vector_store %arg24[%c0_44, %c0_45], %140 {strides = array<i32>} : memref<32x128xf32, #tpu.memory_space<vmem>>, vector<32x128xf32>,
    %cst_46 = arith.constant dense<0.000000e+00> : vector<32x128xf32>
    %142 = tpu.matmul %3, %80, %cst_46 {dimension_numbers = #tpu.dot_dimension_numbers<[1], [0], [0], [1], [0, 0, 1, 1], [], []>} : vector<32x32xf32>, vector<32x128xf32>, vector<32x128xf32> -> vector<32x128xf32>
    %143 = vector.broadcast %4 : vector<32x1xf32> to vector<32x128xf32>
    %144 = arith.addf %142, %143 : vector<32x128xf32>
    %145 = arith.mulf %144, %144 : vector<32x128xf32>
    %cst_47 = arith.constant dense<0.000000e+00> : vector<32x128xf32>
    %146 = tpu.matmul %145, %2, %cst_47 {dimension_numbers = #tpu.dot_dimension_numbers<[1], [0], [0], [1], [0, 0, 1, 1], [], []>} : vector<32x128xf32>, vector<128x128xf32>, vector<32x128xf32> -> vector<32x128xf32>
    %cst_48 = arith.constant 1.000000e-24 : f32
    %147 = vector.broadcast %cst_48 : f32 to vector<32x128xf32>
    %148 = arith.maximumf %146, %147 : vector<32x128xf32>
    %149 = math.rsqrt %148 : vector<32x128xf32>
    %150 = arith.mulf %144, %149 : vector<32x128xf32>
    %c0_49 = arith.constant 0 : index
    %c0_50 = arith.constant 0 : index
    %151 = vector.load %arg26[%c0_49, %c0_50] : memref<32x128xf32, #tpu.memory_space<vmem>>, vector<32x128xf32>
    tpu.vector_store %arg26[%c0_49, %c0_50], %150 {strides = array<i32>} : memref<32x128xf32, #tpu.memory_space<vmem>>, vector<32x128xf32>,
    %c0_51 = arith.constant 0 : index
    %c0_52 = arith.constant 0 : index
    %152 = vector.load %arg3[%c0_51, %c0_52] : memref<32x128xf32, #tpu.memory_space<vmem>>, vector<32x128xf32>
    %c0_53 = arith.constant 0 : index
    %c0_54 = arith.constant 0 : index
    %153 = vector.load %arg5[%c0_53, %c0_54] : memref<32x128xf32, #tpu.memory_space<vmem>>, vector<32x128xf32>
    %154 = tpu.concatenate %129, %152, %82 in 0 : vector<32x128xf32>, vector<32x128xf32>, vector<32x128xf32> -> vector<96x128xf32>
    %c9_i32_55 = arith.constant 9 : i32
    %155 = tpu.dynamic_rotate %154 by %c9_i32_55 dim 1 : vector<96x128xf32>, i32 -> vector<96x128xf32>
    %156 = vector.extract_strided_slice %0 {offsets = [0, 0], sizes = [1, 128], strides = [1, 1]} : vector<9x128xf32> to vector<1x128xf32>
    %157 = vector.broadcast %156 : vector<1x128xf32> to vector<96x128xf32>
    %158 = arith.mulf %155, %157 : vector<96x128xf32>
    %c8_i32_56 = arith.constant 8 : i32
    %159 = tpu.dynamic_rotate %154 by %c8_i32_56 dim 1 : vector<96x128xf32>, i32 -> vector<96x128xf32>
    %160 = vector.extract_strided_slice %0 {offsets = [1, 0], sizes = [1, 128], strides = [1, 1]} : vector<9x128xf32> to vector<1x128xf32>
    %161 = vector.broadcast %160 : vector<1x128xf32> to vector<96x128xf32>
    %162 = arith.mulf %159, %161 : vector<96x128xf32>
    %c7_i32_57 = arith.constant 7 : i32
    %163 = tpu.dynamic_rotate %154 by %c7_i32_57 dim 1 : vector<96x128xf32>, i32 -> vector<96x128xf32>
    %164 = vector.extract_strided_slice %0 {offsets = [2, 0], sizes = [1, 128], strides = [1, 1]} : vector<9x128xf32> to vector<1x128xf32>
    %165 = vector.broadcast %164 : vector<1x128xf32> to vector<96x128xf32>
    %166 = arith.mulf %163, %165 : vector<96x128xf32>
    %c1_i32_58 = arith.constant 1 : i32
    %167 = tpu.dynamic_rotate %154 by %c1_i32_58 dim 1 : vector<96x128xf32>, i32 -> vector<96x128xf32>
    %168 = vector.extract_strided_slice %0 {offsets = [3, 0], sizes = [1, 128], strides = [1, 1]} : vector<9x128xf32> to vector<1x128xf32>
    %169 = vector.broadcast %168 : vector<1x128xf32> to vector<96x128xf32>
    %170 = arith.mulf %167, %169 : vector<96x128xf32>
    %c127_i32_59 = arith.constant 127 : i32
    %171 = tpu.dynamic_rotate %154 by %c127_i32_59 dim 1 : vector<96x128xf32>, i32 -> vector<96x128xf32>
    %172 = vector.extract_strided_slice %0 {offsets = [5, 0], sizes = [1, 128], strides = [1, 1]} : vector<9x128xf32> to vector<1x128xf32>
    %173 = vector.broadcast %172 : vector<1x128xf32> to vector<96x128xf32>
    %174 = arith.mulf %171, %173 : vector<96x128xf32>
    %c121_i32_60 = arith.constant 121 : i32
    %175 = tpu.dynamic_rotate %154 by %c121_i32_60 dim 1 : vector<96x128xf32>, i32 -> vector<96x128xf32>
    %176 = vector.extract_strided_slice %0 {offsets = [6, 0], sizes = [1, 128], strides = [1, 1]} : vector<9x128xf32> to vector<1x128xf32>
    %177 = vector.broadcast %176 : vector<1x128xf32> to vector<96x128xf32>
    %178 = arith.mulf %175, %177 : vector<96x128xf32>
    %c120_i32_61 = arith.constant 120 : i32
    %179 = tpu.dynamic_rotate %154 by %c120_i32_61 dim 1 : vector<96x128xf32>, i32 -> vector<96x128xf32>
    %180 = vector.extract_strided_slice %0 {offsets = [7, 0], sizes = [1, 128], strides = [1, 1]} : vector<9x128xf32> to vector<1x128xf32>
    %181 = vector.broadcast %180 : vector<1x128xf32> to vector<96x128xf32>
    %182 = arith.mulf %179, %181 : vector<96x128xf32>
    %c119_i32_62 = arith.constant 119 : i32
    %183 = tpu.dynamic_rotate %154 by %c119_i32_62 dim 1 : vector<96x128xf32>, i32 -> vector<96x128xf32>
    %184 = vector.extract_strided_slice %0 {offsets = [8, 0], sizes = [1, 128], strides = [1, 1]} : vector<9x128xf32> to vector<1x128xf32>
    %185 = vector.broadcast %184 : vector<1x128xf32> to vector<96x128xf32>
    %186 = arith.mulf %183, %185 : vector<96x128xf32>
    %187 = tpu.concatenate %158, %162, %166, %170, %154, %174, %178, %182, %186 in 0 : vector<96x128xf32>, vector<96x128xf32>, vector<96x128xf32>, vector<96x128xf32>, vector<96x128xf32>, vector<96x128xf32>, vector<96x128xf32>, vector<96x128xf32>, vector<96x128xf32> -> vector<864x128xf32>
    %c0_63 = arith.constant 0 : index
    %c0_64 = arith.constant 0 : index
    %188 = vector.load %arg7[%c0_63, %c0_64] : memref<224x864xf32, #tpu.memory_space<vmem>>, vector<224x864xf32>
    %cst_65 = arith.constant dense<0.000000e+00> : vector<224x128xf32>
    %189 = tpu.matmul %188, %187, %cst_65 {dimension_numbers = #tpu.dot_dimension_numbers<[1], [0], [0], [1], [0, 0, 1, 1], [], []>} : vector<224x864xf32>, vector<864x128xf32>, vector<224x128xf32> -> vector<224x128xf32>
    %190 = vector.extract_strided_slice %189 {offsets = [0, 0], sizes = [32, 128], strides = [1, 1]} : vector<224x128xf32> to vector<32x128xf32>
    %191 = arith.negf %190 : vector<32x128xf32>
    %192 = math.exp %191 : vector<32x128xf32>
    %cst_66 = arith.constant 1.000000e+00 : f32
    %193 = vector.broadcast %cst_66 : f32 to vector<32x128xf32>
    %194 = arith.addf %193, %192 : vector<32x128xf32>
    %195 = arith.divf %193, %194 : vector<32x128xf32>
    %196 = vector.extract_strided_slice %189 {offsets = [32, 0], sizes = [32, 128], strides = [1, 1]} : vector<224x128xf32> to vector<32x128xf32>
    %cst_67 = arith.constant 1.000000e+00 : f32
    %197 = vector.broadcast %cst_67 : f32 to vector<32x128xf32>
    %198 = arith.addf %196, %197 : vector<32x128xf32>
    %199 = arith.negf %198 : vector<32x128xf32>
    %200 = math.exp %199 : vector<32x128xf32>
    %cst_68 = arith.constant 1.000000e+00 : f32
    %201 = vector.broadcast %cst_68 : f32 to vector<32x128xf32>
    %202 = arith.addf %201, %200 : vector<32x128xf32>
    %203 = arith.divf %201, %202 : vector<32x128xf32>
    %204 = vector.extract_strided_slice %189 {offsets = [64, 0], sizes = [32, 128], strides = [1, 1]} : vector<224x128xf32> to vector<32x128xf32>
    %205 = math.tanh %204 : vector<32x128xf32>
    %206 = arith.mulf %195, %205 : vector<32x128xf32>
    %207 = arith.mulf %203, %153 : vector<32x128xf32>
    %208 = arith.addf %207, %206 : vector<32x128xf32>
    %209 = vector.extract_strided_slice %189 {offsets = [96, 0], sizes = [32, 128], strides = [1, 1]} : vector<224x128xf32> to vector<32x128xf32>
    %210 = arith.negf %209 : vector<32x128xf32>
    %211 = math.exp %210 : vector<32x128xf32>
    %cst_69 = arith.constant 1.000000e+00 : f32
    %212 = vector.broadcast %cst_69 : f32 to vector<32x128xf32>
    %213 = arith.addf %212, %211 : vector<32x128xf32>
    %214 = arith.divf %212, %213 : vector<32x128xf32>
    %215 = vector.extract_strided_slice %189 {offsets = [128, 0], sizes = [32, 128], strides = [1, 1]} : vector<224x128xf32> to vector<32x128xf32>
    %cst_70 = arith.constant 1.000000e+00 : f32
    %216 = vector.broadcast %cst_70 : f32 to vector<32x128xf32>
    %217 = arith.addf %215, %216 : vector<32x128xf32>
    %218 = arith.negf %217 : vector<32x128xf32>
    %219 = math.exp %218 : vector<32x128xf32>
    %cst_71 = arith.constant 1.000000e+00 : f32
    %220 = vector.broadcast %cst_71 : f32 to vector<32x128xf32>
    %221 = arith.addf %220, %219 : vector<32x128xf32>
    %222 = arith.divf %220, %221 : vector<32x128xf32>
    %223 = vector.extract_strided_slice %189 {offsets = [160, 0], sizes = [32, 128], strides = [1, 1]} : vector<224x128xf32> to vector<32x128xf32>
    %224 = math.tanh %223 : vector<32x128xf32>
    %225 = arith.mulf %214, %224 : vector<32x128xf32>
    %226 = arith.mulf %222, %82 : vector<32x128xf32>
    %227 = arith.addf %226, %225 : vector<32x128xf32>
    %228 = tpu.concatenate %208, %227 in 0 : vector<32x128xf32>, vector<32x128xf32> -> vector<64x128xf32>
    %c9_i32_72 = arith.constant 9 : i32
    %229 = tpu.dynamic_rotate %228 by %c9_i32_72 dim 1 : vector<64x128xf32>, i32 -> vector<64x128xf32>
    %230 = vector.extract_strided_slice %0 {offsets = [0, 0], sizes = [1, 128], strides = [1, 1]} : vector<9x128xf32> to vector<1x128xf32>
    %231 = vector.broadcast %230 : vector<1x128xf32> to vector<64x128xf32>
    %232 = arith.mulf %229, %231 : vector<64x128xf32>
    %c8_i32_73 = arith.constant 8 : i32
    %233 = tpu.dynamic_rotate %228 by %c8_i32_73 dim 1 : vector<64x128xf32>, i32 -> vector<64x128xf32>
    %234 = vector.extract_strided_slice %0 {offsets = [1, 0], sizes = [1, 128], strides = [1, 1]} : vector<9x128xf32> to vector<1x128xf32>
    %235 = vector.broadcast %234 : vector<1x128xf32> to vector<64x128xf32>
    %236 = arith.mulf %233, %235 : vector<64x128xf32>
    %c7_i32_74 = arith.constant 7 : i32
    %237 = tpu.dynamic_rotate %228 by %c7_i32_74 dim 1 : vector<64x128xf32>, i32 -> vector<64x128xf32>
    %238 = vector.extract_strided_slice %0 {offsets = [2, 0], sizes = [1, 128], strides = [1, 1]} : vector<9x128xf32> to vector<1x128xf32>
    %239 = vector.broadcast %238 : vector<1x128xf32> to vector<64x128xf32>
    %240 = arith.mulf %237, %239 : vector<64x128xf32>
    %c1_i32_75 = arith.constant 1 : i32
    %241 = tpu.dynamic_rotate %228 by %c1_i32_75 dim 1 : vector<64x128xf32>, i32 -> vector<64x128xf32>
    %242 = vector.extract_strided_slice %0 {offsets = [3, 0], sizes = [1, 128], strides = [1, 1]} : vector<9x128xf32> to vector<1x128xf32>
    %243 = vector.broadcast %242 : vector<1x128xf32> to vector<64x128xf32>
    %244 = arith.mulf %241, %243 : vector<64x128xf32>
    %c127_i32_76 = arith.constant 127 : i32
    %245 = tpu.dynamic_rotate %228 by %c127_i32_76 dim 1 : vector<64x128xf32>, i32 -> vector<64x128xf32>
    %246 = vector.extract_strided_slice %0 {offsets = [5, 0], sizes = [1, 128], strides = [1, 1]} : vector<9x128xf32> to vector<1x128xf32>
    %247 = vector.broadcast %246 : vector<1x128xf32> to vector<64x128xf32>
    %248 = arith.mulf %245, %247 : vector<64x128xf32>
    %c121_i32_77 = arith.constant 121 : i32
    %249 = tpu.dynamic_rotate %228 by %c121_i32_77 dim 1 : vector<64x128xf32>, i32 -> vector<64x128xf32>
    %250 = vector.extract_strided_slice %0 {offsets = [6, 0], sizes = [1, 128], strides = [1, 1]} : vector<9x128xf32> to vector<1x128xf32>
    %251 = vector.broadcast %250 : vector<1x128xf32> to vector<64x128xf32>
    %252 = arith.mulf %249, %251 : vector<64x128xf32>
    %c120_i32_78 = arith.constant 120 : i32
    %253 = tpu.dynamic_rotate %228 by %c120_i32_78 dim 1 : vector<64x128xf32>, i32 -> vector<64x128xf32>
    %254 = vector.extract_strided_slice %0 {offsets = [7, 0], sizes = [1, 128], strides = [1, 1]} : vector<9x128xf32> to vector<1x128xf32>
    %255 = vector.broadcast %254 : vector<1x128xf32> to vector<64x128xf32>
    %256 = arith.mulf %253, %255 : vector<64x128xf32>
    %c119_i32_79 = arith.constant 119 : i32
    %257 = tpu.dynamic_rotate %228 by %c119_i32_79 dim 1 : vector<64x128xf32>, i32 -> vector<64x128xf32>
    %258 = vector.extract_strided_slice %0 {offsets = [8, 0], sizes = [1, 128], strides = [1, 1]} : vector<9x128xf32> to vector<1x128xf32>
    %259 = vector.broadcast %258 : vector<1x128xf32> to vector<64x128xf32>
    %260 = arith.mulf %257, %259 : vector<64x128xf32>
    %261 = tpu.concatenate %232, %236, %240, %244, %228, %248, %252, %256, %260 in 0 : vector<64x128xf32>, vector<64x128xf32>, vector<64x128xf32>, vector<64x128xf32>, vector<64x128xf32>, vector<64x128xf32>, vector<64x128xf32>, vector<64x128xf32>, vector<64x128xf32> -> vector<576x128xf32>
    %c0_80 = arith.constant 0 : index
    %c0_81 = arith.constant 0 : index
    %262 = vector.load %arg9[%c0_80, %c0_81] : memref<64x576xf32, #tpu.memory_space<vmem>>, vector<64x576xf32>
    %cst_82 = arith.constant dense<0.000000e+00> : vector<64x128xf32>
    %263 = tpu.matmul %262, %261, %cst_82 {dimension_numbers = #tpu.dot_dimension_numbers<[1], [0], [0], [1], [0, 0, 1, 1], [], []>} : vector<64x576xf32>, vector<576x128xf32>, vector<64x128xf32> -> vector<64x128xf32>
    %264 = vector.extract_strided_slice %189 {offsets = [192, 0], sizes = [32, 128], strides = [1, 1]} : vector<224x128xf32> to vector<32x128xf32>
    %265 = vector.extract_strided_slice %263 {offsets = [0, 0], sizes = [32, 128], strides = [1, 1]} : vector<64x128xf32> to vector<32x128xf32>
    %266 = arith.addf %264, %265 : vector<32x128xf32>
    %267 = arith.negf %266 : vector<32x128xf32>
    %268 = math.exp %267 : vector<32x128xf32>
    %cst_83 = arith.constant 1.000000e+00 : f32
    %269 = vector.broadcast %cst_83 : f32 to vector<32x128xf32>
    %270 = arith.addf %269, %268 : vector<32x128xf32>
    %271 = arith.divf %269, %270 : vector<32x128xf32>
    %272 = vector.extract_strided_slice %263 {offsets = [32, 0], sizes = [32, 128], strides = [1, 1]} : vector<64x128xf32> to vector<32x128xf32>
    %273 = math.tanh %272 : vector<32x128xf32>
    %274 = arith.mulf %271, %273 : vector<32x128xf32>
    %c0_84 = arith.constant 0 : index
    %c0_85 = arith.constant 0 : index
    %275 = vector.load %arg20[%c0_84, %c0_85] : memref<32x128xf32, #tpu.memory_space<vmem>>, vector<32x128xf32>
    tpu.vector_store %arg20[%c0_84, %c0_85], %274 {strides = array<i32>} : memref<32x128xf32, #tpu.memory_space<vmem>>, vector<32x128xf32>,
    %c0_86 = arith.constant 0 : index
    %c0_87 = arith.constant 0 : index
    %276 = vector.load %arg22[%c0_86, %c0_87] : memref<32x128xf32, #tpu.memory_space<vmem>>, vector<32x128xf32>
    tpu.vector_store %arg22[%c0_86, %c0_87], %208 {strides = array<i32>} : memref<32x128xf32, #tpu.memory_space<vmem>>, vector<32x128xf32>,
    %cst_88 = arith.constant dense<0.000000e+00> : vector<32x128xf32>
    %277 = tpu.matmul %3, %206, %cst_88 {dimension_numbers = #tpu.dot_dimension_numbers<[1], [0], [0], [1], [0, 0, 1, 1], [], []>} : vector<32x32xf32>, vector<32x128xf32>, vector<32x128xf32> -> vector<32x128xf32>
    %278 = vector.broadcast %4 : vector<32x1xf32> to vector<32x128xf32>
    %279 = arith.addf %277, %278 : vector<32x128xf32>
    %280 = arith.mulf %279, %279 : vector<32x128xf32>
    %cst_89 = arith.constant dense<0.000000e+00> : vector<32x128xf32>
    %281 = tpu.matmul %280, %2, %cst_89 {dimension_numbers = #tpu.dot_dimension_numbers<[1], [0], [0], [1], [0, 0, 1, 1], [], []>} : vector<32x128xf32>, vector<128x128xf32>, vector<32x128xf32> -> vector<32x128xf32>
    %cst_90 = arith.constant 1.000000e-24 : f32
    %282 = vector.broadcast %cst_90 : f32 to vector<32x128xf32>
    %283 = arith.maximumf %281, %282 : vector<32x128xf32>
    %284 = math.rsqrt %283 : vector<32x128xf32>
    %285 = arith.mulf %279, %284 : vector<32x128xf32>
    %c0_91 = arith.constant 0 : index
    %c0_92 = arith.constant 0 : index
    %286 = vector.load %arg25[%c0_91, %c0_92] : memref<32x128xf32, #tpu.memory_space<vmem>>, vector<32x128xf32>
    tpu.vector_store %arg25[%c0_91, %c0_92], %285 {strides = array<i32>} : memref<32x128xf32, #tpu.memory_space<vmem>>, vector<32x128xf32>,
    %cst_93 = arith.constant dense<0.000000e+00> : vector<32x128xf32>
    %287 = tpu.matmul %3, %225, %cst_93 {dimension_numbers = #tpu.dot_dimension_numbers<[1], [0], [0], [1], [0, 0, 1, 1], [], []>} : vector<32x32xf32>, vector<32x128xf32>, vector<32x128xf32> -> vector<32x128xf32>
    %288 = vector.broadcast %4 : vector<32x1xf32> to vector<32x128xf32>
    %289 = arith.addf %287, %288 : vector<32x128xf32>
    %290 = arith.mulf %289, %289 : vector<32x128xf32>
    %cst_94 = arith.constant dense<0.000000e+00> : vector<32x128xf32>
    %291 = tpu.matmul %290, %2, %cst_94 {dimension_numbers = #tpu.dot_dimension_numbers<[1], [0], [0], [1], [0, 0, 1, 1], [], []>} : vector<32x128xf32>, vector<128x128xf32>, vector<32x128xf32> -> vector<32x128xf32>
    %cst_95 = arith.constant 1.000000e-24 : f32
    %292 = vector.broadcast %cst_95 : f32 to vector<32x128xf32>
    %293 = arith.maximumf %291, %292 : vector<32x128xf32>
    %294 = math.rsqrt %293 : vector<32x128xf32>
    %295 = arith.mulf %289, %294 : vector<32x128xf32>
    %c0_96 = arith.constant 0 : index
    %c0_97 = arith.constant 0 : index
    %296 = vector.load %arg27[%c0_96, %c0_97] : memref<32x128xf32, #tpu.memory_space<vmem>>, vector<32x128xf32>
    tpu.vector_store %arg27[%c0_96, %c0_97], %295 {strides = array<i32>} : memref<32x128xf32, #tpu.memory_space<vmem>>, vector<32x128xf32>,
    %c0_98 = arith.constant 0 : index
    %c0_99 = arith.constant 0 : index
    %297 = vector.load %arg23[%c0_98, %c0_99] : memref<32x128xf32, #tpu.memory_space<vmem>>, vector<32x128xf32>
    tpu.vector_store %arg23[%c0_98, %c0_99], %227 {strides = array<i32>} : memref<32x128xf32, #tpu.memory_space<vmem>>, vector<32x128xf32>,
    %298 = tpu.concatenate %129, %274 in 0 : vector<32x128xf32>, vector<32x128xf32> -> vector<64x128xf32>
    %c9_i32_100 = arith.constant 9 : i32
    %299 = tpu.dynamic_rotate %298 by %c9_i32_100 dim 1 : vector<64x128xf32>, i32 -> vector<64x128xf32>
    %300 = vector.extract_strided_slice %1 {offsets = [0, 0], sizes = [1, 128], strides = [1, 1]} : vector<9x128xf32> to vector<1x128xf32>
    %301 = vector.broadcast %300 : vector<1x128xf32> to vector<64x128xf32>
    %302 = arith.mulf %299, %301 : vector<64x128xf32>
    %c8_i32_101 = arith.constant 8 : i32
    %303 = tpu.dynamic_rotate %298 by %c8_i32_101 dim 1 : vector<64x128xf32>, i32 -> vector<64x128xf32>
    %304 = vector.extract_strided_slice %1 {offsets = [1, 0], sizes = [1, 128], strides = [1, 1]} : vector<9x128xf32> to vector<1x128xf32>
    %305 = vector.broadcast %304 : vector<1x128xf32> to vector<64x128xf32>
    %306 = arith.mulf %303, %305 : vector<64x128xf32>
    %c7_i32_102 = arith.constant 7 : i32
    %307 = tpu.dynamic_rotate %298 by %c7_i32_102 dim 1 : vector<64x128xf32>, i32 -> vector<64x128xf32>
    %308 = vector.extract_strided_slice %1 {offsets = [2, 0], sizes = [1, 128], strides = [1, 1]} : vector<9x128xf32> to vector<1x128xf32>
    %309 = vector.broadcast %308 : vector<1x128xf32> to vector<64x128xf32>
    %310 = arith.mulf %307, %309 : vector<64x128xf32>
    %c1_i32_103 = arith.constant 1 : i32
    %311 = tpu.dynamic_rotate %298 by %c1_i32_103 dim 1 : vector<64x128xf32>, i32 -> vector<64x128xf32>
    %312 = vector.extract_strided_slice %1 {offsets = [3, 0], sizes = [1, 128], strides = [1, 1]} : vector<9x128xf32> to vector<1x128xf32>
    %313 = vector.broadcast %312 : vector<1x128xf32> to vector<64x128xf32>
    %314 = arith.mulf %311, %313 : vector<64x128xf32>
    %c127_i32_104 = arith.constant 127 : i32
    %315 = tpu.dynamic_rotate %298 by %c127_i32_104 dim 1 : vector<64x128xf32>, i32 -> vector<64x128xf32>
    %316 = vector.extract_strided_slice %1 {offsets = [5, 0], sizes = [1, 128], strides = [1, 1]} : vector<9x128xf32> to vector<1x128xf32>
    %317 = vector.broadcast %316 : vector<1x128xf32> to vector<64x128xf32>
    %318 = arith.mulf %315, %317 : vector<64x128xf32>
    %c121_i32_105 = arith.constant 121 : i32
    %319 = tpu.dynamic_rotate %298 by %c121_i32_105 dim 1 : vector<64x128xf32>, i32 -> vector<64x128xf32>
    %320 = vector.extract_strided_slice %1 {offsets = [6, 0], sizes = [1, 128], strides = [1, 1]} : vector<9x128xf32> to vector<1x128xf32>
    %321 = vector.broadcast %320 : vector<1x128xf32> to vector<64x128xf32>
    %322 = arith.mulf %319, %321 : vector<64x128xf32>
    %c120_i32_106 = arith.constant 120 : i32
    %323 = tpu.dynamic_rotate %298 by %c120_i32_106 dim 1 : vector<64x128xf32>, i32 -> vector<64x128xf32>
    %324 = vector.extract_strided_slice %1 {offsets = [7, 0], sizes = [1, 128], strides = [1, 1]} : vector<9x128xf32> to vector<1x128xf32>
    %325 = vector.broadcast %324 : vector<1x128xf32> to vector<64x128xf32>
    %326 = arith.mulf %323, %325 : vector<64x128xf32>
    %c119_i32_107 = arith.constant 119 : i32
    %327 = tpu.dynamic_rotate %298 by %c119_i32_107 dim 1 : vector<64x128xf32>, i32 -> vector<64x128xf32>
    %328 = vector.extract_strided_slice %1 {offsets = [8, 0], sizes = [1, 128], strides = [1, 1]} : vector<9x128xf32> to vector<1x128xf32>
    %329 = vector.broadcast %328 : vector<1x128xf32> to vector<64x128xf32>
    %330 = arith.mulf %327, %329 : vector<64x128xf32>
    %331 = tpu.concatenate %302, %306, %310, %314, %298, %318, %322, %326, %330 in 0 : vector<64x128xf32>, vector<64x128xf32>, vector<64x128xf32>, vector<64x128xf32>, vector<64x128xf32>, vector<64x128xf32>, vector<64x128xf32>, vector<64x128xf32>, vector<64x128xf32> -> vector<576x128xf32>
    %c0_108 = arith.constant 0 : index
    %c0_109 = arith.constant 0 : index
    %332 = vector.load %arg12[%c0_108, %c0_109] : memref<32x576xf32, #tpu.memory_space<vmem>>, vector<32x576xf32>
    %cst_110 = arith.constant dense<0.000000e+00> : vector<32x128xf32>
    %333 = tpu.matmul %332, %331, %cst_110 {dimension_numbers = #tpu.dot_dimension_numbers<[1], [0], [0], [1], [0, 0, 1, 1], [], []>} : vector<32x576xf32>, vector<576x128xf32>, vector<32x128xf32> -> vector<32x128xf32>
    %c0_111 = arith.constant 0 : index
    %c0_112 = arith.constant 0 : index
    %334 = vector.load %arg13[%c0_111, %c0_112] : memref<32x1xf32, #tpu.memory_space<vmem>>, vector<32x1xf32>
    %335 = vector.broadcast %334 : vector<32x1xf32> to vector<32x128xf32>
    %336 = arith.addf %333, %335 : vector<32x128xf32>
    %cst_113 = arith.constant 0.000000e+00 : f32
    %337 = vector.broadcast %cst_113 : f32 to vector<32x128xf32>
    %338 = arith.maximumf %336, %337 : vector<32x128xf32>
    %c0_114 = arith.constant 0 : index
    %c0_115 = arith.constant 0 : index
    %339 = vector.load %arg14[%c0_114, %c0_115] : memref<4x32xf32, #tpu.memory_space<vmem>>, vector<4x32xf32>
    %cst_116 = arith.constant dense<0.000000e+00> : vector<4x128xf32>
    %340 = tpu.matmul %339, %338, %cst_116 {dimension_numbers = #tpu.dot_dimension_numbers<[1], [0], [0], [1], [0, 0, 1, 1], [], []>} : vector<4x32xf32>, vector<32x128xf32>, vector<4x128xf32> -> vector<4x128xf32>
    %c0_117 = arith.constant 0 : index
    %c0_118 = arith.constant 0 : index
    %341 = vector.load %arg18[%c0_117, %c0_118] : memref<4x128xf32, #tpu.memory_space<vmem>>, vector<4x128xf32>
    tpu.vector_store %arg18[%c0_117, %c0_118], %340 {strides = array<i32>} : memref<4x128xf32, #tpu.memory_space<vmem>>, vector<4x128xf32>,
    return
  }
}

</mosaic_0001>

<llo_original>
// kernel: _stack_rnn_forward_impl.1
$region0: #{_stack_rnn_forward_impl.1}
  #allocation0 [shape = 'u32[]', space=smem, size = 0x4, offset = 0x4, fixed_abs, tag = 'smem constant byte address 0x4 - core index']
  #allocation1 [shape = 'u32[144,128]{1,0:T(1,128)}', space=vmem, size = 0x12000, scoped, tag = 'internal scratch']
  %s0 = inlined_call_operand.vmem [shape: f32[8,128], index: 0, kind: input, shape index: {}]
  %s1 = inlined_call_operand.vmem [shape: f32[32,128], index: 1, kind: input, shape index: {}]
  %s2 = inlined_call_operand.vmem [shape: f32[32,128], index: 2, kind: input, shape index: {}]
  %s3 = inlined_call_operand.vmem [shape: f32[32,128], index: 3, kind: input, shape index: {}]
  %s4 = inlined_call_operand.vmem [shape: f32[32,128], index: 4, kind: input, shape index: {}]
  %s5 = inlined_call_operand.vmem [shape: f32[32,128], index: 5, kind: input, shape index: {}]
  %s6 = inlined_call_operand.vmem [shape: f32[224,648], index: 6, kind: input, shape index: {}]
  %s7 = inlined_call_operand.vmem [shape: f32[224,864], index: 7, kind: input, shape index: {}]
  %s8 = inlined_call_operand.vmem [shape: f32[64,576], index: 8, kind: input, shape index: {}]
  %s9 = inlined_call_operand.vmem [shape: f32[64,576], index: 9, kind: input, shape index: {}]
  %s10 = inlined_call_operand.vmem [shape: f32[32,32], index: 10, kind: input, shape index: {}]
  %s11 = inlined_call_operand.vmem [shape: f32[32,1], index: 11, kind: input, shape index: {}]
  %s12 = inlined_call_operand.vmem [shape: f32[32,576], index: 12, kind: input, shape index: {}]
  %s13 = inlined_call_operand.vmem [shape: f32[32,1], index: 13, kind: input, shape index: {}]
  %s14 = inlined_call_operand.vmem [shape: f32[4,32], index: 14, kind: input, shape index: {}]
  %s15 = inlined_call_operand.vmem [shape: f32[128,128], index: 15, kind: input, shape index: {}]
  %s16 = inlined_call_operand.vmem [shape: f32[9,128], index: 16, kind: input, shape index: {}, may-alias: {16,17}]
  %s17 = inlined_call_operand.vmem [shape: f32[9,128], index: 17, kind: input, shape index: {}, may-alias: {16,17}]
  %s18 = inlined_call_operand.vmem [shape: f32[4,128], index: 18, kind: output, shape index: {0}]
  %s19 = inlined_call_operand.vmem [shape: f32[32,128], index: 19, kind: output, shape index: {1}]
  %s20 = inlined_call_operand.vmem [shape: f32[32,128], index: 20, kind: output, shape index: {2}]
  %s21 = inlined_call_operand.vmem [shape: f32[32,128], index: 21, kind: output, shape index: {3}]
  %s22 = inlined_call_operand.vmem [shape: f32[32,128], index: 22, kind: output, shape index: {4}]
  %s23 = inlined_call_operand.vmem [shape: f32[32,128], index: 23, kind: output, shape index: {5}]
  %s24 = inlined_call_operand.vmem [shape: f32[32,128], index: 24, kind: output, shape index: {6}]
  %s25 = inlined_call_operand.vmem [shape: f32[32,128], index: 25, kind: output, shape index: {7}]
  %s26 = inlined_call_operand.vmem [shape: f32[32,128], index: 26, kind: output, shape index: {8}]
  %s27 = inlined_call_operand.vmem [shape: f32[32,128], index: 27, kind: output, shape index: {9}]
  %28 = xla_tuple %s18, %s19, %s20, %s21, %s22, %s23, %s24, %s25, %s26, %s27
  %s29 = sld [smem:[#allocation0]]
  $region154: #{_stack_rnn_forward_impl.1} parent=0
    _
  %s31 = ssub.s32 1, %s29
  %s32 = scalar_select 0, %s31, %s29
  // Predicated region
  $region2: #{_stack_rnn_forward_impl.1} parent=0 // pred_check
    _
  $region3: #{_stack_rnn_forward_impl.1} parent=0 // pred_check_branch
    %34 = sbr.rel (0) target = $region5
  $region4: #{_stack_rnn_forward_impl.1} parent=0 // pred_region
    _
  $region5: #{_stack_rnn_forward_impl.1} parent=0 // pred_fallthru
    _
  // Predicated region
  $region6: #{_stack_rnn_forward_impl.1} parent=0 // pred_check
    _
  $region7: #{_stack_rnn_forward_impl.1} parent=0 // pred_check_branch
    %36 = sbr.rel (0) target = $region9
  $region8: #{_stack_rnn_forward_impl.1} parent=0 // pred_region
    _
  $region9: #{_stack_rnn_forward_impl.1} parent=0 // pred_fallthru
    _
  // Predicated region
  $region10: #{_stack_rnn_forward_impl.1} parent=0 // pred_check
    _
  $region11: #{_stack_rnn_forward_impl.1} parent=0 // pred_check_branch
    %38 = sbr.rel (0) target = $region13
  $region12: #{_stack_rnn_forward_impl.1} parent=0 // pred_region
    _
  $region13: #{_stack_rnn_forward_impl.1} parent=0 // pred_fallthru
    _
  // Predicated region
  $region14: #{_stack_rnn_forward_impl.1} parent=0 // pred_check
    _
  $region15: #{_stack_rnn_forward_impl.1} parent=0 // pred_check_branch
    %40 = sbr.rel (0) target = $region17
  $region16: #{_stack_rnn_forward_impl.1} parent=0 // pred_region
    _
  $region17: #{_stack_rnn_forward_impl.1} parent=0 // pred_fallthru
    _
  // Predicated region
  $region18: #{_stack_rnn_forward_impl.1} parent=0 // pred_check
    _
  $region19: #{_stack_rnn_forward_impl.1} parent=0 // pred_check_branch
    %42 = sbr.rel (0) target = $region21
  $region20: #{_stack_rnn_forward_impl.1} parent=0 // pred_region
    _
  $region21: #{_stack_rnn_forward_impl.1} parent=0 // pred_fallthru
    _
  // Predicated region
  $region22: #{_stack_rnn_forward_impl.1} parent=0 // pred_check
    _
  $region23: #{_stack_rnn_forward_impl.1} parent=0 // pred_check_branch
    %44 = sbr.rel (0) target = $region25
  $region24: #{_stack_rnn_forward_impl.1} parent=0 // pred_region
    _
  $region25: #{_stack_rnn_forward_impl.1} parent=0 // pred_fallthru
    _
  // Predicated region
  $region26: #{_stack_rnn_forward_impl.1} parent=0 // pred_check
    _
  $region27: #{_stack_rnn_forward_impl.1} parent=0 // pred_check_branch
    %46 = sbr.rel (0) target = $region29
  $region28: #{_stack_rnn_forward_impl.1} parent=0 // pred_region
    _
  $region29: #{_stack_rnn_forward_impl.1} parent=0 // pred_fallthru
    _
  // Predicated region
  $region30: #{_stack_rnn_forward_impl.1} parent=0 // pred_check
    _
  $region31: #{_stack_rnn_forward_impl.1} parent=0 // pred_check_branch
    %48 = sbr.rel (0) target = $region33
  $region32: #{_stack_rnn_forward_impl.1} parent=0 // pred_region
    _
  $region33: #{_stack_rnn_forward_impl.1} parent=0 // pred_fallthru
    _
  // Predicated region
  $region34: #{_stack_rnn_forward_impl.1} parent=0 // pred_check
    _
  $region35: #{_stack_rnn_forward_impl.1} parent=0 // pred_check_branch
    %50 = sbr.rel (0) target = $region37
  $region36: #{_stack_rnn_forward_impl.1} parent=0 // pred_region
    _
  $region37: #{_stack_rnn_forward_impl.1} parent=0 // pred_fallthru
    _
  // Predicated region
  $region38: #{_stack_rnn_forward_impl.1} parent=0 // pred_check
    _
  $region39: #{_stack_rnn_forward_impl.1} parent=0 // pred_check_branch
    %52 = sbr.rel (0) target = $region41
  $region40: #{_stack_rnn_forward_impl.1} parent=0 // pred_region
    _
  $region41: #{_stack_rnn_forward_impl.1} parent=0 // pred_fallthru
    _
  // Predicated region
  $region42: #{_stack_rnn_forward_impl.1} parent=0 // pred_check
    _
  $region43: #{_stack_rnn_forward_impl.1} parent=0 // pred_check_branch
    %54 = sbr.rel (0) target = $region45
  $region44: #{_stack_rnn_forward_impl.1} parent=0 // pred_region
    _
  $region45: #{_stack_rnn_forward_impl.1} parent=0 // pred_fallthru
    _
  // Predicated region
  $region46: #{_stack_rnn_forward_impl.1} parent=0 // pred_check
    _
  $region47: #{_stack_rnn_forward_impl.1} parent=0 // pred_check_branch
    %56 = sbr.rel (0) target = $region49
  $region48: #{_stack_rnn_forward_impl.1} parent=0 // pred_region
    _
  $region49: #{_stack_rnn_forward_impl.1} parent=0 // pred_fallthru
    _
  // Predicated region
  $region50: #{_stack_rnn_forward_impl.1} parent=0 // pred_check
    _
  $region51: #{_stack_rnn_forward_impl.1} parent=0 // pred_check_branch
    %58 = sbr.rel (0) target = $region53
  $region52: #{_stack_rnn_forward_impl.1} parent=0 // pred_region
    _
  $region53: #{_stack_rnn_forward_impl.1} parent=0 // pred_fallthru
    _
  // Predicated region
  $region54: #{_stack_rnn_forward_impl.1} parent=0 // pred_check
    _
  $region55: #{_stack_rnn_forward_impl.1} parent=0 // pred_check_branch
    %60 = sbr.rel (0) target = $region57
  $region56: #{_stack_rnn_forward_impl.1} parent=0 // pred_region
    _
  $region57: #{_stack_rnn_forward_impl.1} parent=0 // pred_fallthru
    _
  // Predicated region
  $region58: #{_stack_rnn_forward_impl.1} parent=0 // pred_check
    _
  $region59: #{_stack_rnn_forward_impl.1} parent=0 // pred_check_branch
    %62 = sbr.rel (0) target = $region61
  $region60: #{_stack_rnn_forward_impl.1} parent=0 // pred_region
    _
  $region61: #{_stack_rnn_forward_impl.1} parent=0 // pred_fallthru
    _
  // Predicated region
  $region62: #{_stack_rnn_forward_impl.1} parent=0 // pred_check
    _
  $region63: #{_stack_rnn_forward_impl.1} parent=0 // pred_check_branch
    %64 = sbr.rel (0) target = $region65
  $region64: #{_stack_rnn_forward_impl.1} parent=0 // pred_region
    _
  $region65: #{_stack_rnn_forward_impl.1} parent=0 // pred_fallthru
    _
  // Predicated region
  $region66: #{_stack_rnn_forward_impl.1} parent=0 // pred_check
    _
  $region67: #{_stack_rnn_forward_impl.1} parent=0 // pred_check_branch
    %66 = sbr.rel (0) target = $region69
  $region68: #{_stack_rnn_forward_impl.1} parent=0 // pred_region
    _
  $region69: #{_stack_rnn_forward_impl.1} parent=0 // pred_fallthru
    _
  // Predicated region
  $region70: #{_stack_rnn_forward_impl.1} parent=0 // pred_check
    _
  $region71: #{_stack_rnn_forward_impl.1} parent=0 // pred_check_branch
    %68 = sbr.rel (0) target = $region73
  $region72: #{_stack_rnn_forward_impl.1} parent=0 // pred_region
    _
  $region73: #{_stack_rnn_forward_impl.1} parent=0 // pred_fallthru
    _
  %v69 = vld [vmem:[%s16] sm:$0xff]
  %v70 = vld [vmem:[%s16 + $0x8] sm:$0x1]
  %v71 = vld [vmem:[%s17] sm:$0xff]
  %v72 = vld [vmem:[%s17 + $0x8] sm:$0x1]
  %v73 = vld [vmem:[%s15] sm:$0xff]
  %v74 = vld [vmem:[%s15 + $0x8] sm:$0xff]
  %v75 = vld [vmem:[%s15 + $0x10] sm:$0xff]
  %v76 = vld [vmem:[%s15 + $0x18] sm:$0xff]
  %v77 = vld [vmem:[%s15 + $0x20] sm:$0xff]
  %v78 = vld [vmem:[%s15 + $0x28] sm:$0xff]
  %v79 = vld [vmem:[%s15 + $0x30] sm:$0xff]
  %v80 = vld [vmem:[%s15 + $0x38] sm:$0xff]
  %v81 = vld [vmem:[%s15 + $0x40] sm:$0xff]
  %v82 = vld [vmem:[%s15 + $0x48] sm:$0xff]
  %v83 = vld [vmem:[%s15 + $0x50] sm:$0xff]
  %v84 = vld [vmem:[%s15 + $0x58] sm:$0xff]
  %v85 = vld [vmem:[%s15 + $0x60] sm:$0xff]
  %v86 = vld [vmem:[%s15 + $0x68] sm:$0xff]
  %v87 = vld [vmem:[%s15 + $0x70] sm:$0xff]
  %v88 = vld [vmem:[%s15 + $0x78] sm:$0xff]
  %v89 = vld [vmem:[%s10] sm:$0xff]
  %v90 = vld [vmem:[%s10 + $0x8] sm:$0xff]
  %v91 = vld [vmem:[%s10 + $0x10] sm:$0xff]
  %v92 = vld [vmem:[%s10 + $0x18] sm:$0xff]
  %v93 = vld [vmem:[%s11] sm:$0xff]
  %v94 = vld [vmem:[%s11 + $0x8] sm:$0xff]
  %v95 = vld [vmem:[%s11 + $0x10] sm:$0xff]
  %v96 = vld [vmem:[%s11 + $0x18] sm:$0xff]
  %v97 = vld [vmem:[%s0] sm:$0xff]
  %v98 = vld [vmem:[%s1] sm:$0xff]
  %v99 = vld [vmem:[%s1 + $0x8] sm:$0xff]
  %v100 = vld [vmem:[%s1 + $0x10] sm:$0xff]
  %v101 = vld [vmem:[%s1 + $0x18] sm:$0xff]
  %v102 = vld [vmem:[%s2] sm:$0xff]
  %v103 = vld [vmem:[%s2 + $0x8] sm:$0xff]
  %v104 = vld [vmem:[%s2 + $0x10] sm:$0xff]
  %v105 = vld [vmem:[%s2 + $0x18] sm:$0xff]
  %v106 = vld [vmem:[%s4] sm:$0xff]
  %v107 = vld [vmem:[%s4 + $0x8] sm:$0xff]
  %v108 = vld [vmem:[%s4 + $0x10] sm:$0xff]
  %v109 = vld [vmem:[%s4 + $0x18] sm:$0xff]
  %110 = vrot.lane.b32.xlu0 %v97, 9
  %v111 = vpop.permute.xlu0 %110
  %112 = vrot.lane.b32.xlu0 %v102, 9
  %v113 = vpop.permute.xlu0 %112
  %114 = vrot.lane.b32.xlu0 %v103, 9
  %v115 = vpop.permute.xlu0 %114
  %116 = vrot.lane.b32.xlu0 %v104, 9
  %v117 = vpop.permute.xlu0 %116
  %118 = vrot.lane.b32.xlu0 %v105, 9
  %v119 = vpop.permute.xlu0 %118
  %120 = vrot.lane.b32.xlu0 %v98, 9
  %v121 = vpop.permute.xlu0 %120
  %122 = vrot.lane.b32.xlu0 %v99, 9
  %v123 = vpop.permute.xlu0 %122
  %124 = vrot.lane.b32.xlu0 %v100, 9
  %v125 = vpop.permute.xlu0 %124
  %126 = vrot.lane.b32.xlu0 %v101, 9
  %v127 = vpop.permute.xlu0 %126
  %v128 = vlaneseq
  %v129 = vshrl.u32 %v128, 7
  %v130 = vsub.s32 0, %v129
  %v131 = vrot.slane %v69, %v130
  %v132 = vmul.f32 %v111, %v131
  %v133 = vmul.f32 %v113, %v131
  %v134 = vmul.f32 %v115, %v131
  %v135 = vmul.f32 %v117, %v131
  %v136 = vmul.f32 %v119, %v131
  %v137 = vmul.f32 %v121, %v131
  %v138 = vmul.f32 %v123, %v131
  %v139 = vmul.f32 %v125, %v131
  %v140 = vmul.f32 %v127, %v131
  %141 = vrot.lane.b32.xlu0 %v97, 8
  %v142 = vpop.permute.xlu0 %141
  %143 = vrot.lane.b32.xlu0 %v102, 8
  %v144 = vpop.permute.xlu0 %143
  %145 = vrot.lane.b32.xlu0 %v103, 8
  %v146 = vpop.permute.xlu0 %145
  %147 = vrot.lane.b32.xlu0 %v104, 8
  %v148 = vpop.permute.xlu0 %147
  %149 = vrot.lane.b32.xlu0 %v105, 8
  %v150 = vpop.permute.xlu0 %149
  %151 = vrot.lane.b32.xlu0 %v98, 8
  %v152 = vpop.permute.xlu0 %151
  %153 = vrot.lane.b32.xlu0 %v99, 8
  %v154 = vpop.permute.xlu0 %153
  %155 = vrot.lane.b32.xlu0 %v100, 8
  %v156 = vpop.permute.xlu0 %155
  %157 = vrot.lane.b32.xlu0 %v101, 8
  %v158 = vpop.permute.xlu0 %157
  %v159 = vlaneseq
  %v160 = vshrl.u32 %v159, 7
  %v161 = vsub.s32 1, %v160
  %v162 = vrot.slane %v69, %v161
  %v163 = vmul.f32 %v142, %v162
  %v164 = vmul.f32 %v144, %v162
  %v165 = vmul.f32 %v146, %v162
  %v166 = vmul.f32 %v148, %v162
  %v167 = vmul.f32 %v150, %v162
  %v168 = vmul.f32 %v152, %v162
  %v169 = vmul.f32 %v154, %v162
  %v170 = vmul.f32 %v156, %v162
  %v171 = vmul.f32 %v158, %v162
  %172 = vrot.lane.b32.xlu0 %v97, 7
  %v173 = vpop.permute.xlu0 %172
  %174 = vrot.lane.b32.xlu0 %v102, 7
  %v175 = vpop.permute.xlu0 %174
  %176 = vrot.lane.b32.xlu0 %v103, 7
  %v177 = vpop.permute.xlu0 %176
  %178 = vrot.lane.b32.xlu0 %v104, 7
  %v179 = vpop.permute.xlu0 %178
  %180 = vrot.lane.b32.xlu0 %v105, 7
  %v181 = vpop.permute.xlu0 %180
  %182 = vrot.lane.b32.xlu0 %v98, 7
  %v183 = vpop.permute.xlu0 %182
  %184 = vrot.lane.b32.xlu0 %v99, 7
  %v185 = vpop.permute.xlu0 %184
  %186 = vrot.lane.b32.xlu0 %v100, 7
  %v187 = vpop.permute.xlu0 %186
  %188 = vrot.lane.b32.xlu0 %v101, 7
  %v189 = vpop.permute.xlu0 %188
  %v190 = vlaneseq
  %v191 = vshrl.u32 %v190, 7
  %v192 = vsub.s32 2, %v191
  %v193 = vrot.slane %v69, %v192
  %v194 = vmul.f32 %v173, %v193
  %v195 = vmul.f32 %v175, %v193
  %v196 = vmul.f32 %v177, %v193
  %v197 = vmul.f32 %v179, %v193
  %v198 = vmul.f32 %v181, %v193
  %v199 = vmul.f32 %v183, %v193
  %v200 = vmul.f32 %v185, %v193
  %v201 = vmul.f32 %v187, %v193
  %v202 = vmul.f32 %v189, %v193
  %203 = vrot.lane.b32.xlu0 %v97, 1
  %v204 = vpop.permute.xlu0 %203
  %205 = vrot.lane.b32.xlu0 %v102, 1
  %v206 = vpop.permute.xlu0 %205
  %207 = vrot.lane.b32.xlu0 %v103, 1
  %v208 = vpop.permute.xlu0 %207
  %209 = vrot.lane.b32.xlu0 %v104, 1
  %v210 = vpop.permute.xlu0 %209
  %211 = vrot.lane.b32.xlu0 %v105, 1
  %v212 = vpop.permute.xlu0 %211
  %213 = vrot.lane.b32.xlu0 %v98, 1
  %v214 = vpop.permute.xlu0 %213
  %215 = vrot.lane.b32.xlu0 %v99, 1
  %v216 = vpop.permute.xlu0 %215
  %217 = vrot.lane.b32.xlu0 %v100, 1
  %v218 = vpop.permute.xlu0 %217
  %219 = vrot.lane.b32.xlu0 %v101, 1
  %v220 = vpop.permute.xlu0 %219
  %v221 = vlaneseq
  %v222 = vshrl.u32 %v221, 7
  %v223 = vsub.s32 3, %v222
  %v224 = vrot.slane %v69, %v223
  %v225 = vmul.f32 %v204, %v224
  %v226 = vmul.f32 %v206, %v224
  %v227 = vmul.f32 %v208, %v224
  %v228 = vmul.f32 %v210, %v224
  %v229 = vmul.f32 %v212, %v224
  %v230 = vmul.f32 %v214, %v224
  %v231 = vmul.f32 %v216, %v224
  %v232 = vmul.f32 %v218, %v224
  %v233 = vmul.f32 %v220, %v224
  %234 = vrot.lane.b32.xlu0 %v97, 127
  %v235 = vpop.permute.xlu0 %234
  %236 = vrot.lane.b32.xlu0 %v102, 127
  %v237 = vpop.permute.xlu0 %236
  %238 = vrot.lane.b32.xlu0 %v103, 127
  %v239 = vpop.permute.xlu0 %238
  %240 = vrot.lane.b32.xlu0 %v104, 127
  %v241 = vpop.permute.xlu0 %240
  %242 = vrot.lane.b32.xlu0 %v105, 127
  %v243 = vpop.permute.xlu0 %242
  %244 = vrot.lane.b32.xlu0 %v98, 127
  %v245 = vpop.permute.xlu0 %244
  %246 = vrot.lane.b32.xlu0 %v99, 127
  %v247 = vpop.permute.xlu0 %246
  %248 = vrot.lane.b32.xlu0 %v100, 127
  %v249 = vpop.permute.xlu0 %248
  %250 = vrot.lane.b32.xlu0 %v101, 127
  %v251 = vpop.permute.xlu0 %250
  %v252 = vlaneseq
  %v253 = vshrl.u32 %v252, 7
  %v254 = vsub.s32 5, %v253
  %v255 = vrot.slane %v69, %v254
  %v256 = vmul.f32 %v235, %v255
  %v257 = vmul.f32 %v237, %v255
  %v258 = vmul.f32 %v239, %v255
  %v259 = vmul.f32 %v241, %v255
  %v260 = vmul.f32 %v243, %v255
  %v261 = vmul.f32 %v245, %v255
  %v262 = vmul.f32 %v247, %v255
  %v263 = vmul.f32 %v249, %v255
  %v264 = vmul.f32 %v251, %v255
  %265 = vrot.lane.b32.xlu0 %v97, 121
  %v266 = vpop.permute.xlu0 %265
  %267 = vrot.lane.b32.xlu0 %v102, 121
  %v268 = vpop.permute.xlu0 %267
  %269 = vrot.lane.b32.xlu0 %v103, 121
  %v270 = vpop.permute.xlu0 %269
  %271 = vrot.lane.b32.xlu0 %v104, 121
  %v272 = vpop.permute.xlu0 %271
  %273 = vrot.lane.b32.xlu0 %v105, 121
  %v274 = vpop.permute.xlu0 %273
  %275 = vrot.lane.b32.xlu0 %v98, 121
  %v276 = vpop.permute.xlu0 %275
  %277 = vrot.lane.b32.xlu0 %v99, 121
  %v278 = vpop.permute.xlu0 %277
  %279 = vrot.lane.b32.xlu0 %v100, 121
  %v280 = vpop.permute.xlu0 %279
  %281 = vrot.lane.b32.xlu0 %v101, 121
  %v282 = vpop.permute.xlu0 %281
  %v283 = vlaneseq
  %v284 = vshrl.u32 %v283, 7
  %v285 = vsub.s32 6, %v284
  %v286 = vrot.slane %v69, %v285
  %v287 = vmul.f32 %v266, %v286
  %v288 = vmul.f32 %v268, %v286
  %v289 = vmul.f32 %v270, %v286
  %v290 = vmul.f32 %v272, %v286
  %v291 = vmul.f32 %v274, %v286
  %v292 = vmul.f32 %v276, %v286
  %v293 = vmul.f32 %v278, %v286
  %v294 = vmul.f32 %v280, %v286
  %v295 = vmul.f32 %v282, %v286
  %296 = vrot.lane.b32.xlu0 %v97, 120
  %v297 = vpop.permute.xlu0 %296
  %298 = vrot.lane.b32.xlu0 %v102, 120
  %v299 = vpop.permute.xlu0 %298
  %300 = vrot.lane.b32.xlu0 %v103, 120
  %v301 = vpop.permute.xlu0 %300
  %302 = vrot.lane.b32.xlu0 %v104, 120
  %v303 = vpop.permute.xlu0 %302
  %304 = vrot.lane.b32.xlu0 %v105, 120
  %v305 = vpop.permute.xlu0 %304
  %306 = vrot.lane.b32.xlu0 %v98, 120
  %v307 = vpop.permute.xlu0 %306
  %308 = vrot.lane.b32.xlu0 %v99, 120
  %v309 = vpop.permute.xlu0 %308
  %310 = vrot.lane.b32.xlu0 %v100, 120
  %v311 = vpop.permute.xlu0 %310
  %312 = vrot.lane.b32.xlu0 %v101, 120
  %v313 = vpop.permute.xlu0 %312
  %v314 = vlaneseq
  %v315 = vshrl.u32 %v314, 7
  %v316 = vsub.s32 7, %v315
  %v317 = vrot.slane %v69, %v316
  %v318 = vmul.f32 %v297, %v317
  %v319 = vmul.f32 %v299, %v317
  %v320 = vmul.f32 %v301, %v317
  %v321 = vmul.f32 %v303, %v317
  %v322 = vmul.f32 %v305, %v317
  %v323 = vmul.f32 %v307, %v317
  %v324 = vmul.f32 %v309, %v317
  %v325 = vmul.f32 %v311, %v317
  %v326 = vmul.f32 %v313, %v317
  %327 = vrot.lane.b32.xlu0 %v97, 119
  %v328 = vpop.permute.xlu0 %327
  %329 = vrot.lane.b32.xlu0 %v102, 119
  %v330 = vpop.permute.xlu0 %329
  %331 = vrot.lane.b32.xlu0 %v103, 119
  %v332 = vpop.permute.xlu0 %331
  %333 = vrot.lane.b32.xlu0 %v104, 119
  %v334 = vpop.permute.xlu0 %333
  %335 = vrot.lane.b32.xlu0 %v105, 119
  %v336 = vpop.permute.xlu0 %335
  %337 = vrot.lane.b32.xlu0 %v98, 119
  %v338 = vpop.permute.xlu0 %337
  %339 = vrot.lane.b32.xlu0 %v99, 119
  %v340 = vpop.permute.xlu0 %339
  %341 = vrot.lane.b32.xlu0 %v100, 119
  %v342 = vpop.permute.xlu0 %341
  %343 = vrot.lane.b32.xlu0 %v101, 119
  %v344 = vpop.permute.xlu0 %343
  %v345 = vlaneseq
  %v346 = vshrl.u32 %v345, 7
  %v347 = vsub.s32 0, %v346
  %v348 = vrot.slane %v70, %v347
  %v349 = vmul.f32 %v328, %v348
  %v350 = vmul.f32 %v330, %v348
  %v351 = vmul.f32 %v332, %v348
  %v352 = vmul.f32 %v334, %v348
  %v353 = vmul.f32 %v336, %v348
  %v354 = vmul.f32 %v338, %v348
  %v355 = vmul.f32 %v340, %v348
  %v356 = vmul.f32 %v342, %v348
  %v357 = vmul.f32 %v344, %v348
  %v358 = vld [vmem:[%s6] sm:$0xff]
  %v359 = vld [vmem:[%s6 + $0x8] sm:$0xff]
  %v360 = vld [vmem:[%s6 + $0x10] sm:$0xff]
  %v361 = vld [vmem:[%s6 + $0x18] sm:$0xff]
  %v362 = vld [vmem:[%s6 + $0x20] sm:$0xff]
  %v363 = vld [vmem:[%s6 + $0x28] sm:$0xff]
  %v364 = vld [vmem:[%s6 + $0x30] sm:$0xff]
  %v365 = vld [vmem:[%s6 + $0x38] sm:$0xff]
  %v366 = vld [vmem:[%s6 + $0x40] sm:$0xff]
  %v367 = vld [vmem:[%s6 + $0x48] sm:$0xff]
  %v368 = vld [vmem:[%s6 + $0x50] sm:$0xff]
  %v369 = vld [vmem:[%s6 + $0x58] sm:$0xff]
  %v370 = vld [vmem:[%s6 + $0x60] sm:$0xff]
  %v371 = vld [vmem:[%s6 + $0x68] sm:$0xff]
  %v372 = vld [vmem:[%s6 + $0x70] sm:$0xff]
  %v373 = vld [vmem:[%s6 + $0x78] sm:$0xff]
  %v374 = vld [vmem:[%s6 + $0x80] sm:$0xff]
  %v375 = vld [vmem:[%s6 + $0x88] sm:$0xff]
  %v376 = vld [vmem:[%s6 + $0x90] sm:$0xff]
  %v377 = vld [vmem:[%s6 + $0x98] sm:$0xff]
  %v378 = vld [vmem:[%s6 + $0xa0] sm:$0xff]
  %v379 = vld [vmem:[%s6 + $0xa8] sm:$0xff]
  %v380 = vld [vmem:[%s6 + $0xb0] sm:$0xff]
  %v381 = vld [vmem:[%s6 + $0xb8] sm:$0xff]
  %v382 = vld [vmem:[%s6 + $0xc0] sm:$0xff]
  %v383 = vld [vmem:[%s6 + $0xc8] sm:$0xff]
  %v384 = vld [vmem:[%s6 + $0xd0] sm:$0xff]
  %v385 = vld [vmem:[%s6 + $0xd8] sm:$0xff]
  %v386 = vld [vmem:[%s6 + $0xe0] sm:$0xff]
  %v387 = vld [vmem:[%s6 + $0xe8] sm:$0xff]
  %v388 = vld [vmem:[%s6 + $0xf0] sm:$0xff]
  %v389 = vld [vmem:[%s6 + $0xf8] sm:$0xff]
  %v390 = vld [vmem:[%s6 + $0x100] sm:$0xff]
  %v391 = vld [vmem:[%s6 + $0x108] sm:$0xff]
  %v392 = vld [vmem:[%s6 + $0x110] sm:$0xff]
  %v393 = vld [vmem:[%s6 + $0x118] sm:$0xff]
  %v394 = vld [vmem:[%s6 + $0x120] sm:$0xff]
  %v395 = vld [vmem:[%s6 + $0x128] sm:$0xff]
  %v396 = vld [vmem:[%s6 + $0x130] sm:$0xff]
  %v397 = vld [vmem:[%s6 + $0x138] sm:$0xff]
  %v398 = vld [vmem:[%s6 + $0x140] sm:$0xff]
  %v399 = vld [vmem:[%s6 + $0x148] sm:$0xff]
  %v400 = vld [vmem:[%s6 + $0x150] sm:$0xff]
  %v401 = vld [vmem:[%s6 + $0x158] sm:$0xff]
  %v402 = vld [vmem:[%s6 + $0x160] sm:$0xff]
  %v403 = vld [vmem:[%s6 + $0x168] sm:$0xff]
  %v404 = vld [vmem:[%s6 + $0x170] sm:$0xff]
  %v405 = vld [vmem:[%s6 + $0x178] sm:$0xff]
  %v406 = vld [vmem:[%s6 + $0x180] sm:$0xff]
  %v407 = vld [vmem:[%s6 + $0x188] sm:$0xff]
  %v408 = vld [vmem:[%s6 + $0x190] sm:$0xff]
  %v409 = vld [vmem:[%s6 + $0x198] sm:$0xff]
  %v410 = vld [vmem:[%s6 + $0x1a0] sm:$0xff]
  %v411 = vld [vmem:[%s6 + $0x1a8] sm:$0xff]
  %v412 = vld [vmem:[%s6 + $0x1b0] sm:$0xff]
  %v413 = vld [vmem:[%s6 + $0x1b8] sm:$0xff]
  %v414 = vld [vmem:[%s6 + $0x1c0] sm:$0xff]
  %v415 = vld [vmem:[%s6 + $0x1c8] sm:$0xff]
  %v416 = vld [vmem:[%s6 + $0x1d0] sm:$0xff]
  %v417 = vld [vmem:[%s6 + $0x1d8] sm:$0xff]
  %v418 = vld [vmem:[%s6 + $0x1e0] sm:$0xff]
  %v419 = vld [vmem:[%s6 + $0x1e8] sm:$0xff]
  %v420 = vld [vmem:[%s6 + $0x1f0] sm:$0xff]
  %v421 = vld [vmem:[%s6 + $0x1f8] sm:$0xff]
  %v422 = vld [vmem:[%s6 + $0x200] sm:$0xff]
  %v423 = vld [vmem:[%s6 + $0x208] sm:$0xff]
  %v424 = vld [vmem:[%s6 + $0x210] sm:$0xff]
  %v425 = vld [vmem:[%s6 + $0x218] sm:$0xff]
  %v426 = vld [vmem:[%s6 + $0x220] sm:$0xff]
  %v427 = vld [vmem:[%s6 + $0x228] sm:$0xff]
  %v428 = vld [vmem:[%s6 + $0x230] sm:$0xff]
  %v429 = vld [vmem:[%s6 + $0x238] sm:$0xff]
  %v430 = vld [vmem:[%s6 + $0x240] sm:$0xff]
  %v431 = vld [vmem:[%s6 + $0x248] sm:$0xff]
  %v432 = vld [vmem:[%s6 + $0x250] sm:$0xff]
  %v433 = vld [vmem:[%s6 + $0x258] sm:$0xff]
  %v434 = vld [vmem:[%s6 + $0x260] sm:$0xff]
  %v435 = vld [vmem:[%s6 + $0x268] sm:$0xff]
  %v436 = vld [vmem:[%s6 + $0x270] sm:$0xff]
  %v437 = vld [vmem:[%s6 + $0x278] sm:$0xff]
  %v438 = vld [vmem:[%s6 + $0x280] sm:$0xff]
  %v439 = vld [vmem:[%s6 + $0x288] sm:$0xff]
  %v440 = vld [vmem:[%s6 + $0x290] sm:$0xff]
  %v441 = vld [vmem:[%s6 + $0x298] sm:$0xff]
  %v442 = vld [vmem:[%s6 + $0x2a0] sm:$0xff]
  %v443 = vld [vmem:[%s6 + $0x2a8] sm:$0xff]
  %v444 = vld [vmem:[%s6 + $0x2b0] sm:$0xff]
  %v445 = vld [vmem:[%s6 + $0x2b8] sm:$0xff]
  %v446 = vld [vmem:[%s6 + $0x2c0] sm:$0xff]
  %v447 = vld [vmem:[%s6 + $0x2c8] sm:$0xff]
  %v448 = vld [vmem:[%s6 + $0x2d0] sm:$0xff]
  %v449 = vld [vmem:[%s6 + $0x2d8] sm:$0xff]
  %v450 = vld [vmem:[%s6 + $0x2e0] sm:$0xff]
  %v451 = vld [vmem:[%s6 + $0x2e8] sm:$0xff]
  %v452 = vld [vmem:[%s6 + $0x2f0] sm:$0xff]
  %v453 = vld [vmem:[%s6 + $0x2f8] sm:$0xff]
  %v454 = vld [vmem:[%s6 + $0x300] sm:$0xff]
  %v455 = vld [vmem:[%s6 + $0x308] sm:$0xff]
  %v456 = vld [vmem:[%s6 + $0x310] sm:$0xff]
  %v457 = vld [vmem:[%s6 + $0x318] sm:$0xff]
  %v458 = vld [vmem:[%s6 + $0x320] sm:$0xff]
  %v459 = vld [vmem:[%s6 + $0x328] sm:$0xff]
  %v460 = vld [vmem:[%s6 + $0x330] sm:$0xff]
  %v461 = vld [vmem:[%s6 + $0x338] sm:$0xff]
  %v462 = vld [vmem:[%s6 + $0x340] sm:$0xff]
  %v463 = vld [vmem:[%s6 + $0x348] sm:$0xff]
  %v464 = vld [vmem:[%s6 + $0x350] sm:$0xff]
  %v465 = vld [vmem:[%s6 + $0x358] sm:$0xff]
  %v466 = vld [vmem:[%s6 + $0x360] sm:$0xff]
  %v467 = vld [vmem:[%s6 + $0x368] sm:$0xff]
  %v468 = vld [vmem:[%s6 + $0x370] sm:$0xff]
  %v469 = vld [vmem:[%s6 + $0x378] sm:$0xff]
  %v470 = vld [vmem:[%s6 + $0x380] sm:$0xff]
  %v471 = vld [vmem:[%s6 + $0x388] sm:$0xff]
  %v472 = vld [vmem:[%s6 + $0x390] sm:$0xff]
  %v473 = vld [vmem:[%s6 + $0x398] sm:$0xff]
  %v474 = vld [vmem:[%s6 + $0x3a0] sm:$0xff]
  %v475 = vld [vmem:[%s6 + $0x3a8] sm:$0xff]
  %v476 = vld [vmem:[%s6 + $0x3b0] sm:$0xff]
  %v477 = vld [vmem:[%s6 + $0x3b8] sm:$0xff]
  %v478 = vld [vmem:[%s6 + $0x3c0] sm:$0xff]
  %v479 = vld [vmem:[%s6 + $0x3c8] sm:$0xff]
  %v480 = vld [vmem:[%s6 + $0x3d0] sm:$0xff]
  %v481 = vld [vmem:[%s6 + $0x3d8] sm:$0xff]
  %v482 = vld [vmem:[%s6 + $0x3e0] sm:$0xff]
  %v483 = vld [vmem:[%s6 + $0x3e8] sm:$0xff]
  %v484 = vld [vmem:[%s6 + $0x3f0] sm:$0xff]
  %v485 = vld [vmem:[%s6 + $0x3f8] sm:$0xff]
  %v486 = vld [vmem:[%s6 + $0x400] sm:$0xff]
  %v487 = vld [vmem:[%s6 + $0x408] sm:$0xff]
  %v488 = vld [vmem:[%s6 + $0x410] sm:$0xff]
  %v489 = vld [vmem:[%s6 + $0x418] sm:$0xff]
  %v490 = vld [vmem:[%s6 + $0x420] sm:$0xff]
  %v491 = vld [vmem:[%s6 + $0x428] sm:$0xff]
  %v492 = vld [vmem:[%s6 + $0x430] sm:$0xff]
  %v493 = vld [vmem:[%s6 + $0x438] sm:$0xff]
  %v494 = vld [vmem:[%s6 + $0x440] sm:$0xff]
  %v495 = vld [vmem:[%s6 + $0x448] sm:$0xff]
  %v496 = vld [vmem:[%s6 + $0x450] sm:$0xff]
  %v497 = vld [vmem:[%s6 + $0x458] sm:$0xff]
  %v498 = vld [vmem:[%s6 + $0x460] sm:$0xff]
  %v499 = vld [vmem:[%s6 + $0x468] sm:$0xff]
  %v500 = vld [vmem:[%s6 + $0x470] sm:$0xff]
  %v501 = vld [vmem:[%s6 + $0x478] sm:$0xff]
  %v502 = vld [vmem:[%s6 + $0x480] sm:$0xff]
  %v503 = vld [vmem:[%s6 + $0x488] sm:$0xff]
  %v504 = vld [vmem:[%s6 + $0x490] sm:$0xff]
  %v505 = vld [vmem:[%s6 + $0x498] sm:$0xff]
  %v506 = vld [vmem:[%s6 + $0x4a0] sm:$0xff]
  %v507 = vld [vmem:[%s6 + $0x4a8] sm:$0xff]
  %v508 = vld [vmem:[%s6 + $0x4b0] sm:$0xff]
  %v509 = vld [vmem:[%s6 + $0x4b8] sm:$0xff]
  %v510 = vld [vmem:[%s6 + $0x4c0] sm:$0xff]
  %v511 = vld [vmem:[%s6 + $0x4c8] sm:$0xff]
  %v512 = vld [vmem:[%s6 + $0x4d0] sm:$0xff]
  %v513 = vld [vmem:[%s6 + $0x4d8] sm:$0xff]
  %v514 = vld [vmem:[%s6 + $0x4e0] sm:$0xff]
  %v515 = vld [vmem:[%s6 + $0x4e8] sm:$0xff]
  %v516 = vld [vmem:[%s6 + $0x4f0] sm:$0xff]
  %v517 = vld [vmem:[%s6 + $0x4f8] sm:$0xff]
  %v518 = vld [vmem:[%s6 + $0x500] sm:$0xff]
  %v519 = vld [vmem:[%s6 + $0x508] sm:$0xff]
  %v520 = vld [vmem:[%s6 + $0x510] sm:$0xff]
  %v521 = vld [vmem:[%s6 + $0x518] sm:$0xff]
  %v522 = vld [vmem:[%s6 + $0x520] sm:$0xff]
  %v523 = vld [vmem:[%s6 + $0x528] sm:$0xff]
  %v524 = vld [vmem:[%s6 + $0x530] sm:$0xff]
  %v525 = vld [vmem:[%s6 + $0x538] sm:$0xff]
  %vm526 = vcmask 64512
  %v528 = vsel %vm526, %v363, 0
  %v531 = vsel %vm526, %v369, 0
  %v534 = vsel %vm526, %v375, 0
  %v537 = vsel %vm526, %v381, 0
  %v540 = vsel %vm526, %v387, 0
  %v543 = vsel %vm526, %v393, 0
  %v546 = vsel %vm526, %v399, 0
  %v549 = vsel %vm526, %v405, 0
  %v552 = vsel %vm526, %v411, 0
  %v555 = vsel %vm526, %v417, 0
  %v558 = vsel %vm526, %v423, 0
  %v561 = vsel %vm526, %v429, 0
  %v564 = vsel %vm526, %v435, 0
  %v567 = vsel %vm526, %v441, 0
  %v570 = vsel %vm526, %v447, 0
  %v573 = vsel %vm526, %v453, 0
  %v576 = vsel %vm526, %v459, 0
  %v579 = vsel %vm526, %v465, 0
  %v582 = vsel %vm526, %v471, 0
  %v585 = vsel %vm526, %v477, 0
  %v588 = vsel %vm526, %v483, 0
  %v591 = vsel %vm526, %v489, 0
  %v594 = vsel %vm526, %v495, 0
  %v597 = vsel %vm526, %v501, 0
  %v600 = vsel %vm526, %v507, 0
  %v603 = vsel %vm526, %v513, 0
  %v606 = vsel %vm526, %v519, 0
  %v609 = vsel %vm526, %v525, 0
  %611 = vmatprep.subr.mxu0 0.0
  %612 = vmatpush1.msra.mxu0 %v132
  %613 = vmatprep.subr.mxu0 0.0
  %614 = vmatpush1.msra.mxu0 %v133
  %615 = vmatprep.subr.mxu0 0.0
  %616 = vmatpush1.msra.mxu0 %v134
  %617 = vmatprep.subr.mxu0 0.0
  %618 = vmatpush1.msra.mxu0 %v135
  %619 = vmatprep.subr.mxu0 0.0
  %620 = vmatpush1.msra.mxu0 %v136
  %621 = vmatprep.subr.mxu0 0.0
  %622 = vmatpush1.msra.mxu0 %v137
  %623 = vmatprep.subr.mxu0 0.0
  %624 = vmatpush1.msra.mxu0 %v138
  %625 = vmatprep.subr.mxu0 0.0
  %626 = vmatpush1.msra.mxu0 %v139
  %627 = vmatprep.subr.mxu0 0.0
  %628 = vmatpush1.msra.mxu0 %v140
  %629 = vmatprep.subr.mxu0 0.0
  %630 = vmatpush1.msra.mxu0 %v163
  %631 = vmatprep.subr.mxu0 0.0
  %632 = vmatpush1.msra.mxu0 %v164
  %633 = vmatprep.subr.mxu0 0.0
  %634 = vmatpush1.msra.mxu0 %v165
  %635 = vmatprep.subr.mxu0 0.0
  %636 = vmatpush1.msra.mxu0 %v166
  %637 = vmatprep.subr.mxu0 0.0
  %638 = vmatpush1.msra.mxu0 %v167
  %639 = vmatprep.subr.mxu0 0.0
  %640 = vmatpush1.msra.mxu0 %v168
  %641 = vmatprep.subr.mxu0 0.0
  %642 = vmatpush1.msra.mxu0 %v169
  %643 = vmatprep.subr.mxu0 0.0
  %644 = vmatpush1.msra.mxu0 %v170
  %645 = vmatprep.subr.mxu0 0.0
  %646 = vmatpush1.msra.mxu0 %v171
  %647 = vmatprep.subr.mxu0 0.0
  %648 = vmatpush1.msra.mxu0 %v194
  %649 = vmatprep.subr.mxu0 0.0
  %650 = vmatpush1.msra.mxu0 %v195
  %651 = vmatprep.subr.mxu0 0.0
  %652 = vmatpush1.msra.mxu0 %v196
  %653 = vmatprep.subr.mxu0 0.0
  %654 = vmatpush1.msra.mxu0 %v197
  %655 = vmatprep.subr.mxu0 0.0
  %656 = vmatpush1.msra.mxu0 %v198
  %657 = vmatprep.subr.mxu0 0.0
  %658 = vmatpush1.msra.mxu0 %v199
  %659 = vmatprep.subr.mxu0 0.0
  %660 = vmatpush1.msra.mxu0 %v200
  %661 = vmatprep.subr.mxu0 0.0
  %662 = vmatpush1.msra.mxu0 %v201
  %663 = vmatprep.subr.mxu0 0.0
  %664 = vmatpush1.msra.mxu0 %v202
  %665 = vmatprep.subr.mxu0 0.0
  %666 = vmatpush1.msra.mxu0 %v225
  %667 = vmatprep.subr.mxu0 0.0
  %668 = vmatpush1.msra.mxu0 %v226
  %669 = vmatprep.subr.mxu0 0.0
  %670 = vmatpush1.msra.mxu0 %v227
  %671 = vmatprep.subr.mxu0 0.0
  %672 = vmatpush1.msra.mxu0 %v228
  %673 = vmatprep.subr.mxu0 0.0
  %674 = vmatpush1.msra.mxu0 %v229
  %675 = vmatprep.mubr.f32.mxu0 %v359
  %676 = vmatmul.mubr.f32.gmra.mrb[0].mxu0 %v358
  %v677 = vpop.f32.mrb[0].mxu0
  %v678 = vadd.f32 0.0, %v677
  %v679 = vpop.f32.mrb[0].mxu0
  %680 = vmatprep.mubr.f32.mxu0 %v365
  %681 = vmatmul.mubr.f32.gmra.mrb[0].mxu0 %v364
  %v682 = vpop.f32.mrb[0].mxu0
  %v683 = vadd.f32 0.0, %v682
  %v684 = vpop.f32.mrb[0].mxu0
  %685 = vmatprep.mubr.f32.mxu0 %v371
  %686 = vmatmul.mubr.f32.gmra.mrb[0].mxu0 %v370
  %v687 = vpop.f32.mrb[0].mxu0
  %v688 = vadd.f32 0.0, %v687
  %v689 = vpop.f32.mrb[0].mxu0
  %690 = vmatprep.mubr.f32.mxu0 %v377
  %691 = vmatmul.mubr.f32.gmra.mrb[0].mxu0 %v376
  %v692 = vpop.f32.mrb[0].mxu0
  %v693 = vadd.f32 0.0, %v692
  %v694 = vpop.f32.mrb[0].mxu0
  %695 = vmatprep.mubr.f32.mxu0 %v383
  %696 = vmatmul.mubr.f32.gmra.mrb[0].mxu0 %v382
  %v697 = vpop.f32.mrb[0].mxu0
  %v698 = vadd.f32 0.0, %v697
  %v699 = vpop.f32.mrb[0].mxu0
  %700 = vmatprep.mubr.f32.mxu0 %v389
  %701 = vmatmul.mubr.f32.gmra.mrb[0].mxu0 %v388
  %v702 = vpop.f32.mrb[0].mxu0
  %v703 = vadd.f32 0.0, %v702
  %v704 = vpop.f32.mrb[0].mxu0
  %705 = vmatprep.mubr.f32.mxu0 %v395
  %706 = vmatmul.mubr.f32.gmra.mrb[0].mxu0 %v394
  %v707 = vpop.f32.mrb[0].mxu0
  %v708 = vadd.f32 0.0, %v707
  %v709 = vpop.f32.mrb[0].mxu0
  %710 = vmatprep.mubr.f32.mxu0 %v401
  %711 = vmatmul.mubr.f32.gmra.mrb[0].mxu0 %v400
  %v712 = vpop.f32.mrb[0].mxu0
  %v713 = vadd.f32 0.0, %v712
  %v714 = vpop.f32.mrb[0].mxu0
  %715 = vmatprep.mubr.f32.mxu0 %v407
  %716 = vmatmul.mubr.f32.gmra.mrb[0].mxu0 %v406
  %v717 = vpop.f32.mrb[0].mxu0
  %v718 = vadd.f32 0.0, %v717
  %v719 = vpop.f32.mrb[0].mxu0
  %720 = vmatprep.mubr.f32.mxu0 %v413
  %721 = vmatmul.mubr.f32.gmra.mrb[0].mxu0 %v412
  %v722 = vpop.f32.mrb[0].mxu0
  %v723 = vadd.f32 0.0, %v722
  %v724 = vpop.f32.mrb[0].mxu0
  %725 = vmatprep.mubr.f32.mxu0 %v419
  %726 = vmatmul.mubr.f32.gmra.mrb[0].mxu0 %v418
  %v727 = vpop.f32.mrb[0].mxu0
  %v728 = vadd.f32 0.0, %v727
  %v729 = vpop.f32.mrb[0].mxu0
  %730 = vmatprep.mubr.f32.mxu0 %v425
  %731 = vmatmul.mubr.f32.gmra.mrb[0].mxu0 %v424
  %v732 = vpop.f32.mrb[0].mxu0
  %v733 = vadd.f32 0.0, %v732
  %v734 = vpop.f32.mrb[0].mxu0
  %735 = vmatprep.mubr.f32.mxu0 %v431
  %736 = vmatmul.mubr.f32.gmra.mrb[0].mxu0 %v430
  %v737 = vpop.f32.mrb[0].mxu0
  %v738 = vadd.f32 0.0, %v737
  %v739 = vpop.f32.mrb[0].mxu0
  %740 = vmatprep.mubr.f32.mxu0 %v437
  %741 = vmatmul.mubr.f32.gmra.mrb[0].mxu0 %v436
  %v742 = vpop.f32.mrb[0].mxu0
  %v743 = vadd.f32 0.0, %v742
  %v744 = vpop.f32.mrb[0].mxu0
  %745 = vmatprep.mubr.f32.mxu0 %v443
  %746 = vmatmul.mubr.f32.gmra.mrb[0].mxu0 %v442
  %v747 = vpop.f32.mrb[0].mxu0
  %v748 = vadd.f32 0.0, %v747
  %v749 = vpop.f32.mrb[0].mxu0
  %750 = vmatprep.mubr.f32.mxu0 %v449
  %751 = vmatmul.mubr.f32.gmra.mrb[0].mxu0 %v448
  %v752 = vpop.f32.mrb[0].mxu0
  %v753 = vadd.f32 0.0, %v752
  %v754 = vpop.f32.mrb[0].mxu0
  %755 = vmatprep.mubr.f32.mxu0 %v455
  %756 = vmatmul.mubr.f32.gmra.mrb[0].mxu0 %v454
  %v757 = vpop.f32.mrb[0].mxu0
  %v758 = vadd.f32 0.0, %v757
  %v759 = vpop.f32.mrb[0].mxu0
  %760 = vmatprep.mubr.f32.mxu0 %v461
  %761 = vmatmul.mubr.f32.gmra.mrb[0].mxu0 %v460
  %v762 = vpop.f32.mrb[0].mxu0
  %v763 = vadd.f32 0.0, %v762
  %v764 = vpop.f32.mrb[0].mxu0
  %765 = vmatprep.mubr.f32.mxu0 %v467
  %766 = vmatmul.mubr.f32.gmra.mrb[0].mxu0 %v466
  %v767 = vpop.f32.mrb[0].mxu0
  %v768 = vadd.f32 0.0, %v767
  %v769 = vpop.f32.mrb[0].mxu0
  %770 = vmatprep.mubr.f32.mxu0 %v473
  %771 = vmatmul.mubr.f32.gmra.mrb[0].mxu0 %v472
  %v772 = vpop.f32.mrb[0].mxu0
  %v773 = vadd.f32 0.0, %v772
  %v774 = vpop.f32.mrb[0].mxu0
  %775 = vmatprep.mubr.f32.mxu0 %v479
  %776 = vmatmul.mubr.f32.gmra.mrb[0].mxu0 %v478
  %v777 = vpop.f32.mrb[0].mxu0
  %v778 = vadd.f32 0.0, %v777
  %v779 = vpop.f32.mrb[0].mxu0
  %780 = vmatprep.mubr.f32.mxu0 %v485
  %781 = vmatmul.mubr.f32.gmra.mrb[0].mxu0 %v484
  %v782 = vpop.f32.mrb[0].mxu0
  %v783 = vadd.f32 0.0, %v782
  %v784 = vpop.f32.mrb[0].mxu0
  %785 = vmatprep.mubr.f32.mxu0 %v491
  %786 = vmatmul.mubr.f32.gmra.mrb[0].mxu0 %v490
  %v787 = vpop.f32.mrb[0].mxu0
  %v788 = vadd.f32 0.0, %v787
  %v789 = vpop.f32.mrb[0].mxu0
  %790 = vmatprep.mubr.f32.mxu0 %v497
  %791 = vmatmul.mubr.f32.gmra.mrb[0].mxu0 %v496
  %v792 = vpop.f32.mrb[0].mxu0
  %v793 = vadd.f32 0.0, %v792
  %v794 = vpop.f32.mrb[0].mxu0
  %795 = vmatprep.mubr.f32.mxu0 %v503
  %796 = vmatmul.mubr.f32.gmra.mrb[0].mxu0 %v502
  %v797 = vpop.f32.mrb[0].mxu0
  %v798 = vadd.f32 0.0, %v797
  %v799 = vpop.f32.mrb[0].mxu0
  %800 = vmatprep.mubr.f32.mxu0 %v509
  %801 = vmatmul.mubr.f32.gmra.mrb[0].mxu0 %v508
  %v802 = vpop.f32.mrb[0].mxu0
  %v803 = vadd.f32 0.0, %v802
  %v804 = vpop.f32.mrb[0].mxu0
  %805 = vmatprep.mubr.f32.mxu0 %v515
  %806 = vmatmul.mubr.f32.gmra.mrb[0].mxu0 %v514
  %v807 = vpop.f32.mrb[0].mxu0
  %v808 = vadd.f32 0.0, %v807
  %v809 = vpop.f32.mrb[0].mxu0
  %810 = vmatprep.mubr.f32.mxu0 %v521
  %811 = vmatmul.mubr.f32.gmra.mrb[0].mxu0 %v520
  %v812 = vpop.f32.mrb[0].mxu0
  %v813 = vadd.f32 0.0, %v812
  %v814 = vpop.f32.mrb[0].mxu0
  %815 = vdwg.mxu0
  %816 = vmatprep.subr.mxu0 0.0
  %817 = vmatpush1.msra.mxu0 %v230
  %818 = vmatprep.subr.mxu0 0.0
  %819 = vmatpush1.msra.mxu0 %v231
  %820 = vmatprep.subr.mxu0 0.0
  %821 = vmatpush1.msra.mxu0 %v232
  %822 = vmatprep.subr.mxu0 0.0
  %823 = vmatpush1.msra.mxu0 %v233
  %824 = vmatprep.subr.mxu0 0.0
  %825 = vmatpush1.msra.mxu0 %v97
  %826 = vmatprep.subr.mxu0 0.0
  %827 = vmatpush1.msra.mxu0 %v102
  %828 = vmatprep.subr.mxu0 0.0
  %829 = vmatpush1.msra.mxu0 %v103
  %830 = vmatprep.subr.mxu0 0.0
  %831 = vmatpush1.msra.mxu0 %v104
  %832 = vmatprep.subr.mxu0 0.0
  %833 = vmatpush1.msra.mxu0 %v105
  %834 = vmatprep.subr.mxu0 0.0
  %835 = vmatpush1.msra.mxu0 %v98
  %836 = vmatprep.subr.mxu0 0.0
  %837 = vmatpush1.msra.mxu0 %v99
  %838 = vmatprep.subr.mxu0 0.0
  %839 = vmatpush1.msra.mxu0 %v100
  %840 = vmatprep.subr.mxu0 0.0
  %841 = vmatpush1.msra.mxu0 %v101
  %842 = vmatprep.subr.mxu0 0.0
  %843 = vmatpush1.msra.mxu0 %v256
  %844 = vmatprep.subr.mxu0 0.0
  %845 = vmatpush1.msra.mxu0 %v257
  %846 = vmatprep.subr.mxu0 0.0
  %847 = vmatpush1.msra.mxu0 %v258
  %848 = vmatprep.subr.mxu0 0.0
  %849 = vmatpush1.msra.mxu0 %v259
  %850 = vmatprep.subr.mxu0 0.0
  %851 = vmatpush1.msra.mxu0 %v260
  %852 = vmatprep.subr.mxu0 0.0
  %853 = vmatpush1.msra.mxu0 %v261
  %854 = vmatprep.subr.mxu0 0.0
  %855 = vmatpush1.msra.mxu0 %v262
  %856 = vmatprep.subr.mxu0 0.0
  %857 = vmatpush1.msra.mxu0 %v263
  %858 = vmatprep.subr.mxu0 0.0
  %859 = vmatpush1.msra.mxu0 %v264
  %860 = vmatprep.subr.mxu0 0.0
  %861 = vmatpush1.msra.mxu0 %v287
  %862 = vmatprep.subr.mxu0 0.0
  %863 = vmatpush1.msra.mxu0 %v288
  %864 = vmatprep.subr.mxu0 0.0
  %865 = vmatpush1.msra.mxu0 %v289
  %866 = vmatprep.subr.mxu0 0.0
  %867 = vmatpush1.msra.mxu0 %v290
  %868 = vmatprep.subr.mxu0 0.0
  %869 = vmatpush1.msra.mxu0 %v291
  %870 = vmatprep.subr.mxu0 0.0
  %871 = vmatpush1.msra.mxu0 %v292
  %872 = vmatprep.subr.mxu0 0.0
  %873 = vmatpush1.msra.mxu0 %v293
  %874 = vmatprep.subr.mxu0 0.0
  %875 = vmatpush1.msra.mxu0 %v294
  %876 = vmatprep.subr.mxu0 0.0
  %877 = vmatpush1.msra.mxu0 %v295
  %878 = vmatprep.subr.mxu0 0.0
  %879 = vmatpush1.msra.mxu0 %v318
  %880 = vmatprep.mubr.f32.mxu0 %v361
  %881 = vmatmul.mubr.f32.gmra.mrb[0].mxu0 %v360
  %v882 = vpop.f32.mrb[0].mxu0
  %v883 = vadd.f32 %v678, %v882
  %v884 = vpop.f32.mrb[0].mxu0
  %885 = vmatprep.mubr.f32.mxu0 %v367
  %886 = vmatmul.mubr.f32.gmra.mrb[0].mxu0 %v366
  %v887 = vpop.f32.mrb[0].mxu0
  %v888 = vadd.f32 %v683, %v887
  %v889 = vpop.f32.mrb[0].mxu0
  %890 = vmatprep.mubr.f32.mxu0 %v373
  %891 = vmatmul.mubr.f32.gmra.mrb[0].mxu0 %v372
  %v892 = vpop.f32.mrb[0].mxu0
  %v893 = vadd.f32 %v688, %v892
  %v894 = vpop.f32.mrb[0].mxu0
  %895 = vmatprep.mubr.f32.mxu0 %v379
  %896 = vmatmul.mubr.f32.gmra.mrb[0].mxu0 %v378
  %v897 = vpop.f32.mrb[0].mxu0
  %v898 = vadd.f32 %v693, %v897
  %v899 = vpop.f32.mrb[0].mxu0
  %900 = vmatprep.mubr.f32.mxu0 %v385
  %901 = vmatmul.mubr.f32.gmra.mrb[0].mxu0 %v384
  %v902 = vpop.f32.mrb[0].mxu0
  %v903 = vadd.f32 %v698, %v902
  %v904 = vpop.f32.mrb[0].mxu0
  %905 = vmatprep.mubr.f32.mxu0 %v391
  %906 = vmatmul.mubr.f32.gmra.mrb[0].mxu0 %v390
  %v907 = vpop.f32.mrb[0].mxu0
  %v908 = vadd.f32 %v703, %v907
  %v909 = vpop.f32.mrb[0].mxu0
  %910 = vmatprep.mubr.f32.mxu0 %v397
  %911 = vmatmul.mubr.f32.gmra.mrb[0].mxu0 %v396
  %v912 = vpop.f32.mrb[0].mxu0
  %v913 = vadd.f32 %v708, %v912
  %v914 = vpop.f32.mrb[0].mxu0
  %915 = vmatprep.mubr.f32.mxu0 %v403
  %916 = vmatmul.mubr.f32.gmra.mrb[0].mxu0 %v402
  %v917 = vpop.f32.mrb[0].mxu0
  %v918 = vadd.f32 %v713, %v917
  %v919 = vpop.f32.mrb[0].mxu0
  %920 = vmatprep.mubr.f32.mxu0 %v409
  %921 = vmatmul.mubr.f32.gmra.mrb[0].mxu0 %v408
  %v922 = vpop.f32.mrb[0].mxu0
  %v923 = vadd.f32 %v718, %v922
  %v924 = vpop.f32.mrb[0].mxu0
  %925 = vmatprep.mubr.f32.mxu0 %v415
  %926 = vmatmul.mubr.f32.gmra.mrb[0].mxu0 %v414
  %v927 = vpop.f32.mrb[0].mxu0
  %v928 = vadd.f32 %v723, %v927
  %v929 = vpop.f32.mrb[0].mxu0
  %930 = vmatprep.mubr.f32.mxu0 %v421
  %931 = vmatmul.mubr.f32.gmra.mrb[0].mxu0 %v420
  %v932 = vpop.f32.mrb[0].mxu0
  %v933 = vadd.f32 %v728, %v932
  %v934 = vpop.f32.mrb[0].mxu0
  %935 = vmatprep.mubr.f32.mxu0 %v427
  %936 = vmatmul.mubr.f32.gmra.mrb[0].mxu0 %v426
  %v937 = vpop.f32.mrb[0].mxu0
  %v938 = vadd.f32 %v733, %v937
  %v939 = vpop.f32.mrb[0].mxu0
  %940 = vmatprep.mubr.f32.mxu0 %v433
  %941 = vmatmul.mubr.f32.gmra.mrb[0].mxu0 %v432
  %v942 = vpop.f32.mrb[0].mxu0
  %v943 = vadd.f32 %v738, %v942
  %v944 = vpop.f32.mrb[0].mxu0
  %945 = vmatprep.mubr.f32.mxu0 %v439
  %946 = vmatmul.mubr.f32.gmra.mrb[0].mxu0 %v438
  %v947 = vpop.f32.mrb[0].mxu0
  %v948 = vadd.f32 %v743, %v947
  %v949 = vpop.f32.mrb[0].mxu0
  %950 = vmatprep.mubr.f32.mxu0 %v445
  %951 = vmatmul.mubr.f32.gmra.mrb[0].mxu0 %v444
  %v952 = vpop.f32.mrb[0].mxu0
  %v953 = vadd.f32 %v748, %v952
  %v954 = vpop.f32.mrb[0].mxu0
  %955 = vmatprep.mubr.f32.mxu0 %v451
  %956 = vmatmul.mubr.f32.gmra.mrb[0].mxu0 %v450
  %v957 = vpop.f32.mrb[0].mxu0
  %v958 = vadd.f32 %v753, %v957
  %v959 = vpop.f32.mrb[0].mxu0
  %960 = vmatprep.mubr.f32.mxu0 %v457
  %961 = vmatmul.mubr.f32.gmra.mrb[0].mxu0 %v456
  %v962 = vpop.f32.mrb[0].mxu0
  %v963 = vadd.f32 %v758, %v962
  %v964 = vpop.f32.mrb[0].mxu0
  %965 = vmatprep.mubr.f32.mxu0 %v463
  %966 = vmatmul.mubr.f32.gmra.mrb[0].mxu0 %v462
  %v967 = vpop.f32.mrb[0].mxu0
  %v968 = vadd.f32 %v763, %v967
  %v969 = vpop.f32.mrb[0].mxu0
  %970 = vmatprep.mubr.f32.mxu0 %v469
  %971 = vmatmul.mubr.f32.gmra.mrb[0].mxu0 %v468
  %v972 = vpop.f32.mrb[0].mxu0
  %v973 = vadd.f32 %v768, %v972
  %v974 = vpop.f32.mrb[0].mxu0
  %975 = vmatprep.mubr.f32.mxu0 %v475
  %976 = vmatmul.mubr.f32.gmra.mrb[0].mxu0 %v474
  %v977 = vpop.f32.mrb[0].mxu0
  %v978 = vadd.f32 %v773, %v977
  %v979 = vpop.f32.mrb[0].mxu0
  %980 = vmatprep.mubr.f32.mxu0 %v481
  %981 = vmatmul.mubr.f32.gmra.mrb[0].mxu0 %v480
  %v982 = vpop.f32.mrb[0].mxu0
  %v983 = vadd.f32 %v778, %v982
  %v984 = vpop.f32.mrb[0].mxu0
  %985 = vmatprep.mubr.f32.mxu0 %v487
  %986 = vmatmul.mubr.f32.gmra.mrb[0].mxu0 %v486
  %v987 = vpop.f32.mrb[0].mxu0
  %v988 = vadd.f32 %v783, %v987
  %v989 = vpop.f32.mrb[0].mxu0
  %990 = vmatprep.mubr.f32.mxu0 %v493
  %991 = vmatmul.mubr.f32.gmra.mrb[0].mxu0 %v492
  %v992 = vpop.f32.mrb[0].mxu0
  %v993 = vadd.f32 %v788, %v992
  %v994 = vpop.f32.mrb[0].mxu0
  %995 = vmatprep.mubr.f32.mxu0 %v499
  %996 = vmatmul.mubr.f32.gmra.mrb[0].mxu0 %v498
  %v997 = vpop.f32.mrb[0].mxu0
  %v998 = vadd.f32 %v793, %v997
  %v999 = vpop.f32.mrb[0].mxu0
  %1000 = vmatprep.mubr.f32.mxu0 %v505
  %1001 = vmatmul.mubr.f32.gmra.mrb[0].mxu0 %v504
  %v1002 = vpop.f32.mrb[0].mxu0
  %v1003 = vadd.f32 %v798, %v1002
  %v1004 = vpop.f32.mrb[0].mxu0
  %1005 = vmatprep.mubr.f32.mxu0 %v511
  %1006 = vmatmul.mubr.f32.gmra.mrb[0].mxu0 %v510
  %v1007 = vpop.f32.mrb[0].mxu0
  %v1008 = vadd.f32 %v803, %v1007
  %v1009 = vpop.f32.mrb[0].mxu0
  %1010 = vmatprep.mubr.f32.mxu0 %v517
  %1011 = vmatmul.mubr.f32.gmra.mrb[0].mxu0 %v516
  %v1012 = vpop.f32.mrb[0].mxu0
  %v1013 = vadd.f32 %v808, %v1012
  %v1014 = vpop.f32.mrb[0].mxu0
  %1015 = vmatprep.mubr.f32.mxu0 %v523
  %1016 = vmatmul.mubr.f32.gmra.mrb[0].mxu0 %v522
  %v1017 = vpop.f32.mrb[0].mxu0
  %v1018 = vadd.f32 %v813, %v1017
  %v1019 = vpop.f32.mrb[0].mxu0
  %1020 = vdwg.mxu0
  %1021 = vmatprep.subr.mxu0 0.0
  %1022 = vmatpush1.msra.mxu0 %v319
  %1023 = vmatprep.subr.mxu0 0.0
  %1024 = vmatpush1.msra.mxu0 %v320
  %1025 = vmatprep.subr.mxu0 0.0
  %1026 = vmatpush1.msra.mxu0 %v321
  %1027 = vmatprep.subr.mxu0 0.0
  %1028 = vmatpush1.msra.mxu0 %v322
  %1029 = vmatprep.subr.mxu0 0.0
  %1030 = vmatpush1.msra.mxu0 %v323
  %1031 = vmatprep.subr.mxu0 0.0
  %1032 = vmatpush1.msra.mxu0 %v324
  %1033 = vmatprep.subr.mxu0 0.0
  %1034 = vmatpush1.msra.mxu0 %v325
  %1035 = vmatprep.subr.mxu0 0.0
  %1036 = vmatpush1.msra.mxu0 %v326
  %1037 = vmatprep.subr.mxu0 0.0
  %1038 = vmatpush1.msra.mxu0 %v349
  %1039 = vmatprep.subr.mxu0 0.0
  %1040 = vmatpush1.msra.mxu0 %v350
  %1041 = vmatprep.subr.mxu0 0.0
  %1042 = vmatpush1.msra.mxu0 %v351
  %1043 = vmatprep.subr.mxu0 0.0
  %1044 = vmatpush1.msra.mxu0 %v352
  %1045 = vmatprep.subr.mxu0 0.0
  %1046 = vmatpush1.msra.mxu0 %v353
  %1047 = vmatprep.subr.mxu0 0.0
  %1048 = vmatpush1.msra.mxu0 %v354
  %1049 = vmatprep.subr.mxu0 0.0
  %1050 = vmatpush1.msra.mxu0 %v355
  %1051 = vmatprep.subr.mxu0 0.0
  %1052 = vmatpush1.msra.mxu0 %v356
  %1053 = vmatprep.subr.mxu0 0.0
  %1054 = vmatpush1.msra.mxu0 %v357
  %1055 = vmatprep.subr.mxu0 0.0
  %1056 = vmatpush1.msra.mxu0 0.0
  %1057 = vmatprep.subr.mxu0 0.0
  %1058 = vmatpush1.msra.mxu0 0.0
  %1059 = vmatprep.subr.mxu0 0.0
  %1060 = vmatpush1.msra.mxu0 0.0
  %1061 = vmatprep.subr.mxu0 0.0
  %1062 = vmatpush1.msra.mxu0 0.0
  %1063 = vmatprep.subr.mxu0 0.0
  %1064 = vmatpush1.msra.mxu0 0.0
  %1065 = vmatprep.subr.mxu0 0.0
  %1066 = vmatpush1.msra.mxu0 0.0
  %1067 = vmatprep.subr.mxu0 0.0
  %1068 = vmatpush1.msra.mxu0 0.0
  %1069 = vmatprep.subr.mxu0 0.0
  %1070 = vmatpush1.msra.mxu0 0.0
  %1071 = vmatprep.subr.mxu0 0.0
  %1072 = vmatpush1.msra.mxu0 0.0
  %1073 = vmatprep.subr.mxu0 0.0
  %1074 = vmatpush1.msra.mxu0 0.0
  %1075 = vmatprep.subr.mxu0 0.0
  %1076 = vmatpush1.msra.mxu0 0.0
  %1077 = vmatprep.subr.mxu0 0.0
  %1078 = vmatpush1.msra.mxu0 0.0
  %1079 = vmatprep.subr.mxu0 0.0
  %1080 = vmatpush1.msra.mxu0 0.0
  %1081 = vmatprep.subr.mxu0 0.0
  %1082 = vmatpush1.msra.mxu0 0.0
  %1083 = vmatprep.subr.mxu0 0.0
  %1084 = vmatpush1.msra.mxu0 0.0
  %1085 = vmatprep.mubr.f32.mxu0 %v528
  %1086 = vmatmul.mubr.f32.gmra.mrb[0].mxu0 %v362
  %v1087 = vpop.f32.mrb[0].mxu0
  %v1088 = vadd.f32 %v883, %v1087
  %v1089 = vpop.f32.mrb[0].mxu0
  %1090 = vmatprep.mubr.f32.mxu0 %v531
  %1091 = vmatmul.mubr.f32.gmra.mrb[0].mxu0 %v368
  %v1092 = vpop.f32.mrb[0].mxu0
  %v1093 = vadd.f32 %v888, %v1092
  %v1094 = vpop.f32.mrb[0].mxu0
  %1095 = vmatprep.mubr.f32.mxu0 %v534
  %1096 = vmatmul.mubr.f32.gmra.mrb[0].mxu0 %v374
  %v1097 = vpop.f32.mrb[0].mxu0
  %v1098 = vadd.f32 %v893, %v1097
  %v1099 = vpop.f32.mrb[0].mxu0
  %1100 = vmatprep.mubr.f32.mxu0 %v537
  %1101 = vmatmul.mubr.f32.gmra.mrb[0].mxu0 %v380
  %v1102 = vpop.f32.mrb[0].mxu0
  %v1103 = vadd.f32 %v898, %v1102
  %v1104 = vpop.f32.mrb[0].mxu0
  %1105 = vmatprep.mubr.f32.mxu0 %v540
  %1106 = vmatmul.mubr.f32.gmra.mrb[0].mxu0 %v386
  %v1107 = vpop.f32.mrb[0].mxu0
  %v1108 = vadd.f32 %v903, %v1107
  %v1109 = vpop.f32.mrb[0].mxu0
  %1110 = vmatprep.mubr.f32.mxu0 %v543
  %1111 = vmatmul.mubr.f32.gmra.mrb[0].mxu0 %v392
  %v1112 = vpop.f32.mrb[0].mxu0
  %v1113 = vadd.f32 %v908, %v1112
  %v1114 = vpop.f32.mrb[0].mxu0
  %1115 = vmatprep.mubr.f32.mxu0 %v546
  %1116 = vmatmul.mubr.f32.gmra.mrb[0].mxu0 %v398
  %v1117 = vpop.f32.mrb[0].mxu0
  %v1118 = vadd.f32 %v913, %v1117
  %v1119 = vpop.f32.mrb[0].mxu0
  %1120 = vmatprep.mubr.f32.mxu0 %v549
  %1121 = vmatmul.mubr.f32.gmra.mrb[0].mxu0 %v404
  %v1122 = vpop.f32.mrb[0].mxu0
  %v1123 = vadd.f32 %v918, %v1122
  %v1124 = vpop.f32.mrb[0].mxu0
  %1125 = vmatprep.mubr.f32.mxu0 %v552
  %1126 = vmatmul.mubr.f32.gmra.mrb[0].mxu0 %v410
  %v1127 = vpop.f32.mrb[0].mxu0
  %v1128 = vadd.f32 %v923, %v1127
  %v1129 = vpop.f32.mrb[0].mxu0
  %1130 = vmatprep.mubr.f32.mxu0 %v555
  %1131 = vmatmul.mubr.f32.gmra.mrb[0].mxu0 %v416
  %v1132 = vpop.f32.mrb[0].mxu0
  %v1133 = vadd.f32 %v928, %v1132
  %v1134 = vpop.f32.mrb[0].mxu0
  %1135 = vmatprep.mubr.f32.mxu0 %v558
  %1136 = vmatmul.mubr.f32.gmra.mrb[0].mxu0 %v422
  %v1137 = vpop.f32.mrb[0].mxu0
  %v1138 = vadd.f32 %v933, %v1137
  %v1139 = vpop.f32.mrb[0].mxu0
  %1140 = vmatprep.mubr.f32.mxu0 %v561
  %1141 = vmatmul.mubr.f32.gmra.mrb[0].mxu0 %v428
  %v1142 = vpop.f32.mrb[0].mxu0
  %v1143 = vadd.f32 %v938, %v1142
  %v1144 = vpop.f32.mrb[0].mxu0
  %1145 = vmatprep.mubr.f32.mxu0 %v564
  %1146 = vmatmul.mubr.f32.gmra.mrb[0].mxu0 %v434
  %v1147 = vpop.f32.mrb[0].mxu0
  %v1148 = vadd.f32 %v943, %v1147
  %v1149 = vpop.f32.mrb[0].mxu0
  %1150 = vmatprep.mubr.f32.mxu0 %v567
  %1151 = vmatmul.mubr.f32.gmra.mrb[0].mxu0 %v440
  %v1152 = vpop.f32.mrb[0].mxu0
  %v1153 = vadd.f32 %v948, %v1152
  %v1154 = vpop.f32.mrb[0].mxu0
  %1155 = vmatprep.mubr.f32.mxu0 %v570
  %1156 = vmatmul.mubr.f32.gmra.mrb[0].mxu0 %v446
  %v1157 = vpop.f32.mrb[0].mxu0
  %v1158 = vadd.f32 %v953, %v1157
  %v1159 = vpop.f32.mrb[0].mxu0
  %1160 = vmatprep.mubr.f32.mxu0 %v573
  %1161 = vmatmul.mubr.f32.gmra.mrb[0].mxu0 %v452
  %v1162 = vpop.f32.mrb[0].mxu0
  %v1163 = vadd.f32 %v958, %v1162
  %v1164 = vpop.f32.mrb[0].mxu0
  %1165 = vmatprep.mubr.f32.mxu0 %v576
  %1166 = vmatmul.mubr.f32.gmra.mrb[0].mxu0 %v458
  %v1167 = vpop.f32.mrb[0].mxu0
  %v1168 = vadd.f32 %v963, %v1167
  %v1169 = vpop.f32.mrb[0].mxu0
  %1170 = vmatprep.mubr.f32.mxu0 %v579
  %1171 = vmatmul.mubr.f32.gmra.mrb[0].mxu0 %v464
  %v1172 = vpop.f32.mrb[0].mxu0
  %v1173 = vadd.f32 %v968, %v1172
  %v1174 = vpop.f32.mrb[0].mxu0
  %1175 = vmatprep.mubr.f32.mxu0 %v582
  %1176 = vmatmul.mubr.f32.gmra.mrb[0].mxu0 %v470
  %v1177 = vpop.f32.mrb[0].mxu0
  %v1178 = vadd.f32 %v973, %v1177
  %v1179 = vpop.f32.mrb[0].mxu0
  %1180 = vmatprep.mubr.f32.mxu0 %v585
  %1181 = vmatmul.mubr.f32.gmra.mrb[0].mxu0 %v476
  %v1182 = vpop.f32.mrb[0].mxu0
  %v1183 = vadd.f32 %v978, %v1182
  %v1184 = vpop.f32.mrb[0].mxu0
  %1185 = vmatprep.mubr.f32.mxu0 %v588
  %1186 = vmatmul.mubr.f32.gmra.mrb[0].mxu0 %v482
  %v1187 = vpop.f32.mrb[0].mxu0
  %v1188 = vadd.f32 %v983, %v1187
  %v1189 = vpop.f32.mrb[0].mxu0
  %1190 = vmatprep.mubr.f32.mxu0 %v591
  %1191 = vmatmul.mubr.f32.gmra.mrb[0].mxu0 %v488
  %v1192 = vpop.f32.mrb[0].mxu0
  %v1193 = vadd.f32 %v988, %v1192
  %v1194 = vpop.f32.mrb[0].mxu0
  %1195 = vmatprep.mubr.f32.mxu0 %v594
  %1196 = vmatmul.mubr.f32.gmra.mrb[0].mxu0 %v494
  %v1197 = vpop.f32.mrb[0].mxu0
  %v1198 = vadd.f32 %v993, %v1197
  %v1199 = vpop.f32.mrb[0].mxu0
  %1200 = vmatprep.mubr.f32.mxu0 %v597
  %1201 = vmatmul.mubr.f32.gmra.mrb[0].mxu0 %v500
  %v1202 = vpop.f32.mrb[0].mxu0
  %v1203 = vadd.f32 %v998, %v1202
  %v1204 = vpop.f32.mrb[0].mxu0
  %1205 = vmatprep.mubr.f32.mxu0 %v600
  %1206 = vmatmul.mubr.f32.gmra.mrb[0].mxu0 %v506
  %v1207 = vpop.f32.mrb[0].mxu0
  %v1208 = vadd.f32 %v1003, %v1207
  %v1209 = vpop.f32.mrb[0].mxu0
  %1210 = vmatprep.mubr.f32.mxu0 %v603
  %1211 = vmatmul.mubr.f32.gmra.mrb[0].mxu0 %v512
  %v1212 = vpop.f32.mrb[0].mxu0
  %v1213 = vadd.f32 %v1008, %v1212
  %v1214 = vpop.f32.mrb[0].mxu0
  %1215 = vmatprep.mubr.f32.mxu0 %v606
  %1216 = vmatmul.mubr.f32.gmra.mrb[0].mxu0 %v518
  %v1217 = vpop.f32.mrb[0].mxu0
  %v1218 = vadd.f32 %v1013, %v1217
  %v1219 = vpop.f32.mrb[0].mxu0
  %1220 = vmatprep.mubr.f32.mxu0 %v609
  %1221 = vmatmul.mubr.f32.gmra.mrb[0].mxu0 %v524
  %v1222 = vpop.f32.mrb[0].mxu0
  %v1223 = vadd.f32 %v1018, %v1222
  %v1224 = vpop.f32.mrb[0].mxu0
  %1225 = vdwg.mxu0
  %v1226 = vxor.u32 %v1088, 2147483648
  %v1227 = vxor.u32 %v1093, 2147483648
  %v1228 = vxor.u32 %v1098, 2147483648
  %v1229 = vxor.u32 %v1103, 2147483648
  %v1230 = vmul.f32 %v1226, 1.442695
  %v1231 = vpow.pop %v1230
  %v1232 = vmul.f32 %v1227, 1.442695
  %v1233 = vpow.pop %v1232
  %v1234 = vmul.f32 %v1228, 1.442695
  %v1235 = vpow.pop %v1234
  %v1236 = vmul.f32 %v1229, 1.442695
  %v1237 = vpow.pop %v1236
  %v1238 = vadd.f32 %v1231, 1.0
  %v1239 = vadd.f32 %v1233, 1.0
  %v1240 = vadd.f32 %v1235, 1.0
  %v1241 = vadd.f32 %v1237, 1.0
  %v1242 = vrcp.pop %v1238
  %v1243 = vmul.f32 1.0, %v1242
  %v1244 = vrcp.pop %v1239
  %v1245 = vmul.f32 1.0, %v1244
  %v1246 = vrcp.pop %v1240
  %v1247 = vmul.f32 1.0, %v1246
  %v1248 = vrcp.pop %v1241
  %v1249 = vmul.f32 1.0, %v1248
  %v1250 = vadd.f32 %v1108, 1.0
  %v1251 = vadd.f32 %v1113, 1.0
  %v1252 = vadd.f32 %v1118, 1.0
  %v1253 = vadd.f32 %v1123, 1.0
  %v1254 = vxor.u32 %v1250, 2147483648
  %v1255 = vxor.u32 %v1251, 2147483648
  %v1256 = vxor.u32 %v1252, 2147483648
  %v1257 = vxor.u32 %v1253, 2147483648
  %v1258 = vmul.f32 %v1254, 1.442695
  %v1259 = vpow.pop %v1258
  %v1260 = vmul.f32 %v1255, 1.442695
  %v1261 = vpow.pop %v1260
  %v1262 = vmul.f32 %v1256, 1.442695
  %v1263 = vpow.pop %v1262
  %v1264 = vmul.f32 %v1257, 1.442695
  %v1265 = vpow.pop %v1264
  %v1266 = vadd.f32 %v1259, 1.0
  %v1267 = vadd.f32 %v1261, 1.0
  %v1268 = vadd.f32 %v1263, 1.0
  %v1269 = vadd.f32 %v1265, 1.0
  %v1270 = vrcp.pop %v1266
  %v1271 = vmul.f32 1.0, %v1270
  %v1272 = vrcp.pop %v1267
  %v1273 = vmul.f32 1.0, %v1272
  %v1274 = vrcp.pop %v1268
  %v1275 = vmul.f32 1.0, %v1274
  %v1276 = vrcp.pop %v1269
  %v1277 = vmul.f32 1.0, %v1276
  %v1278 = vtanh.pop %v1128
  %v1279 = vtanh.pop %v1133
  %v1280 = vtanh.pop %v1138
  %v1281 = vtanh.pop %v1143
  %v1282 = vmul.f32 %v1243, %v1278
  %v1283 = vmul.f32 %v1245, %v1279
  %v1284 = vmul.f32 %v1247, %v1280
  %v1285 = vmul.f32 %v1249, %v1281
  %v1286 = vmul.f32 %v1271, %v106
  %v1287 = vmul.f32 %v1273, %v107
  %v1288 = vmul.f32 %v1275, %v108
  %v1289 = vmul.f32 %v1277, %v109
  %v1290 = vadd.f32 %v1286, %v1282
  %v1291 = vadd.f32 %v1287, %v1283
  %v1292 = vadd.f32 %v1288, %v1284
  %v1293 = vadd.f32 %v1289, %v1285
  %v1294 = vxor.u32 %v1148, 2147483648
  %v1295 = vxor.u32 %v1153, 2147483648
  %v1296 = vxor.u32 %v1158, 2147483648
  %v1297 = vxor.u32 %v1163, 2147483648
  %v1298 = vmul.f32 %v1294, 1.442695
  %v1299 = vpow.pop %v1298
  %v1300 = vmul.f32 %v1295, 1.442695
  %v1301 = vpow.pop %v1300
  %v1302 = vmul.f32 %v1296, 1.442695
  %v1303 = vpow.pop %v1302
  %v1304 = vmul.f32 %v1297, 1.442695
  %v1305 = vpow.pop %v1304
  %v1306 = vadd.f32 %v1299, 1.0
  %v1307 = vadd.f32 %v1301, 1.0
  %v1308 = vadd.f32 %v1303, 1.0
  %v1309 = vadd.f32 %v1305, 1.0
  %v1310 = vrcp.pop %v1306
  %v1311 = vmul.f32 1.0, %v1310
  %v1312 = vrcp.pop %v1307
  %v1313 = vmul.f32 1.0, %v1312
  %v1314 = vrcp.pop %v1308
  %v1315 = vmul.f32 1.0, %v1314
  %v1316 = vrcp.pop %v1309
  %v1317 = vmul.f32 1.0, %v1316
  %v1318 = vadd.f32 %v1168, 1.0
  %v1319 = vadd.f32 %v1173, 1.0
  %v1320 = vadd.f32 %v1178, 1.0
  %v1321 = vadd.f32 %v1183, 1.0
  %v1322 = vxor.u32 %v1318, 2147483648
  %v1323 = vxor.u32 %v1319, 2147483648
  %v1324 = vxor.u32 %v1320, 2147483648
  %v1325 = vxor.u32 %v1321, 2147483648
  %v1326 = vmul.f32 %v1322, 1.442695
  %v1327 = vpow.pop %v1326
  %v1328 = vmul.f32 %v1323, 1.442695
  %v1329 = vpow.pop %v1328
  %v1330 = vmul.f32 %v1324, 1.442695
  %v1331 = vpow.pop %v1330
  %v1332 = vmul.f32 %v1325, 1.442695
  %v1333 = vpow.pop %v1332
  %v1334 = vadd.f32 %v1327, 1.0
  %v1335 = vadd.f32 %v1329, 1.0
  %v1336 = vadd.f32 %v1331, 1.0
  %v1337 = vadd.f32 %v1333, 1.0
  %v1338 = vrcp.pop %v1334
  %v1339 = vmul.f32 1.0, %v1338
  %v1340 = vrcp.pop %v1335
  %v1341 = vmul.f32 1.0, %v1340
  %v1342 = vrcp.pop %v1336
  %v1343 = vmul.f32 1.0, %v1342
  %v1344 = vrcp.pop %v1337
  %v1345 = vmul.f32 1.0, %v1344
  %v1346 = vtanh.pop %v1188
  %v1347 = vtanh.pop %v1193
  %v1348 = vtanh.pop %v1198
  %v1349 = vtanh.pop %v1203
  %v1350 = vmul.f32 %v1311, %v1346
  %v1351 = vmul.f32 %v1313, %v1347
  %v1352 = vmul.f32 %v1315, %v1348
  %v1353 = vmul.f32 %v1317, %v1349
  %v1354 = vmul.f32 %v1339, %v98
  %v1355 = vmul.f32 %v1341, %v99
  %v1356 = vmul.f32 %v1343, %v100
  %v1357 = vmul.f32 %v1345, %v101
  %v1358 = vadd.f32 %v1354, %v1350
  %v1359 = vadd.f32 %v1355, %v1351
  %v1360 = vadd.f32 %v1356, %v1352
  %v1361 = vadd.f32 %v1357, %v1353
  %1362 = vrot.lane.b32.xlu0 %v1290, 9
  %v1363 = vpop.permute.xlu0 %1362
  %1364 = vrot.lane.b32.xlu0 %v1291, 9
  %v1365 = vpop.permute.xlu0 %1364
  %1366 = vrot.lane.b32.xlu0 %v1292, 9
  %v1367 = vpop.permute.xlu0 %1366
  %1368 = vrot.lane.b32.xlu0 %v1293, 9
  %v1369 = vpop.permute.xlu0 %1368
  %1370 = vrot.lane.b32.xlu0 %v1358, 9
  %v1371 = vpop.permute.xlu0 %1370
  %1372 = vrot.lane.b32.xlu0 %v1359, 9
  %v1373 = vpop.permute.xlu0 %1372
  %1374 = vrot.lane.b32.xlu0 %v1360, 9
  %v1375 = vpop.permute.xlu0 %1374
  %1376 = vrot.lane.b32.xlu0 %v1361, 9
  %v1377 = vpop.permute.xlu0 %1376
  %v1378 = vmul.f32 %v1363, %v131
  %v1379 = vmul.f32 %v1365, %v131
  %v1380 = vmul.f32 %v1367, %v131
  %v1381 = vmul.f32 %v1369, %v131
  %v1382 = vmul.f32 %v1371, %v131
  %v1383 = vmul.f32 %v1373, %v131
  %v1384 = vmul.f32 %v1375, %v131
  %v1385 = vmul.f32 %v1377, %v131
  %1386 = vrot.lane.b32.xlu0 %v1290, 8
  %v1387 = vpop.permute.xlu0 %1386
  %1388 = vrot.lane.b32.xlu0 %v1291, 8
  %v1389 = vpop.permute.xlu0 %1388
  %1390 = vrot.lane.b32.xlu0 %v1292, 8
  %v1391 = vpop.permute.xlu0 %1390
  %1392 = vrot.lane.b32.xlu0 %v1293, 8
  %v1393 = vpop.permute.xlu0 %1392
  %1394 = vrot.lane.b32.xlu0 %v1358, 8
  %v1395 = vpop.permute.xlu0 %1394
  %1396 = vrot.lane.b32.xlu0 %v1359, 8
  %v1397 = vpop.permute.xlu0 %1396
  %1398 = vrot.lane.b32.xlu0 %v1360, 8
  %v1399 = vpop.permute.xlu0 %1398
  %1400 = vrot.lane.b32.xlu0 %v1361, 8
  %v1401 = vpop.permute.xlu0 %1400
  %v1402 = vmul.f32 %v1387, %v162
  %v1403 = vmul.f32 %v1389, %v162
  %v1404 = vmul.f32 %v1391, %v162
  %v1405 = vmul.f32 %v1393, %v162
  %v1406 = vmul.f32 %v1395, %v162
  %v1407 = vmul.f32 %v1397, %v162
  %v1408 = vmul.f32 %v1399, %v162
  %v1409 = vmul.f32 %v1401, %v162
  %1410 = vrot.lane.b32.xlu0 %v1290, 7
  %v1411 = vpop.permute.xlu0 %1410
  %1412 = vrot.lane.b32.xlu0 %v1291, 7
  %v1413 = vpop.permute.xlu0 %1412
  %1414 = vrot.lane.b32.xlu0 %v1292, 7
  %v1415 = vpop.permute.xlu0 %1414
  %1416 = vrot.lane.b32.xlu0 %v1293, 7
  %v1417 = vpop.permute.xlu0 %1416
  %1418 = vrot.lane.b32.xlu0 %v1358, 7
  %v1419 = vpop.permute.xlu0 %1418
  %1420 = vrot.lane.b32.xlu0 %v1359, 7
  %v1421 = vpop.permute.xlu0 %1420
  %1422 = vrot.lane.b32.xlu0 %v1360, 7
  %v1423 = vpop.permute.xlu0 %1422
  %1424 = vrot.lane.b32.xlu0 %v1361, 7
  %v1425 = vpop.permute.xlu0 %1424
  %v1426 = vmul.f32 %v1411, %v193
  %v1427 = vmul.f32 %v1413, %v193
  %v1428 = vmul.f32 %v1415, %v193
  %v1429 = vmul.f32 %v1417, %v193
  %v1430 = vmul.f32 %v1419, %v193
  %v1431 = vmul.f32 %v1421, %v193
  %v1432 = vmul.f32 %v1423, %v193
  %v1433 = vmul.f32 %v1425, %v193
  %1434 = vrot.lane.b32.xlu0 %v1290, 1
  %v1435 = vpop.permute.xlu0 %1434
  %1436 = vrot.lane.b32.xlu0 %v1291, 1
  %v1437 = vpop.permute.xlu0 %1436
  %1438 = vrot.lane.b32.xlu0 %v1292, 1
  %v1439 = vpop.permute.xlu0 %1438
  %1440 = vrot.lane.b32.xlu0 %v1293, 1
  %v1441 = vpop.permute.xlu0 %1440
  %1442 = vrot.lane.b32.xlu0 %v1358, 1
  %v1443 = vpop.permute.xlu0 %1442
  %1444 = vrot.lane.b32.xlu0 %v1359, 1
  %v1445 = vpop.permute.xlu0 %1444
  %1446 = vrot.lane.b32.xlu0 %v1360, 1
  %v1447 = vpop.permute.xlu0 %1446
  %1448 = vrot.lane.b32.xlu0 %v1361, 1
  %v1449 = vpop.permute.xlu0 %1448
  %v1450 = vmul.f32 %v1435, %v224
  %v1451 = vmul.f32 %v1437, %v224
  %v1452 = vmul.f32 %v1439, %v224
  %v1453 = vmul.f32 %v1441, %v224
  %v1454 = vmul.f32 %v1443, %v224
  %v1455 = vmul.f32 %v1445, %v224
  %v1456 = vmul.f32 %v1447, %v224
  %v1457 = vmul.f32 %v1449, %v224
  %1458 = vrot.lane.b32.xlu0 %v1290, 127
  %v1459 = vpop.permute.xlu0 %1458
  %1460 = vrot.lane.b32.xlu0 %v1291, 127
  %v1461 = vpop.permute.xlu0 %1460
  %1462 = vrot.lane.b32.xlu0 %v1292, 127
  %v1463 = vpop.permute.xlu0 %1462
  %1464 = vrot.lane.b32.xlu0 %v1293, 127
  %v1465 = vpop.permute.xlu0 %1464
  %1466 = vrot.lane.b32.xlu0 %v1358, 127
  %v1467 = vpop.permute.xlu0 %1466
  %1468 = vrot.lane.b32.xlu0 %v1359, 127
  %v1469 = vpop.permute.xlu0 %1468
  %1470 = vrot.lane.b32.xlu0 %v1360, 127
  %v1471 = vpop.permute.xlu0 %1470
  %1472 = vrot.lane.b32.xlu0 %v1361, 127
  %v1473 = vpop.permute.xlu0 %1472
  %v1474 = vmul.f32 %v1459, %v255
  %v1475 = vmul.f32 %v1461, %v255
  %v1476 = vmul.f32 %v1463, %v255
  %v1477 = vmul.f32 %v1465, %v255
  %v1478 = vmul.f32 %v1467, %v255
  %v1479 = vmul.f32 %v1469, %v255
  %v1480 = vmul.f32 %v1471, %v255
  %v1481 = vmul.f32 %v1473, %v255
  %1482 = vrot.lane.b32.xlu0 %v1290, 121
  %v1483 = vpop.permute.xlu0 %1482
  %1484 = vrot.lane.b32.xlu0 %v1291, 121
  %v1485 = vpop.permute.xlu0 %1484
  %1486 = vrot.lane.b32.xlu0 %v1292, 121
  %v1487 = vpop.permute.xlu0 %1486
  %1488 = vrot.lane.b32.xlu0 %v1293, 121
  %v1489 = vpop.permute.xlu0 %1488
  %1490 = vrot.lane.b32.xlu0 %v1358, 121
  %v1491 = vpop.permute.xlu0 %1490
  %1492 = vrot.lane.b32.xlu0 %v1359, 121
  %v1493 = vpop.permute.xlu0 %1492
  %1494 = vrot.lane.b32.xlu0 %v1360, 121
  %v1495 = vpop.permute.xlu0 %1494
  %1496 = vrot.lane.b32.xlu0 %v1361, 121
  %v1497 = vpop.permute.xlu0 %1496
  %v1498 = vmul.f32 %v1483, %v286
  %v1499 = vmul.f32 %v1485, %v286
  %v1500 = vmul.f32 %v1487, %v286
  %v1501 = vmul.f32 %v1489, %v286
  %v1502 = vmul.f32 %v1491, %v286
  %v1503 = vmul.f32 %v1493, %v286
  %v1504 = vmul.f32 %v1495, %v286
  %v1505 = vmul.f32 %v1497, %v286
  %1506 = vrot.lane.b32.xlu0 %v1290, 120
  %v1507 = vpop.permute.xlu0 %1506
  %1508 = vrot.lane.b32.xlu0 %v1291, 120
  %v1509 = vpop.permute.xlu0 %1508
  %1510 = vrot.lane.b32.xlu0 %v1292, 120
  %v1511 = vpop.permute.xlu0 %1510
  %1512 = vrot.lane.b32.xlu0 %v1293, 120
  %v1513 = vpop.permute.xlu0 %1512
  %1514 = vrot.lane.b32.xlu0 %v1358, 120
  %v1515 = vpop.permute.xlu0 %1514
  %1516 = vrot.lane.b32.xlu0 %v1359, 120
  %v1517 = vpop.permute.xlu0 %1516
  %1518 = vrot.lane.b32.xlu0 %v1360, 120
  %v1519 = vpop.permute.xlu0 %1518
  %1520 = vrot.lane.b32.xlu0 %v1361, 120
  %v1521 = vpop.permute.xlu0 %1520
  %v1522 = vmul.f32 %v1507, %v317
  %v1523 = vmul.f32 %v1509, %v317
  %v1524 = vmul.f32 %v1511, %v317
  %v1525 = vmul.f32 %v1513, %v317
  %v1526 = vmul.f32 %v1515, %v317
  %v1527 = vmul.f32 %v1517, %v317
  %v1528 = vmul.f32 %v1519, %v317
  %v1529 = vmul.f32 %v1521, %v317
  %1530 = vrot.lane.b32.xlu0 %v1290, 119
  %v1531 = vpop.permute.xlu0 %1530
  %1532 = vrot.lane.b32.xlu0 %v1291, 119
  %v1533 = vpop.permute.xlu0 %1532
  %1534 = vrot.lane.b32.xlu0 %v1292, 119
  %v1535 = vpop.permute.xlu0 %1534
  %1536 = vrot.lane.b32.xlu0 %v1293, 119
  %v1537 = vpop.permute.xlu0 %1536
  %1538 = vrot.lane.b32.xlu0 %v1358, 119
  %v1539 = vpop.permute.xlu0 %1538
  %1540 = vrot.lane.b32.xlu0 %v1359, 119
  %v1541 = vpop.permute.xlu0 %1540
  %1542 = vrot.lane.b32.xlu0 %v1360, 119
  %v1543 = vpop.permute.xlu0 %1542
  %1544 = vrot.lane.b32.xlu0 %v1361, 119
  %v1545 = vpop.permute.xlu0 %1544
  %v1546 = vmul.f32 %v1531, %v348
  %v1547 = vmul.f32 %v1533, %v348
  %v1548 = vmul.f32 %v1535, %v348
  %v1549 = vmul.f32 %v1537, %v348
  %v1550 = vmul.f32 %v1539, %v348
  %v1551 = vmul.f32 %v1541, %v348
  %v1552 = vmul.f32 %v1543, %v348
  %v1553 = vmul.f32 %v1545, %v348
  %v1554 = vld [vmem:[%s8] sm:$0xff]
  %v1555 = vld [vmem:[%s8 + $0x8] sm:$0xff]
  %v1556 = vld [vmem:[%s8 + $0x10] sm:$0xff]
  %v1557 = vld [vmem:[%s8 + $0x18] sm:$0xff]
  %v1558 = vld [vmem:[%s8 + $0x20] sm:$0xff]
  %v1559 = vld [vmem:[%s8 + $0x28] sm:$0xff]
  %v1560 = vld [vmem:[%s8 + $0x30] sm:$0xff]
  %v1561 = vld [vmem:[%s8 + $0x38] sm:$0xff]
  %v1562 = vld [vmem:[%s8 + $0x40] sm:$0xff]
  %v1563 = vld [vmem:[%s8 + $0x48] sm:$0xff]
  %v1564 = vld [vmem:[%s8 + $0x50] sm:$0xff]
  %v1565 = vld [vmem:[%s8 + $0x58] sm:$0xff]
  %v1566 = vld [vmem:[%s8 + $0x60] sm:$0xff]
  %v1567 = vld [vmem:[%s8 + $0x68] sm:$0xff]
  %v1568 = vld [vmem:[%s8 + $0x70] sm:$0xff]
  %v1569 = vld [vmem:[%s8 + $0x78] sm:$0xff]
  %v1570 = vld [vmem:[%s8 + $0x80] sm:$0xff]
  %v1571 = vld [vmem:[%s8 + $0x88] sm:$0xff]
  %v1572 = vld [vmem:[%s8 + $0x90] sm:$0xff]
  %v1573 = vld [vmem:[%s8 + $0x98] sm:$0xff]
  %v1574 = vld [vmem:[%s8 + $0xa0] sm:$0xff]
  %v1575 = vld [vmem:[%s8 + $0xa8] sm:$0xff]
  %v1576 = vld [vmem:[%s8 + $0xb0] sm:$0xff]
  %v1577 = vld [vmem:[%s8 + $0xb8] sm:$0xff]
  %v1578 = vld [vmem:[%s8 + $0xc0] sm:$0xff]
  %v1579 = vld [vmem:[%s8 + $0xc8] sm:$0xff]
  %v1580 = vld [vmem:[%s8 + $0xd0] sm:$0xff]
  %v1581 = vld [vmem:[%s8 + $0xd8] sm:$0xff]
  %v1582 = vld [vmem:[%s8 + $0xe0] sm:$0xff]
  %v1583 = vld [vmem:[%s8 + $0xe8] sm:$0xff]
  %v1584 = vld [vmem:[%s8 + $0xf0] sm:$0xff]
  %v1585 = vld [vmem:[%s8 + $0xf8] sm:$0xff]
  %v1586 = vld [vmem:[%s8 + $0x100] sm:$0xff]
  %v1587 = vld [vmem:[%s8 + $0x108] sm:$0xff]
  %v1588 = vld [vmem:[%s8 + $0x110] sm:$0xff]
  %v1589 = vld [vmem:[%s8 + $0x118] sm:$0xff]
  %v1590 = vld [vmem:[%s8 + $0x120] sm:$0xff]
  %v1591 = vld [vmem:[%s8 + $0x128] sm:$0xff]
  %v1592 = vld [vmem:[%s8 + $0x130] sm:$0xff]
  %v1593 = vld [vmem:[%s8 + $0x138] sm:$0xff]
  %vm1594 = vcmask 523264
  %v1596 = vsel %vm1594, %v1558, 0
  %v1599 = vsel %vm1594, %v1563, 0
  %v1602 = vsel %vm1594, %v1568, 0
  %v1605 = vsel %vm1594, %v1573, 0
  %v1608 = vsel %vm1594, %v1578, 0
  %v1611 = vsel %vm1594, %v1583, 0
  %v1614 = vsel %vm1594, %v1588, 0
  %v1617 = vsel %vm1594, %v1593, 0
  %1619 = vmatprep.subr.mxu0 0.0
  %1620 = vmatpush1.msra.mxu0 %v1378
  %1621 = vmatprep.subr.mxu0 0.0
  %1622 = vmatpush1.msra.mxu0 %v1379
  %1623 = vmatprep.subr.mxu0 0.0
  %1624 = vmatpush1.msra.mxu0 %v1380
  %1625 = vmatprep.subr.mxu0 0.0
  %1626 = vmatpush1.msra.mxu0 %v1381
  %1627 = vmatprep.subr.mxu0 0.0
  %1628 = vmatpush1.msra.mxu0 %v1382
  %1629 = vmatprep.subr.mxu0 0.0
  %1630 = vmatpush1.msra.mxu0 %v1383
  %1631 = vmatprep.subr.mxu0 0.0
  %1632 = vmatpush1.msra.mxu0 %v1384
  %1633 = vmatprep.subr.mxu0 0.0
  %1634 = vmatpush1.msra.mxu0 %v1385
  %1635 = vmatprep.subr.mxu0 0.0
  %1636 = vmatpush1.msra.mxu0 %v1402
  %1637 = vmatprep.subr.mxu0 0.0
  %1638 = vmatpush1.msra.mxu0 %v1403
  %1639 = vmatprep.subr.mxu0 0.0
  %1640 = vmatpush1.msra.mxu0 %v1404
  %1641 = vmatprep.subr.mxu0 0.0
  %1642 = vmatpush1.msra.mxu0 %v1405
  %1643 = vmatprep.subr.mxu0 0.0
  %1644 = vmatpush1.msra.mxu0 %v1406
  %1645 = vmatprep.subr.mxu0 0.0
  %1646 = vmatpush1.msra.mxu0 %v1407
  %1647 = vmatprep.subr.mxu0 0.0
  %1648 = vmatpush1.msra.mxu0 %v1408
  %1649 = vmatprep.subr.mxu0 0.0
  %1650 = vmatpush1.msra.mxu0 %v1409
  %1651 = vmatprep.subr.mxu0 0.0
  %1652 = vmatpush1.msra.mxu0 %v1426
  %1653 = vmatprep.subr.mxu0 0.0
  %1654 = vmatpush1.msra.mxu0 %v1427
  %1655 = vmatprep.subr.mxu0 0.0
  %1656 = vmatpush1.msra.mxu0 %v1428
  %1657 = vmatprep.subr.mxu0 0.0
  %1658 = vmatpush1.msra.mxu0 %v1429
  %1659 = vmatprep.subr.mxu0 0.0
  %1660 = vmatpush1.msra.mxu0 %v1430
  %1661 = vmatprep.subr.mxu0 0.0
  %1662 = vmatpush1.msra.mxu0 %v1431
  %1663 = vmatprep.subr.mxu0 0.0
  %1664 = vmatpush1.msra.mxu0 %v1432
  %1665 = vmatprep.subr.mxu0 0.0
  %1666 = vmatpush1.msra.mxu0 %v1433
  %1667 = vmatprep.subr.mxu0 0.0
  %1668 = vmatpush1.msra.mxu0 %v1450
  %1669 = vmatprep.subr.mxu0 0.0
  %1670 = vmatpush1.msra.mxu0 %v1451
  %1671 = vmatprep.subr.mxu0 0.0
  %1672 = vmatpush1.msra.mxu0 %v1452
  %1673 = vmatprep.subr.mxu0 0.0
  %1674 = vmatpush1.msra.mxu0 %v1453
  %1675 = vmatprep.subr.mxu0 0.0
  %1676 = vmatpush1.msra.mxu0 %v1454
  %1677 = vmatprep.subr.mxu0 0.0
  %1678 = vmatpush1.msra.mxu0 %v1455
  %1679 = vmatprep.subr.mxu0 0.0
  %1680 = vmatpush1.msra.mxu0 %v1456
  %1681 = vmatprep.subr.mxu0 0.0
  %1682 = vmatpush1.msra.mxu0 %v1457
  %1683 = vmatprep.mubr.f32.mxu0 %v1555
  %1684 = vmatmul.mubr.f32.gmra.mrb[0].mxu0 %v1554
  %v1685 = vpop.f32.mrb[0].mxu0
  %v1686 = vadd.f32 0.0, %v1685
  %v1687 = vpop.f32.mrb[0].mxu0
  %1688 = vmatprep.mubr.f32.mxu0 %v1560
  %1689 = vmatmul.mubr.f32.gmra.mrb[0].mxu0 %v1559
  %v1690 = vpop.f32.mrb[0].mxu0
  %v1691 = vadd.f32 0.0, %v1690
  %v1692 = vpop.f32.mrb[0].mxu0
  %1693 = vmatprep.mubr.f32.mxu0 %v1565
  %1694 = vmatmul.mubr.f32.gmra.mrb[0].mxu0 %v1564
  %v1695 = vpop.f32.mrb[0].mxu0
  %v1696 = vadd.f32 0.0, %v1695
  %v1697 = vpop.f32.mrb[0].mxu0
  %1698 = vmatprep.mubr.f32.mxu0 %v1570
  %1699 = vmatmul.mubr.f32.gmra.mrb[0].mxu0 %v1569
  %v1700 = vpop.f32.mrb[0].mxu0
  %v1701 = vadd.f32 0.0, %v1700
  %v1702 = vpop.f32.mrb[0].mxu0
  %1703 = vmatprep.mubr.f32.mxu0 %v1575
  %1704 = vmatmul.mubr.f32.gmra.mrb[0].mxu0 %v1574
  %v1705 = vpop.f32.mrb[0].mxu0
  %v1706 = vadd.f32 0.0, %v1705
  %v1707 = vpop.f32.mrb[0].mxu0
  %1708 = vmatprep.mubr.f32.mxu0 %v1580
  %1709 = vmatmul.mubr.f32.gmra.mrb[0].mxu0 %v1579
  %v1710 = vpop.f32.mrb[0].mxu0
  %v1711 = vadd.f32 0.0, %v1710
  %v1712 = vpop.f32.mrb[0].mxu0
  %1713 = vmatprep.mubr.f32.mxu0 %v1585
  %1714 = vmatmul.mubr.f32.gmra.mrb[0].mxu0 %v1584
  %v1715 = vpop.f32.mrb[0].mxu0
  %v1716 = vadd.f32 0.0, %v1715
  %v1717 = vpop.f32.mrb[0].mxu0
  %1718 = vmatprep.mubr.f32.mxu0 %v1590
  %1719 = vmatmul.mubr.f32.gmra.mrb[0].mxu0 %v1589
  %v1720 = vpop.f32.mrb[0].mxu0
  %v1721 = vadd.f32 0.0, %v1720
  %v1722 = vpop.f32.mrb[0].mxu0
  %1723 = vdwg.mxu0
  %1724 = vmatprep.subr.mxu0 0.0
  %1725 = vmatpush1.msra.mxu0 %v1290
  %1726 = vmatprep.subr.mxu0 0.0
  %1727 = vmatpush1.msra.mxu0 %v1291
  %1728 = vmatprep.subr.mxu0 0.0
  %1729 = vmatpush1.msra.mxu0 %v1292
  %1730 = vmatprep.subr.mxu0 0.0
  %1731 = vmatpush1.msra.mxu0 %v1293
  %1732 = vmatprep.subr.mxu0 0.0
  %1733 = vmatpush1.msra.mxu0 %v1358
  %1734 = vmatprep.subr.mxu0 0.0
  %1735 = vmatpush1.msra.mxu0 %v1359
  %1736 = vmatprep.subr.mxu0 0.0
  %1737 = vmatpush1.msra.mxu0 %v1360
  %1738 = vmatprep.subr.mxu0 0.0
  %1739 = vmatpush1.msra.mxu0 %v1361
  %1740 = vmatprep.subr.mxu0 0.0
  %1741 = vmatpush1.msra.mxu0 %v1474
  %1742 = vmatprep.subr.mxu0 0.0
  %1743 = vmatpush1.msra.mxu0 %v1475
  %1744 = vmatprep.subr.mxu0 0.0
  %1745 = vmatpush1.msra.mxu0 %v1476
  %1746 = vmatprep.subr.mxu0 0.0
  %1747 = vmatpush1.msra.mxu0 %v1477
  %1748 = vmatprep.subr.mxu0 0.0
  %1749 = vmatpush1.msra.mxu0 %v1478
  %1750 = vmatprep.subr.mxu0 0.0
  %1751 = vmatpush1.msra.mxu0 %v1479
  %1752 = vmatprep.subr.mxu0 0.0
  %1753 = vmatpush1.msra.mxu0 %v1480
  %1754 = vmatprep.subr.mxu0 0.0
  %1755 = vmatpush1.msra.mxu0 %v1481
  %1756 = vmatprep.subr.mxu0 0.0
  %1757 = vmatpush1.msra.mxu0 %v1498
  %1758 = vmatprep.subr.mxu0 0.0
  %1759 = vmatpush1.msra.mxu0 %v1499
  %1760 = vmatprep.subr.mxu0 0.0
  %1761 = vmatpush1.msra.mxu0 %v1500
  %1762 = vmatprep.subr.mxu0 0.0
  %1763 = vmatpush1.msra.mxu0 %v1501
  %1764 = vmatprep.subr.mxu0 0.0
  %1765 = vmatpush1.msra.mxu0 %v1502
  %1766 = vmatprep.subr.mxu0 0.0
  %1767 = vmatpush1.msra.mxu0 %v1503
  %1768 = vmatprep.subr.mxu0 0.0
  %1769 = vmatpush1.msra.mxu0 %v1504
  %1770 = vmatprep.subr.mxu0 0.0
  %1771 = vmatpush1.msra.mxu0 %v1505
  %1772 = vmatprep.subr.mxu0 0.0
  %1773 = vmatpush1.msra.mxu0 %v1522
  %1774 = vmatprep.subr.mxu0 0.0
  %1775 = vmatpush1.msra.mxu0 %v1523
  %1776 = vmatprep.subr.mxu0 0.0
  %1777 = vmatpush1.msra.mxu0 %v1524
  %1778 = vmatprep.subr.mxu0 0.0
  %1779 = vmatpush1.msra.mxu0 %v1525
  %1780 = vmatprep.subr.mxu0 0.0
  %1781 = vmatpush1.msra.mxu0 %v1526
  %1782 = vmatprep.subr.mxu0 0.0
  %1783 = vmatpush1.msra.mxu0 %v1527
  %1784 = vmatprep.subr.mxu0 0.0
  %1785 = vmatpush1.msra.mxu0 %v1528
  %1786 = vmatprep.subr.mxu0 0.0
  %1787 = vmatpush1.msra.mxu0 %v1529
  %1788 = vmatprep.mubr.f32.mxu0 %v1557
  %1789 = vmatmul.mubr.f32.gmra.mrb[0].mxu0 %v1556
  %v1790 = vpop.f32.mrb[0].mxu0
  %v1791 = vadd.f32 %v1686, %v1790
  %v1792 = vpop.f32.mrb[0].mxu0
  %1793 = vmatprep.mubr.f32.mxu0 %v1562
  %1794 = vmatmul.mubr.f32.gmra.mrb[0].mxu0 %v1561
  %v1795 = vpop.f32.mrb[0].mxu0
  %v1796 = vadd.f32 %v1691, %v1795
  %v1797 = vpop.f32.mrb[0].mxu0
  %1798 = vmatprep.mubr.f32.mxu0 %v1567
  %1799 = vmatmul.mubr.f32.gmra.mrb[0].mxu0 %v1566
  %v1800 = vpop.f32.mrb[0].mxu0
  %v1801 = vadd.f32 %v1696, %v1800
  %v1802 = vpop.f32.mrb[0].mxu0
  %1803 = vmatprep.mubr.f32.mxu0 %v1572
  %1804 = vmatmul.mubr.f32.gmra.mrb[0].mxu0 %v1571
  %v1805 = vpop.f32.mrb[0].mxu0
  %v1806 = vadd.f32 %v1701, %v1805
  %v1807 = vpop.f32.mrb[0].mxu0
  %1808 = vmatprep.mubr.f32.mxu0 %v1577
  %1809 = vmatmul.mubr.f32.gmra.mrb[0].mxu0 %v1576
  %v1810 = vpop.f32.mrb[0].mxu0
  %v1811 = vadd.f32 %v1706, %v1810
  %v1812 = vpop.f32.mrb[0].mxu0
  %1813 = vmatprep.mubr.f32.mxu0 %v1582
  %1814 = vmatmul.mubr.f32.gmra.mrb[0].mxu0 %v1581
  %v1815 = vpop.f32.mrb[0].mxu0
  %v1816 = vadd.f32 %v1711, %v1815
  %v1817 = vpop.f32.mrb[0].mxu0
  %1818 = vmatprep.mubr.f32.mxu0 %v1587
  %1819 = vmatmul.mubr.f32.gmra.mrb[0].mxu0 %v1586
  %v1820 = vpop.f32.mrb[0].mxu0
  %v1821 = vadd.f32 %v1716, %v1820
  %v1822 = vpop.f32.mrb[0].mxu0
  %1823 = vmatprep.mubr.f32.mxu0 %v1592
  %1824 = vmatmul.mubr.f32.gmra.mrb[0].mxu0 %v1591
  %v1825 = vpop.f32.mrb[0].mxu0
  %v1826 = vadd.f32 %v1721, %v1825
  %v1827 = vpop.f32.mrb[0].mxu0
  %1828 = vdwg.mxu0
  %1829 = vmatprep.subr.mxu0 0.0
  %1830 = vmatpush1.msra.mxu0 %v1546
  %1831 = vmatprep.subr.mxu0 0.0
  %1832 = vmatpush1.msra.mxu0 %v1547
  %1833 = vmatprep.subr.mxu0 0.0
  %1834 = vmatpush1.msra.mxu0 %v1548
  %1835 = vmatprep.subr.mxu0 0.0
  %1836 = vmatpush1.msra.mxu0 %v1549
  %1837 = vmatprep.subr.mxu0 0.0
  %1838 = vmatpush1.msra.mxu0 %v1550
  %1839 = vmatprep.subr.mxu0 0.0
  %1840 = vmatpush1.msra.mxu0 %v1551
  %1841 = vmatprep.subr.mxu0 0.0
  %1842 = vmatpush1.msra.mxu0 %v1552
  %1843 = vmatprep.subr.mxu0 0.0
  %1844 = vmatpush1.msra.mxu0 %v1553
  %1845 = vmatprep.subr.mxu0 0.0
  %1846 = vmatpush1.msra.mxu0 0.0
  %1847 = vmatprep.subr.mxu0 0.0
  %1848 = vmatpush1.msra.mxu0 0.0
  %1849 = vmatprep.subr.mxu0 0.0
  %1850 = vmatpush1.msra.mxu0 0.0
  %1851 = vmatprep.subr.mxu0 0.0
  %1852 = vmatpush1.msra.mxu0 0.0
  %1853 = vmatprep.subr.mxu0 0.0
  %1854 = vmatpush1.msra.mxu0 0.0
  %1855 = vmatprep.subr.mxu0 0.0
  %1856 = vmatpush1.msra.mxu0 0.0
  %1857 = vmatprep.subr.mxu0 0.0
  %1858 = vmatpush1.msra.mxu0 0.0
  %1859 = vmatprep.subr.mxu0 0.0
  %1860 = vmatpush1.msra.mxu0 0.0
  %1861 = vmatprep.subr.mxu0 0.0
  %1862 = vmatpush1.msra.mxu0 0.0
  %1863 = vmatprep.subr.mxu0 0.0
  %1864 = vmatpush1.msra.mxu0 0.0
  %1865 = vmatprep.subr.mxu0 0.0
  %1866 = vmatpush1.msra.mxu0 0.0
  %1867 = vmatprep.subr.mxu0 0.0
  %1868 = vmatpush1.msra.mxu0 0.0
  %1869 = vmatprep.subr.mxu0 0.0
  %1870 = vmatpush1.msra.mxu0 0.0
  %1871 = vmatprep.subr.mxu0 0.0
  %1872 = vmatpush1.msra.mxu0 0.0
  %1873 = vmatprep.subr.mxu0 0.0
  %1874 = vmatpush1.msra.mxu0 0.0
  %1875 = vmatprep.subr.mxu0 0.0
  %1876 = vmatpush1.msra.mxu0 0.0
  %1877 = vmatprep.subr.mxu0 0.0
  %1878 = vmatpush1.msra.mxu0 0.0
  %1879 = vmatprep.subr.mxu0 0.0
  %1880 = vmatpush1.msra.mxu0 0.0
  %1881 = vmatprep.subr.mxu0 0.0
  %1882 = vmatpush1.msra.mxu0 0.0
  %1883 = vmatprep.subr.mxu0 0.0
  %1884 = vmatpush1.msra.mxu0 0.0
  %1885 = vmatprep.subr.mxu0 0.0
  %1886 = vmatpush1.msra.mxu0 0.0
  %1887 = vmatprep.subr.mxu0 0.0
  %1888 = vmatpush1.msra.mxu0 0.0
  %1889 = vmatprep.subr.mxu0 0.0
  %1890 = vmatpush1.msra.mxu0 0.0
  %1891 = vmatprep.subr.mxu0 0.0
  %1892 = vmatpush1.msra.mxu0 0.0
  %1893 = vmatprep.mubr.f32.mxu0 0.0
  %1894 = vmatmul.mubr.f32.gmra.mrb[0].mxu0 %v1596
  %v1895 = vpop.f32.mrb[0].mxu0
  %v1896 = vadd.f32 %v1791, %v1895
  %v1897 = vpop.f32.mrb[0].mxu0
  %1898 = vmatprep.mubr.f32.mxu0 0.0
  %1899 = vmatmul.mubr.f32.gmra.mrb[0].mxu0 %v1599
  %v1900 = vpop.f32.mrb[0].mxu0
  %v1901 = vadd.f32 %v1796, %v1900
  %v1902 = vpop.f32.mrb[0].mxu0
  %1903 = vmatprep.mubr.f32.mxu0 0.0
  %1904 = vmatmul.mubr.f32.gmra.mrb[0].mxu0 %v1602
  %v1905 = vpop.f32.mrb[0].mxu0
  %v1906 = vadd.f32 %v1801, %v1905
  %v1907 = vpop.f32.mrb[0].mxu0
  %1908 = vmatprep.mubr.f32.mxu0 0.0
  %1909 = vmatmul.mubr.f32.gmra.mrb[0].mxu0 %v1605
  %v1910 = vpop.f32.mrb[0].mxu0
  %v1911 = vadd.f32 %v1806, %v1910
  %v1912 = vpop.f32.mrb[0].mxu0
  %1913 = vmatprep.mubr.f32.mxu0 0.0
  %1914 = vmatmul.mubr.f32.gmra.mrb[0].mxu0 %v1608
  %v1915 = vpop.f32.mrb[0].mxu0
  %v1916 = vadd.f32 %v1811, %v1915
  %v1917 = vpop.f32.mrb[0].mxu0
  %1918 = vmatprep.mubr.f32.mxu0 0.0
  %1919 = vmatmul.mubr.f32.gmra.mrb[0].mxu0 %v1611
  %v1920 = vpop.f32.mrb[0].mxu0
  %v1921 = vadd.f32 %v1816, %v1920
  %v1922 = vpop.f32.mrb[0].mxu0
  %1923 = vmatprep.mubr.f32.mxu0 0.0
  %1924 = vmatmul.mubr.f32.gmra.mrb[0].mxu0 %v1614
  %v1925 = vpop.f32.mrb[0].mxu0
  %v1926 = vadd.f32 %v1821, %v1925
  %v1927 = vpop.f32.mrb[0].mxu0
  %1928 = vmatprep.mubr.f32.mxu0 0.0
  %1929 = vmatmul.mubr.f32.gmra.mrb[0].mxu0 %v1617
  %v1930 = vpop.f32.mrb[0].mxu0
  %v1931 = vadd.f32 %v1826, %v1930
  %v1932 = vpop.f32.mrb[0].mxu0
  %1933 = vdwg.mxu0
  %v1934 = vadd.f32 %v1208, %v1896
  %v1935 = vadd.f32 %v1213, %v1901
  %v1936 = vadd.f32 %v1218, %v1906
  %v1937 = vadd.f32 %v1223, %v1911
  %v1938 = vxor.u32 %v1934, 2147483648
  %v1939 = vxor.u32 %v1935, 2147483648
  %v1940 = vxor.u32 %v1936, 2147483648
  %v1941 = vxor.u32 %v1937, 2147483648
  %v1942 = vmul.f32 %v1938, 1.442695
  %v1943 = vpow.pop %v1942
  %v1944 = vmul.f32 %v1939, 1.442695
  %v1945 = vpow.pop %v1944
  %v1946 = vmul.f32 %v1940, 1.442695
  %v1947 = vpow.pop %v1946
  %v1948 = vmul.f32 %v1941, 1.442695
  %v1949 = vpow.pop %v1948
  %v1950 = vadd.f32 %v1943, 1.0
  %v1951 = vadd.f32 %v1945, 1.0
  %v1952 = vadd.f32 %v1947, 1.0
  %v1953 = vadd.f32 %v1949, 1.0
  %v1954 = vrcp.pop %v1950
  %v1955 = vmul.f32 1.0, %v1954
  %v1956 = vrcp.pop %v1951
  %v1957 = vmul.f32 1.0, %v1956
  %v1958 = vrcp.pop %v1952
  %v1959 = vmul.f32 1.0, %v1958
  %v1960 = vrcp.pop %v1953
  %v1961 = vmul.f32 1.0, %v1960
  %v1962 = vtanh.pop %v1916
  %v1963 = vtanh.pop %v1921
  %v1964 = vtanh.pop %v1926
  %v1965 = vtanh.pop %v1931
  %v1966 = vmul.f32 %v1955, %v1962
  %v1967 = vmul.f32 %v1957, %v1963
  %v1968 = vmul.f32 %v1959, %v1964
  %v1969 = vmul.f32 %v1961, %v1965
  %1970 = vst [vmem:[%s19] sm:$0xff] %v1966
  %1971 = vst [vmem:[%s19 + $0x8] sm:$0xff] %v1967
  %1972 = vst [vmem:[%s19 + $0x10] sm:$0xff] %v1968
  %1973 = vst [vmem:[%s19 + $0x18] sm:$0xff] %v1969
  %1974 = vst [vmem:[%s21] sm:$0xff] %v1290
  %1975 = vst [vmem:[%s21 + $0x8] sm:$0xff] %v1291
  %1976 = vst [vmem:[%s21 + $0x10] sm:$0xff] %v1292
  %1977 = vst [vmem:[%s21 + $0x18] sm:$0xff] %v1293
  %1979 = vset.pattern.permute.xlu0 0
  %1980 = vperm.xlu0 %1979, %v93
  %v1981 = vpop.permute.xlu0 %1980
  %1984 = vset.pattern.permute.xlu0 0
  %1985 = vperm.xlu0 %1984, %v94
  %v1986 = vpop.permute.xlu0 %1985
  %1989 = vset.pattern.permute.xlu0 0
  %1990 = vperm.xlu0 %1989, %v95
  %v1991 = vpop.permute.xlu0 %1990
  %1994 = vset.pattern.permute.xlu0 0
  %1995 = vperm.xlu0 %1994, %v96
  %v1996 = vpop.permute.xlu0 %1995
  %vm1998 = vcmask 261120
  %v2000 = vsel %vm1998, %v89, 0
  %v2003 = vsel %vm1998, %v90, 0
  %v2006 = vsel %vm1998, %v91, 0
  %v2009 = vsel %vm1998, %v92, 0
  %2011 = vmatprep.subr.mxu0 0.0
  %2012 = vmatpush1.msra.mxu0 %v1282
  %2013 = vmatprep.subr.mxu0 0.0
  %2014 = vmatpush1.msra.mxu0 %v1283
  %2015 = vmatprep.subr.mxu0 0.0
  %2016 = vmatpush1.msra.mxu0 %v1284
  %2017 = vmatprep.subr.mxu0 0.0
  %2018 = vmatpush1.msra.mxu0 %v1285
  %2019 = vmatprep.subr.mxu0 0.0
  %2020 = vmatpush1.msra.mxu0 0.0
  %2021 = vmatprep.subr.mxu0 0.0
  %2022 = vmatpush1.msra.mxu0 0.0
  %2023 = vmatprep.subr.mxu0 0.0
  %2024 = vmatpush1.msra.mxu0 0.0
  %2025 = vmatprep.subr.mxu0 0.0
  %2026 = vmatpush1.msra.mxu0 0.0
  %2027 = vmatprep.subr.mxu0 0.0
  %2028 = vmatpush1.msra.mxu0 0.0
  %2029 = vmatprep.subr.mxu0 0.0
  %2030 = vmatpush1.msra.mxu0 0.0
  %2031 = vmatprep.subr.mxu0 0.0
  %2032 = vmatpush1.msra.mxu0 0.0
  %2033 = vmatprep.subr.mxu0 0.0
  %2034 = vmatpush1.msra.mxu0 0.0
  %2035 = vmatprep.subr.mxu0 0.0
  %2036 = vmatpush1.msra.mxu0 0.0
  %2037 = vmatprep.subr.mxu0 0.0
  %2038 = vmatpush1.msra.mxu0 0.0
  %2039 = vmatprep.subr.mxu0 0.0
  %2040 = vmatpush1.msra.mxu0 0.0
  %2041 = vmatprep.subr.mxu0 0.0
  %2042 = vmatpush1.msra.mxu0 0.0
  %2043 = vmatprep.subr.mxu0 0.0
  %2044 = vmatpush1.msra.mxu0 0.0
  %2045 = vmatprep.subr.mxu0 0.0
  %2046 = vmatpush1.msra.mxu0 0.0
  %2047 = vmatprep.subr.mxu0 0.0
  %2048 = vmatpush1.msra.mxu0 0.0
  %2049 = vmatprep.subr.mxu0 0.0
  %2050 = vmatpush1.msra.mxu0 0.0
  %2051 = vmatprep.subr.mxu0 0.0
  %2052 = vmatpush1.msra.mxu0 0.0
  %2053 = vmatprep.subr.mxu0 0.0
  %2054 = vmatpush1.msra.mxu0 0.0
  %2055 = vmatprep.subr.mxu0 0.0
  %2056 = vmatpush1.msra.mxu0 0.0
  %2057 = vmatprep.subr.mxu0 0.0
  %2058 = vmatpush1.msra.mxu0 0.0
  %2059 = vmatprep.subr.mxu0 0.0
  %2060 = vmatpush1.msra.mxu0 0.0
  %2061 = vmatprep.subr.mxu0 0.0
  %2062 = vmatpush1.msra.mxu0 0.0
  %2063 = vmatprep.subr.mxu0 0.0
  %2064 = vmatpush1.msra.mxu0 0.0
  %2065 = vmatprep.subr.mxu0 0.0
  %2066 = vmatpush1.msra.mxu0 0.0
  %2067 = vmatprep.subr.mxu0 0.0
  %2068 = vmatpush1.msra.mxu0 0.0
  %2069 = vmatprep.subr.mxu0 0.0
  %2070 = vmatpush1.msra.mxu0 0.0
  %2071 = vmatprep.subr.mxu0 0.0
  %2072 = vmatpush1.msra.mxu0 0.0
  %2073 = vmatprep.subr.mxu0 0.0
  %2074 = vmatpush1.msra.mxu0 0.0
  %2075 = vmatprep.mubr.f32.mxu0 0.0
  %2076 = vmatmul.mubr.f32.gmra.mrb[0].mxu0 %v2000
  %v2077 = vpop.f32.mrb[0].mxu0
  %v2078 = vadd.f32 %v1981, %v2077
  %v2079 = vpop.f32.mrb[0].mxu0
  %2080 = vmatprep.mubr.f32.mxu0 0.0
  %2081 = vmatmul.mubr.f32.gmra.mrb[0].mxu0 %v2003
  %v2082 = vpop.f32.mrb[0].mxu0
  %v2083 = vadd.f32 %v1986, %v2082
  %v2084 = vpop.f32.mrb[0].mxu0
  %2085 = vmatprep.mubr.f32.mxu0 0.0
  %2086 = vmatmul.mubr.f32.gmra.mrb[0].mxu0 %v2006
  %v2087 = vpop.f32.mrb[0].mxu0
  %v2088 = vadd.f32 %v1991, %v2087
  %v2089 = vpop.f32.mrb[0].mxu0
  %2090 = vmatprep.mubr.f32.mxu0 0.0
  %2091 = vmatmul.mubr.f32.gmra.mrb[0].mxu0 %v2009
  %v2092 = vpop.f32.mrb[0].mxu0
  %v2093 = vadd.f32 %v1996, %v2092
  %v2094 = vpop.f32.mrb[0].mxu0
  %2095 = vdwg.mxu0
  %v2096 = vmul.f32 %v2078, %v2078
  %v2097 = vmul.f32 %v2083, %v2083
  %v2098 = vmul.f32 %v2088, %v2088
  %v2099 = vmul.f32 %v2093, %v2093
  %2100 = vmatprep.subr.mxu0 0.0
  %2101 = vmatpush1.msra.mxu0 %v73
  %2102 = vmatprep.subr.mxu0 0.0
  %2103 = vmatpush1.msra.mxu0 %v74
  %2104 = vmatprep.subr.mxu0 0.0
  %2105 = vmatpush1.msra.mxu0 %v75
  %2106 = vmatprep.subr.mxu0 0.0
  %2107 = vmatpush1.msra.mxu0 %v76
  %2108 = vmatprep.subr.mxu0 0.0
  %2109 = vmatpush1.msra.mxu0 %v77
  %2110 = vmatprep.subr.mxu0 0.0
  %2111 = vmatpush1.msra.mxu0 %v78
  %2112 = vmatprep.subr.mxu0 0.0
  %2113 = vmatpush1.msra.mxu0 %v79
  %2114 = vmatprep.subr.mxu0 0.0
  %2115 = vmatpush1.msra.mxu0 %v80
  %2116 = vmatprep.subr.mxu0 0.0
  %2117 = vmatpush1.msra.mxu0 %v81
  %2118 = vmatprep.subr.mxu0 0.0
  %2119 = vmatpush1.msra.mxu0 %v82
  %2120 = vmatprep.subr.mxu0 0.0
  %2121 = vmatpush1.msra.mxu0 %v83
  %2122 = vmatprep.subr.mxu0 0.0
  %2123 = vmatpush1.msra.mxu0 %v84
  %2124 = vmatprep.subr.mxu0 0.0
  %2125 = vmatpush1.msra.mxu0 %v85
  %2126 = vmatprep.subr.mxu0 0.0
  %2127 = vmatpush1.msra.mxu0 %v86
  %2128 = vmatprep.subr.mxu0 0.0
  %2129 = vmatpush1.msra.mxu0 %v87
  %2130 = vmatprep.subr.mxu0 0.0
  %2131 = vmatpush1.msra.mxu0 %v88
  %2132 = vmatprep.subr.mxu0 0.0
  %2133 = vmatpush1.msra.mxu0 0.0
  %2134 = vmatprep.subr.mxu0 0.0
  %2135 = vmatpush1.msra.mxu0 0.0
  %2136 = vmatprep.subr.mxu0 0.0
  %2137 = vmatpush1.msra.mxu0 0.0
  %2138 = vmatprep.subr.mxu0 0.0
  %2139 = vmatpush1.msra.mxu0 0.0
  %2140 = vmatprep.subr.mxu0 0.0
  %2141 = vmatpush1.msra.mxu0 0.0
  %2142 = vmatprep.subr.mxu0 0.0
  %2143 = vmatpush1.msra.mxu0 0.0
  %2144 = vmatprep.subr.mxu0 0.0
  %2145 = vmatpush1.msra.mxu0 0.0
  %2146 = vmatprep.subr.mxu0 0.0
  %2147 = vmatpush1.msra.mxu0 0.0
  %2148 = vmatprep.subr.mxu0 0.0
  %2149 = vmatpush1.msra.mxu0 0.0
  %2150 = vmatprep.subr.mxu0 0.0
  %2151 = vmatpush1.msra.mxu0 0.0
  %2152 = vmatprep.subr.mxu0 0.0
  %2153 = vmatpush1.msra.mxu0 0.0
  %2154 = vmatprep.subr.mxu0 0.0
  %2155 = vmatpush1.msra.mxu0 0.0
  %2156 = vmatprep.subr.mxu0 0.0
  %2157 = vmatpush1.msra.mxu0 0.0
  %2158 = vmatprep.subr.mxu0 0.0
  %2159 = vmatpush1.msra.mxu0 0.0
  %2160 = vmatprep.subr.mxu0 0.0
  %2161 = vmatpush1.msra.mxu0 0.0
  %2162 = vmatprep.subr.mxu0 0.0
  %2163 = vmatpush1.msra.mxu0 0.0
  %2164 = vmatprep.mubr.f32.mxu0 0.0
  %2165 = vmatmul.mubr.f32.gmra.mrb[0].mxu0 %v2096
  %v2166 = vpop.f32.mrb[0].mxu0
  %v2167 = vadd.f32 0.0, %v2166
  %v2168 = vpop.f32.mrb[0].mxu0
  %2169 = vmatprep.mubr.f32.mxu0 0.0
  %2170 = vmatmul.mubr.f32.gmra.mrb[0].mxu0 %v2097
  %v2171 = vpop.f32.mrb[0].mxu0
  %v2172 = vadd.f32 0.0, %v2171
  %v2173 = vpop.f32.mrb[0].mxu0
  %2174 = vmatprep.mubr.f32.mxu0 0.0
  %2175 = vmatmul.mubr.f32.gmra.mrb[0].mxu0 %v2098
  %v2176 = vpop.f32.mrb[0].mxu0
  %v2177 = vadd.f32 0.0, %v2176
  %v2178 = vpop.f32.mrb[0].mxu0
  %2179 = vmatprep.mubr.f32.mxu0 0.0
  %2180 = vmatmul.mubr.f32.gmra.mrb[0].mxu0 %v2099
  %v2181 = vpop.f32.mrb[0].mxu0
  %v2182 = vadd.f32 0.0, %v2181
  %v2183 = vpop.f32.mrb[0].mxu0
  %2184 = vdwg.mxu0
  %v2185 = vmax.f32 %v2167, 1e-24
  %v2186 = vmax.f32 %v2172, 1e-24
  %v2187 = vmax.f32 %v2177, 1e-24
  %v2188 = vmax.f32 %v2182, 1e-24
  %v2189 = vrsqrt.pop %v2185
  %v2190 = vrsqrt.pop %v2186
  %v2191 = vrsqrt.pop %v2187
  %v2192 = vrsqrt.pop %v2188
  %v2193 = vmul.f32 %v2078, %v2189
  %v2194 = vmul.f32 %v2083, %v2190
  %v2195 = vmul.f32 %v2088, %v2191
  %v2196 = vmul.f32 %v2093, %v2192
  %2197 = vst [vmem:[%s24] sm:$0xff] %v2193
  %2198 = vst [vmem:[%s24 + $0x8] sm:$0xff] %v2194
  %2199 = vst [vmem:[%s24 + $0x10] sm:$0xff] %v2195
  %2200 = vst [vmem:[%s24 + $0x18] sm:$0xff] %v2196
  %2201 = vmatprep.subr.mxu0 0.0
  %2202 = vmatpush1.msra.mxu0 %v1350
  %2203 = vmatprep.subr.mxu0 0.0
  %2204 = vmatpush1.msra.mxu0 %v1351
  %2205 = vmatprep.subr.mxu0 0.0
  %2206 = vmatpush1.msra.mxu0 %v1352
  %2207 = vmatprep.subr.mxu0 0.0
  %2208 = vmatpush1.msra.mxu0 %v1353
  %2209 = vmatprep.subr.mxu0 0.0
  %2210 = vmatpush1.msra.mxu0 0.0
  %2211 = vmatprep.subr.mxu0 0.0
  %2212 = vmatpush1.msra.mxu0 0.0
  %2213 = vmatprep.subr.mxu0 0.0
  %2214 = vmatpush1.msra.mxu0 0.0
  %2215 = vmatprep.subr.mxu0 0.0
  %2216 = vmatpush1.msra.mxu0 0.0
  %2217 = vmatprep.subr.mxu0 0.0
  %2218 = vmatpush1.msra.mxu0 0.0
  %2219 = vmatprep.subr.mxu0 0.0
  %2220 = vmatpush1.msra.mxu0 0.0
  %2221 = vmatprep.subr.mxu0 0.0
  %2222 = vmatpush1.msra.mxu0 0.0
  %2223 = vmatprep.subr.mxu0 0.0
  %2224 = vmatpush1.msra.mxu0 0.0
  %2225 = vmatprep.subr.mxu0 0.0
  %2226 = vmatpush1.msra.mxu0 0.0
  %2227 = vmatprep.subr.mxu0 0.0
  %2228 = vmatpush1.msra.mxu0 0.0
  %2229 = vmatprep.subr.mxu0 0.0
  %2230 = vmatpush1.msra.mxu0 0.0
  %2231 = vmatprep.subr.mxu0 0.0
  %2232 = vmatpush1.msra.mxu0 0.0
  %2233 = vmatprep.subr.mxu0 0.0
  %2234 = vmatpush1.msra.mxu0 0.0
  %2235 = vmatprep.subr.mxu0 0.0
  %2236 = vmatpush1.msra.mxu0 0.0
  %2237 = vmatprep.subr.mxu0 0.0
  %2238 = vmatpush1.msra.mxu0 0.0
  %2239 = vmatprep.subr.mxu0 0.0
  %2240 = vmatpush1.msra.mxu0 0.0
  %2241 = vmatprep.subr.mxu0 0.0
  %2242 = vmatpush1.msra.mxu0 0.0
  %2243 = vmatprep.subr.mxu0 0.0
  %2244 = vmatpush1.msra.mxu0 0.0
  %2245 = vmatprep.subr.mxu0 0.0
  %2246 = vmatpush1.msra.mxu0 0.0
  %2247 = vmatprep.subr.mxu0 0.0
  %2248 = vmatpush1.msra.mxu0 0.0
  %2249 = vmatprep.subr.mxu0 0.0
  %2250 = vmatpush1.msra.mxu0 0.0
  %2251 = vmatprep.subr.mxu0 0.0
  %2252 = vmatpush1.msra.mxu0 0.0
  %2253 = vmatprep.subr.mxu0 0.0
  %2254 = vmatpush1.msra.mxu0 0.0
  %2255 = vmatprep.subr.mxu0 0.0
  %2256 = vmatpush1.msra.mxu0 0.0
  %2257 = vmatprep.subr.mxu0 0.0
  %2258 = vmatpush1.msra.mxu0 0.0
  %2259 = vmatprep.subr.mxu0 0.0
  %2260 = vmatpush1.msra.mxu0 0.0
  %2261 = vmatprep.subr.mxu0 0.0
  %2262 = vmatpush1.msra.mxu0 0.0
  %2263 = vmatprep.subr.mxu0 0.0
  %2264 = vmatpush1.msra.mxu0 0.0
  %2265 = vmatprep.mubr.f32.mxu0 0.0
  %2266 = vmatmul.mubr.f32.gmra.mrb[0].mxu0 %v2000
  %v2267 = vpop.f32.mrb[0].mxu0
  %v2268 = vadd.f32 %v1981, %v2267
  %v2269 = vpop.f32.mrb[0].mxu0
  %2270 = vmatprep.mubr.f32.mxu0 0.0
  %2271 = vmatmul.mubr.f32.gmra.mrb[0].mxu0 %v2003
  %v2272 = vpop.f32.mrb[0].mxu0
  %v2273 = vadd.f32 %v1986, %v2272
  %v2274 = vpop.f32.mrb[0].mxu0
  %2275 = vmatprep.mubr.f32.mxu0 0.0
  %2276 = vmatmul.mubr.f32.gmra.mrb[0].mxu0 %v2006
  %v2277 = vpop.f32.mrb[0].mxu0
  %v2278 = vadd.f32 %v1991, %v2277
  %v2279 = vpop.f32.mrb[0].mxu0
  %2280 = vmatprep.mubr.f32.mxu0 0.0
  %2281 = vmatmul.mubr.f32.gmra.mrb[0].mxu0 %v2009
  %v2282 = vpop.f32.mrb[0].mxu0
  %v2283 = vadd.f32 %v1996, %v2282
  %v2284 = vpop.f32.mrb[0].mxu0
  %2285 = vdwg.mxu0
  %v2286 = vmul.f32 %v2268, %v2268
  %v2287 = vmul.f32 %v2273, %v2273
  %v2288 = vmul.f32 %v2278, %v2278
  %v2289 = vmul.f32 %v2283, %v2283
  %2290 = vmatprep.subr.mxu0 0.0
  %2291 = vmatpush1.msra.mxu0 %v73
  %2292 = vmatprep.subr.mxu0 0.0
  %2293 = vmatpush1.msra.mxu0 %v74
  %2294 = vmatprep.subr.mxu0 0.0
  %2295 = vmatpush1.msra.mxu0 %v75
  %2296 = vmatprep.subr.mxu0 0.0
  %2297 = vmatpush1.msra.mxu0 %v76
  %2298 = vmatprep.subr.mxu0 0.0
  %2299 = vmatpush1.msra.mxu0 %v77
  %2300 = vmatprep.subr.mxu0 0.0
  %2301 = vmatpush1.msra.mxu0 %v78
  %2302 = vmatprep.subr.mxu0 0.0
  %2303 = vmatpush1.msra.mxu0 %v79
  %2304 = vmatprep.subr.mxu0 0.0
  %2305 = vmatpush1.msra.mxu0 %v80
  %2306 = vmatprep.subr.mxu0 0.0
  %2307 = vmatpush1.msra.mxu0 %v81
  %2308 = vmatprep.subr.mxu0 0.0
  %2309 = vmatpush1.msra.mxu0 %v82
  %2310 = vmatprep.subr.mxu0 0.0
  %2311 = vmatpush1.msra.mxu0 %v83
  %2312 = vmatprep.subr.mxu0 0.0
  %2313 = vmatpush1.msra.mxu0 %v84
  %2314 = vmatprep.subr.mxu0 0.0
  %2315 = vmatpush1.msra.mxu0 %v85
  %2316 = vmatprep.subr.mxu0 0.0
  %2317 = vmatpush1.msra.mxu0 %v86
  %2318 = vmatprep.subr.mxu0 0.0
  %2319 = vmatpush1.msra.mxu0 %v87
  %2320 = vmatprep.subr.mxu0 0.0
  %2321 = vmatpush1.msra.mxu0 %v88
  %2322 = vmatprep.subr.mxu0 0.0
  %2323 = vmatpush1.msra.mxu0 0.0
  %2324 = vmatprep.subr.mxu0 0.0
  %2325 = vmatpush1.msra.mxu0 0.0
  %2326 = vmatprep.subr.mxu0 0.0
  %2327 = vmatpush1.msra.mxu0 0.0
  %2328 = vmatprep.subr.mxu0 0.0
  %2329 = vmatpush1.msra.mxu0 0.0
  %2330 = vmatprep.subr.mxu0 0.0
  %2331 = vmatpush1.msra.mxu0 0.0
  %2332 = vmatprep.subr.mxu0 0.0
  %2333 = vmatpush1.msra.mxu0 0.0
  %2334 = vmatprep.subr.mxu0 0.0
  %2335 = vmatpush1.msra.mxu0 0.0
  %2336 = vmatprep.subr.mxu0 0.0
  %2337 = vmatpush1.msra.mxu0 0.0
  %2338 = vmatprep.subr.mxu0 0.0
  %2339 = vmatpush1.msra.mxu0 0.0
  %2340 = vmatprep.subr.mxu0 0.0
  %2341 = vmatpush1.msra.mxu0 0.0
  %2342 = vmatprep.subr.mxu0 0.0
  %2343 = vmatpush1.msra.mxu0 0.0
  %2344 = vmatprep.subr.mxu0 0.0
  %2345 = vmatpush1.msra.mxu0 0.0
  %2346 = vmatprep.subr.mxu0 0.0
  %2347 = vmatpush1.msra.mxu0 0.0
  %2348 = vmatprep.subr.mxu0 0.0
  %2349 = vmatpush1.msra.mxu0 0.0
  %2350 = vmatprep.subr.mxu0 0.0
  %2351 = vmatpush1.msra.mxu0 0.0
  %2352 = vmatprep.subr.mxu0 0.0
  %2353 = vmatpush1.msra.mxu0 0.0
  %2354 = vmatprep.mubr.f32.mxu0 0.0
  %2355 = vmatmul.mubr.f32.gmra.mrb[0].mxu0 %v2286
  %v2356 = vpop.f32.mrb[0].mxu0
  %v2357 = vadd.f32 0.0, %v2356
  %v2358 = vpop.f32.mrb[0].mxu0
  %2359 = vmatprep.mubr.f32.mxu0 0.0
  %2360 = vmatmul.mubr.f32.gmra.mrb[0].mxu0 %v2287
  %v2361 = vpop.f32.mrb[0].mxu0
  %v2362 = vadd.f32 0.0, %v2361
  %v2363 = vpop.f32.mrb[0].mxu0
  %2364 = vmatprep.mubr.f32.mxu0 0.0
  %2365 = vmatmul.mubr.f32.gmra.mrb[0].mxu0 %v2288
  %v2366 = vpop.f32.mrb[0].mxu0
  %v2367 = vadd.f32 0.0, %v2366
  %v2368 = vpop.f32.mrb[0].mxu0
  %2369 = vmatprep.mubr.f32.mxu0 0.0
  %2370 = vmatmul.mubr.f32.gmra.mrb[0].mxu0 %v2289
  %v2371 = vpop.f32.mrb[0].mxu0
  %v2372 = vadd.f32 0.0, %v2371
  %v2373 = vpop.f32.mrb[0].mxu0
  %2374 = vdwg.mxu0
  %v2375 = vmax.f32 %v2357, 1e-24
  %v2376 = vmax.f32 %v2362, 1e-24
  %v2377 = vmax.f32 %v2367, 1e-24
  %v2378 = vmax.f32 %v2372, 1e-24
  %v2379 = vrsqrt.pop %v2375
  %v2380 = vrsqrt.pop %v2376
  %v2381 = vrsqrt.pop %v2377
  %v2382 = vrsqrt.pop %v2378
  %v2383 = vmul.f32 %v2268, %v2379
  %v2384 = vmul.f32 %v2273, %v2380
  %v2385 = vmul.f32 %v2278, %v2381
  %v2386 = vmul.f32 %v2283, %v2382
  %2387 = vst [vmem:[%s26] sm:$0xff] %v2383
  %2388 = vst [vmem:[%s26 + $0x8] sm:$0xff] %v2384
  %2389 = vst [vmem:[%s26 + $0x10] sm:$0xff] %v2385
  %2390 = vst [vmem:[%s26 + $0x18] sm:$0xff] %v2386
  %v2391 = vld [vmem:[%s3] sm:$0xff]
  %v2392 = vld [vmem:[%s3 + $0x8] sm:$0xff]
  %v2393 = vld [vmem:[%s3 + $0x10] sm:$0xff]
  %v2394 = vld [vmem:[%s3 + $0x18] sm:$0xff]
  %v2395 = vld [vmem:[%s5] sm:$0xff]
  %v2396 = vld [vmem:[%s5 + $0x8] sm:$0xff]
  %v2397 = vld [vmem:[%s5 + $0x10] sm:$0xff]
  %v2398 = vld [vmem:[%s5 + $0x18] sm:$0xff]
  %2399 = vrot.lane.b32.xlu0 %v1966, 9
  %v2400 = vpop.permute.xlu0 %2399
  %2401 = vrot.lane.b32.xlu0 %v1967, 9
  %v2402 = vpop.permute.xlu0 %2401
  %2403 = vrot.lane.b32.xlu0 %v1968, 9
  %v2404 = vpop.permute.xlu0 %2403
  %2405 = vrot.lane.b32.xlu0 %v1969, 9
  %v2406 = vpop.permute.xlu0 %2405
  %2407 = vrot.lane.b32.xlu0 %v2391, 9
  %v2408 = vpop.permute.xlu0 %2407
  %2409 = vrot.lane.b32.xlu0 %v2392, 9
  %v2410 = vpop.permute.xlu0 %2409
  %2411 = vrot.lane.b32.xlu0 %v2393, 9
  %v2412 = vpop.permute.xlu0 %2411
  %2413 = vrot.lane.b32.xlu0 %v2394, 9
  %v2414 = vpop.permute.xlu0 %2413
  %v2415 = vmul.f32 %v2400, %v131
  %v2416 = vmul.f32 %v2402, %v131
  %v2417 = vmul.f32 %v2404, %v131
  %v2418 = vmul.f32 %v2406, %v131
  %v2419 = vmul.f32 %v2408, %v131
  %v2420 = vmul.f32 %v2410, %v131
  %v2421 = vmul.f32 %v2412, %v131
  %v2422 = vmul.f32 %v2414, %v131
  %2423 = vrot.lane.b32.xlu0 %v1966, 8
  %v2424 = vpop.permute.xlu0 %2423
  %2425 = vrot.lane.b32.xlu0 %v1967, 8
  %v2426 = vpop.permute.xlu0 %2425
  %2427 = vrot.lane.b32.xlu0 %v1968, 8
  %v2428 = vpop.permute.xlu0 %2427
  %2429 = vrot.lane.b32.xlu0 %v1969, 8
  %v2430 = vpop.permute.xlu0 %2429
  %2431 = vrot.lane.b32.xlu0 %v2391, 8
  %v2432 = vpop.permute.xlu0 %2431
  %2433 = vrot.lane.b32.xlu0 %v2392, 8
  %v2434 = vpop.permute.xlu0 %2433
  %2435 = vrot.lane.b32.xlu0 %v2393, 8
  %v2436 = vpop.permute.xlu0 %2435
  %2437 = vrot.lane.b32.xlu0 %v2394, 8
  %v2438 = vpop.permute.xlu0 %2437
  %v2439 = vmul.f32 %v2424, %v162
  %v2440 = vmul.f32 %v2426, %v162
  %v2441 = vmul.f32 %v2428, %v162
  %v2442 = vmul.f32 %v2430, %v162
  %v2443 = vmul.f32 %v2432, %v162
  %v2444 = vmul.f32 %v2434, %v162
  %v2445 = vmul.f32 %v2436, %v162
  %v2446 = vmul.f32 %v2438, %v162
  %2447 = vrot.lane.b32.xlu0 %v1966, 7
  %v2448 = vpop.permute.xlu0 %2447
  %2449 = vrot.lane.b32.xlu0 %v1967, 7
  %v2450 = vpop.permute.xlu0 %2449
  %2451 = vrot.lane.b32.xlu0 %v1968, 7
  %v2452 = vpop.permute.xlu0 %2451
  %2453 = vrot.lane.b32.xlu0 %v1969, 7
  %v2454 = vpop.permute.xlu0 %2453
  %2455 = vrot.lane.b32.xlu0 %v2391, 7
  %v2456 = vpop.permute.xlu0 %2455
  %2457 = vrot.lane.b32.xlu0 %v2392, 7
  %v2458 = vpop.permute.xlu0 %2457
  %2459 = vrot.lane.b32.xlu0 %v2393, 7
  %v2460 = vpop.permute.xlu0 %2459
  %2461 = vrot.lane.b32.xlu0 %v2394, 7
  %v2462 = vpop.permute.xlu0 %2461
  %v2463 = vmul.f32 %v2448, %v193
  %v2464 = vmul.f32 %v2450, %v193
  %v2465 = vmul.f32 %v2452, %v193
  %v2466 = vmul.f32 %v2454, %v193
  %v2467 = vmul.f32 %v2456, %v193
  %v2468 = vmul.f32 %v2458, %v193
  %v2469 = vmul.f32 %v2460, %v193
  %v2470 = vmul.f32 %v2462, %v193
  %2471 = vrot.lane.b32.xlu0 %v1966, 1
  %v2472 = vpop.permute.xlu0 %2471
  %2473 = vrot.lane.b32.xlu0 %v1967, 1
  %v2474 = vpop.permute.xlu0 %2473
  %2475 = vrot.lane.b32.xlu0 %v1968, 1
  %v2476 = vpop.permute.xlu0 %2475
  %2477 = vrot.lane.b32.xlu0 %v1969, 1
  %v2478 = vpop.permute.xlu0 %2477
  %2479 = vrot.lane.b32.xlu0 %v2391, 1
  %v2480 = vpop.permute.xlu0 %2479
  %2481 = vrot.lane.b32.xlu0 %v2392, 1
  %v2482 = vpop.permute.xlu0 %2481
  %2483 = vrot.lane.b32.xlu0 %v2393, 1
  %v2484 = vpop.permute.xlu0 %2483
  %2485 = vrot.lane.b32.xlu0 %v2394, 1
  %v2486 = vpop.permute.xlu0 %2485
  %v2487 = vmul.f32 %v2472, %v224
  %v2488 = vmul.f32 %v2474, %v224
  %v2489 = vmul.f32 %v2476, %v224
  %v2490 = vmul.f32 %v2478, %v224
  %v2491 = vmul.f32 %v2480, %v224
  %v2492 = vmul.f32 %v2482, %v224
  %v2493 = vmul.f32 %v2484, %v224
  %v2494 = vmul.f32 %v2486, %v224
  %2495 = vrot.lane.b32.xlu0 %v1966, 127
  %v2496 = vpop.permute.xlu0 %2495
  %2497 = vrot.lane.b32.xlu0 %v1967, 127
  %v2498 = vpop.permute.xlu0 %2497
  %2499 = vrot.lane.b32.xlu0 %v1968, 127
  %v2500 = vpop.permute.xlu0 %2499
  %2501 = vrot.lane.b32.xlu0 %v1969, 127
  %v2502 = vpop.permute.xlu0 %2501
  %2503 = vrot.lane.b32.xlu0 %v2391, 127
  %v2504 = vpop.permute.xlu0 %2503
  %2505 = vrot.lane.b32.xlu0 %v2392, 127
  %v2506 = vpop.permute.xlu0 %2505
  %2507 = vrot.lane.b32.xlu0 %v2393, 127
  %v2508 = vpop.permute.xlu0 %2507
  %2509 = vrot.lane.b32.xlu0 %v2394, 127
  %v2510 = vpop.permute.xlu0 %2509
  %v2511 = vmul.f32 %v2496, %v255
  %v2512 = vmul.f32 %v2498, %v255
  %v2513 = vmul.f32 %v2500, %v255
  %v2514 = vmul.f32 %v2502, %v255
  %v2515 = vmul.f32 %v2504, %v255
  %v2516 = vmul.f32 %v2506, %v255
  %v2517 = vmul.f32 %v2508, %v255
  %v2518 = vmul.f32 %v2510, %v255
  %2519 = vrot.lane.b32.xlu0 %v1966, 121
  %v2520 = vpop.permute.xlu0 %2519
  %2521 = vrot.lane.b32.xlu0 %v1967, 121
  %v2522 = vpop.permute.xlu0 %2521
  %2523 = vrot.lane.b32.xlu0 %v1968, 121
  %v2524 = vpop.permute.xlu0 %2523
  %2525 = vrot.lane.b32.xlu0 %v1969, 121
  %v2526 = vpop.permute.xlu0 %2525
  %2527 = vrot.lane.b32.xlu0 %v2391, 121
  %v2528 = vpop.permute.xlu0 %2527
  %2529 = vrot.lane.b32.xlu0 %v2392, 121
  %v2530 = vpop.permute.xlu0 %2529
  %2531 = vrot.lane.b32.xlu0 %v2393, 121
  %v2532 = vpop.permute.xlu0 %2531
  %2533 = vrot.lane.b32.xlu0 %v2394, 121
  %v2534 = vpop.permute.xlu0 %2533
  %v2535 = vmul.f32 %v2520, %v286
  %v2536 = vmul.f32 %v2522, %v286
  %v2537 = vmul.f32 %v2524, %v286
  %v2538 = vmul.f32 %v2526, %v286
  %v2539 = vmul.f32 %v2528, %v286
  %v2540 = vmul.f32 %v2530, %v286
  %v2541 = vmul.f32 %v2532, %v286
  %v2542 = vmul.f32 %v2534, %v286
  %2543 = vrot.lane.b32.xlu0 %v1966, 120
  %v2544 = vpop.permute.xlu0 %2543
  %2545 = vrot.lane.b32.xlu0 %v1967, 120
  %v2546 = vpop.permute.xlu0 %2545
  %2547 = vrot.lane.b32.xlu0 %v1968, 120
  %v2548 = vpop.permute.xlu0 %2547
  %2549 = vrot.lane.b32.xlu0 %v1969, 120
  %v2550 = vpop.permute.xlu0 %2549
  %2551 = vrot.lane.b32.xlu0 %v2391, 120
  %v2552 = vpop.permute.xlu0 %2551
  %2553 = vrot.lane.b32.xlu0 %v2392, 120
  %v2554 = vpop.permute.xlu0 %2553
  %2555 = vrot.lane.b32.xlu0 %v2393, 120
  %v2556 = vpop.permute.xlu0 %2555
  %2557 = vrot.lane.b32.xlu0 %v2394, 120
  %v2558 = vpop.permute.xlu0 %2557
  %v2559 = vmul.f32 %v2544, %v317
  %v2560 = vmul.f32 %v2546, %v317
  %v2561 = vmul.f32 %v2548, %v317
  %v2562 = vmul.f32 %v2550, %v317
  %v2563 = vmul.f32 %v2552, %v317
  %v2564 = vmul.f32 %v2554, %v317
  %v2565 = vmul.f32 %v2556, %v317
  %v2566 = vmul.f32 %v2558, %v317
  %2567 = vrot.lane.b32.xlu0 %v1966, 119
  %v2568 = vpop.permute.xlu0 %2567
  %2569 = vrot.lane.b32.xlu0 %v1967, 119
  %v2570 = vpop.permute.xlu0 %2569
  %2571 = vrot.lane.b32.xlu0 %v1968, 119
  %v2572 = vpop.permute.xlu0 %2571
  %2573 = vrot.lane.b32.xlu0 %v1969, 119
  %v2574 = vpop.permute.xlu0 %2573
  %2575 = vrot.lane.b32.xlu0 %v2391, 119
  %v2576 = vpop.permute.xlu0 %2575
  %2577 = vrot.lane.b32.xlu0 %v2392, 119
  %v2578 = vpop.permute.xlu0 %2577
  %2579 = vrot.lane.b32.xlu0 %v2393, 119
  %v2580 = vpop.permute.xlu0 %2579
  %2581 = vrot.lane.b32.xlu0 %v2394, 119
  %v2582 = vpop.permute.xlu0 %2581
  %v2583 = vmul.f32 %v2568, %v348
  %v2584 = vmul.f32 %v2570, %v348
  %v2585 = vmul.f32 %v2572, %v348
  %v2586 = vmul.f32 %v2574, %v348
  %v2587 = vmul.f32 %v2576, %v348
  %v2588 = vmul.f32 %v2578, %v348
  %v2589 = vmul.f32 %v2580, %v348
  %v2590 = vmul.f32 %v2582, %v348
  %v2591 = vld [vmem:[%s7] sm:$0xff]
  %v2592 = vld [vmem:[%s7 + $0x8] sm:$0xff]
  %v2593 = vld [vmem:[%s7 + $0x10] sm:$0xff]
  %v2594 = vld [vmem:[%s7 + $0x18] sm:$0xff]
  %v2595 = vld [vmem:[%s7 + $0x20] sm:$0xff]
  %v2596 = vld [vmem:[%s7 + $0x28] sm:$0xff]
  %v2597 = vld [vmem:[%s7 + $0x30] sm:$0xff]
  %v2598 = vld [vmem:[%s7 + $0x38] sm:$0xff]
  %v2599 = vld [vmem:[%s7 + $0x40] sm:$0xff]
  %v2600 = vld [vmem:[%s7 + $0x48] sm:$0xff]
  %v2601 = vld [vmem:[%s7 + $0x50] sm:$0xff]
  %v2602 = vld [vmem:[%s7 + $0x58] sm:$0xff]
  %v2603 = vld [vmem:[%s7 + $0x60] sm:$0xff]
  %v2604 = vld [vmem:[%s7 + $0x68] sm:$0xff]
  %v2605 = vld [vmem:[%s7 + $0x70] sm:$0xff]
  %v2606 = vld [vmem:[%s7 + $0x78] sm:$0xff]
  %v2607 = vld [vmem:[%s7 + $0x80] sm:$0xff]
  %v2608 = vld [vmem:[%s7 + $0x88] sm:$0xff]
  %v2609 = vld [vmem:[%s7 + $0x90] sm:$0xff]
  %v2610 = vld [vmem:[%s7 + $0x98] sm:$0xff]
  %v2611 = vld [vmem:[%s7 + $0xa0] sm:$0xff]
  %v2612 = vld [vmem:[%s7 + $0xa8] sm:$0xff]
  %v2613 = vld [vmem:[%s7 + $0xb0] sm:$0xff]
  %v2614 = vld [vmem:[%s7 + $0xb8] sm:$0xff]
  %v2615 = vld [vmem:[%s7 + $0xc0] sm:$0xff]
  %v2616 = vld [vmem:[%s7 + $0xc8] sm:$0xff]
  %v2617 = vld [vmem:[%s7 + $0xd0] sm:$0xff]
  %v2618 = vld [vmem:[%s7 + $0xd8] sm:$0xff]
  %v2619 = vld [vmem:[%s7 + $0xe0] sm:$0xff]
  %v2620 = vld [vmem:[%s7 + $0xe8] sm:$0xff]
  %v2621 = vld [vmem:[%s7 + $0xf0] sm:$0xff]
  %v2622 = vld [vmem:[%s7 + $0xf8] sm:$0xff]
  %v2623 = vld [vmem:[%s7 + $0x100] sm:$0xff]
  %v2624 = vld [vmem:[%s7 + $0x108] sm:$0xff]
  %v2625 = vld [vmem:[%s7 + $0x110] sm:$0xff]
  %v2626 = vld [vmem:[%s7 + $0x118] sm:$0xff]
  %v2627 = vld [vmem:[%s7 + $0x120] sm:$0xff]
  %v2628 = vld [vmem:[%s7 + $0x128] sm:$0xff]
  %v2629 = vld [vmem:[%s7 + $0x130] sm:$0xff]
  %v2630 = vld [vmem:[%s7 + $0x138] sm:$0xff]
  %v2631 = vld [vmem:[%s7 + $0x140] sm:$0xff]
  %v2632 = vld [vmem:[%s7 + $0x148] sm:$0xff]
  %v2633 = vld [vmem:[%s7 + $0x150] sm:$0xff]
  %v2634 = vld [vmem:[%s7 + $0x158] sm:$0xff]
  %v2635 = vld [vmem:[%s7 + $0x160] sm:$0xff]
  %v2636 = vld [vmem:[%s7 + $0x168] sm:$0xff]
  %v2637 = vld [vmem:[%s7 + $0x170] sm:$0xff]
  %v2638 = vld [vmem:[%s7 + $0x178] sm:$0xff]
  %v2639 = vld [vmem:[%s7 + $0x180] sm:$0xff]
  %v2640 = vld [vmem:[%s7 + $0x188] sm:$0xff]
  %v2641 = vld [vmem:[%s7 + $0x190] sm:$0xff]
  %v2642 = vld [vmem:[%s7 + $0x198] sm:$0xff]
  %v2643 = vld [vmem:[%s7 + $0x1a0] sm:$0xff]
  %v2644 = vld [vmem:[%s7 + $0x1a8] sm:$0xff]
  %v2645 = vld [vmem:[%s7 + $0x1b0] sm:$0xff]
  %v2646 = vld [vmem:[%s7 + $0x1b8] sm:$0xff]
  %v2647 = vld [vmem:[%s7 + $0x1c0] sm:$0xff]
  %v2648 = vld [vmem:[%s7 + $0x1c8] sm:$0xff]
  %v2649 = vld [vmem:[%s7 + $0x1d0] sm:$0xff]
  %v2650 = vld [vmem:[%s7 + $0x1d8] sm:$0xff]
  %v2651 = vld [vmem:[%s7 + $0x1e0] sm:$0xff]
  %v2652 = vld [vmem:[%s7 + $0x1e8] sm:$0xff]
  %v2653 = vld [vmem:[%s7 + $0x1f0] sm:$0xff]
  %v2654 = vld [vmem:[%s7 + $0x1f8] sm:$0xff]
  %v2655 = vld [vmem:[%s7 + $0x200] sm:$0xff]
  %v2656 = vld [vmem:[%s7 + $0x208] sm:$0xff]
  %v2657 = vld [vmem:[%s7 + $0x210] sm:$0xff]
  %v2658 = vld [vmem:[%s7 + $0x218] sm:$0xff]
  %v2659 = vld [vmem:[%s7 + $0x220] sm:$0xff]
  %v2660 = vld [vmem:[%s7 + $0x228] sm:$0xff]
  %v2661 = vld [vmem:[%s7 + $0x230] sm:$0xff]
  %v2662 = vld [vmem:[%s7 + $0x238] sm:$0xff]
  %v2663 = vld [vmem:[%s7 + $0x240] sm:$0xff]
  %v2664 = vld [vmem:[%s7 + $0x248] sm:$0xff]
  %v2665 = vld [vmem:[%s7 + $0x250] sm:$0xff]
  %v2666 = vld [vmem:[%s7 + $0x258] sm:$0xff]
  %v2667 = vld [vmem:[%s7 + $0x260] sm:$0xff]
  %v2668 = vld [vmem:[%s7 + $0x268] sm:$0xff]
  %v2669 = vld [vmem:[%s7 + $0x270] sm:$0xff]
  %v2670 = vld [vmem:[%s7 + $0x278] sm:$0xff]
  %v2671 = vld [vmem:[%s7 + $0x280] sm:$0xff]
  %v2672 = vld [vmem:[%s7 + $0x288] sm:$0xff]
  %v2673 = vld [vmem:[%s7 + $0x290] sm:$0xff]
  %v2674 = vld [vmem:[%s7 + $0x298] sm:$0xff]
  %v2675 = vld [vmem:[%s7 + $0x2a0] sm:$0xff]
  %v2676 = vld [vmem:[%s7 + $0x2a8] sm:$0xff]
  %v2677 = vld [vmem:[%s7 + $0x2b0] sm:$0xff]
  %v2678 = vld [vmem:[%s7 + $0x2b8] sm:$0xff]
  %v2679 = vld [vmem:[%s7 + $0x2c0] sm:$0xff]
  %v2680 = vld [vmem:[%s7 + $0x2c8] sm:$0xff]
  %v2681 = vld [vmem:[%s7 + $0x2d0] sm:$0xff]
  %v2682 = vld [vmem:[%s7 + $0x2d8] sm:$0xff]
  %v2683 = vld [vmem:[%s7 + $0x2e0] sm:$0xff]
  %v2684 = vld [vmem:[%s7 + $0x2e8] sm:$0xff]
  %v2685 = vld [vmem:[%s7 + $0x2f0] sm:$0xff]
  %v2686 = vld [vmem:[%s7 + $0x2f8] sm:$0xff]
  %v2687 = vld [vmem:[%s7 + $0x300] sm:$0xff]
  %v2688 = vld [vmem:[%s7 + $0x308] sm:$0xff]
  %v2689 = vld [vmem:[%s7 + $0x310] sm:$0xff]
  %v2690 = vld [vmem:[%s7 + $0x318] sm:$0xff]
  %v2691 = vld [vmem:[%s7 + $0x320] sm:$0xff]
  %v2692 = vld [vmem:[%s7 + $0x328] sm:$0xff]
  %v2693 = vld [vmem:[%s7 + $0x330] sm:$0xff]
  %v2694 = vld [vmem:[%s7 + $0x338] sm:$0xff]
  %v2695 = vld [vmem:[%s7 + $0x340] sm:$0xff]
  %v2696 = vld [vmem:[%s7 + $0x348] sm:$0xff]
  %v2697 = vld [vmem:[%s7 + $0x350] sm:$0xff]
  %v2698 = vld [vmem:[%s7 + $0x358] sm:$0xff]
  %v2699 = vld [vmem:[%s7 + $0x360] sm:$0xff]
  %v2700 = vld [vmem:[%s7 + $0x368] sm:$0xff]
  %v2701 = vld [vmem:[%s7 + $0x370] sm:$0xff]
  %v2702 = vld [vmem:[%s7 + $0x378] sm:$0xff]
  %v2703 = vld [vmem:[%s7 + $0x380] sm:$0xff]
  %v2704 = vld [vmem:[%s7 + $0x388] sm:$0xff]
  %v2705 = vld [vmem:[%s7 + $0x390] sm:$0xff]
  %v2706 = vld [vmem:[%s7 + $0x398] sm:$0xff]
  %v2707 = vld [vmem:[%s7 + $0x3a0] sm:$0xff]
  %v2708 = vld [vmem:[%s7 + $0x3a8] sm:$0xff]
  %v2709 = vld [vmem:[%s7 + $0x3b0] sm:$0xff]
  %v2710 = vld [vmem:[%s7 + $0x3b8] sm:$0xff]
  %v2711 = vld [vmem:[%s7 + $0x3c0] sm:$0xff]
  %v2712 = vld [vmem:[%s7 + $0x3c8] sm:$0xff]
  %v2713 = vld [vmem:[%s7 + $0x3d0] sm:$0xff]
  %v2714 = vld [vmem:[%s7 + $0x3d8] sm:$0xff]
  %v2715 = vld [vmem:[%s7 + $0x3e0] sm:$0xff]
  %v2716 = vld [vmem:[%s7 + $0x3e8] sm:$0xff]
  %v2717 = vld [vmem:[%s7 + $0x3f0] sm:$0xff]
  %v2718 = vld [vmem:[%s7 + $0x3f8] sm:$0xff]
  %v2719 = vld [vmem:[%s7 + $0x400] sm:$0xff]
  %v2720 = vld [vmem:[%s7 + $0x408] sm:$0xff]
  %v2721 = vld [vmem:[%s7 + $0x410] sm:$0xff]
  %v2722 = vld [vmem:[%s7 + $0x418] sm:$0xff]
  %v2723 = vld [vmem:[%s7 + $0x420] sm:$0xff]
  %v2724 = vld [vmem:[%s7 + $0x428] sm:$0xff]
  %v2725 = vld [vmem:[%s7 + $0x430] sm:$0xff]
  %v2726 = vld [vmem:[%s7 + $0x438] sm:$0xff]
  %v2727 = vld [vmem:[%s7 + $0x440] sm:$0xff]
  %v2728 = vld [vmem:[%s7 + $0x448] sm:$0xff]
  %v2729 = vld [vmem:[%s7 + $0x450] sm:$0xff]
  %v2730 = vld [vmem:[%s7 + $0x458] sm:$0xff]
  %v2731 = vld [vmem:[%s7 + $0x460] sm:$0xff]
  %v2732 = vld [vmem:[%s7 + $0x468] sm:$0xff]
  %v2733 = vld [vmem:[%s7 + $0x470] sm:$0xff]
  %v2734 = vld [vmem:[%s7 + $0x478] sm:$0xff]
  %v2735 = vld [vmem:[%s7 + $0x480] sm:$0xff]
  %v2736 = vld [vmem:[%s7 + $0x488] sm:$0xff]
  %v2737 = vld [vmem:[%s7 + $0x490] sm:$0xff]
  %v2738 = vld [vmem:[%s7 + $0x498] sm:$0xff]
  %v2739 = vld [vmem:[%s7 + $0x4a0] sm:$0xff]
  %v2740 = vld [vmem:[%s7 + $0x4a8] sm:$0xff]
  %v2741 = vld [vmem:[%s7 + $0x4b0] sm:$0xff]
  %v2742 = vld [vmem:[%s7 + $0x4b8] sm:$0xff]
  %v2743 = vld [vmem:[%s7 + $0x4c0] sm:$0xff]
  %v2744 = vld [vmem:[%s7 + $0x4c8] sm:$0xff]
  %v2745 = vld [vmem:[%s7 + $0x4d0] sm:$0xff]
  %v2746 = vld [vmem:[%s7 + $0x4d8] sm:$0xff]
  %v2747 = vld [vmem:[%s7 + $0x4e0] sm:$0xff]
  %v2748 = vld [vmem:[%s7 + $0x4e8] sm:$0xff]
  %v2749 = vld [vmem:[%s7 + $0x4f0] sm:$0xff]
  %v2750 = vld [vmem:[%s7 + $0x4f8] sm:$0xff]
  %v2751 = vld [vmem:[%s7 + $0x500] sm:$0xff]
  %v2752 = vld [vmem:[%s7 + $0x508] sm:$0xff]
  %v2753 = vld [vmem:[%s7 + $0x510] sm:$0xff]
  %v2754 = vld [vmem:[%s7 + $0x518] sm:$0xff]
  %v2755 = vld [vmem:[%s7 + $0x520] sm:$0xff]
  %v2756 = vld [vmem:[%s7 + $0x528] sm:$0xff]
  %v2757 = vld [vmem:[%s7 + $0x530] sm:$0xff]
  %v2758 = vld [vmem:[%s7 + $0x538] sm:$0xff]
  %v2759 = vld [vmem:[%s7 + $0x540] sm:$0xff]
  %v2760 = vld [vmem:[%s7 + $0x548] sm:$0xff]
  %v2761 = vld [vmem:[%s7 + $0x550] sm:$0xff]
  %v2762 = vld [vmem:[%s7 + $0x558] sm:$0xff]
  %v2763 = vld [vmem:[%s7 + $0x560] sm:$0xff]
  %v2764 = vld [vmem:[%s7 + $0x568] sm:$0xff]
  %v2765 = vld [vmem:[%s7 + $0x570] sm:$0xff]
  %v2766 = vld [vmem:[%s7 + $0x578] sm:$0xff]
  %v2767 = vld [vmem:[%s7 + $0x580] sm:$0xff]
  %v2768 = vld [vmem:[%s7 + $0x588] sm:$0xff]
  %v2769 = vld [vmem:[%s7 + $0x590] sm:$0xff]
  %v2770 = vld [vmem:[%s7 + $0x598] sm:$0xff]
  %v2771 = vld [vmem:[%s7 + $0x5a0] sm:$0xff]
  %v2772 = vld [vmem:[%s7 + $0x5a8] sm:$0xff]
  %v2773 = vld [vmem:[%s7 + $0x5b0] sm:$0xff]
  %v2774 = vld [vmem:[%s7 + $0x5b8] sm:$0xff]
  %v2775 = vld [vmem:[%s7 + $0x5c0] sm:$0xff]
  %v2776 = vld [vmem:[%s7 + $0x5c8] sm:$0xff]
  %v2777 = vld [vmem:[%s7 + $0x5d0] sm:$0xff]
  %v2778 = vld [vmem:[%s7 + $0x5d8] sm:$0xff]
  %v2779 = vld [vmem:[%s7 + $0x5e0] sm:$0xff]
  %v2780 = vld [vmem:[%s7 + $0x5e8] sm:$0xff]
  %v2781 = vld [vmem:[%s7 + $0x5f0] sm:$0xff]
  %v2782 = vld [vmem:[%s7 + $0x5f8] sm:$0xff]
  %v2783 = vld [vmem:[%s7 + $0x600] sm:$0xff]
  %v2784 = vld [vmem:[%s7 + $0x608] sm:$0xff]
  %v2785 = vld [vmem:[%s7 + $0x610] sm:$0xff]
  %v2786 = vld [vmem:[%s7 + $0x618] sm:$0xff]
  %vm2787 = vcmask 785408
  %v2789 = vsel %vm2787, %v2597, 0
  %v2792 = vsel %vm2787, %v2604, 0
  %v2795 = vsel %vm2787, %v2611, 0
  %v2798 = vsel %vm2787, %v2618, 0
  %v2801 = vsel %vm2787, %v2625, 0
  %v2804 = vsel %vm2787, %v2632, 0
  %v2807 = vsel %vm2787, %v2639, 0
  %v2810 = vsel %vm2787, %v2646, 0
  %v2813 = vsel %vm2787, %v2653, 0
  %v2816 = vsel %vm2787, %v2660, 0
  %v2819 = vsel %vm2787, %v2667, 0
  %v2822 = vsel %vm2787, %v2674, 0
  %v2825 = vsel %vm2787, %v2681, 0
  %v2828 = vsel %vm2787, %v2688, 0
  %v2831 = vsel %vm2787, %v2695, 0
  %v2834 = vsel %vm2787, %v2702, 0
  %v2837 = vsel %vm2787, %v2709, 0
  %v2840 = vsel %vm2787, %v2716, 0
  %v2843 = vsel %vm2787, %v2723, 0
  %v2846 = vsel %vm2787, %v2730, 0
  %v2849 = vsel %vm2787, %v2737, 0
  %v2852 = vsel %vm2787, %v2744, 0
  %v2855 = vsel %vm2787, %v2751, 0
  %v2858 = vsel %vm2787, %v2758, 0
  %v2861 = vsel %vm2787, %v2765, 0
  %v2864 = vsel %vm2787, %v2772, 0
  %v2867 = vsel %vm2787, %v2779, 0
  %v2870 = vsel %vm2787, %v2786, 0
  %2872 = vmatprep.subr.mxu0 0.0
  %2873 = vmatpush1.msra.mxu0 %v2415
  %2874 = vmatprep.subr.mxu0 0.0
  %2875 = vmatpush1.msra.mxu0 %v2416
  %2876 = vmatprep.subr.mxu0 0.0
  %2877 = vmatpush1.msra.mxu0 %v2417
  %2878 = vmatprep.subr.mxu0 0.0
  %2879 = vmatpush1.msra.mxu0 %v2418
  %2880 = vmatprep.subr.mxu0 0.0
  %2881 = vmatpush1.msra.mxu0 %v2419
  %2882 = vmatprep.subr.mxu0 0.0
  %2883 = vmatpush1.msra.mxu0 %v2420
  %2884 = vmatprep.subr.mxu0 0.0
  %2885 = vmatpush1.msra.mxu0 %v2421
  %2886 = vmatprep.subr.mxu0 0.0
  %2887 = vmatpush1.msra.mxu0 %v2422
  %2888 = vmatprep.subr.mxu0 0.0
  %2889 = vmatpush1.msra.mxu0 %v1382
  %2890 = vmatprep.subr.mxu0 0.0
  %2891 = vmatpush1.msra.mxu0 %v1383
  %2892 = vmatprep.subr.mxu0 0.0
  %2893 = vmatpush1.msra.mxu0 %v1384
  %2894 = vmatprep.subr.mxu0 0.0
  %2895 = vmatpush1.msra.mxu0 %v1385
  %2896 = vmatprep.subr.mxu0 0.0
  %2897 = vmatpush1.msra.mxu0 %v2439
  %2898 = vmatprep.subr.mxu0 0.0
  %2899 = vmatpush1.msra.mxu0 %v2440
  %2900 = vmatprep.subr.mxu0 0.0
  %2901 = vmatpush1.msra.mxu0 %v2441
  %2902 = vmatprep.subr.mxu0 0.0
  %2903 = vmatpush1.msra.mxu0 %v2442
  %2904 = vmatprep.subr.mxu0 0.0
  %2905 = vmatpush1.msra.mxu0 %v2443
  %2906 = vmatprep.subr.mxu0 0.0
  %2907 = vmatpush1.msra.mxu0 %v2444
  %2908 = vmatprep.subr.mxu0 0.0
  %2909 = vmatpush1.msra.mxu0 %v2445
  %2910 = vmatprep.subr.mxu0 0.0
  %2911 = vmatpush1.msra.mxu0 %v2446
  %2912 = vmatprep.subr.mxu0 0.0
  %2913 = vmatpush1.msra.mxu0 %v1406
  %2914 = vmatprep.subr.mxu0 0.0
  %2915 = vmatpush1.msra.mxu0 %v1407
  %2916 = vmatprep.subr.mxu0 0.0
  %2917 = vmatpush1.msra.mxu0 %v1408
  %2918 = vmatprep.subr.mxu0 0.0
  %2919 = vmatpush1.msra.mxu0 %v1409
  %2920 = vmatprep.subr.mxu0 0.0
  %2921 = vmatpush1.msra.mxu0 %v2463
  %2922 = vmatprep.subr.mxu0 0.0
  %2923 = vmatpush1.msra.mxu0 %v2464
  %2924 = vmatprep.subr.mxu0 0.0
  %2925 = vmatpush1.msra.mxu0 %v2465
  %2926 = vmatprep.subr.mxu0 0.0
  %2927 = vmatpush1.msra.mxu0 %v2466
  %2928 = vmatprep.subr.mxu0 0.0
  %2929 = vmatpush1.msra.mxu0 %v2467
  %2930 = vmatprep.subr.mxu0 0.0
  %2931 = vmatpush1.msra.mxu0 %v2468
  %2932 = vmatprep.subr.mxu0 0.0
  %2933 = vmatpush1.msra.mxu0 %v2469
  %2934 = vmatprep.subr.mxu0 0.0
  %2935 = vmatpush1.msra.mxu0 %v2470
  %2936 = vmatprep.mubr.f32.mxu0 %v2592
  %2937 = vmatmul.mubr.f32.gmra.mrb[0].mxu0 %v2591
  %v2938 = vpop.f32.mrb[0].mxu0
  %v2939 = vadd.f32 0.0, %v2938
  %v2940 = vpop.f32.mrb[0].mxu0
  %2941 = vmatprep.mubr.f32.mxu0 %v2599
  %2942 = vmatmul.mubr.f32.gmra.mrb[0].mxu0 %v2598
  %v2943 = vpop.f32.mrb[0].mxu0
  %v2944 = vadd.f32 0.0, %v2943
  %v2945 = vpop.f32.mrb[0].mxu0
  %2946 = vmatprep.mubr.f32.mxu0 %v2606
  %2947 = vmatmul.mubr.f32.gmra.mrb[0].mxu0 %v2605
  %v2948 = vpop.f32.mrb[0].mxu0
  %v2949 = vadd.f32 0.0, %v2948
  %v2950 = vpop.f32.mrb[0].mxu0
  %2951 = vmatprep.mubr.f32.mxu0 %v2613
  %2952 = vmatmul.mubr.f32.gmra.mrb[0].mxu0 %v2612
  %v2953 = vpop.f32.mrb[0].mxu0
  %v2954 = vadd.f32 0.0, %v2953
  %v2955 = vpop.f32.mrb[0].mxu0
  %2956 = vmatprep.mubr.f32.mxu0 %v2620
  %2957 = vmatmul.mubr.f32.gmra.mrb[0].mxu0 %v2619
  %v2958 = vpop.f32.mrb[0].mxu0
  %v2959 = vadd.f32 0.0, %v2958
  %v2960 = vpop.f32.mrb[0].mxu0
  %2961 = vmatprep.mubr.f32.mxu0 %v2627
  %2962 = vmatmul.mubr.f32.gmra.mrb[0].mxu0 %v2626
  %v2963 = vpop.f32.mrb[0].mxu0
  %v2964 = vadd.f32 0.0, %v2963
  %v2965 = vpop.f32.mrb[0].mxu0
  %2966 = vmatprep.mubr.f32.mxu0 %v2634
  %2967 = vmatmul.mubr.f32.gmra.mrb[0].mxu0 %v2633
  %v2968 = vpop.f32.mrb[0].mxu0
  %v2969 = vadd.f32 0.0, %v2968
  %v2970 = vpop.f32.mrb[0].mxu0
  %2971 = vmatprep.mubr.f32.mxu0 %v2641
  %2972 = vmatmul.mubr.f32.gmra.mrb[0].mxu0 %v2640
  %v2973 = vpop.f32.mrb[0].mxu0
  %v2974 = vadd.f32 0.0, %v2973
  %v2975 = vpop.f32.mrb[0].mxu0
  %2976 = vmatprep.mubr.f32.mxu0 %v2648
  %2977 = vmatmul.mubr.f32.gmra.mrb[0].mxu0 %v2647
  %v2978 = vpop.f32.mrb[0].mxu0
  %v2979 = vadd.f32 0.0, %v2978
  %v2980 = vpop.f32.mrb[0].mxu0
  %2981 = vmatprep.mubr.f32.mxu0 %v2655
  %2982 = vmatmul.mubr.f32.gmra.mrb[0].mxu0 %v2654
  %v2983 = vpop.f32.mrb[0].mxu0
  %v2984 = vadd.f32 0.0, %v2983
  %v2985 = vpop.f32.mrb[0].mxu0
  %2986 = vmatprep.mubr.f32.mxu0 %v2662
  %2987 = vmatmul.mubr.f32.gmra.mrb[0].mxu0 %v2661
  %v2988 = vpop.f32.mrb[0].mxu0
  %v2989 = vadd.f32 0.0, %v2988
  %v2990 = vpop.f32.mrb[0].mxu0
  %2991 = vmatprep.mubr.f32.mxu0 %v2669
  %2992 = vmatmul.mubr.f32.gmra.mrb[0].mxu0 %v2668
  %v2993 = vpop.f32.mrb[0].mxu0
  %v2994 = vadd.f32 0.0, %v2993
  %v2995 = vpop.f32.mrb[0].mxu0
  %2996 = vmatprep.mubr.f32.mxu0 %v2676
  %2997 = vmatmul.mubr.f32.gmra.mrb[0].mxu0 %v2675
  %v2998 = vpop.f32.mrb[0].mxu0
  %v2999 = vadd.f32 0.0, %v2998
  %v3000 = vpop.f32.mrb[0].mxu0
  %3001 = vmatprep.mubr.f32.mxu0 %v2683
  %3002 = vmatmul.mubr.f32.gmra.mrb[0].mxu0 %v2682
  %v3003 = vpop.f32.mrb[0].mxu0
  %v3004 = vadd.f32 0.0, %v3003
  %v3005 = vpop.f32.mrb[0].mxu0
  %3006 = vmatprep.mubr.f32.mxu0 %v2690
  %3007 = vmatmul.mubr.f32.gmra.mrb[0].mxu0 %v2689
  %v3008 = vpop.f32.mrb[0].mxu0
  %v3009 = vadd.f32 0.0, %v3008
  %v3010 = vpop.f32.mrb[0].mxu0
  %3011 = vmatprep.mubr.f32.mxu0 %v2697
  %3012 = vmatmul.mubr.f32.gmra.mrb[0].mxu0 %v2696
  %v3013 = vpop.f32.mrb[0].mxu0
  %v3014 = vadd.f32 0.0, %v3013
  %v3015 = vpop.f32.mrb[0].mxu0
  %3016 = vmatprep.mubr.f32.mxu0 %v2704
  %3017 = vmatmul.mubr.f32.gmra.mrb[0].mxu0 %v2703
  %v3018 = vpop.f32.mrb[0].mxu0
  %v3019 = vadd.f32 0.0, %v3018
  %v3020 = vpop.f32.mrb[0].mxu0
  %3021 = vmatprep.mubr.f32.mxu0 %v2711
  %3022 = vmatmul.mubr.f32.gmra.mrb[0].mxu0 %v2710
  %v3023 = vpop.f32.mrb[0].mxu0
  %v3024 = vadd.f32 0.0, %v3023
  %v3025 = vpop.f32.mrb[0].mxu0
  %3026 = vmatprep.mubr.f32.mxu0 %v2718
  %3027 = vmatmul.mubr.f32.gmra.mrb[0].mxu0 %v2717
  %v3028 = vpop.f32.mrb[0].mxu0
  %v3029 = vadd.f32 0.0, %v3028
  %v3030 = vpop.f32.mrb[0].mxu0
  %3031 = vmatprep.mubr.f32.mxu0 %v2725
  %3032 = vmatmul.mubr.f32.gmra.mrb[0].mxu0 %v2724
  %v3033 = vpop.f32.mrb[0].mxu0
  %v3034 = vadd.f32 0.0, %v3033
  %v3035 = vpop.f32.mrb[0].mxu0
  %3036 = vmatprep.mubr.f32.mxu0 %v2732
  %3037 = vmatmul.mubr.f32.gmra.mrb[0].mxu0 %v2731
  %v3038 = vpop.f32.mrb[0].mxu0
  %v3039 = vadd.f32 0.0, %v3038
  %v3040 = vpop.f32.mrb[0].mxu0
  %3041 = vmatprep.mubr.f32.mxu0 %v2739
  %3042 = vmatmul.mubr.f32.gmra.mrb[0].mxu0 %v2738
  %v3043 = vpop.f32.mrb[0].mxu0
  %v3044 = vadd.f32 0.0, %v3043
  %v3045 = vpop.f32.mrb[0].mxu0
  %3046 = vmatprep.mubr.f32.mxu0 %v2746
  %3047 = vmatmul.mubr.f32.gmra.mrb[0].mxu0 %v2745
  %v3048 = vpop.f32.mrb[0].mxu0
  %v3049 = vadd.f32 0.0, %v3048
  %v3050 = vpop.f32.mrb[0].mxu0
  %3051 = vmatprep.mubr.f32.mxu0 %v2753
  %3052 = vmatmul.mubr.f32.gmra.mrb[0].mxu0 %v2752
  %v3053 = vpop.f32.mrb[0].mxu0
  %v3054 = vadd.f32 0.0, %v3053
  %v3055 = vpop.f32.mrb[0].mxu0
  %3056 = vmatprep.mubr.f32.mxu0 %v2760
  %3057 = vmatmul.mubr.f32.gmra.mrb[0].mxu0 %v2759
  %v3058 = vpop.f32.mrb[0].mxu0
  %v3059 = vadd.f32 0.0, %v3058
  %v3060 = vpop.f32.mrb[0].mxu0
  %3061 = vmatprep.mubr.f32.mxu0 %v2767
  %3062 = vmatmul.mubr.f32.gmra.mrb[0].mxu0 %v2766
  %v3063 = vpop.f32.mrb[0].mxu0
  %v3064 = vadd.f32 0.0, %v3063
  %v3065 = vpop.f32.mrb[0].mxu0
  %3066 = vmatprep.mubr.f32.mxu0 %v2774
  %3067 = vmatmul.mubr.f32.gmra.mrb[0].mxu0 %v2773
  %v3068 = vpop.f32.mrb[0].mxu0
  %v3069 = vadd.f32 0.0, %v3068
  %v3070 = vpop.f32.mrb[0].mxu0
  %3071 = vmatprep.mubr.f32.mxu0 %v2781
  %3072 = vmatmul.mubr.f32.gmra.mrb[0].mxu0 %v2780
  %v3073 = vpop.f32.mrb[0].mxu0
  %v3074 = vadd.f32 0.0, %v3073
  %v3075 = vpop.f32.mrb[0].mxu0
  %3076 = vdwg.mxu0
  %3077 = vmatprep.subr.mxu0 0.0
  %3078 = vmatpush1.msra.mxu0 %v1430
  %3079 = vmatprep.subr.mxu0 0.0
  %3080 = vmatpush1.msra.mxu0 %v1431
  %3081 = vmatprep.subr.mxu0 0.0
  %3082 = vmatpush1.msra.mxu0 %v1432
  %3083 = vmatprep.subr.mxu0 0.0
  %3084 = vmatpush1.msra.mxu0 %v1433
  %3085 = vmatprep.subr.mxu0 0.0
  %3086 = vmatpush1.msra.mxu0 %v2487
  %3087 = vmatprep.subr.mxu0 0.0
  %3088 = vmatpush1.msra.mxu0 %v2488
  %3089 = vmatprep.subr.mxu0 0.0
  %3090 = vmatpush1.msra.mxu0 %v2489
  %3091 = vmatprep.subr.mxu0 0.0
  %3092 = vmatpush1.msra.mxu0 %v2490
  %3093 = vmatprep.subr.mxu0 0.0
  %3094 = vmatpush1.msra.mxu0 %v2491
  %3095 = vmatprep.subr.mxu0 0.0
  %3096 = vmatpush1.msra.mxu0 %v2492
  %3097 = vmatprep.subr.mxu0 0.0
  %3098 = vmatpush1.msra.mxu0 %v2493
  %3099 = vmatprep.subr.mxu0 0.0
  %3100 = vmatpush1.msra.mxu0 %v2494
  %3101 = vmatprep.subr.mxu0 0.0
  %3102 = vmatpush1.msra.mxu0 %v1454
  %3103 = vmatprep.subr.mxu0 0.0
  %3104 = vmatpush1.msra.mxu0 %v1455
  %3105 = vmatprep.subr.mxu0 0.0
  %3106 = vmatpush1.msra.mxu0 %v1456
  %3107 = vmatprep.subr.mxu0 0.0
  %3108 = vmatpush1.msra.mxu0 %v1457
  %3109 = vmatprep.subr.mxu0 0.0
  %3110 = vmatpush1.msra.mxu0 %v1966
  %3111 = vmatprep.subr.mxu0 0.0
  %3112 = vmatpush1.msra.mxu0 %v1967
  %3113 = vmatprep.subr.mxu0 0.0
  %3114 = vmatpush1.msra.mxu0 %v1968
  %3115 = vmatprep.subr.mxu0 0.0
  %3116 = vmatpush1.msra.mxu0 %v1969
  %3117 = vmatprep.subr.mxu0 0.0
  %3118 = vmatpush1.msra.mxu0 %v2391
  %3119 = vmatprep.subr.mxu0 0.0
  %3120 = vmatpush1.msra.mxu0 %v2392
  %3121 = vmatprep.subr.mxu0 0.0
  %3122 = vmatpush1.msra.mxu0 %v2393
  %3123 = vmatprep.subr.mxu0 0.0
  %3124 = vmatpush1.msra.mxu0 %v2394
  %3125 = vmatprep.subr.mxu0 0.0
  %3126 = vmatpush1.msra.mxu0 %v1358
  %3127 = vmatprep.subr.mxu0 0.0
  %3128 = vmatpush1.msra.mxu0 %v1359
  %3129 = vmatprep.subr.mxu0 0.0
  %3130 = vmatpush1.msra.mxu0 %v1360
  %3131 = vmatprep.subr.mxu0 0.0
  %3132 = vmatpush1.msra.mxu0 %v1361
  %3133 = vmatprep.subr.mxu0 0.0
  %3134 = vmatpush1.msra.mxu0 %v2511
  %3135 = vmatprep.subr.mxu0 0.0
  %3136 = vmatpush1.msra.mxu0 %v2512
  %3137 = vmatprep.subr.mxu0 0.0
  %3138 = vmatpush1.msra.mxu0 %v2513
  %3139 = vmatprep.subr.mxu0 0.0
  %3140 = vmatpush1.msra.mxu0 %v2514
  %3141 = vmatprep.mubr.f32.mxu0 %v2594
  %3142 = vmatmul.mubr.f32.gmra.mrb[0].mxu0 %v2593
  %v3143 = vpop.f32.mrb[0].mxu0
  %v3144 = vadd.f32 %v2939, %v3143
  %v3145 = vpop.f32.mrb[0].mxu0
  %3146 = vmatprep.mubr.f32.mxu0 %v2601
  %3147 = vmatmul.mubr.f32.gmra.mrb[0].mxu0 %v2600
  %v3148 = vpop.f32.mrb[0].mxu0
  %v3149 = vadd.f32 %v2944, %v3148
  %v3150 = vpop.f32.mrb[0].mxu0
  %3151 = vmatprep.mubr.f32.mxu0 %v2608
  %3152 = vmatmul.mubr.f32.gmra.mrb[0].mxu0 %v2607
  %v3153 = vpop.f32.mrb[0].mxu0
  %v3154 = vadd.f32 %v2949, %v3153
  %v3155 = vpop.f32.mrb[0].mxu0
  %3156 = vmatprep.mubr.f32.mxu0 %v2615
  %3157 = vmatmul.mubr.f32.gmra.mrb[0].mxu0 %v2614
  %v3158 = vpop.f32.mrb[0].mxu0
  %v3159 = vadd.f32 %v2954, %v3158
  %v3160 = vpop.f32.mrb[0].mxu0
  %3161 = vmatprep.mubr.f32.mxu0 %v2622
  %3162 = vmatmul.mubr.f32.gmra.mrb[0].mxu0 %v2621
  %v3163 = vpop.f32.mrb[0].mxu0
  %v3164 = vadd.f32 %v2959, %v3163
  %v3165 = vpop.f32.mrb[0].mxu0
  %3166 = vmatprep.mubr.f32.mxu0 %v2629
  %3167 = vmatmul.mubr.f32.gmra.mrb[0].mxu0 %v2628
  %v3168 = vpop.f32.mrb[0].mxu0
  %v3169 = vadd.f32 %v2964, %v3168
  %v3170 = vpop.f32.mrb[0].mxu0
  %3171 = vmatprep.mubr.f32.mxu0 %v2636
  %3172 = vmatmul.mubr.f32.gmra.mrb[0].mxu0 %v2635
  %v3173 = vpop.f32.mrb[0].mxu0
  %v3174 = vadd.f32 %v2969, %v3173
  %v3175 = vpop.f32.mrb[0].mxu0
  %3176 = vmatprep.mubr.f32.mxu0 %v2643
  %3177 = vmatmul.mubr.f32.gmra.mrb[0].mxu0 %v2642
  %v3178 = vpop.f32.mrb[0].mxu0
  %v3179 = vadd.f32 %v2974, %v3178
  %v3180 = vpop.f32.mrb[0].mxu0
  %3181 = vmatprep.mubr.f32.mxu0 %v2650
  %3182 = vmatmul.mubr.f32.gmra.mrb[0].mxu0 %v2649
  %v3183 = vpop.f32.mrb[0].mxu0
  %v3184 = vadd.f32 %v2979, %v3183
  %v3185 = vpop.f32.mrb[0].mxu0
  %3186 = vmatprep.mubr.f32.mxu0 %v2657
  %3187 = vmatmul.mubr.f32.gmra.mrb[0].mxu0 %v2656
  %v3188 = vpop.f32.mrb[0].mxu0
  %v3189 = vadd.f32 %v2984, %v3188
  %v3190 = vpop.f32.mrb[0].mxu0
  %3191 = vmatprep.mubr.f32.mxu0 %v2664
  %3192 = vmatmul.mubr.f32.gmra.mrb[0].mxu0 %v2663
  %v3193 = vpop.f32.mrb[0].mxu0
  %v3194 = vadd.f32 %v2989, %v3193
  %v3195 = vpop.f32.mrb[0].mxu0
  %3196 = vmatprep.mubr.f32.mxu0 %v2671
  %3197 = vmatmul.mubr.f32.gmra.mrb[0].mxu0 %v2670
  %v3198 = vpop.f32.mrb[0].mxu0
  %v3199 = vadd.f32 %v2994, %v3198
  %v3200 = vpop.f32.mrb[0].mxu0
  %3201 = vmatprep.mubr.f32.mxu0 %v2678
  %3202 = vmatmul.mubr.f32.gmra.mrb[0].mxu0 %v2677
  %v3203 = vpop.f32.mrb[0].mxu0
  %v3204 = vadd.f32 %v2999, %v3203
  %v3205 = vpop.f32.mrb[0].mxu0
  %3206 = vmatprep.mubr.f32.mxu0 %v2685
  %3207 = vmatmul.mubr.f32.gmra.mrb[0].mxu0 %v2684
  %v3208 = vpop.f32.mrb[0].mxu0
  %v3209 = vadd.f32 %v3004, %v3208
  %v3210 = vpop.f32.mrb[0].mxu0
  %3211 = vmatprep.mubr.f32.mxu0 %v2692
  %3212 = vmatmul.mubr.f32.gmra.mrb[0].mxu0 %v2691
  %v3213 = vpop.f32.mrb[0].mxu0
  %v3214 = vadd.f32 %v3009, %v3213
  %v3215 = vpop.f32.mrb[0].mxu0
  %3216 = vmatprep.mubr.f32.mxu0 %v2699
  %3217 = vmatmul.mubr.f32.gmra.mrb[0].mxu0 %v2698
  %v3218 = vpop.f32.mrb[0].mxu0
  %v3219 = vadd.f32 %v3014, %v3218
  %v3220 = vpop.f32.mrb[0].mxu0
  %3221 = vmatprep.mubr.f32.mxu0 %v2706
  %3222 = vmatmul.mubr.f32.gmra.mrb[0].mxu0 %v2705
  %v3223 = vpop.f32.mrb[0].mxu0
  %v3224 = vadd.f32 %v3019, %v3223
  %v3225 = vpop.f32.mrb[0].mxu0
  %3226 = vmatprep.mubr.f32.mxu0 %v2713
  %3227 = vmatmul.mubr.f32.gmra.mrb[0].mxu0 %v2712
  %v3228 = vpop.f32.mrb[0].mxu0
  %v3229 = vadd.f32 %v3024, %v3228
  %v3230 = vpop.f32.mrb[0].mxu0
  %3231 = vmatprep.mubr.f32.mxu0 %v2720
  %3232 = vmatmul.mubr.f32.gmra.mrb[0].mxu0 %v2719
  %v3233 = vpop.f32.mrb[0].mxu0
  %v3234 = vadd.f32 %v3029, %v3233
  %v3235 = vpop.f32.mrb[0].mxu0
  %3236 = vmatprep.mubr.f32.mxu0 %v2727
  %3237 = vmatmul.mubr.f32.gmra.mrb[0].mxu0 %v2726
  %v3238 = vpop.f32.mrb[0].mxu0
  %v3239 = vadd.f32 %v3034, %v3238
  %v3240 = vpop.f32.mrb[0].mxu0
  %3241 = vmatprep.mubr.f32.mxu0 %v2734
  %3242 = vmatmul.mubr.f32.gmra.mrb[0].mxu0 %v2733
  %v3243 = vpop.f32.mrb[0].mxu0
  %v3244 = vadd.f32 %v3039, %v3243
  %v3245 = vpop.f32.mrb[0].mxu0
  %3246 = vmatprep.mubr.f32.mxu0 %v2741
  %3247 = vmatmul.mubr.f32.gmra.mrb[0].mxu0 %v2740
  %v3248 = vpop.f32.mrb[0].mxu0
  %v3249 = vadd.f32 %v3044, %v3248
  %v3250 = vpop.f32.mrb[0].mxu0
  %3251 = vmatprep.mubr.f32.mxu0 %v2748
  %3252 = vmatmul.mubr.f32.gmra.mrb[0].mxu0 %v2747
  %v3253 = vpop.f32.mrb[0].mxu0
  %v3254 = vadd.f32 %v3049, %v3253
  %v3255 = vpop.f32.mrb[0].mxu0
  %3256 = vmatprep.mubr.f32.mxu0 %v2755
  %3257 = vmatmul.mubr.f32.gmra.mrb[0].mxu0 %v2754
  %v3258 = vpop.f32.mrb[0].mxu0
  %v3259 = vadd.f32 %v3054, %v3258
  %v3260 = vpop.f32.mrb[0].mxu0
  %3261 = vmatprep.mubr.f32.mxu0 %v2762
  %3262 = vmatmul.mubr.f32.gmra.mrb[0].mxu0 %v2761
  %v3263 = vpop.f32.mrb[0].mxu0
  %v3264 = vadd.f32 %v3059, %v3263
  %v3265 = vpop.f32.mrb[0].mxu0
  %3266 = vmatprep.mubr.f32.mxu0 %v2769
  %3267 = vmatmul.mubr.f32.gmra.mrb[0].mxu0 %v2768
  %v3268 = vpop.f32.mrb[0].mxu0
  %v3269 = vadd.f32 %v3064, %v3268
  %v3270 = vpop.f32.mrb[0].mxu0
  %3271 = vmatprep.mubr.f32.mxu0 %v2776
  %3272 = vmatmul.mubr.f32.gmra.mrb[0].mxu0 %v2775
  %v3273 = vpop.f32.mrb[0].mxu0
  %v3274 = vadd.f32 %v3069, %v3273
  %v3275 = vpop.f32.mrb[0].mxu0
  %3276 = vmatprep.mubr.f32.mxu0 %v2783
  %3277 = vmatmul.mubr.f32.gmra.mrb[0].mxu0 %v2782
  %v3278 = vpop.f32.mrb[0].mxu0
  %v3279 = vadd.f32 %v3074, %v3278
  %v3280 = vpop.f32.mrb[0].mxu0
  %3281 = vdwg.mxu0
  %3282 = vmatprep.subr.mxu0 0.0
  %3283 = vmatpush1.msra.mxu0 %v2515
  %3284 = vmatprep.subr.mxu0 0.0
  %3285 = vmatpush1.msra.mxu0 %v2516
  %3286 = vmatprep.subr.mxu0 0.0
  %3287 = vmatpush1.msra.mxu0 %v2517
  %3288 = vmatprep.subr.mxu0 0.0
  %3289 = vmatpush1.msra.mxu0 %v2518
  %3290 = vmatprep.subr.mxu0 0.0
  %3291 = vmatpush1.msra.mxu0 %v1478
  %3292 = vmatprep.subr.mxu0 0.0
  %3293 = vmatpush1.msra.mxu0 %v1479
  %3294 = vmatprep.subr.mxu0 0.0
  %3295 = vmatpush1.msra.mxu0 %v1480
  %3296 = vmatprep.subr.mxu0 0.0
  %3297 = vmatpush1.msra.mxu0 %v1481
  %3298 = vmatprep.subr.mxu0 0.0
  %3299 = vmatpush1.msra.mxu0 %v2535
  %3300 = vmatprep.subr.mxu0 0.0
  %3301 = vmatpush1.msra.mxu0 %v2536
  %3302 = vmatprep.subr.mxu0 0.0
  %3303 = vmatpush1.msra.mxu0 %v2537
  %3304 = vmatprep.subr.mxu0 0.0
  %3305 = vmatpush1.msra.mxu0 %v2538
  %3306 = vmatprep.subr.mxu0 0.0
  %3307 = vmatpush1.msra.mxu0 %v2539
  %3308 = vmatprep.subr.mxu0 0.0
  %3309 = vmatpush1.msra.mxu0 %v2540
  %3310 = vmatprep.subr.mxu0 0.0
  %3311 = vmatpush1.msra.mxu0 %v2541
  %3312 = vmatprep.subr.mxu0 0.0
  %3313 = vmatpush1.msra.mxu0 %v2542
  %3314 = vmatprep.subr.mxu0 0.0
  %3315 = vmatpush1.msra.mxu0 %v1502
  %3316 = vmatprep.subr.mxu0 0.0
  %3317 = vmatpush1.msra.mxu0 %v1503
  %3318 = vmatprep.subr.mxu0 0.0
  %3319 = vmatpush1.msra.mxu0 %v1504
  %3320 = vmatprep.subr.mxu0 0.0
  %3321 = vmatpush1.msra.mxu0 %v1505
  %3322 = vmatprep.subr.mxu0 0.0
  %3323 = vmatpush1.msra.mxu0 %v2559
  %3324 = vmatprep.subr.mxu0 0.0
  %3325 = vmatpush1.msra.mxu0 %v2560
  %3326 = vmatprep.subr.mxu0 0.0
  %3327 = vmatpush1.msra.mxu0 %v2561
  %3328 = vmatprep.subr.mxu0 0.0
  %3329 = vmatpush1.msra.mxu0 %v2562
  %3330 = vmatprep.subr.mxu0 0.0
  %3331 = vmatpush1.msra.mxu0 %v2563
  %3332 = vmatprep.subr.mxu0 0.0
  %3333 = vmatpush1.msra.mxu0 %v2564
  %3334 = vmatprep.subr.mxu0 0.0
  %3335 = vmatpush1.msra.mxu0 %v2565
  %3336 = vmatprep.subr.mxu0 0.0
  %3337 = vmatpush1.msra.mxu0 %v2566
  %3338 = vmatprep.subr.mxu0 0.0
  %3339 = vmatpush1.msra.mxu0 %v1526
  %3340 = vmatprep.subr.mxu0 0.0
  %3341 = vmatpush1.msra.mxu0 %v1527
  %3342 = vmatprep.subr.mxu0 0.0
  %3343 = vmatpush1.msra.mxu0 %v1528
  %3344 = vmatprep.subr.mxu0 0.0
  %3345 = vmatpush1.msra.mxu0 %v1529
  %3346 = vmatprep.mubr.f32.mxu0 %v2596
  %3347 = vmatmul.mubr.f32.gmra.mrb[0].mxu0 %v2595
  %v3348 = vpop.f32.mrb[0].mxu0
  %v3349 = vadd.f32 %v3144, %v3348
  %v3350 = vpop.f32.mrb[0].mxu0
  %3351 = vmatprep.mubr.f32.mxu0 %v2603
  %3352 = vmatmul.mubr.f32.gmra.mrb[0].mxu0 %v2602
  %v3353 = vpop.f32.mrb[0].mxu0
  %v3354 = vadd.f32 %v3149, %v3353
  %v3355 = vpop.f32.mrb[0].mxu0
  %3356 = vmatprep.mubr.f32.mxu0 %v2610
  %3357 = vmatmul.mubr.f32.gmra.mrb[0].mxu0 %v2609
  %v3358 = vpop.f32.mrb[0].mxu0
  %v3359 = vadd.f32 %v3154, %v3358
  %v3360 = vpop.f32.mrb[0].mxu0
  %3361 = vmatprep.mubr.f32.mxu0 %v2617
  %3362 = vmatmul.mubr.f32.gmra.mrb[0].mxu0 %v2616
  %v3363 = vpop.f32.mrb[0].mxu0
  %v3364 = vadd.f32 %v3159, %v3363
  %v3365 = vpop.f32.mrb[0].mxu0
  %3366 = vmatprep.mubr.f32.mxu0 %v2624
  %3367 = vmatmul.mubr.f32.gmra.mrb[0].mxu0 %v2623
  %v3368 = vpop.f32.mrb[0].mxu0
  %v3369 = vadd.f32 %v3164, %v3368
  %v3370 = vpop.f32.mrb[0].mxu0
  %3371 = vmatprep.mubr.f32.mxu0 %v2631
  %3372 = vmatmul.mubr.f32.gmra.mrb[0].mxu0 %v2630
  %v3373 = vpop.f32.mrb[0].mxu0
  %v3374 = vadd.f32 %v3169, %v3373
  %v3375 = vpop.f32.mrb[0].mxu0
  %3376 = vmatprep.mubr.f32.mxu0 %v2638
  %3377 = vmatmul.mubr.f32.gmra.mrb[0].mxu0 %v2637
  %v3378 = vpop.f32.mrb[0].mxu0
  %v3379 = vadd.f32 %v3174, %v3378
  %v3380 = vpop.f32.mrb[0].mxu0
  %3381 = vmatprep.mubr.f32.mxu0 %v2645
  %3382 = vmatmul.mubr.f32.gmra.mrb[0].mxu0 %v2644
  %v3383 = vpop.f32.mrb[0].mxu0
  %v3384 = vadd.f32 %v3179, %v3383
  %v3385 = vpop.f32.mrb[0].mxu0
  %3386 = vmatprep.mubr.f32.mxu0 %v2652
  %3387 = vmatmul.mubr.f32.gmra.mrb[0].mxu0 %v2651
  %v3388 = vpop.f32.mrb[0].mxu0
  %v3389 = vadd.f32 %v3184, %v3388
  %v3390 = vpop.f32.mrb[0].mxu0
  %3391 = vmatprep.mubr.f32.mxu0 %v2659
  %3392 = vmatmul.mubr.f32.gmra.mrb[0].mxu0 %v2658
  %v3393 = vpop.f32.mrb[0].mxu0
  %v3394 = vadd.f32 %v3189, %v3393
  %v3395 = vpop.f32.mrb[0].mxu0
  %3396 = vmatprep.mubr.f32.mxu0 %v2666
  %3397 = vmatmul.mubr.f32.gmra.mrb[0].mxu0 %v2665
  %v3398 = vpop.f32.mrb[0].mxu0
  %v3399 = vadd.f32 %v3194, %v3398
  %v3400 = vpop.f32.mrb[0].mxu0
  %3401 = vmatprep.mubr.f32.mxu0 %v2673
  %3402 = vmatmul.mubr.f32.gmra.mrb[0].mxu0 %v2672
  %v3403 = vpop.f32.mrb[0].mxu0
  %v3404 = vadd.f32 %v3199, %v3403
  %v3405 = vpop.f32.mrb[0].mxu0
  %3406 = vmatprep.mubr.f32.mxu0 %v2680
  %3407 = vmatmul.mubr.f32.gmra.mrb[0].mxu0 %v2679
  %v3408 = vpop.f32.mrb[0].mxu0
  %v3409 = vadd.f32 %v3204, %v3408
  %v3410 = vpop.f32.mrb[0].mxu0
  %3411 = vmatprep.mubr.f32.mxu0 %v2687
  %3412 = vmatmul.mubr.f32.gmra.mrb[0].mxu0 %v2686
  %v3413 = vpop.f32.mrb[0].mxu0
  %v3414 = vadd.f32 %v3209, %v3413
  %v3415 = vpop.f32.mrb[0].mxu0
  %3416 = vmatprep.mubr.f32.mxu0 %v2694
  %3417 = vmatmul.mubr.f32.gmra.mrb[0].mxu0 %v2693
  %v3418 = vpop.f32.mrb[0].mxu0
  %v3419 = vadd.f32 %v3214, %v3418
  %v3420 = vpop.f32.mrb[0].mxu0
  %3421 = vmatprep.mubr.f32.mxu0 %v2701
  %3422 = vmatmul.mubr.f32.gmra.mrb[0].mxu0 %v2700
  %v3423 = vpop.f32.mrb[0].mxu0
  %v3424 = vadd.f32 %v3219, %v3423
  %v3425 = vpop.f32.mrb[0].mxu0
  %3426 = vmatprep.mubr.f32.mxu0 %v2708
  %3427 = vmatmul.mubr.f32.gmra.mrb[0].mxu0 %v2707
  %v3428 = vpop.f32.mrb[0].mxu0
  %v3429 = vadd.f32 %v3224, %v3428
  %v3430 = vpop.f32.mrb[0].mxu0
  %3431 = vmatprep.mubr.f32.mxu0 %v2715
  %3432 = vmatmul.mubr.f32.gmra.mrb[0].mxu0 %v2714
  %v3433 = vpop.f32.mrb[0].mxu0
  %v3434 = vadd.f32 %v3229, %v3433
  %v3435 = vpop.f32.mrb[0].mxu0
  %3436 = vmatprep.mubr.f32.mxu0 %v2722
  %3437 = vmatmul.mubr.f32.gmra.mrb[0].mxu0 %v2721
  %v3438 = vpop.f32.mrb[0].mxu0
  %v3439 = vadd.f32 %v3234, %v3438
  %v3440 = vpop.f32.mrb[0].mxu0
  %3441 = vmatprep.mubr.f32.mxu0 %v2729
  %3442 = vmatmul.mubr.f32.gmra.mrb[0].mxu0 %v2728
  %v3443 = vpop.f32.mrb[0].mxu0
  %v3444 = vadd.f32 %v3239, %v3443
  %v3445 = vpop.f32.mrb[0].mxu0
  %3446 = vmatprep.mubr.f32.mxu0 %v2736
  %3447 = vmatmul.mubr.f32.gmra.mrb[0].mxu0 %v2735
  %v3448 = vpop.f32.mrb[0].mxu0
  %v3449 = vadd.f32 %v3244, %v3448
  %v3450 = vpop.f32.mrb[0].mxu0
  %3451 = vmatprep.mubr.f32.mxu0 %v2743
  %3452 = vmatmul.mubr.f32.gmra.mrb[0].mxu0 %v2742
  %v3453 = vpop.f32.mrb[0].mxu0
  %v3454 = vadd.f32 %v3249, %v3453
  %v3455 = vpop.f32.mrb[0].mxu0
  %3456 = vmatprep.mubr.f32.mxu0 %v2750
  %3457 = vmatmul.mubr.f32.gmra.mrb[0].mxu0 %v2749
  %v3458 = vpop.f32.mrb[0].mxu0
  %v3459 = vadd.f32 %v3254, %v3458
  %v3460 = vpop.f32.mrb[0].mxu0
  %3461 = vmatprep.mubr.f32.mxu0 %v2757
  %3462 = vmatmul.mubr.f32.gmra.mrb[0].mxu0 %v2756
  %v3463 = vpop.f32.mrb[0].mxu0
  %v3464 = vadd.f32 %v3259, %v3463
  %v3465 = vpop.f32.mrb[0].mxu0
  %3466 = vmatprep.mubr.f32.mxu0 %v2764
  %3467 = vmatmul.mubr.f32.gmra.mrb[0].mxu0 %v2763
  %v3468 = vpop.f32.mrb[0].mxu0
  %v3469 = vadd.f32 %v3264, %v3468
  %v3470 = vpop.f32.mrb[0].mxu0
  %3471 = vmatprep.mubr.f32.mxu0 %v2771
  %3472 = vmatmul.mubr.f32.gmra.mrb[0].mxu0 %v2770
  %v3473 = vpop.f32.mrb[0].mxu0
  %v3474 = vadd.f32 %v3269, %v3473
  %v3475 = vpop.f32.mrb[0].mxu0
  %3476 = vmatprep.mubr.f32.mxu0 %v2778
  %3477 = vmatmul.mubr.f32.gmra.mrb[0].mxu0 %v2777
  %v3478 = vpop.f32.mrb[0].mxu0
  %v3479 = vadd.f32 %v3274, %v3478
  %v3480 = vpop.f32.mrb[0].mxu0
  %3481 = vmatprep.mubr.f32.mxu0 %v2785
  %3482 = vmatmul.mubr.f32.gmra.mrb[0].mxu0 %v2784
  %v3483 = vpop.f32.mrb[0].mxu0
  %v3484 = vadd.f32 %v3279, %v3483
  %v3485 = vpop.f32.mrb[0].mxu0
  %3486 = vdwg.mxu0
  %3487 = vmatprep.subr.mxu0 0.0
  %3488 = vmatpush1.msra.mxu0 %v2583
  %3489 = vmatprep.subr.mxu0 0.0
  %3490 = vmatpush1.msra.mxu0 %v2584
  %3491 = vmatprep.subr.mxu0 0.0
  %3492 = vmatpush1.msra.mxu0 %v2585
  %3493 = vmatprep.subr.mxu0 0.0
  %3494 = vmatpush1.msra.mxu0 %v2586
  %3495 = vmatprep.subr.mxu0 0.0
  %3496 = vmatpush1.msra.mxu0 %v2587
  %3497 = vmatprep.subr.mxu0 0.0
  %3498 = vmatpush1.msra.mxu0 %v2588
  %3499 = vmatprep.subr.mxu0 0.0
  %3500 = vmatpush1.msra.mxu0 %v2589
  %3501 = vmatprep.subr.mxu0 0.0
  %3502 = vmatpush1.msra.mxu0 %v2590
  %3503 = vmatprep.subr.mxu0 0.0
  %3504 = vmatpush1.msra.mxu0 %v1550
  %3505 = vmatprep.subr.mxu0 0.0
  %3506 = vmatpush1.msra.mxu0 %v1551
  %3507 = vmatprep.subr.mxu0 0.0
  %3508 = vmatpush1.msra.mxu0 %v1552
  %3509 = vmatprep.subr.mxu0 0.0
  %3510 = vmatpush1.msra.mxu0 %v1553
  %3511 = vmatprep.subr.mxu0 0.0
  %3512 = vmatpush1.msra.mxu0 0.0
  %3513 = vmatprep.subr.mxu0 0.0
  %3514 = vmatpush1.msra.mxu0 0.0
  %3515 = vmatprep.subr.mxu0 0.0
  %3516 = vmatpush1.msra.mxu0 0.0
  %3517 = vmatprep.subr.mxu0 0.0
  %3518 = vmatpush1.msra.mxu0 0.0
  %3519 = vmatprep.subr.mxu0 0.0
  %3520 = vmatpush1.msra.mxu0 0.0
  %3521 = vmatprep.subr.mxu0 0.0
  %3522 = vmatpush1.msra.mxu0 0.0
  %3523 = vmatprep.subr.mxu0 0.0
  %3524 = vmatpush1.msra.mxu0 0.0
  %3525 = vmatprep.subr.mxu0 0.0
  %3526 = vmatpush1.msra.mxu0 0.0
  %3527 = vmatprep.subr.mxu0 0.0
  %3528 = vmatpush1.msra.mxu0 0.0
  %3529 = vmatprep.subr.mxu0 0.0
  %3530 = vmatpush1.msra.mxu0 0.0
  %3531 = vmatprep.subr.mxu0 0.0
  %3532 = vmatpush1.msra.mxu0 0.0
  %3533 = vmatprep.subr.mxu0 0.0
  %3534 = vmatpush1.msra.mxu0 0.0
  %3535 = vmatprep.subr.mxu0 0.0
  %3536 = vmatpush1.msra.mxu0 0.0
  %3537 = vmatprep.subr.mxu0 0.0
  %3538 = vmatpush1.msra.mxu0 0.0
  %3539 = vmatprep.subr.mxu0 0.0
  %3540 = vmatpush1.msra.mxu0 0.0
  %3541 = vmatprep.subr.mxu0 0.0
  %3542 = vmatpush1.msra.mxu0 0.0
  %3543 = vmatprep.subr.mxu0 0.0
  %3544 = vmatpush1.msra.mxu0 0.0
  %3545 = vmatprep.subr.mxu0 0.0
  %3546 = vmatpush1.msra.mxu0 0.0
  %3547 = vmatprep.subr.mxu0 0.0
  %3548 = vmatpush1.msra.mxu0 0.0
  %3549 = vmatprep.subr.mxu0 0.0
  %3550 = vmatpush1.msra.mxu0 0.0
  %3551 = vmatprep.mubr.f32.mxu0 0.0
  %3552 = vmatmul.mubr.f32.gmra.mrb[0].mxu0 %v2789
  %v3553 = vpop.f32.mrb[0].mxu0
  %v3554 = vadd.f32 %v3349, %v3553
  %v3555 = vpop.f32.mrb[0].mxu0
  %3556 = vmatprep.mubr.f32.mxu0 0.0
  %3557 = vmatmul.mubr.f32.gmra.mrb[0].mxu0 %v2792
  %v3558 = vpop.f32.mrb[0].mxu0
  %v3559 = vadd.f32 %v3354, %v3558
  %v3560 = vpop.f32.mrb[0].mxu0
  %3561 = vmatprep.mubr.f32.mxu0 0.0
  %3562 = vmatmul.mubr.f32.gmra.mrb[0].mxu0 %v2795
  %v3563 = vpop.f32.mrb[0].mxu0
  %v3564 = vadd.f32 %v3359, %v3563
  %v3565 = vpop.f32.mrb[0].mxu0
  %3566 = vmatprep.mubr.f32.mxu0 0.0
  %3567 = vmatmul.mubr.f32.gmra.mrb[0].mxu0 %v2798
  %v3568 = vpop.f32.mrb[0].mxu0
  %v3569 = vadd.f32 %v3364, %v3568
  %v3570 = vpop.f32.mrb[0].mxu0
  %3571 = vmatprep.mubr.f32.mxu0 0.0
  %3572 = vmatmul.mubr.f32.gmra.mrb[0].mxu0 %v2801
  %v3573 = vpop.f32.mrb[0].mxu0
  %v3574 = vadd.f32 %v3369, %v3573
  %v3575 = vpop.f32.mrb[0].mxu0
  %3576 = vmatprep.mubr.f32.mxu0 0.0
  %3577 = vmatmul.mubr.f32.gmra.mrb[0].mxu0 %v2804
  %v3578 = vpop.f32.mrb[0].mxu0
  %v3579 = vadd.f32 %v3374, %v3578
  %v3580 = vpop.f32.mrb[0].mxu0
  %3581 = vmatprep.mubr.f32.mxu0 0.0
  %3582 = vmatmul.mubr.f32.gmra.mrb[0].mxu0 %v2807
  %v3583 = vpop.f32.mrb[0].mxu0
  %v3584 = vadd.f32 %v3379, %v3583
  %v3585 = vpop.f32.mrb[0].mxu0
  %3586 = vmatprep.mubr.f32.mxu0 0.0
  %3587 = vmatmul.mubr.f32.gmra.mrb[0].mxu0 %v2810
  %v3588 = vpop.f32.mrb[0].mxu0
  %v3589 = vadd.f32 %v3384, %v3588
  %v3590 = vpop.f32.mrb[0].mxu0
  %3591 = vmatprep.mubr.f32.mxu0 0.0
  %3592 = vmatmul.mubr.f32.gmra.mrb[0].mxu0 %v2813
  %v3593 = vpop.f32.mrb[0].mxu0
  %v3594 = vadd.f32 %v3389, %v3593
  %v3595 = vpop.f32.mrb[0].mxu0
  %3596 = vmatprep.mubr.f32.mxu0 0.0
  %3597 = vmatmul.mubr.f32.gmra.mrb[0].mxu0 %v2816
  %v3598 = vpop.f32.mrb[0].mxu0
  %v3599 = vadd.f32 %v3394, %v3598
  %v3600 = vpop.f32.mrb[0].mxu0
  %3601 = vmatprep.mubr.f32.mxu0 0.0
  %3602 = vmatmul.mubr.f32.gmra.mrb[0].mxu0 %v2819
  %v3603 = vpop.f32.mrb[0].mxu0
  %v3604 = vadd.f32 %v3399, %v3603
  %v3605 = vpop.f32.mrb[0].mxu0
  %3606 = vmatprep.mubr.f32.mxu0 0.0
  %3607 = vmatmul.mubr.f32.gmra.mrb[0].mxu0 %v2822
  %v3608 = vpop.f32.mrb[0].mxu0
  %v3609 = vadd.f32 %v3404, %v3608
  %v3610 = vpop.f32.mrb[0].mxu0
  %3611 = vmatprep.mubr.f32.mxu0 0.0
  %3612 = vmatmul.mubr.f32.gmra.mrb[0].mxu0 %v2825
  %v3613 = vpop.f32.mrb[0].mxu0
  %v3614 = vadd.f32 %v3409, %v3613
  %v3615 = vpop.f32.mrb[0].mxu0
  %3616 = vmatprep.mubr.f32.mxu0 0.0
  %3617 = vmatmul.mubr.f32.gmra.mrb[0].mxu0 %v2828
  %v3618 = vpop.f32.mrb[0].mxu0
  %v3619 = vadd.f32 %v3414, %v3618
  %v3620 = vpop.f32.mrb[0].mxu0
  %3621 = vmatprep.mubr.f32.mxu0 0.0
  %3622 = vmatmul.mubr.f32.gmra.mrb[0].mxu0 %v2831
  %v3623 = vpop.f32.mrb[0].mxu0
  %v3624 = vadd.f32 %v3419, %v3623
  %v3625 = vpop.f32.mrb[0].mxu0
  %3626 = vmatprep.mubr.f32.mxu0 0.0
  %3627 = vmatmul.mubr.f32.gmra.mrb[0].mxu0 %v2834
  %v3628 = vpop.f32.mrb[0].mxu0
  %v3629 = vadd.f32 %v3424, %v3628
  %v3630 = vpop.f32.mrb[0].mxu0
  %3631 = vmatprep.mubr.f32.mxu0 0.0
  %3632 = vmatmul.mubr.f32.gmra.mrb[0].mxu0 %v2837
  %v3633 = vpop.f32.mrb[0].mxu0
  %v3634 = vadd.f32 %v3429, %v3633
  %v3635 = vpop.f32.mrb[0].mxu0
  %3636 = vmatprep.mubr.f32.mxu0 0.0
  %3637 = vmatmul.mubr.f32.gmra.mrb[0].mxu0 %v2840
  %v3638 = vpop.f32.mrb[0].mxu0
  %v3639 = vadd.f32 %v3434, %v3638
  %v3640 = vpop.f32.mrb[0].mxu0
  %3641 = vmatprep.mubr.f32.mxu0 0.0
  %3642 = vmatmul.mubr.f32.gmra.mrb[0].mxu0 %v2843
  %v3643 = vpop.f32.mrb[0].mxu0
  %v3644 = vadd.f32 %v3439, %v3643
  %v3645 = vpop.f32.mrb[0].mxu0
  %3646 = vmatprep.mubr.f32.mxu0 0.0
  %3647 = vmatmul.mubr.f32.gmra.mrb[0].mxu0 %v2846
  %v3648 = vpop.f32.mrb[0].mxu0
  %v3649 = vadd.f32 %v3444, %v3648
  %v3650 = vpop.f32.mrb[0].mxu0
  %3651 = vmatprep.mubr.f32.mxu0 0.0
  %3652 = vmatmul.mubr.f32.gmra.mrb[0].mxu0 %v2849
  %v3653 = vpop.f32.mrb[0].mxu0
  %v3654 = vadd.f32 %v3449, %v3653
  %v3655 = vpop.f32.mrb[0].mxu0
  %3656 = vmatprep.mubr.f32.mxu0 0.0
  %3657 = vmatmul.mubr.f32.gmra.mrb[0].mxu0 %v2852
  %v3658 = vpop.f32.mrb[0].mxu0
  %v3659 = vadd.f32 %v3454, %v3658
  %v3660 = vpop.f32.mrb[0].mxu0
  %3661 = vmatprep.mubr.f32.mxu0 0.0
  %3662 = vmatmul.mubr.f32.gmra.mrb[0].mxu0 %v2855
  %v3663 = vpop.f32.mrb[0].mxu0
  %v3664 = vadd.f32 %v3459, %v3663
  %v3665 = vpop.f32.mrb[0].mxu0
  %3666 = vmatprep.mubr.f32.mxu0 0.0
  %3667 = vmatmul.mubr.f32.gmra.mrb[0].mxu0 %v2858
  %v3668 = vpop.f32.mrb[0].mxu0
  %v3669 = vadd.f32 %v3464, %v3668
  %v3670 = vpop.f32.mrb[0].mxu0
  %3671 = vmatprep.mubr.f32.mxu0 0.0
  %3672 = vmatmul.mubr.f32.gmra.mrb[0].mxu0 %v2861
  %v3673 = vpop.f32.mrb[0].mxu0
  %v3674 = vadd.f32 %v3469, %v3673
  %v3675 = vpop.f32.mrb[0].mxu0
  %3676 = vmatprep.mubr.f32.mxu0 0.0
  %3677 = vmatmul.mubr.f32.gmra.mrb[0].mxu0 %v2864
  %v3678 = vpop.f32.mrb[0].mxu0
  %v3679 = vadd.f32 %v3474, %v3678
  %v3680 = vpop.f32.mrb[0].mxu0
  %3681 = vmatprep.mubr.f32.mxu0 0.0
  %3682 = vmatmul.mubr.f32.gmra.mrb[0].mxu0 %v2867
  %v3683 = vpop.f32.mrb[0].mxu0
  %v3684 = vadd.f32 %v3479, %v3683
  %v3685 = vpop.f32.mrb[0].mxu0
  %3686 = vmatprep.mubr.f32.mxu0 0.0
  %3687 = vmatmul.mubr.f32.gmra.mrb[0].mxu0 %v2870
  %v3688 = vpop.f32.mrb[0].mxu0
  %v3689 = vadd.f32 %v3484, %v3688
  %v3690 = vpop.f32.mrb[0].mxu0
  %3691 = vdwg.mxu0
  %v3692 = vxor.u32 %v3554, 2147483648
  %v3693 = vxor.u32 %v3559, 2147483648
  %v3694 = vxor.u32 %v3564, 2147483648
  %v3695 = vxor.u32 %v3569, 2147483648
  %v3696 = vmul.f32 %v3692, 1.442695
  %v3697 = vpow.pop %v3696
  %v3698 = vmul.f32 %v3693, 1.442695
  %v3699 = vpow.pop %v3698
  %v3700 = vmul.f32 %v3694, 1.442695
  %v3701 = vpow.pop %v3700
  %v3702 = vmul.f32 %v3695, 1.442695
  %v3703 = vpow.pop %v3702
  %v3704 = vadd.f32 %v3697, 1.0
  %v3705 = vadd.f32 %v3699, 1.0
  %v3706 = vadd.f32 %v3701, 1.0
  %v3707 = vadd.f32 %v3703, 1.0
  %v3708 = vrcp.pop %v3704
  %v3709 = vmul.f32 1.0, %v3708
  %v3710 = vrcp.pop %v3705
  %v3711 = vmul.f32 1.0, %v3710
  %v3712 = vrcp.pop %v3706
  %v3713 = vmul.f32 1.0, %v3712
  %v3714 = vrcp.pop %v3707
  %v3715 = vmul.f32 1.0, %v3714
  %v3716 = vadd.f32 %v3574, 1.0
  %v3717 = vadd.f32 %v3579, 1.0
  %v3718 = vadd.f32 %v3584, 1.0
  %v3719 = vadd.f32 %v3589, 1.0
  %v3720 = vxor.u32 %v3716, 2147483648
  %v3721 = vxor.u32 %v3717, 2147483648
  %v3722 = vxor.u32 %v3718, 2147483648
  %v3723 = vxor.u32 %v3719, 2147483648
  %v3724 = vmul.f32 %v3720, 1.442695
  %v3725 = vpow.pop %v3724
  %v3726 = vmul.f32 %v3721, 1.442695
  %v3727 = vpow.pop %v3726
  %v3728 = vmul.f32 %v3722, 1.442695
  %v3729 = vpow.pop %v3728
  %v3730 = vmul.f32 %v3723, 1.442695
  %v3731 = vpow.pop %v3730
  %v3732 = vadd.f32 %v3725, 1.0
  %v3733 = vadd.f32 %v3727, 1.0
  %v3734 = vadd.f32 %v3729, 1.0
  %v3735 = vadd.f32 %v3731, 1.0
  %v3736 = vrcp.pop %v3732
  %v3737 = vmul.f32 1.0, %v3736
  %v3738 = vrcp.pop %v3733
  %v3739 = vmul.f32 1.0, %v3738
  %v3740 = vrcp.pop %v3734
  %v3741 = vmul.f32 1.0, %v3740
  %v3742 = vrcp.pop %v3735
  %v3743 = vmul.f32 1.0, %v3742
  %v3744 = vtanh.pop %v3594
  %v3745 = vtanh.pop %v3599
  %v3746 = vtanh.pop %v3604
  %v3747 = vtanh.pop %v3609
  %v3748 = vmul.f32 %v3709, %v3744
  %v3749 = vmul.f32 %v3711, %v3745
  %v3750 = vmul.f32 %v3713, %v3746
  %v3751 = vmul.f32 %v3715, %v3747
  %v3752 = vmul.f32 %v3737, %v2395
  %v3753 = vmul.f32 %v3739, %v2396
  %v3754 = vmul.f32 %v3741, %v2397
  %v3755 = vmul.f32 %v3743, %v2398
  %v3756 = vadd.f32 %v3752, %v3748
  %v3757 = vadd.f32 %v3753, %v3749
  %v3758 = vadd.f32 %v3754, %v3750
  %v3759 = vadd.f32 %v3755, %v3751
  %v3760 = vxor.u32 %v3614, 2147483648
  %v3761 = vxor.u32 %v3619, 2147483648
  %v3762 = vxor.u32 %v3624, 2147483648
  %v3763 = vxor.u32 %v3629, 2147483648
  %v3764 = vmul.f32 %v3760, 1.442695
  %v3765 = vpow.pop %v3764
  %v3766 = vmul.f32 %v3761, 1.442695
  %v3767 = vpow.pop %v3766
  %v3768 = vmul.f32 %v3762, 1.442695
  %v3769 = vpow.pop %v3768
  %v3770 = vmul.f32 %v3763, 1.442695
  %v3771 = vpow.pop %v3770
  %v3772 = vadd.f32 %v3765, 1.0
  %v3773 = vadd.f32 %v3767, 1.0
  %v3774 = vadd.f32 %v3769, 1.0
  %v3775 = vadd.f32 %v3771, 1.0
  %v3776 = vrcp.pop %v3772
  %v3777 = vmul.f32 1.0, %v3776
  %v3778 = vrcp.pop %v3773
  %v3779 = vmul.f32 1.0, %v3778
  %v3780 = vrcp.pop %v3774
  %v3781 = vmul.f32 1.0, %v3780
  %v3782 = vrcp.pop %v3775
  %v3783 = vmul.f32 1.0, %v3782
  %v3784 = vadd.f32 %v3634, 1.0
  %v3785 = vadd.f32 %v3639, 1.0
  %v3786 = vadd.f32 %v3644, 1.0
  %v3787 = vadd.f32 %v3649, 1.0
  %v3788 = vxor.u32 %v3784, 2147483648
  %v3789 = vxor.u32 %v3785, 2147483648
  %v3790 = vxor.u32 %v3786, 2147483648
  %v3791 = vxor.u32 %v3787, 2147483648
  %v3792 = vmul.f32 %v3788, 1.442695
  %v3793 = vpow.pop %v3792
  %v3794 = vmul.f32 %v3789, 1.442695
  %v3795 = vpow.pop %v3794
  %v3796 = vmul.f32 %v3790, 1.442695
  %v3797 = vpow.pop %v3796
  %v3798 = vmul.f32 %v3791, 1.442695
  %v3799 = vpow.pop %v3798
  %v3800 = vadd.f32 %v3793, 1.0
  %v3801 = vadd.f32 %v3795, 1.0
  %v3802 = vadd.f32 %v3797, 1.0
  %v3803 = vadd.f32 %v3799, 1.0
  %v3804 = vrcp.pop %v3800
  %v3805 = vmul.f32 1.0, %v3804
  %v3806 = vrcp.pop %v3801
  %v3807 = vmul.f32 1.0, %v3806
  %v3808 = vrcp.pop %v3802
  %v3809 = vmul.f32 1.0, %v3808
  %v3810 = vrcp.pop %v3803
  %v3811 = vmul.f32 1.0, %v3810
  %v3812 = vtanh.pop %v3654
  %v3813 = vtanh.pop %v3659
  %v3814 = vtanh.pop %v3664
  %v3815 = vtanh.pop %v3669
  %v3816 = vmul.f32 %v3777, %v3812
  %v3817 = vmul.f32 %v3779, %v3813
  %v3818 = vmul.f32 %v3781, %v3814
  %v3819 = vmul.f32 %v3783, %v3815
  %v3820 = vmul.f32 %v3805, %v1358
  %v3821 = vmul.f32 %v3807, %v1359
  %v3822 = vmul.f32 %v3809, %v1360
  %v3823 = vmul.f32 %v3811, %v1361
  %v3824 = vadd.f32 %v3820, %v3816
  %v3825 = vadd.f32 %v3821, %v3817
  %v3826 = vadd.f32 %v3822, %v3818
  %v3827 = vadd.f32 %v3823, %v3819
  %3828 = vrot.lane.b32.xlu0 %v3756, 9
  %v3829 = vpop.permute.xlu0 %3828
  %3830 = vrot.lane.b32.xlu0 %v3757, 9
  %v3831 = vpop.permute.xlu0 %3830
  %3832 = vrot.lane.b32.xlu0 %v3758, 9
  %v3833 = vpop.permute.xlu0 %3832
  %3834 = vrot.lane.b32.xlu0 %v3759, 9
  %v3835 = vpop.permute.xlu0 %3834
  %3836 = vrot.lane.b32.xlu0 %v3824, 9
  %v3837 = vpop.permute.xlu0 %3836
  %3838 = vrot.lane.b32.xlu0 %v3825, 9
  %v3839 = vpop.permute.xlu0 %3838
  %3840 = vrot.lane.b32.xlu0 %v3826, 9
  %v3841 = vpop.permute.xlu0 %3840
  %3842 = vrot.lane.b32.xlu0 %v3827, 9
  %v3843 = vpop.permute.xlu0 %3842
  %v3844 = vmul.f32 %v3829, %v131
  %v3845 = vmul.f32 %v3831, %v131
  %v3846 = vmul.f32 %v3833, %v131
  %v3847 = vmul.f32 %v3835, %v131
  %v3848 = vmul.f32 %v3837, %v131
  %v3849 = vmul.f32 %v3839, %v131
  %v3850 = vmul.f32 %v3841, %v131
  %v3851 = vmul.f32 %v3843, %v131
  %3852 = vrot.lane.b32.xlu0 %v3756, 8
  %v3853 = vpop.permute.xlu0 %3852
  %3854 = vrot.lane.b32.xlu0 %v3757, 8
  %v3855 = vpop.permute.xlu0 %3854
  %3856 = vrot.lane.b32.xlu0 %v3758, 8
  %v3857 = vpop.permute.xlu0 %3856
  %3858 = vrot.lane.b32.xlu0 %v3759, 8
  %v3859 = vpop.permute.xlu0 %3858
  %3860 = vrot.lane.b32.xlu0 %v3824, 8
  %v3861 = vpop.permute.xlu0 %3860
  %3862 = vrot.lane.b32.xlu0 %v3825, 8
  %v3863 = vpop.permute.xlu0 %3862
  %3864 = vrot.lane.b32.xlu0 %v3826, 8
  %v3865 = vpop.permute.xlu0 %3864
  %3866 = vrot.lane.b32.xlu0 %v3827, 8
  %v3867 = vpop.permute.xlu0 %3866
  %v3868 = vmul.f32 %v3853, %v162
  %v3869 = vmul.f32 %v3855, %v162
  %v3870 = vmul.f32 %v3857, %v162
  %v3871 = vmul.f32 %v3859, %v162
  %v3872 = vmul.f32 %v3861, %v162
  %v3873 = vmul.f32 %v3863, %v162
  %v3874 = vmul.f32 %v3865, %v162
  %v3875 = vmul.f32 %v3867, %v162
  %3876 = vrot.lane.b32.xlu0 %v3756, 7
  %v3877 = vpop.permute.xlu0 %3876
  %3878 = vrot.lane.b32.xlu0 %v3757, 7
  %v3879 = vpop.permute.xlu0 %3878
  %3880 = vrot.lane.b32.xlu0 %v3758, 7
  %v3881 = vpop.permute.xlu0 %3880
  %3882 = vrot.lane.b32.xlu0 %v3759, 7
  %v3883 = vpop.permute.xlu0 %3882
  %3884 = vrot.lane.b32.xlu0 %v3824, 7
  %v3885 = vpop.permute.xlu0 %3884
  %3886 = vrot.lane.b32.xlu0 %v3825, 7
  %v3887 = vpop.permute.xlu0 %3886
  %3888 = vrot.lane.b32.xlu0 %v3826, 7
  %v3889 = vpop.permute.xlu0 %3888
  %3890 = vrot.lane.b32.xlu0 %v3827, 7
  %v3891 = vpop.permute.xlu0 %3890
  %v3892 = vmul.f32 %v3877, %v193
  %v3893 = vmul.f32 %v3879, %v193
  %v3894 = vmul.f32 %v3881, %v193
  %v3895 = vmul.f32 %v3883, %v193
  %v3896 = vmul.f32 %v3885, %v193
  %v3897 = vmul.f32 %v3887, %v193
  %v3898 = vmul.f32 %v3889, %v193
  %v3899 = vmul.f32 %v3891, %v193
  %3900 = vrot.lane.b32.xlu0 %v3756, 1
  %v3901 = vpop.permute.xlu0 %3900
  %3902 = vrot.lane.b32.xlu0 %v3757, 1
  %v3903 = vpop.permute.xlu0 %3902
  %3904 = vrot.lane.b32.xlu0 %v3758, 1
  %v3905 = vpop.permute.xlu0 %3904
  %3906 = vrot.lane.b32.xlu0 %v3759, 1
  %v3907 = vpop.permute.xlu0 %3906
  %3908 = vrot.lane.b32.xlu0 %v3824, 1
  %v3909 = vpop.permute.xlu0 %3908
  %3910 = vrot.lane.b32.xlu0 %v3825, 1
  %v3911 = vpop.permute.xlu0 %3910
  %3912 = vrot.lane.b32.xlu0 %v3826, 1
  %v3913 = vpop.permute.xlu0 %3912
  %3914 = vrot.lane.b32.xlu0 %v3827, 1
  %v3915 = vpop.permute.xlu0 %3914
  %v3916 = vmul.f32 %v3901, %v224
  %v3917 = vmul.f32 %v3903, %v224
  %v3918 = vmul.f32 %v3905, %v224
  %v3919 = vmul.f32 %v3907, %v224
  %v3920 = vmul.f32 %v3909, %v224
  %v3921 = vmul.f32 %v3911, %v224
  %v3922 = vmul.f32 %v3913, %v224
  %v3923 = vmul.f32 %v3915, %v224
  %3924 = vrot.lane.b32.xlu0 %v3756, 127
  %v3925 = vpop.permute.xlu0 %3924
  %3926 = vrot.lane.b32.xlu0 %v3757, 127
  %v3927 = vpop.permute.xlu0 %3926
  %3928 = vrot.lane.b32.xlu0 %v3758, 127
  %v3929 = vpop.permute.xlu0 %3928
  %3930 = vrot.lane.b32.xlu0 %v3759, 127
  %v3931 = vpop.permute.xlu0 %3930
  %3932 = vrot.lane.b32.xlu0 %v3824, 127
  %v3933 = vpop.permute.xlu0 %3932
  %3934 = vrot.lane.b32.xlu0 %v3825, 127
  %v3935 = vpop.permute.xlu0 %3934
  %3936 = vrot.lane.b32.xlu0 %v3826, 127
  %v3937 = vpop.permute.xlu0 %3936
  %3938 = vrot.lane.b32.xlu0 %v3827, 127
  %v3939 = vpop.permute.xlu0 %3938
  %v3940 = vmul.f32 %v3925, %v255
  %v3941 = vmul.f32 %v3927, %v255
  %v3942 = vmul.f32 %v3929, %v255
  %v3943 = vmul.f32 %v3931, %v255
  %v3944 = vmul.f32 %v3933, %v255
  %v3945 = vmul.f32 %v3935, %v255
  %v3946 = vmul.f32 %v3937, %v255
  %v3947 = vmul.f32 %v3939, %v255
  %3948 = vrot.lane.b32.xlu0 %v3756, 121
  %v3949 = vpop.permute.xlu0 %3948
  %3950 = vrot.lane.b32.xlu0 %v3757, 121
  %v3951 = vpop.permute.xlu0 %3950
  %3952 = vrot.lane.b32.xlu0 %v3758, 121
  %v3953 = vpop.permute.xlu0 %3952
  %3954 = vrot.lane.b32.xlu0 %v3759, 121
  %v3955 = vpop.permute.xlu0 %3954
  %3956 = vrot.lane.b32.xlu0 %v3824, 121
  %v3957 = vpop.permute.xlu0 %3956
  %3958 = vrot.lane.b32.xlu0 %v3825, 121
  %v3959 = vpop.permute.xlu0 %3958
  %3960 = vrot.lane.b32.xlu0 %v3826, 121
  %v3961 = vpop.permute.xlu0 %3960
  %3962 = vrot.lane.b32.xlu0 %v3827, 121
  %v3963 = vpop.permute.xlu0 %3962
  %v3964 = vmul.f32 %v3949, %v286
  %v3965 = vmul.f32 %v3951, %v286
  %v3966 = vmul.f32 %v3953, %v286
  %v3967 = vmul.f32 %v3955, %v286
  %v3968 = vmul.f32 %v3957, %v286
  %v3969 = vmul.f32 %v3959, %v286
  %v3970 = vmul.f32 %v3961, %v286
  %v3971 = vmul.f32 %v3963, %v286
  %3972 = vrot.lane.b32.xlu0 %v3756, 120
  %v3973 = vpop.permute.xlu0 %3972
  %3974 = vrot.lane.b32.xlu0 %v3757, 120
  %v3975 = vpop.permute.xlu0 %3974
  %3976 = vrot.lane.b32.xlu0 %v3758, 120
  %v3977 = vpop.permute.xlu0 %3976
  %3978 = vrot.lane.b32.xlu0 %v3759, 120
  %v3979 = vpop.permute.xlu0 %3978
  %3980 = vrot.lane.b32.xlu0 %v3824, 120
  %v3981 = vpop.permute.xlu0 %3980
  %3982 = vrot.lane.b32.xlu0 %v3825, 120
  %v3983 = vpop.permute.xlu0 %3982
  %3984 = vrot.lane.b32.xlu0 %v3826, 120
  %v3985 = vpop.permute.xlu0 %3984
  %3986 = vrot.lane.b32.xlu0 %v3827, 120
  %v3987 = vpop.permute.xlu0 %3986
  %v3988 = vmul.f32 %v3973, %v317
  %v3989 = vmul.f32 %v3975, %v317
  %v3990 = vmul.f32 %v3977, %v317
  %v3991 = vmul.f32 %v3979, %v317
  %v3992 = vmul.f32 %v3981, %v317
  %v3993 = vmul.f32 %v3983, %v317
  %v3994 = vmul.f32 %v3985, %v317
  %v3995 = vmul.f32 %v3987, %v317
  %3996 = vrot.lane.b32.xlu0 %v3756, 119
  %v3997 = vpop.permute.xlu0 %3996
  %3998 = vrot.lane.b32.xlu0 %v3757, 119
  %v3999 = vpop.permute.xlu0 %3998
  %4000 = vrot.lane.b32.xlu0 %v3758, 119
  %v4001 = vpop.permute.xlu0 %4000
  %4002 = vrot.lane.b32.xlu0 %v3759, 119
  %v4003 = vpop.permute.xlu0 %4002
  %4004 = vrot.lane.b32.xlu0 %v3824, 119
  %v4005 = vpop.permute.xlu0 %4004
  %4006 = vrot.lane.b32.xlu0 %v3825, 119
  %v4007 = vpop.permute.xlu0 %4006
  %4008 = vrot.lane.b32.xlu0 %v3826, 119
  %v4009 = vpop.permute.xlu0 %4008
  %4010 = vrot.lane.b32.xlu0 %v3827, 119
  %v4011 = vpop.permute.xlu0 %4010
  %v4012 = vmul.f32 %v3997, %v348
  %v4013 = vmul.f32 %v3999, %v348
  %v4014 = vmul.f32 %v4001, %v348
  %v4015 = vmul.f32 %v4003, %v348
  %v4016 = vmul.f32 %v4005, %v348
  %v4017 = vmul.f32 %v4007, %v348
  %v4018 = vmul.f32 %v4009, %v348
  %v4019 = vmul.f32 %v4011, %v348
  %v4020 = vld [vmem:[%s9] sm:$0xff]
  %v4021 = vld [vmem:[%s9 + $0x8] sm:$0xff]
  %v4022 = vld [vmem:[%s9 + $0x10] sm:$0xff]
  %v4023 = vld [vmem:[%s9 + $0x18] sm:$0xff]
  %v4024 = vld [vmem:[%s9 + $0x20] sm:$0xff]
  %v4025 = vld [vmem:[%s9 + $0x28] sm:$0xff]
  %v4026 = vld [vmem:[%s9 + $0x30] sm:$0xff]
  %v4027 = vld [vmem:[%s9 + $0x38] sm:$0xff]
  %v4028 = vld [vmem:[%s9 + $0x40] sm:$0xff]
  %v4029 = vld [vmem:[%s9 + $0x48] sm:$0xff]
  %v4030 = vld [vmem:[%s9 + $0x50] sm:$0xff]
  %v4031 = vld [vmem:[%s9 + $0x58] sm:$0xff]
  %v4032 = vld [vmem:[%s9 + $0x60] sm:$0xff]
  %v4033 = vld [vmem:[%s9 + $0x68] sm:$0xff]
  %v4034 = vld [vmem:[%s9 + $0x70] sm:$0xff]
  %v4035 = vld [vmem:[%s9 + $0x78] sm:$0xff]
  %v4036 = vld [vmem:[%s9 + $0x80] sm:$0xff]
  %v4037 = vld [vmem:[%s9 + $0x88] sm:$0xff]
  %v4038 = vld [vmem:[%s9 + $0x90] sm:$0xff]
  %v4039 = vld [vmem:[%s9 + $0x98] sm:$0xff]
  %v4040 = vld [vmem:[%s9 + $0xa0] sm:$0xff]
  %v4041 = vld [vmem:[%s9 + $0xa8] sm:$0xff]
  %v4042 = vld [vmem:[%s9 + $0xb0] sm:$0xff]
  %v4043 = vld [vmem:[%s9 + $0xb8] sm:$0xff]
  %v4044 = vld [vmem:[%s9 + $0xc0] sm:$0xff]
  %v4045 = vld [vmem:[%s9 + $0xc8] sm:$0xff]
  %v4046 = vld [vmem:[%s9 + $0xd0] sm:$0xff]
  %v4047 = vld [vmem:[%s9 + $0xd8] sm:$0xff]
  %v4048 = vld [vmem:[%s9 + $0xe0] sm:$0xff]
  %v4049 = vld [vmem:[%s9 + $0xe8] sm:$0xff]
  %v4050 = vld [vmem:[%s9 + $0xf0] sm:$0xff]
  %v4051 = vld [vmem:[%s9 + $0xf8] sm:$0xff]
  %v4052 = vld [vmem:[%s9 + $0x100] sm:$0xff]
  %v4053 = vld [vmem:[%s9 + $0x108] sm:$0xff]
  %v4054 = vld [vmem:[%s9 + $0x110] sm:$0xff]
  %v4055 = vld [vmem:[%s9 + $0x118] sm:$0xff]
  %v4056 = vld [vmem:[%s9 + $0x120] sm:$0xff]
  %v4057 = vld [vmem:[%s9 + $0x128] sm:$0xff]
  %v4058 = vld [vmem:[%s9 + $0x130] sm:$0xff]
  %v4059 = vld [vmem:[%s9 + $0x138] sm:$0xff]
  %v4061 = vsel %vm1594, %v4024, 0
  %v4064 = vsel %vm1594, %v4029, 0
  %v4067 = vsel %vm1594, %v4034, 0
  %v4070 = vsel %vm1594, %v4039, 0
  %v4073 = vsel %vm1594, %v4044, 0
  %v4076 = vsel %vm1594, %v4049, 0
  %v4079 = vsel %vm1594, %v4054, 0
  %v4082 = vsel %vm1594, %v4059, 0
  %4084 = vmatprep.subr.mxu0 0.0
  %4085 = vmatpush1.msra.mxu0 %v3844
  %4086 = vmatprep.subr.mxu0 0.0
  %4087 = vmatpush1.msra.mxu0 %v3845
  %4088 = vmatprep.subr.mxu0 0.0
  %4089 = vmatpush1.msra.mxu0 %v3846
  %4090 = vmatprep.subr.mxu0 0.0
  %4091 = vmatpush1.msra.mxu0 %v3847
  %4092 = vmatprep.subr.mxu0 0.0
  %4093 = vmatpush1.msra.mxu0 %v3848
  %4094 = vmatprep.subr.mxu0 0.0
  %4095 = vmatpush1.msra.mxu0 %v3849
  %4096 = vmatprep.subr.mxu0 0.0
  %4097 = vmatpush1.msra.mxu0 %v3850
  %4098 = vmatprep.subr.mxu0 0.0
  %4099 = vmatpush1.msra.mxu0 %v3851
  %4100 = vmatprep.subr.mxu0 0.0
  %4101 = vmatpush1.msra.mxu0 %v3868
  %4102 = vmatprep.subr.mxu0 0.0
  %4103 = vmatpush1.msra.mxu0 %v3869
  %4104 = vmatprep.subr.mxu0 0.0
  %4105 = vmatpush1.msra.mxu0 %v3870
  %4106 = vmatprep.subr.mxu0 0.0
  %4107 = vmatpush1.msra.mxu0 %v3871
  %4108 = vmatprep.subr.mxu0 0.0
  %4109 = vmatpush1.msra.mxu0 %v3872
  %4110 = vmatprep.subr.mxu0 0.0
  %4111 = vmatpush1.msra.mxu0 %v3873
  %4112 = vmatprep.subr.mxu0 0.0
  %4113 = vmatpush1.msra.mxu0 %v3874
  %4114 = vmatprep.subr.mxu0 0.0
  %4115 = vmatpush1.msra.mxu0 %v3875
  %4116 = vmatprep.subr.mxu0 0.0
  %4117 = vmatpush1.msra.mxu0 %v3892
  %4118 = vmatprep.subr.mxu0 0.0
  %4119 = vmatpush1.msra.mxu0 %v3893
  %4120 = vmatprep.subr.mxu0 0.0
  %4121 = vmatpush1.msra.mxu0 %v3894
  %4122 = vmatprep.subr.mxu0 0.0
  %4123 = vmatpush1.msra.mxu0 %v3895
  %4124 = vmatprep.subr.mxu0 0.0
  %4125 = vmatpush1.msra.mxu0 %v3896
  %4126 = vmatprep.subr.mxu0 0.0
  %4127 = vmatpush1.msra.mxu0 %v3897
  %4128 = vmatprep.subr.mxu0 0.0
  %4129 = vmatpush1.msra.mxu0 %v3898
  %4130 = vmatprep.subr.mxu0 0.0
  %4131 = vmatpush1.msra.mxu0 %v3899
  %4132 = vmatprep.subr.mxu0 0.0
  %4133 = vmatpush1.msra.mxu0 %v3916
  %4134 = vmatprep.subr.mxu0 0.0
  %4135 = vmatpush1.msra.mxu0 %v3917
  %4136 = vmatprep.subr.mxu0 0.0
  %4137 = vmatpush1.msra.mxu0 %v3918
  %4138 = vmatprep.subr.mxu0 0.0
  %4139 = vmatpush1.msra.mxu0 %v3919
  %4140 = vmatprep.subr.mxu0 0.0
  %4141 = vmatpush1.msra.mxu0 %v3920
  %4142 = vmatprep.subr.mxu0 0.0
  %4143 = vmatpush1.msra.mxu0 %v3921
  %4144 = vmatprep.subr.mxu0 0.0
  %4145 = vmatpush1.msra.mxu0 %v3922
  %4146 = vmatprep.subr.mxu0 0.0
  %4147 = vmatpush1.msra.mxu0 %v3923
  %4148 = vmatprep.mubr.f32.mxu0 %v4021
  %4149 = vmatmul.mubr.f32.gmra.mrb[0].mxu0 %v4020
  %v4150 = vpop.f32.mrb[0].mxu0
  %v4151 = vadd.f32 0.0, %v4150
  %v4152 = vpop.f32.mrb[0].mxu0
  %4153 = vmatprep.mubr.f32.mxu0 %v4026
  %4154 = vmatmul.mubr.f32.gmra.mrb[0].mxu0 %v4025
  %v4155 = vpop.f32.mrb[0].mxu0
  %v4156 = vadd.f32 0.0, %v4155
  %v4157 = vpop.f32.mrb[0].mxu0
  %4158 = vmatprep.mubr.f32.mxu0 %v4031
  %4159 = vmatmul.mubr.f32.gmra.mrb[0].mxu0 %v4030
  %v4160 = vpop.f32.mrb[0].mxu0
  %v4161 = vadd.f32 0.0, %v4160
  %v4162 = vpop.f32.mrb[0].mxu0
  %4163 = vmatprep.mubr.f32.mxu0 %v4036
  %4164 = vmatmul.mubr.f32.gmra.mrb[0].mxu0 %v4035
  %v4165 = vpop.f32.mrb[0].mxu0
  %v4166 = vadd.f32 0.0, %v4165
  %v4167 = vpop.f32.mrb[0].mxu0
  %4168 = vmatprep.mubr.f32.mxu0 %v4041
  %4169 = vmatmul.mubr.f32.gmra.mrb[0].mxu0 %v4040
  %v4170 = vpop.f32.mrb[0].mxu0
  %v4171 = vadd.f32 0.0, %v4170
  %v4172 = vpop.f32.mrb[0].mxu0
  %4173 = vmatprep.mubr.f32.mxu0 %v4046
  %4174 = vmatmul.mubr.f32.gmra.mrb[0].mxu0 %v4045
  %v4175 = vpop.f32.mrb[0].mxu0
  %v4176 = vadd.f32 0.0, %v4175
  %v4177 = vpop.f32.mrb[0].mxu0
  %4178 = vmatprep.mubr.f32.mxu0 %v4051
  %4179 = vmatmul.mubr.f32.gmra.mrb[0].mxu0 %v4050
  %v4180 = vpop.f32.mrb[0].mxu0
  %v4181 = vadd.f32 0.0, %v4180
  %v4182 = vpop.f32.mrb[0].mxu0
  %4183 = vmatprep.mubr.f32.mxu0 %v4056
  %4184 = vmatmul.mubr.f32.gmra.mrb[0].mxu0 %v4055
  %v4185 = vpop.f32.mrb[0].mxu0
  %v4186 = vadd.f32 0.0, %v4185
  %v4187 = vpop.f32.mrb[0].mxu0
  %4188 = vdwg.mxu0
  %4189 = vmatprep.subr.mxu0 0.0
  %4190 = vmatpush1.msra.mxu0 %v3756
  %4191 = vmatprep.subr.mxu0 0.0
  %4192 = vmatpush1.msra.mxu0 %v3757
  %4193 = vmatprep.subr.mxu0 0.0
  %4194 = vmatpush1.msra.mxu0 %v3758
  %4195 = vmatprep.subr.mxu0 0.0
  %4196 = vmatpush1.msra.mxu0 %v3759
  %4197 = vmatprep.subr.mxu0 0.0
  %4198 = vmatpush1.msra.mxu0 %v3824
  %4199 = vmatprep.subr.mxu0 0.0
  %4200 = vmatpush1.msra.mxu0 %v3825
  %4201 = vmatprep.subr.mxu0 0.0
  %4202 = vmatpush1.msra.mxu0 %v3826
  %4203 = vmatprep.subr.mxu0 0.0
  %4204 = vmatpush1.msra.mxu0 %v3827
  %4205 = vmatprep.subr.mxu0 0.0
  %4206 = vmatpush1.msra.mxu0 %v3940
  %4207 = vmatprep.subr.mxu0 0.0
  %4208 = vmatpush1.msra.mxu0 %v3941
  %4209 = vmatprep.subr.mxu0 0.0
  %4210 = vmatpush1.msra.mxu0 %v3942
  %4211 = vmatprep.subr.mxu0 0.0
  %4212 = vmatpush1.msra.mxu0 %v3943
  %4213 = vmatprep.subr.mxu0 0.0
  %4214 = vmatpush1.msra.mxu0 %v3944
  %4215 = vmatprep.subr.mxu0 0.0
  %4216 = vmatpush1.msra.mxu0 %v3945
  %4217 = vmatprep.subr.mxu0 0.0
  %4218 = vmatpush1.msra.mxu0 %v3946
  %4219 = vmatprep.subr.mxu0 0.0
  %4220 = vmatpush1.msra.mxu0 %v3947
  %4221 = vmatprep.subr.mxu0 0.0
  %4222 = vmatpush1.msra.mxu0 %v3964
  %4223 = vmatprep.subr.mxu0 0.0
  %4224 = vmatpush1.msra.mxu0 %v3965
  %4225 = vmatprep.subr.mxu0 0.0
  %4226 = vmatpush1.msra.mxu0 %v3966
  %4227 = vmatprep.subr.mxu0 0.0
  %4228 = vmatpush1.msra.mxu0 %v3967
  %4229 = vmatprep.subr.mxu0 0.0
  %4230 = vmatpush1.msra.mxu0 %v3968
  %4231 = vmatprep.subr.mxu0 0.0
  %4232 = vmatpush1.msra.mxu0 %v3969
  %4233 = vmatprep.subr.mxu0 0.0
  %4234 = vmatpush1.msra.mxu0 %v3970
  %4235 = vmatprep.subr.mxu0 0.0
  %4236 = vmatpush1.msra.mxu0 %v3971
  %4237 = vmatprep.subr.mxu0 0.0
  %4238 = vmatpush1.msra.mxu0 %v3988
  %4239 = vmatprep.subr.mxu0 0.0
  %4240 = vmatpush1.msra.mxu0 %v3989
  %4241 = vmatprep.subr.mxu0 0.0
  %4242 = vmatpush1.msra.mxu0 %v3990
  %4243 = vmatprep.subr.mxu0 0.0
  %4244 = vmatpush1.msra.mxu0 %v3991
  %4245 = vmatprep.subr.mxu0 0.0
  %4246 = vmatpush1.msra.mxu0 %v3992
  %4247 = vmatprep.subr.mxu0 0.0
  %4248 = vmatpush1.msra.mxu0 %v3993
  %4249 = vmatprep.subr.mxu0 0.0
  %4250 = vmatpush1.msra.mxu0 %v3994
  %4251 = vmatprep.subr.mxu0 0.0
  %4252 = vmatpush1.msra.mxu0 %v3995
  %4253 = vmatprep.mubr.f32.mxu0 %v4023
  %4254 = vmatmul.mubr.f32.gmra.mrb[0].mxu0 %v4022
  %v4255 = vpop.f32.mrb[0].mxu0
  %v4256 = vadd.f32 %v4151, %v4255
  %v4257 = vpop.f32.mrb[0].mxu0
  %4258 = vmatprep.mubr.f32.mxu0 %v4028
  %4259 = vmatmul.mubr.f32.gmra.mrb[0].mxu0 %v4027
  %v4260 = vpop.f32.mrb[0].mxu0
  %v4261 = vadd.f32 %v4156, %v4260
  %v4262 = vpop.f32.mrb[0].mxu0
  %4263 = vmatprep.mubr.f32.mxu0 %v4033
  %4264 = vmatmul.mubr.f32.gmra.mrb[0].mxu0 %v4032
  %v4265 = vpop.f32.mrb[0].mxu0
  %v4266 = vadd.f32 %v4161, %v4265
  %v4267 = vpop.f32.mrb[0].mxu0
  %4268 = vmatprep.mubr.f32.mxu0 %v4038
  %4269 = vmatmul.mubr.f32.gmra.mrb[0].mxu0 %v4037
  %v4270 = vpop.f32.mrb[0].mxu0
  %v4271 = vadd.f32 %v4166, %v4270
  %v4272 = vpop.f32.mrb[0].mxu0
  %4273 = vmatprep.mubr.f32.mxu0 %v4043
  %4274 = vmatmul.mubr.f32.gmra.mrb[0].mxu0 %v4042
  %v4275 = vpop.f32.mrb[0].mxu0
  %v4276 = vadd.f32 %v4171, %v4275
  %v4277 = vpop.f32.mrb[0].mxu0
  %4278 = vmatprep.mubr.f32.mxu0 %v4048
  %4279 = vmatmul.mubr.f32.gmra.mrb[0].mxu0 %v4047
  %v4280 = vpop.f32.mrb[0].mxu0
  %v4281 = vadd.f32 %v4176, %v4280
  %v4282 = vpop.f32.mrb[0].mxu0
  %4283 = vmatprep.mubr.f32.mxu0 %v4053
  %4284 = vmatmul.mubr.f32.gmra.mrb[0].mxu0 %v4052
  %v4285 = vpop.f32.mrb[0].mxu0
  %v4286 = vadd.f32 %v4181, %v4285
  %v4287 = vpop.f32.mrb[0].mxu0
  %4288 = vmatprep.mubr.f32.mxu0 %v4058
  %4289 = vmatmul.mubr.f32.gmra.mrb[0].mxu0 %v4057
  %v4290 = vpop.f32.mrb[0].mxu0
  %v4291 = vadd.f32 %v4186, %v4290
  %v4292 = vpop.f32.mrb[0].mxu0
  %4293 = vdwg.mxu0
  %4294 = vmatprep.subr.mxu0 0.0
  %4295 = vmatpush1.msra.mxu0 %v4012
  %4296 = vmatprep.subr.mxu0 0.0
  %4297 = vmatpush1.msra.mxu0 %v4013
  %4298 = vmatprep.subr.mxu0 0.0
  %4299 = vmatpush1.msra.mxu0 %v4014
  %4300 = vmatprep.subr.mxu0 0.0
  %4301 = vmatpush1.msra.mxu0 %v4015
  %4302 = vmatprep.subr.mxu0 0.0
  %4303 = vmatpush1.msra.mxu0 %v4016
  %4304 = vmatprep.subr.mxu0 0.0
  %4305 = vmatpush1.msra.mxu0 %v4017
  %4306 = vmatprep.subr.mxu0 0.0
  %4307 = vmatpush1.msra.mxu0 %v4018
  %4308 = vmatprep.subr.mxu0 0.0
  %4309 = vmatpush1.msra.mxu0 %v4019
  %4310 = vmatprep.subr.mxu0 0.0
  %4311 = vmatpush1.msra.mxu0 0.0
  %4312 = vmatprep.subr.mxu0 0.0
  %4313 = vmatpush1.msra.mxu0 0.0
  %4314 = vmatprep.subr.mxu0 0.0
  %4315 = vmatpush1.msra.mxu0 0.0
  %4316 = vmatprep.subr.mxu0 0.0
  %4317 = vmatpush1.msra.mxu0 0.0
  %4318 = vmatprep.subr.mxu0 0.0
  %4319 = vmatpush1.msra.mxu0 0.0
  %4320 = vmatprep.subr.mxu0 0.0
  %4321 = vmatpush1.msra.mxu0 0.0
  %4322 = vmatprep.subr.mxu0 0.0
  %4323 = vmatpush1.msra.mxu0 0.0
  %4324 = vmatprep.subr.mxu0 0.0
  %4325 = vmatpush1.msra.mxu0 0.0
  %4326 = vmatprep.subr.mxu0 0.0
  %4327 = vmatpush1.msra.mxu0 0.0
  %4328 = vmatprep.subr.mxu0 0.0
  %4329 = vmatpush1.msra.mxu0 0.0
  %4330 = vmatprep.subr.mxu0 0.0
  %4331 = vmatpush1.msra.mxu0 0.0
  %4332 = vmatprep.subr.mxu0 0.0
  %4333 = vmatpush1.msra.mxu0 0.0
  %4334 = vmatprep.subr.mxu0 0.0
  %4335 = vmatpush1.msra.mxu0 0.0
  %4336 = vmatprep.subr.mxu0 0.0
  %4337 = vmatpush1.msra.mxu0 0.0
  %4338 = vmatprep.subr.mxu0 0.0
  %4339 = vmatpush1.msra.mxu0 0.0
  %4340 = vmatprep.subr.mxu0 0.0
  %4341 = vmatpush1.msra.mxu0 0.0
  %4342 = vmatprep.subr.mxu0 0.0
  %4343 = vmatpush1.msra.mxu0 0.0
  %4344 = vmatprep.subr.mxu0 0.0
  %4345 = vmatpush1.msra.mxu0 0.0
  %4346 = vmatprep.subr.mxu0 0.0
  %4347 = vmatpush1.msra.mxu0 0.0
  %4348 = vmatprep.subr.mxu0 0.0
  %4349 = vmatpush1.msra.mxu0 0.0
  %4350 = vmatprep.subr.mxu0 0.0
  %4351 = vmatpush1.msra.mxu0 0.0
  %4352 = vmatprep.subr.mxu0 0.0
  %4353 = vmatpush1.msra.mxu0 0.0
  %4354 = vmatprep.subr.mxu0 0.0
  %4355 = vmatpush1.msra.mxu0 0.0
  %4356 = vmatprep.subr.mxu0 0.0
  %4357 = vmatpush1.msra.mxu0 0.0
  %4358 = vmatprep.mubr.f32.mxu0 0.0
  %4359 = vmatmul.mubr.f32.gmra.mrb[0].mxu0 %v4061
  %v4360 = vpop.f32.mrb[0].mxu0
  %v4361 = vadd.f32 %v4256, %v4360
  %v4362 = vpop.f32.mrb[0].mxu0
  %4363 = vmatprep.mubr.f32.mxu0 0.0
  %4364 = vmatmul.mubr.f32.gmra.mrb[0].mxu0 %v4064
  %v4365 = vpop.f32.mrb[0].mxu0
  %v4366 = vadd.f32 %v4261, %v4365
  %v4367 = vpop.f32.mrb[0].mxu0
  %4368 = vmatprep.mubr.f32.mxu0 0.0
  %4369 = vmatmul.mubr.f32.gmra.mrb[0].mxu0 %v4067
  %v4370 = vpop.f32.mrb[0].mxu0
  %v4371 = vadd.f32 %v4266, %v4370
  %v4372 = vpop.f32.mrb[0].mxu0
  %4373 = vmatprep.mubr.f32.mxu0 0.0
  %4374 = vmatmul.mubr.f32.gmra.mrb[0].mxu0 %v4070
  %v4375 = vpop.f32.mrb[0].mxu0
  %v4376 = vadd.f32 %v4271, %v4375
  %v4377 = vpop.f32.mrb[0].mxu0
  %4378 = vmatprep.mubr.f32.mxu0 0.0
  %4379 = vmatmul.mubr.f32.gmra.mrb[0].mxu0 %v4073
  %v4380 = vpop.f32.mrb[0].mxu0
  %v4381 = vadd.f32 %v4276, %v4380
  %v4382 = vpop.f32.mrb[0].mxu0
  %4383 = vmatprep.mubr.f32.mxu0 0.0
  %4384 = vmatmul.mubr.f32.gmra.mrb[0].mxu0 %v4076
  %v4385 = vpop.f32.mrb[0].mxu0
  %v4386 = vadd.f32 %v4281, %v4385
  %v4387 = vpop.f32.mrb[0].mxu0
  %4388 = vmatprep.mubr.f32.mxu0 0.0
  %4389 = vmatmul.mubr.f32.gmra.mrb[0].mxu0 %v4079
  %v4390 = vpop.f32.mrb[0].mxu0
  %v4391 = vadd.f32 %v4286, %v4390
  %v4392 = vpop.f32.mrb[0].mxu0
  %4393 = vmatprep.mubr.f32.mxu0 0.0
  %4394 = vmatmul.mubr.f32.gmra.mrb[0].mxu0 %v4082
  %v4395 = vpop.f32.mrb[0].mxu0
  %v4396 = vadd.f32 %v4291, %v4395
  %v4397 = vpop.f32.mrb[0].mxu0
  %4398 = vdwg.mxu0
  %v4399 = vadd.f32 %v3674, %v4361
  %v4400 = vadd.f32 %v3679, %v4366
  %v4401 = vadd.f32 %v3684, %v4371
  %v4402 = vadd.f32 %v3689, %v4376
  %v4403 = vxor.u32 %v4399, 2147483648
  %v4404 = vxor.u32 %v4400, 2147483648
  %v4405 = vxor.u32 %v4401, 2147483648
  %v4406 = vxor.u32 %v4402, 2147483648
  %v4407 = vmul.f32 %v4403, 1.442695
  %v4408 = vpow.pop %v4407
  %v4409 = vmul.f32 %v4404, 1.442695
  %v4410 = vpow.pop %v4409
  %v4411 = vmul.f32 %v4405, 1.442695
  %v4412 = vpow.pop %v4411
  %v4413 = vmul.f32 %v4406, 1.442695
  %v4414 = vpow.pop %v4413
  %v4415 = vadd.f32 %v4408, 1.0
  %v4416 = vadd.f32 %v4410, 1.0
  %v4417 = vadd.f32 %v4412, 1.0
  %v4418 = vadd.f32 %v4414, 1.0
  %v4419 = vrcp.pop %v4415
  %v4420 = vmul.f32 1.0, %v4419
  %v4421 = vrcp.pop %v4416
  %v4422 = vmul.f32 1.0, %v4421
  %v4423 = vrcp.pop %v4417
  %v4424 = vmul.f32 1.0, %v4423
  %v4425 = vrcp.pop %v4418
  %v4426 = vmul.f32 1.0, %v4425
  %v4427 = vtanh.pop %v4381
  %v4428 = vtanh.pop %v4386
  %v4429 = vtanh.pop %v4391
  %v4430 = vtanh.pop %v4396
  %v4431 = vmul.f32 %v4420, %v4427
  %v4432 = vmul.f32 %v4422, %v4428
  %v4433 = vmul.f32 %v4424, %v4429
  %v4434 = vmul.f32 %v4426, %v4430
  %4435 = vst [vmem:[%s20] sm:$0xff] %v4431
  %4436 = vst [vmem:[%s20 + $0x8] sm:$0xff] %v4432
  %4437 = vst [vmem:[%s20 + $0x10] sm:$0xff] %v4433
  %4438 = vst [vmem:[%s20 + $0x18] sm:$0xff] %v4434
  %4439 = vst [vmem:[%s22] sm:$0xff] %v3756
  %4440 = vst [vmem:[%s22 + $0x8] sm:$0xff] %v3757
  %4441 = vst [vmem:[%s22 + $0x10] sm:$0xff] %v3758
  %4442 = vst [vmem:[%s22 + $0x18] sm:$0xff] %v3759
  %4443 = vmatprep.subr.mxu0 0.0
  %4444 = vmatpush1.msra.mxu0 %v3748
  %4445 = vmatprep.subr.mxu0 0.0
  %4446 = vmatpush1.msra.mxu0 %v3749
  %4447 = vmatprep.subr.mxu0 0.0
  %4448 = vmatpush1.msra.mxu0 %v3750
  %4449 = vmatprep.subr.mxu0 0.0
  %4450 = vmatpush1.msra.mxu0 %v3751
  %4451 = vmatprep.subr.mxu0 0.0
  %4452 = vmatpush1.msra.mxu0 0.0
  %4453 = vmatprep.subr.mxu0 0.0
  %4454 = vmatpush1.msra.mxu0 0.0
  %4455 = vmatprep.subr.mxu0 0.0
  %4456 = vmatpush1.msra.mxu0 0.0
  %4457 = vmatprep.subr.mxu0 0.0
  %4458 = vmatpush1.msra.mxu0 0.0
  %4459 = vmatprep.subr.mxu0 0.0
  %4460 = vmatpush1.msra.mxu0 0.0
  %4461 = vmatprep.subr.mxu0 0.0
  %4462 = vmatpush1.msra.mxu0 0.0
  %4463 = vmatprep.subr.mxu0 0.0
  %4464 = vmatpush1.msra.mxu0 0.0
  %4465 = vmatprep.subr.mxu0 0.0
  %4466 = vmatpush1.msra.mxu0 0.0
  %4467 = vmatprep.subr.mxu0 0.0
  %4468 = vmatpush1.msra.mxu0 0.0
  %4469 = vmatprep.subr.mxu0 0.0
  %4470 = vmatpush1.msra.mxu0 0.0
  %4471 = vmatprep.subr.mxu0 0.0
  %4472 = vmatpush1.msra.mxu0 0.0
  %4473 = vmatprep.subr.mxu0 0.0
  %4474 = vmatpush1.msra.mxu0 0.0
  %4475 = vmatprep.subr.mxu0 0.0
  %4476 = vmatpush1.msra.mxu0 0.0
  %4477 = vmatprep.subr.mxu0 0.0
  %4478 = vmatpush1.msra.mxu0 0.0
  %4479 = vmatprep.subr.mxu0 0.0
  %4480 = vmatpush1.msra.mxu0 0.0
  %4481 = vmatprep.subr.mxu0 0.0
  %4482 = vmatpush1.msra.mxu0 0.0
  %4483 = vmatprep.subr.mxu0 0.0
  %4484 = vmatpush1.msra.mxu0 0.0
  %4485 = vmatprep.subr.mxu0 0.0
  %4486 = vmatpush1.msra.mxu0 0.0
  %4487 = vmatprep.subr.mxu0 0.0
  %4488 = vmatpush1.msra.mxu0 0.0
  %4489 = vmatprep.subr.mxu0 0.0
  %4490 = vmatpush1.msra.mxu0 0.0
  %4491 = vmatprep.subr.mxu0 0.0
  %4492 = vmatpush1.msra.mxu0 0.0
  %4493 = vmatprep.subr.mxu0 0.0
  %4494 = vmatpush1.msra.mxu0 0.0
  %4495 = vmatprep.subr.mxu0 0.0
  %4496 = vmatpush1.msra.mxu0 0.0
  %4497 = vmatprep.subr.mxu0 0.0
  %4498 = vmatpush1.msra.mxu0 0.0
  %4499 = vmatprep.subr.mxu0 0.0
  %4500 = vmatpush1.msra.mxu0 0.0
  %4501 = vmatprep.subr.mxu0 0.0
  %4502 = vmatpush1.msra.mxu0 0.0
  %4503 = vmatprep.subr.mxu0 0.0
  %4504 = vmatpush1.msra.mxu0 0.0
  %4505 = vmatprep.subr.mxu0 0.0
  %4506 = vmatpush1.msra.mxu0 0.0
  %4507 = vmatprep.mubr.f32.mxu0 0.0
  %4508 = vmatmul.mubr.f32.gmra.mrb[0].mxu0 %v2000
  %v4509 = vpop.f32.mrb[0].mxu0
  %v4510 = vadd.f32 %v1981, %v4509
  %v4511 = vpop.f32.mrb[0].mxu0
  %4512 = vmatprep.mubr.f32.mxu0 0.0
  %4513 = vmatmul.mubr.f32.gmra.mrb[0].mxu0 %v2003
  %v4514 = vpop.f32.mrb[0].mxu0
  %v4515 = vadd.f32 %v1986, %v4514
  %v4516 = vpop.f32.mrb[0].mxu0
  %4517 = vmatprep.mubr.f32.mxu0 0.0
  %4518 = vmatmul.mubr.f32.gmra.mrb[0].mxu0 %v2006
  %v4519 = vpop.f32.mrb[0].mxu0
  %v4520 = vadd.f32 %v1991, %v4519
  %v4521 = vpop.f32.mrb[0].mxu0
  %4522 = vmatprep.mubr.f32.mxu0 0.0
  %4523 = vmatmul.mubr.f32.gmra.mrb[0].mxu0 %v2009
  %v4524 = vpop.f32.mrb[0].mxu0
  %v4525 = vadd.f32 %v1996, %v4524
  %v4526 = vpop.f32.mrb[0].mxu0
  %4527 = vdwg.mxu0
  %v4528 = vmul.f32 %v4510, %v4510
  %v4529 = vmul.f32 %v4515, %v4515
  %v4530 = vmul.f32 %v4520, %v4520
  %v4531 = vmul.f32 %v4525, %v4525
  %4532 = vmatprep.subr.mxu0 0.0
  %4533 = vmatpush1.msra.mxu0 %v73
  %4534 = vmatprep.subr.mxu0 0.0
  %4535 = vmatpush1.msra.mxu0 %v74
  %4536 = vmatprep.subr.mxu0 0.0
  %4537 = vmatpush1.msra.mxu0 %v75
  %4538 = vmatprep.subr.mxu0 0.0
  %4539 = vmatpush1.msra.mxu0 %v76
  %4540 = vmatprep.subr.mxu0 0.0
  %4541 = vmatpush1.msra.mxu0 %v77
  %4542 = vmatprep.subr.mxu0 0.0
  %4543 = vmatpush1.msra.mxu0 %v78
  %4544 = vmatprep.subr.mxu0 0.0
  %4545 = vmatpush1.msra.mxu0 %v79
  %4546 = vmatprep.subr.mxu0 0.0
  %4547 = vmatpush1.msra.mxu0 %v80
  %4548 = vmatprep.subr.mxu0 0.0
  %4549 = vmatpush1.msra.mxu0 %v81
  %4550 = vmatprep.subr.mxu0 0.0
  %4551 = vmatpush1.msra.mxu0 %v82
  %4552 = vmatprep.subr.mxu0 0.0
  %4553 = vmatpush1.msra.mxu0 %v83
  %4554 = vmatprep.subr.mxu0 0.0
  %4555 = vmatpush1.msra.mxu0 %v84
  %4556 = vmatprep.subr.mxu0 0.0
  %4557 = vmatpush1.msra.mxu0 %v85
  %4558 = vmatprep.subr.mxu0 0.0
  %4559 = vmatpush1.msra.mxu0 %v86
  %4560 = vmatprep.subr.mxu0 0.0
  %4561 = vmatpush1.msra.mxu0 %v87
  %4562 = vmatprep.subr.mxu0 0.0
  %4563 = vmatpush1.msra.mxu0 %v88
  %4564 = vmatprep.subr.mxu0 0.0
  %4565 = vmatpush1.msra.mxu0 0.0
  %4566 = vmatprep.subr.mxu0 0.0
  %4567 = vmatpush1.msra.mxu0 0.0
  %4568 = vmatprep.subr.mxu0 0.0
  %4569 = vmatpush1.msra.mxu0 0.0
  %4570 = vmatprep.subr.mxu0 0.0
  %4571 = vmatpush1.msra.mxu0 0.0
  %4572 = vmatprep.subr.mxu0 0.0
  %4573 = vmatpush1.msra.mxu0 0.0
  %4574 = vmatprep.subr.mxu0 0.0
  %4575 = vmatpush1.msra.mxu0 0.0
  %4576 = vmatprep.subr.mxu0 0.0
  %4577 = vmatpush1.msra.mxu0 0.0
  %4578 = vmatprep.subr.mxu0 0.0
  %4579 = vmatpush1.msra.mxu0 0.0
  %4580 = vmatprep.subr.mxu0 0.0
  %4581 = vmatpush1.msra.mxu0 0.0
  %4582 = vmatprep.subr.mxu0 0.0
  %4583 = vmatpush1.msra.mxu0 0.0
  %4584 = vmatprep.subr.mxu0 0.0
  %4585 = vmatpush1.msra.mxu0 0.0
  %4586 = vmatprep.subr.mxu0 0.0
  %4587 = vmatpush1.msra.mxu0 0.0
  %4588 = vmatprep.subr.mxu0 0.0
  %4589 = vmatpush1.msra.mxu0 0.0
  %4590 = vmatprep.subr.mxu0 0.0
  %4591 = vmatpush1.msra.mxu0 0.0
  %4592 = vmatprep.subr.mxu0 0.0
  %4593 = vmatpush1.msra.mxu0 0.0
  %4594 = vmatprep.subr.mxu0 0.0
  %4595 = vmatpush1.msra.mxu0 0.0
  %4596 = vmatprep.mubr.f32.mxu0 0.0
  %4597 = vmatmul.mubr.f32.gmra.mrb[0].mxu0 %v4528
  %v4598 = vpop.f32.mrb[0].mxu0
  %v4599 = vadd.f32 0.0, %v4598
  %v4600 = vpop.f32.mrb[0].mxu0
  %4601 = vmatprep.mubr.f32.mxu0 0.0
  %4602 = vmatmul.mubr.f32.gmra.mrb[0].mxu0 %v4529
  %v4603 = vpop.f32.mrb[0].mxu0
  %v4604 = vadd.f32 0.0, %v4603
  %v4605 = vpop.f32.mrb[0].mxu0
  %4606 = vmatprep.mubr.f32.mxu0 0.0
  %4607 = vmatmul.mubr.f32.gmra.mrb[0].mxu0 %v4530
  %v4608 = vpop.f32.mrb[0].mxu0
  %v4609 = vadd.f32 0.0, %v4608
  %v4610 = vpop.f32.mrb[0].mxu0
  %4611 = vmatprep.mubr.f32.mxu0 0.0
  %4612 = vmatmul.mubr.f32.gmra.mrb[0].mxu0 %v4531
  %v4613 = vpop.f32.mrb[0].mxu0
  %v4614 = vadd.f32 0.0, %v4613
  %v4615 = vpop.f32.mrb[0].mxu0
  %4616 = vdwg.mxu0
  %v4617 = vmax.f32 %v4599, 1e-24
  %v4618 = vmax.f32 %v4604, 1e-24
  %v4619 = vmax.f32 %v4609, 1e-24
  %v4620 = vmax.f32 %v4614, 1e-24
  %v4621 = vrsqrt.pop %v4617
  %v4622 = vrsqrt.pop %v4618
  %v4623 = vrsqrt.pop %v4619
  %v4624 = vrsqrt.pop %v4620
  %v4625 = vmul.f32 %v4510, %v4621
  %v4626 = vmul.f32 %v4515, %v4622
  %v4627 = vmul.f32 %v4520, %v4623
  %v4628 = vmul.f32 %v4525, %v4624
  %4629 = vst [vmem:[%s25] sm:$0xff] %v4625
  %4630 = vst [vmem:[%s25 + $0x8] sm:$0xff] %v4626
  %4631 = vst [vmem:[%s25 + $0x10] sm:$0xff] %v4627
  %4632 = vst [vmem:[%s25 + $0x18] sm:$0xff] %v4628
  %4633 = vmatprep.subr.mxu0 0.0
  %4634 = vmatpush1.msra.mxu0 %v3816
  %4635 = vmatprep.subr.mxu0 0.0
  %4636 = vmatpush1.msra.mxu0 %v3817
  %4637 = vmatprep.subr.mxu0 0.0
  %4638 = vmatpush1.msra.mxu0 %v3818
  %4639 = vmatprep.subr.mxu0 0.0
  %4640 = vmatpush1.msra.mxu0 %v3819
  %4641 = vmatprep.subr.mxu0 0.0
  %4642 = vmatpush1.msra.mxu0 0.0
  %4643 = vmatprep.subr.mxu0 0.0
  %4644 = vmatpush1.msra.mxu0 0.0
  %4645 = vmatprep.subr.mxu0 0.0
  %4646 = vmatpush1.msra.mxu0 0.0
  %4647 = vmatprep.subr.mxu0 0.0
  %4648 = vmatpush1.msra.mxu0 0.0
  %4649 = vmatprep.subr.mxu0 0.0
  %4650 = vmatpush1.msra.mxu0 0.0
  %4651 = vmatprep.subr.mxu0 0.0
  %4652 = vmatpush1.msra.mxu0 0.0
  %4653 = vmatprep.subr.mxu0 0.0
  %4654 = vmatpush1.msra.mxu0 0.0
  %4655 = vmatprep.subr.mxu0 0.0
  %4656 = vmatpush1.msra.mxu0 0.0
  %4657 = vmatprep.subr.mxu0 0.0
  %4658 = vmatpush1.msra.mxu0 0.0
  %4659 = vmatprep.subr.mxu0 0.0
  %4660 = vmatpush1.msra.mxu0 0.0
  %4661 = vmatprep.subr.mxu0 0.0
  %4662 = vmatpush1.msra.mxu0 0.0
  %4663 = vmatprep.subr.mxu0 0.0
  %4664 = vmatpush1.msra.mxu0 0.0
  %4665 = vmatprep.subr.mxu0 0.0
  %4666 = vmatpush1.msra.mxu0 0.0
  %4667 = vmatprep.subr.mxu0 0.0
  %4668 = vmatpush1.msra.mxu0 0.0
  %4669 = vmatprep.subr.mxu0 0.0
  %4670 = vmatpush1.msra.mxu0 0.0
  %4671 = vmatprep.subr.mxu0 0.0
  %4672 = vmatpush1.msra.mxu0 0.0
  %4673 = vmatprep.subr.mxu0 0.0
  %4674 = vmatpush1.msra.mxu0 0.0
  %4675 = vmatprep.subr.mxu0 0.0
  %4676 = vmatpush1.msra.mxu0 0.0
  %4677 = vmatprep.subr.mxu0 0.0
  %4678 = vmatpush1.msra.mxu0 0.0
  %4679 = vmatprep.subr.mxu0 0.0
  %4680 = vmatpush1.msra.mxu0 0.0
  %4681 = vmatprep.subr.mxu0 0.0
  %4682 = vmatpush1.msra.mxu0 0.0
  %4683 = vmatprep.subr.mxu0 0.0
  %4684 = vmatpush1.msra.mxu0 0.0
  %4685 = vmatprep.subr.mxu0 0.0
  %4686 = vmatpush1.msra.mxu0 0.0
  %4687 = vmatprep.subr.mxu0 0.0
  %4688 = vmatpush1.msra.mxu0 0.0
  %4689 = vmatprep.subr.mxu0 0.0
  %4690 = vmatpush1.msra.mxu0 0.0
  %4691 = vmatprep.subr.mxu0 0.0
  %4692 = vmatpush1.msra.mxu0 0.0
  %4693 = vmatprep.subr.mxu0 0.0
  %4694 = vmatpush1.msra.mxu0 0.0
  %4695 = vmatprep.subr.mxu0 0.0
  %4696 = vmatpush1.msra.mxu0 0.0
  %4697 = vmatprep.mubr.f32.mxu0 0.0
  %4698 = vmatmul.mubr.f32.gmra.mrb[0].mxu0 %v2000
  %v4699 = vpop.f32.mrb[0].mxu0
  %v4700 = vadd.f32 %v1981, %v4699
  %v4701 = vpop.f32.mrb[0].mxu0
  %4702 = vmatprep.mubr.f32.mxu0 0.0
  %4703 = vmatmul.mubr.f32.gmra.mrb[0].mxu0 %v2003
  %v4704 = vpop.f32.mrb[0].mxu0
  %v4705 = vadd.f32 %v1986, %v4704
  %v4706 = vpop.f32.mrb[0].mxu0
  %4707 = vmatprep.mubr.f32.mxu0 0.0
  %4708 = vmatmul.mubr.f32.gmra.mrb[0].mxu0 %v2006
  %v4709 = vpop.f32.mrb[0].mxu0
  %v4710 = vadd.f32 %v1991, %v4709
  %v4711 = vpop.f32.mrb[0].mxu0
  %4712 = vmatprep.mubr.f32.mxu0 0.0
  %4713 = vmatmul.mubr.f32.gmra.mrb[0].mxu0 %v2009
  %v4714 = vpop.f32.mrb[0].mxu0
  %v4715 = vadd.f32 %v1996, %v4714
  %v4716 = vpop.f32.mrb[0].mxu0
  %4717 = vdwg.mxu0
  %v4718 = vmul.f32 %v4700, %v4700
  %v4719 = vmul.f32 %v4705, %v4705
  %v4720 = vmul.f32 %v4710, %v4710
  %v4721 = vmul.f32 %v4715, %v4715
  %4722 = vmatprep.subr.mxu0 0.0
  %4723 = vmatpush1.msra.mxu0 %v73
  %4724 = vmatprep.subr.mxu0 0.0
  %4725 = vmatpush1.msra.mxu0 %v74
  %4726 = vmatprep.subr.mxu0 0.0
  %4727 = vmatpush1.msra.mxu0 %v75
  %4728 = vmatprep.subr.mxu0 0.0
  %4729 = vmatpush1.msra.mxu0 %v76
  %4730 = vmatprep.subr.mxu0 0.0
  %4731 = vmatpush1.msra.mxu0 %v77
  %4732 = vmatprep.subr.mxu0 0.0
  %4733 = vmatpush1.msra.mxu0 %v78
  %4734 = vmatprep.subr.mxu0 0.0
  %4735 = vmatpush1.msra.mxu0 %v79
  %4736 = vmatprep.subr.mxu0 0.0
  %4737 = vmatpush1.msra.mxu0 %v80
  %4738 = vmatprep.subr.mxu0 0.0
  %4739 = vmatpush1.msra.mxu0 %v81
  %4740 = vmatprep.subr.mxu0 0.0
  %4741 = vmatpush1.msra.mxu0 %v82
  %4742 = vmatprep.subr.mxu0 0.0
  %4743 = vmatpush1.msra.mxu0 %v83
  %4744 = vmatprep.subr.mxu0 0.0
  %4745 = vmatpush1.msra.mxu0 %v84
  %4746 = vmatprep.subr.mxu0 0.0
  %4747 = vmatpush1.msra.mxu0 %v85
  %4748 = vmatprep.subr.mxu0 0.0
  %4749 = vmatpush1.msra.mxu0 %v86
  %4750 = vmatprep.subr.mxu0 0.0
  %4751 = vmatpush1.msra.mxu0 %v87
  %4752 = vmatprep.subr.mxu0 0.0
  %4753 = vmatpush1.msra.mxu0 %v88
  %4754 = vmatprep.subr.mxu0 0.0
  %4755 = vmatpush1.msra.mxu0 0.0
  %4756 = vmatprep.subr.mxu0 0.0
  %4757 = vmatpush1.msra.mxu0 0.0
  %4758 = vmatprep.subr.mxu0 0.0
  %4759 = vmatpush1.msra.mxu0 0.0
  %4760 = vmatprep.subr.mxu0 0.0
  %4761 = vmatpush1.msra.mxu0 0.0
  %4762 = vmatprep.subr.mxu0 0.0
  %4763 = vmatpush1.msra.mxu0 0.0
  %4764 = vmatprep.subr.mxu0 0.0
  %4765 = vmatpush1.msra.mxu0 0.0
  %4766 = vmatprep.subr.mxu0 0.0
  %4767 = vmatpush1.msra.mxu0 0.0
  %4768 = vmatprep.subr.mxu0 0.0
  %4769 = vmatpush1.msra.mxu0 0.0
  %4770 = vmatprep.subr.mxu0 0.0
  %4771 = vmatpush1.msra.mxu0 0.0
  %4772 = vmatprep.subr.mxu0 0.0
  %4773 = vmatpush1.msra.mxu0 0.0
  %4774 = vmatprep.subr.mxu0 0.0
  %4775 = vmatpush1.msra.mxu0 0.0
  %4776 = vmatprep.subr.mxu0 0.0
  %4777 = vmatpush1.msra.mxu0 0.0
  %4778 = vmatprep.subr.mxu0 0.0
  %4779 = vmatpush1.msra.mxu0 0.0
  %4780 = vmatprep.subr.mxu0 0.0
  %4781 = vmatpush1.msra.mxu0 0.0
  %4782 = vmatprep.subr.mxu0 0.0
  %4783 = vmatpush1.msra.mxu0 0.0
  %4784 = vmatprep.subr.mxu0 0.0
  %4785 = vmatpush1.msra.mxu0 0.0
  %4786 = vmatprep.mubr.f32.mxu0 0.0
  %4787 = vmatmul.mubr.f32.gmra.mrb[0].mxu0 %v4718
  %v4788 = vpop.f32.mrb[0].mxu0
  %v4789 = vadd.f32 0.0, %v4788
  %v4790 = vpop.f32.mrb[0].mxu0
  %4791 = vmatprep.mubr.f32.mxu0 0.0
  %4792 = vmatmul.mubr.f32.gmra.mrb[0].mxu0 %v4719
  %v4793 = vpop.f32.mrb[0].mxu0
  %v4794 = vadd.f32 0.0, %v4793
  %v4795 = vpop.f32.mrb[0].mxu0
  %4796 = vmatprep.mubr.f32.mxu0 0.0
  %4797 = vmatmul.mubr.f32.gmra.mrb[0].mxu0 %v4720
  %v4798 = vpop.f32.mrb[0].mxu0
  %v4799 = vadd.f32 0.0, %v4798
  %v4800 = vpop.f32.mrb[0].mxu0
  %4801 = vmatprep.mubr.f32.mxu0 0.0
  %4802 = vmatmul.mubr.f32.gmra.mrb[0].mxu0 %v4721
  %v4803 = vpop.f32.mrb[0].mxu0
  %v4804 = vadd.f32 0.0, %v4803
  %v4805 = vpop.f32.mrb[0].mxu0
  %4806 = vdwg.mxu0
  %v4807 = vmax.f32 %v4789, 1e-24
  %v4808 = vmax.f32 %v4794, 1e-24
  %v4809 = vmax.f32 %v4799, 1e-24
  %v4810 = vmax.f32 %v4804, 1e-24
  %v4811 = vrsqrt.pop %v4807
  %v4812 = vrsqrt.pop %v4808
  %v4813 = vrsqrt.pop %v4809
  %v4814 = vrsqrt.pop %v4810
  %v4815 = vmul.f32 %v4700, %v4811
  %v4816 = vmul.f32 %v4705, %v4812
  %v4817 = vmul.f32 %v4710, %v4813
  %v4818 = vmul.f32 %v4715, %v4814
  %4819 = vst [vmem:[%s27] sm:$0xff] %v4815
  %4820 = vst [vmem:[%s27 + $0x8] sm:$0xff] %v4816
  %4821 = vst [vmem:[%s27 + $0x10] sm:$0xff] %v4817
  %4822 = vst [vmem:[%s27 + $0x18] sm:$0xff] %v4818
  %4823 = vst [vmem:[%s23] sm:$0xff] %v3824
  %4824 = vst [vmem:[%s23 + $0x8] sm:$0xff] %v3825
  %4825 = vst [vmem:[%s23 + $0x10] sm:$0xff] %v3826
  %4826 = vst [vmem:[%s23 + $0x18] sm:$0xff] %v3827
  %4827 = vrot.lane.b32.xlu0 %v4431, 9
  %v4828 = vpop.permute.xlu0 %4827
  %4829 = vrot.lane.b32.xlu0 %v4432, 9
  %v4830 = vpop.permute.xlu0 %4829
  %4831 = vrot.lane.b32.xlu0 %v4433, 9
  %v4832 = vpop.permute.xlu0 %4831
  %4833 = vrot.lane.b32.xlu0 %v4434, 9
  %v4834 = vpop.permute.xlu0 %4833
  %v4835 = vlaneseq
  %v4836 = vshrl.u32 %v4835, 7
  %v4837 = vsub.s32 0, %v4836
  %v4838 = vrot.slane %v71, %v4837
  %v4839 = vmul.f32 %v2400, %v4838
  %v4840 = vmul.f32 %v2402, %v4838
  %v4841 = vmul.f32 %v2404, %v4838
  %v4842 = vmul.f32 %v2406, %v4838
  %v4843 = vmul.f32 %v4828, %v4838
  %v4844 = vmul.f32 %v4830, %v4838
  %v4845 = vmul.f32 %v4832, %v4838
  %v4846 = vmul.f32 %v4834, %v4838
  %4847 = vrot.lane.b32.xlu0 %v4431, 8
  %v4848 = vpop.permute.xlu0 %4847
  %4849 = vrot.lane.b32.xlu0 %v4432, 8
  %v4850 = vpop.permute.xlu0 %4849
  %4851 = vrot.lane.b32.xlu0 %v4433, 8
  %v4852 = vpop.permute.xlu0 %4851
  %4853 = vrot.lane.b32.xlu0 %v4434, 8
  %v4854 = vpop.permute.xlu0 %4853
  %v4855 = vlaneseq
  %v4856 = vshrl.u32 %v4855, 7
  %v4857 = vsub.s32 1, %v4856
  %v4858 = vrot.slane %v71, %v4857
  %v4859 = vmul.f32 %v2424, %v4858
  %v4860 = vmul.f32 %v2426, %v4858
  %v4861 = vmul.f32 %v2428, %v4858
  %v4862 = vmul.f32 %v2430, %v4858
  %v4863 = vmul.f32 %v4848, %v4858
  %v4864 = vmul.f32 %v4850, %v4858
  %v4865 = vmul.f32 %v4852, %v4858
  %v4866 = vmul.f32 %v4854, %v4858
  %4867 = vrot.lane.b32.xlu0 %v4431, 7
  %v4868 = vpop.permute.xlu0 %4867
  %4869 = vrot.lane.b32.xlu0 %v4432, 7
  %v4870 = vpop.permute.xlu0 %4869
  %4871 = vrot.lane.b32.xlu0 %v4433, 7
  %v4872 = vpop.permute.xlu0 %4871
  %4873 = vrot.lane.b32.xlu0 %v4434, 7
  %v4874 = vpop.permute.xlu0 %4873
  %v4875 = vlaneseq
  %v4876 = vshrl.u32 %v4875, 7
  %v4877 = vsub.s32 2, %v4876
  %v4878 = vrot.slane %v71, %v4877
  %v4879 = vmul.f32 %v2448, %v4878
  %v4880 = vmul.f32 %v2450, %v4878
  %v4881 = vmul.f32 %v2452, %v4878
  %v4882 = vmul.f32 %v2454, %v4878
  %v4883 = vmul.f32 %v4868, %v4878
  %v4884 = vmul.f32 %v4870, %v4878
  %v4885 = vmul.f32 %v4872, %v4878
  %v4886 = vmul.f32 %v4874, %v4878
  %4887 = vrot.lane.b32.xlu0 %v4431, 1
  %v4888 = vpop.permute.xlu0 %4887
  %4889 = vrot.lane.b32.xlu0 %v4432, 1
  %v4890 = vpop.permute.xlu0 %4889
  %4891 = vrot.lane.b32.xlu0 %v4433, 1
  %v4892 = vpop.permute.xlu0 %4891
  %4893 = vrot.lane.b32.xlu0 %v4434, 1
  %v4894 = vpop.permute.xlu0 %4893
  %v4895 = vlaneseq
  %v4896 = vshrl.u32 %v4895, 7
  %v4897 = vsub.s32 3, %v4896
  %v4898 = vrot.slane %v71, %v4897
  %v4899 = vmul.f32 %v2472, %v4898
  %v4900 = vmul.f32 %v2474, %v4898
  %v4901 = vmul.f32 %v2476, %v4898
  %v4902 = vmul.f32 %v2478, %v4898
  %v4903 = vmul.f32 %v4888, %v4898
  %v4904 = vmul.f32 %v4890, %v4898
  %v4905 = vmul.f32 %v4892, %v4898
  %v4906 = vmul.f32 %v4894, %v4898
  %4907 = vrot.lane.b32.xlu0 %v4431, 127
  %v4908 = vpop.permute.xlu0 %4907
  %4909 = vrot.lane.b32.xlu0 %v4432, 127
  %v4910 = vpop.permute.xlu0 %4909
  %4911 = vrot.lane.b32.xlu0 %v4433, 127
  %v4912 = vpop.permute.xlu0 %4911
  %4913 = vrot.lane.b32.xlu0 %v4434, 127
  %v4914 = vpop.permute.xlu0 %4913
  %v4915 = vlaneseq
  %v4916 = vshrl.u32 %v4915, 7
  %v4917 = vsub.s32 5, %v4916
  %v4918 = vrot.slane %v71, %v4917
  %v4919 = vmul.f32 %v2496, %v4918
  %v4920 = vmul.f32 %v2498, %v4918
  %v4921 = vmul.f32 %v2500, %v4918
  %v4922 = vmul.f32 %v2502, %v4918
  %v4923 = vmul.f32 %v4908, %v4918
  %v4924 = vmul.f32 %v4910, %v4918
  %v4925 = vmul.f32 %v4912, %v4918
  %v4926 = vmul.f32 %v4914, %v4918
  %4927 = vrot.lane.b32.xlu0 %v4431, 121
  %v4928 = vpop.permute.xlu0 %4927
  %4929 = vrot.lane.b32.xlu0 %v4432, 121
  %v4930 = vpop.permute.xlu0 %4929
  %4931 = vrot.lane.b32.xlu0 %v4433, 121
  %v4932 = vpop.permute.xlu0 %4931
  %4933 = vrot.lane.b32.xlu0 %v4434, 121
  %v4934 = vpop.permute.xlu0 %4933
  %v4935 = vlaneseq
  %v4936 = vshrl.u32 %v4935, 7
  %v4937 = vsub.s32 6, %v4936
  %v4938 = vrot.slane %v71, %v4937
  %v4939 = vmul.f32 %v2520, %v4938
  %v4940 = vmul.f32 %v2522, %v4938
  %v4941 = vmul.f32 %v2524, %v4938
  %v4942 = vmul.f32 %v2526, %v4938
  %v4943 = vmul.f32 %v4928, %v4938
  %v4944 = vmul.f32 %v4930, %v4938
  %v4945 = vmul.f32 %v4932, %v4938
  %v4946 = vmul.f32 %v4934, %v4938
  %4947 = vrot.lane.b32.xlu0 %v4431, 120
  %v4948 = vpop.permute.xlu0 %4947
  %4949 = vrot.lane.b32.xlu0 %v4432, 120
  %v4950 = vpop.permute.xlu0 %4949
  %4951 = vrot.lane.b32.xlu0 %v4433, 120
  %v4952 = vpop.permute.xlu0 %4951
  %4953 = vrot.lane.b32.xlu0 %v4434, 120
  %v4954 = vpop.permute.xlu0 %4953
  %v4955 = vlaneseq
  %v4956 = vshrl.u32 %v4955, 7
  %v4957 = vsub.s32 7, %v4956
  %v4958 = vrot.slane %v71, %v4957
  %v4959 = vmul.f32 %v2544, %v4958
  %v4960 = vmul.f32 %v2546, %v4958
  %v4961 = vmul.f32 %v2548, %v4958
  %v4962 = vmul.f32 %v2550, %v4958
  %v4963 = vmul.f32 %v4948, %v4958
  %v4964 = vmul.f32 %v4950, %v4958
  %v4965 = vmul.f32 %v4952, %v4958
  %v4966 = vmul.f32 %v4954, %v4958
  %4967 = vrot.lane.b32.xlu0 %v4431, 119
  %v4968 = vpop.permute.xlu0 %4967
  %4969 = vrot.lane.b32.xlu0 %v4432, 119
  %v4970 = vpop.permute.xlu0 %4969
  %4971 = vrot.lane.b32.xlu0 %v4433, 119
  %v4972 = vpop.permute.xlu0 %4971
  %4973 = vrot.lane.b32.xlu0 %v4434, 119
  %v4974 = vpop.permute.xlu0 %4973
  %v4975 = vlaneseq
  %v4976 = vshrl.u32 %v4975, 7
  %v4977 = vsub.s32 0, %v4976
  %v4978 = vrot.slane %v72, %v4977
  %v4979 = vmul.f32 %v2568, %v4978
  %v4980 = vmul.f32 %v2570, %v4978
  %v4981 = vmul.f32 %v2572, %v4978
  %v4982 = vmul.f32 %v2574, %v4978
  %v4983 = vmul.f32 %v4968, %v4978
  %v4984 = vmul.f32 %v4970, %v4978
  %v4985 = vmul.f32 %v4972, %v4978
  %v4986 = vmul.f32 %v4974, %v4978
  %v4987 = vld [vmem:[%s12] sm:$0xff]
  %v4988 = vld [vmem:[%s12 + $0x8] sm:$0xff]
  %v4989 = vld [vmem:[%s12 + $0x10] sm:$0xff]
  %v4990 = vld [vmem:[%s12 + $0x18] sm:$0xff]
  %v4991 = vld [vmem:[%s12 + $0x20] sm:$0xff]
  %v4992 = vld [vmem:[%s12 + $0x28] sm:$0xff]
  %v4993 = vld [vmem:[%s12 + $0x30] sm:$0xff]
  %v4994 = vld [vmem:[%s12 + $0x38] sm:$0xff]
  %v4995 = vld [vmem:[%s12 + $0x40] sm:$0xff]
  %v4996 = vld [vmem:[%s12 + $0x48] sm:$0xff]
  %v4997 = vld [vmem:[%s12 + $0x50] sm:$0xff]
  %v4998 = vld [vmem:[%s12 + $0x58] sm:$0xff]
  %v4999 = vld [vmem:[%s12 + $0x60] sm:$0xff]
  %v5000 = vld [vmem:[%s12 + $0x68] sm:$0xff]
  %v5001 = vld [vmem:[%s12 + $0x70] sm:$0xff]
  %v5002 = vld [vmem:[%s12 + $0x78] sm:$0xff]
  %v5003 = vld [vmem:[%s12 + $0x80] sm:$0xff]
  %v5004 = vld [vmem:[%s12 + $0x88] sm:$0xff]
  %v5005 = vld [vmem:[%s12 + $0x90] sm:$0xff]
  %v5006 = vld [vmem:[%s12 + $0x98] sm:$0xff]
  %v5007 = vld [vmem:[%s13] sm:$0xff]
  %v5008 = vld [vmem:[%s13 + $0x8] sm:$0xff]
  %v5009 = vld [vmem:[%s13 + $0x10] sm:$0xff]
  %v5010 = vld [vmem:[%s13 + $0x18] sm:$0xff]
  %5012 = vset.pattern.permute.xlu0 0
  %5013 = vperm.xlu0 %5012, %v5007
  %v5014 = vpop.permute.xlu0 %5013
  %5017 = vset.pattern.permute.xlu0 0
  %5018 = vperm.xlu0 %5017, %v5008
  %v5019 = vpop.permute.xlu0 %5018
  %5022 = vset.pattern.permute.xlu0 0
  %5023 = vperm.xlu0 %5022, %v5009
  %v5024 = vpop.permute.xlu0 %5023
  %5027 = vset.pattern.permute.xlu0 0
  %5028 = vperm.xlu0 %5027, %v5010
  %v5029 = vpop.permute.xlu0 %5028
  %v5032 = vsel %vm1594, %v4991, 0
  %v5035 = vsel %vm1594, %v4996, 0
  %v5038 = vsel %vm1594, %v5001, 0
  %v5041 = vsel %vm1594, %v5006, 0
  %5043 = vmatprep.subr.mxu0 0.0
  %5044 = vmatpush1.msra.mxu0 %v4839
  %5045 = vmatprep.subr.mxu0 0.0
  %5046 = vmatpush1.msra.mxu0 %v4840
  %5047 = vmatprep.subr.mxu0 0.0
  %5048 = vmatpush1.msra.mxu0 %v4841
  %5049 = vmatprep.subr.mxu0 0.0
  %5050 = vmatpush1.msra.mxu0 %v4842
  %5051 = vmatprep.subr.mxu0 0.0
  %5052 = vmatpush1.msra.mxu0 %v4843
  %5053 = vmatprep.subr.mxu0 0.0
  %5054 = vmatpush1.msra.mxu0 %v4844
  %5055 = vmatprep.subr.mxu0 0.0
  %5056 = vmatpush1.msra.mxu0 %v4845
  %5057 = vmatprep.subr.mxu0 0.0
  %5058 = vmatpush1.msra.mxu0 %v4846
  %5059 = vmatprep.subr.mxu0 0.0
  %5060 = vmatpush1.msra.mxu0 %v4859
  %5061 = vmatprep.subr.mxu0 0.0
  %5062 = vmatpush1.msra.mxu0 %v4860
  %5063 = vmatprep.subr.mxu0 0.0
  %5064 = vmatpush1.msra.mxu0 %v4861
  %5065 = vmatprep.subr.mxu0 0.0
  %5066 = vmatpush1.msra.mxu0 %v4862
  %5067 = vmatprep.subr.mxu0 0.0
  %5068 = vmatpush1.msra.mxu0 %v4863
  %5069 = vmatprep.subr.mxu0 0.0
  %5070 = vmatpush1.msra.mxu0 %v4864
  %5071 = vmatprep.subr.mxu0 0.0
  %5072 = vmatpush1.msra.mxu0 %v4865
  %5073 = vmatprep.subr.mxu0 0.0
  %5074 = vmatpush1.msra.mxu0 %v4866
  %5075 = vmatprep.subr.mxu0 0.0
  %5076 = vmatpush1.msra.mxu0 %v4879
  %5077 = vmatprep.subr.mxu0 0.0
  %5078 = vmatpush1.msra.mxu0 %v4880
  %5079 = vmatprep.subr.mxu0 0.0
  %5080 = vmatpush1.msra.mxu0 %v4881
  %5081 = vmatprep.subr.mxu0 0.0
  %5082 = vmatpush1.msra.mxu0 %v4882
  %5083 = vmatprep.subr.mxu0 0.0
  %5084 = vmatpush1.msra.mxu0 %v4883
  %5085 = vmatprep.subr.mxu0 0.0
  %5086 = vmatpush1.msra.mxu0 %v4884
  %5087 = vmatprep.subr.mxu0 0.0
  %5088 = vmatpush1.msra.mxu0 %v4885
  %5089 = vmatprep.subr.mxu0 0.0
  %5090 = vmatpush1.msra.mxu0 %v4886
  %5091 = vmatprep.subr.mxu0 0.0
  %5092 = vmatpush1.msra.mxu0 %v4899
  %5093 = vmatprep.subr.mxu0 0.0
  %5094 = vmatpush1.msra.mxu0 %v4900
  %5095 = vmatprep.subr.mxu0 0.0
  %5096 = vmatpush1.msra.mxu0 %v4901
  %5097 = vmatprep.subr.mxu0 0.0
  %5098 = vmatpush1.msra.mxu0 %v4902
  %5099 = vmatprep.subr.mxu0 0.0
  %5100 = vmatpush1.msra.mxu0 %v4903
  %5101 = vmatprep.subr.mxu0 0.0
  %5102 = vmatpush1.msra.mxu0 %v4904
  %5103 = vmatprep.subr.mxu0 0.0
  %5104 = vmatpush1.msra.mxu0 %v4905
  %5105 = vmatprep.subr.mxu0 0.0
  %5106 = vmatpush1.msra.mxu0 %v4906
  %5107 = vmatprep.mubr.f32.mxu0 %v4988
  %5108 = vmatmul.mubr.f32.gmra.mrb[0].mxu0 %v4987
  %v5109 = vpop.f32.mrb[0].mxu0
  %v5110 = vadd.f32 %v5014, %v5109
  %v5111 = vpop.f32.mrb[0].mxu0
  %5112 = vmatprep.mubr.f32.mxu0 %v4993
  %5113 = vmatmul.mubr.f32.gmra.mrb[0].mxu0 %v4992
  %v5114 = vpop.f32.mrb[0].mxu0
  %v5115 = vadd.f32 %v5019, %v5114
  %v5116 = vpop.f32.mrb[0].mxu0
  %5117 = vmatprep.mubr.f32.mxu0 %v4998
  %5118 = vmatmul.mubr.f32.gmra.mrb[0].mxu0 %v4997
  %v5119 = vpop.f32.mrb[0].mxu0
  %v5120 = vadd.f32 %v5024, %v5119
  %v5121 = vpop.f32.mrb[0].mxu0
  %5122 = vmatprep.mubr.f32.mxu0 %v5003
  %5123 = vmatmul.mubr.f32.gmra.mrb[0].mxu0 %v5002
  %v5124 = vpop.f32.mrb[0].mxu0
  %v5125 = vadd.f32 %v5029, %v5124
  %v5126 = vpop.f32.mrb[0].mxu0
  %5127 = vdwg.mxu0
  %5128 = vmatprep.subr.mxu0 0.0
  %5129 = vmatpush1.msra.mxu0 %v1966
  %5130 = vmatprep.subr.mxu0 0.0
  %5131 = vmatpush1.msra.mxu0 %v1967
  %5132 = vmatprep.subr.mxu0 0.0
  %5133 = vmatpush1.msra.mxu0 %v1968
  %5134 = vmatprep.subr.mxu0 0.0
  %5135 = vmatpush1.msra.mxu0 %v1969
  %5136 = vmatprep.subr.mxu0 0.0
  %5137 = vmatpush1.msra.mxu0 %v4431
  %5138 = vmatprep.subr.mxu0 0.0
  %5139 = vmatpush1.msra.mxu0 %v4432
  %5140 = vmatprep.subr.mxu0 0.0
  %5141 = vmatpush1.msra.mxu0 %v4433
  %5142 = vmatprep.subr.mxu0 0.0
  %5143 = vmatpush1.msra.mxu0 %v4434
  %5144 = vmatprep.subr.mxu0 0.0
  %5145 = vmatpush1.msra.mxu0 %v4919
  %5146 = vmatprep.subr.mxu0 0.0
  %5147 = vmatpush1.msra.mxu0 %v4920
  %5148 = vmatprep.subr.mxu0 0.0
  %5149 = vmatpush1.msra.mxu0 %v4921
  %5150 = vmatprep.subr.mxu0 0.0
  %5151 = vmatpush1.msra.mxu0 %v4922
  %5152 = vmatprep.subr.mxu0 0.0
  %5153 = vmatpush1.msra.mxu0 %v4923
  %5154 = vmatprep.subr.mxu0 0.0
  %5155 = vmatpush1.msra.mxu0 %v4924
  %5156 = vmatprep.subr.mxu0 0.0
  %5157 = vmatpush1.msra.mxu0 %v4925
  %5158 = vmatprep.subr.mxu0 0.0
  %5159 = vmatpush1.msra.mxu0 %v4926
  %5160 = vmatprep.subr.mxu0 0.0
  %5161 = vmatpush1.msra.mxu0 %v4939
  %5162 = vmatprep.subr.mxu0 0.0
  %5163 = vmatpush1.msra.mxu0 %v4940
  %5164 = vmatprep.subr.mxu0 0.0
  %5165 = vmatpush1.msra.mxu0 %v4941
  %5166 = vmatprep.subr.mxu0 0.0
  %5167 = vmatpush1.msra.mxu0 %v4942
  %5168 = vmatprep.subr.mxu0 0.0
  %5169 = vmatpush1.msra.mxu0 %v4943
  %5170 = vmatprep.subr.mxu0 0.0
  %5171 = vmatpush1.msra.mxu0 %v4944
  %5172 = vmatprep.subr.mxu0 0.0
  %5173 = vmatpush1.msra.mxu0 %v4945
  %5174 = vmatprep.subr.mxu0 0.0
  %5175 = vmatpush1.msra.mxu0 %v4946
  %5176 = vmatprep.subr.mxu0 0.0
  %5177 = vmatpush1.msra.mxu0 %v4959
  %5178 = vmatprep.subr.mxu0 0.0
  %5179 = vmatpush1.msra.mxu0 %v4960
  %5180 = vmatprep.subr.mxu0 0.0
  %5181 = vmatpush1.msra.mxu0 %v4961
  %5182 = vmatprep.subr.mxu0 0.0
  %5183 = vmatpush1.msra.mxu0 %v4962
  %5184 = vmatprep.subr.mxu0 0.0
  %5185 = vmatpush1.msra.mxu0 %v4963
  %5186 = vmatprep.subr.mxu0 0.0
  %5187 = vmatpush1.msra.mxu0 %v4964
  %5188 = vmatprep.subr.mxu0 0.0
  %5189 = vmatpush1.msra.mxu0 %v4965
  %5190 = vmatprep.subr.mxu0 0.0
  %5191 = vmatpush1.msra.mxu0 %v4966
  %5192 = vmatprep.mubr.f32.mxu0 %v4990
  %5193 = vmatmul.mubr.f32.gmra.mrb[0].mxu0 %v4989
  %v5194 = vpop.f32.mrb[0].mxu0
  %v5195 = vadd.f32 %v5110, %v5194
  %v5196 = vpop.f32.mrb[0].mxu0
  %5197 = vmatprep.mubr.f32.mxu0 %v4995
  %5198 = vmatmul.mubr.f32.gmra.mrb[0].mxu0 %v4994
  %v5199 = vpop.f32.mrb[0].mxu0
  %v5200 = vadd.f32 %v5115, %v5199
  %v5201 = vpop.f32.mrb[0].mxu0
  %5202 = vmatprep.mubr.f32.mxu0 %v5000
  %5203 = vmatmul.mubr.f32.gmra.mrb[0].mxu0 %v4999
  %v5204 = vpop.f32.mrb[0].mxu0
  %v5205 = vadd.f32 %v5120, %v5204
  %v5206 = vpop.f32.mrb[0].mxu0
  %5207 = vmatprep.mubr.f32.mxu0 %v5005
  %5208 = vmatmul.mubr.f32.gmra.mrb[0].mxu0 %v5004
  %v5209 = vpop.f32.mrb[0].mxu0
  %v5210 = vadd.f32 %v5125, %v5209
  %v5211 = vpop.f32.mrb[0].mxu0
  %5212 = vdwg.mxu0
  %5213 = vmatprep.subr.mxu0 0.0
  %5214 = vmatpush1.msra.mxu0 %v4979
  %5215 = vmatprep.subr.mxu0 0.0
  %5216 = vmatpush1.msra.mxu0 %v4980
  %5217 = vmatprep.subr.mxu0 0.0
  %5218 = vmatpush1.msra.mxu0 %v4981
  %5219 = vmatprep.subr.mxu0 0.0
  %5220 = vmatpush1.msra.mxu0 %v4982
  %5221 = vmatprep.subr.mxu0 0.0
  %5222 = vmatpush1.msra.mxu0 %v4983
  %5223 = vmatprep.subr.mxu0 0.0
  %5224 = vmatpush1.msra.mxu0 %v4984
  %5225 = vmatprep.subr.mxu0 0.0
  %5226 = vmatpush1.msra.mxu0 %v4985
  %5227 = vmatprep.subr.mxu0 0.0
  %5228 = vmatpush1.msra.mxu0 %v4986
  %5229 = vmatprep.subr.mxu0 0.0
  %5230 = vmatpush1.msra.mxu0 0.0
  %5231 = vmatprep.subr.mxu0 0.0
  %5232 = vmatpush1.msra.mxu0 0.0
  %5233 = vmatprep.subr.mxu0 0.0
  %5234 = vmatpush1.msra.mxu0 0.0
  %5235 = vmatprep.subr.mxu0 0.0
  %5236 = vmatpush1.msra.mxu0 0.0
  %5237 = vmatprep.subr.mxu0 0.0
  %5238 = vmatpush1.msra.mxu0 0.0
  %5239 = vmatprep.subr.mxu0 0.0
  %5240 = vmatpush1.msra.mxu0 0.0
  %5241 = vmatprep.subr.mxu0 0.0
  %5242 = vmatpush1.msra.mxu0 0.0
  %5243 = vmatprep.subr.mxu0 0.0
  %5244 = vmatpush1.msra.mxu0 0.0
  %5245 = vmatprep.subr.mxu0 0.0
  %5246 = vmatpush1.msra.mxu0 0.0
  %5247 = vmatprep.subr.mxu0 0.0
  %5248 = vmatpush1.msra.mxu0 0.0
  %5249 = vmatprep.subr.mxu0 0.0
  %5250 = vmatpush1.msra.mxu0 0.0
  %5251 = vmatprep.subr.mxu0 0.0
  %5252 = vmatpush1.msra.mxu0 0.0
  %5253 = vmatprep.subr.mxu0 0.0
  %5254 = vmatpush1.msra.mxu0 0.0
  %5255 = vmatprep.subr.mxu0 0.0
  %5256 = vmatpush1.msra.mxu0 0.0
  %5257 = vmatprep.subr.mxu0 0.0
  %5258 = vmatpush1.msra.mxu0 0.0
  %5259 = vmatprep.subr.mxu0 0.0
  %5260 = vmatpush1.msra.mxu0 0.0
  %5261 = vmatprep.subr.mxu0 0.0
  %5262 = vmatpush1.msra.mxu0 0.0
  %5263 = vmatprep.subr.mxu0 0.0
  %5264 = vmatpush1.msra.mxu0 0.0
  %5265 = vmatprep.subr.mxu0 0.0
  %5266 = vmatpush1.msra.mxu0 0.0
  %5267 = vmatprep.subr.mxu0 0.0
  %5268 = vmatpush1.msra.mxu0 0.0
  %5269 = vmatprep.subr.mxu0 0.0
  %5270 = vmatpush1.msra.mxu0 0.0
  %5271 = vmatprep.subr.mxu0 0.0
  %5272 = vmatpush1.msra.mxu0 0.0
  %5273 = vmatprep.subr.mxu0 0.0
  %5274 = vmatpush1.msra.mxu0 0.0
  %5275 = vmatprep.subr.mxu0 0.0
  %5276 = vmatpush1.msra.mxu0 0.0
  %5277 = vmatprep.mubr.f32.mxu0 0.0
  %5278 = vmatmul.mubr.f32.gmra.mrb[0].mxu0 %v5032
  %v5279 = vpop.f32.mrb[0].mxu0
  %v5280 = vadd.f32 %v5195, %v5279
  %v5281 = vpop.f32.mrb[0].mxu0
  %5282 = vmatprep.mubr.f32.mxu0 0.0
  %5283 = vmatmul.mubr.f32.gmra.mrb[0].mxu0 %v5035
  %v5284 = vpop.f32.mrb[0].mxu0
  %v5285 = vadd.f32 %v5200, %v5284
  %v5286 = vpop.f32.mrb[0].mxu0
  %5287 = vmatprep.mubr.f32.mxu0 0.0
  %5288 = vmatmul.mubr.f32.gmra.mrb[0].mxu0 %v5038
  %v5289 = vpop.f32.mrb[0].mxu0
  %v5290 = vadd.f32 %v5205, %v5289
  %v5291 = vpop.f32.mrb[0].mxu0
  %5292 = vmatprep.mubr.f32.mxu0 0.0
  %5293 = vmatmul.mubr.f32.gmra.mrb[0].mxu0 %v5041
  %v5294 = vpop.f32.mrb[0].mxu0
  %v5295 = vadd.f32 %v5210, %v5294
  %v5296 = vpop.f32.mrb[0].mxu0
  %5297 = vdwg.mxu0
  %v5298 = vmax.f32 %v5280, 0.0
  %v5299 = vmax.f32 %v5285, 0.0
  %v5300 = vmax.f32 %v5290, 0.0
  %v5301 = vmax.f32 %v5295, 0.0
  %v5302 = vld [vmem:[%s14] sm:$0xf]
  %v5304 = vsel %vm1998, %v5302, 0
  %5306 = vmatprep.subr.mxu0 0.0
  %5307 = vmatpush1.msra.mxu0 %v5298
  %5308 = vmatprep.subr.mxu0 0.0
  %5309 = vmatpush1.msra.mxu0 %v5299
  %5310 = vmatprep.subr.mxu0 0.0
  %5311 = vmatpush1.msra.mxu0 %v5300
  %5312 = vmatprep.subr.mxu0 0.0
  %5313 = vmatpush1.msra.mxu0 %v5301
  %5314 = vmatprep.subr.mxu0 0.0
  %5315 = vmatpush1.msra.mxu0 0.0
  %5316 = vmatprep.subr.mxu0 0.0
  %5317 = vmatpush1.msra.mxu0 0.0
  %5318 = vmatprep.subr.mxu0 0.0
  %5319 = vmatpush1.msra.mxu0 0.0
  %5320 = vmatprep.subr.mxu0 0.0
  %5321 = vmatpush1.msra.mxu0 0.0
  %5322 = vmatprep.subr.mxu0 0.0
  %5323 = vmatpush1.msra.mxu0 0.0
  %5324 = vmatprep.subr.mxu0 0.0
  %5325 = vmatpush1.msra.mxu0 0.0
  %5326 = vmatprep.subr.mxu0 0.0
  %5327 = vmatpush1.msra.mxu0 0.0
  %5328 = vmatprep.subr.mxu0 0.0
  %5329 = vmatpush1.msra.mxu0 0.0
  %5330 = vmatprep.subr.mxu0 0.0
  %5331 = vmatpush1.msra.mxu0 0.0
  %5332 = vmatprep.subr.mxu0 0.0
  %5333 = vmatpush1.msra.mxu0 0.0
  %5334 = vmatprep.subr.mxu0 0.0
  %5335 = vmatpush1.msra.mxu0 0.0
  %5336 = vmatprep.subr.mxu0 0.0
  %5337 = vmatpush1.msra.mxu0 0.0
  %5338 = vmatprep.subr.mxu0 0.0
  %5339 = vmatpush1.msra.mxu0 0.0
  %5340 = vmatprep.subr.mxu0 0.0
  %5341 = vmatpush1.msra.mxu0 0.0
  %5342 = vmatprep.subr.mxu0 0.0
  %5343 = vmatpush1.msra.mxu0 0.0
  %5344 = vmatprep.subr.mxu0 0.0
  %5345 = vmatpush1.msra.mxu0 0.0
  %5346 = vmatprep.subr.mxu0 0.0
  %5347 = vmatpush1.msra.mxu0 0.0
  %5348 = vmatprep.subr.mxu0 0.0
  %5349 = vmatpush1.msra.mxu0 0.0
  %5350 = vmatprep.subr.mxu0 0.0
  %5351 = vmatpush1.msra.mxu0 0.0
  %5352 = vmatprep.subr.mxu0 0.0
  %5353 = vmatpush1.msra.mxu0 0.0
  %5354 = vmatprep.subr.mxu0 0.0
  %5355 = vmatpush1.msra.mxu0 0.0
  %5356 = vmatprep.subr.mxu0 0.0
  %5357 = vmatpush1.msra.mxu0 0.0
  %5358 = vmatprep.subr.mxu0 0.0
  %5359 = vmatpush1.msra.mxu0 0.0
  %5360 = vmatprep.subr.mxu0 0.0
  %5361 = vmatpush1.msra.mxu0 0.0
  %5362 = vmatprep.subr.mxu0 0.0
  %5363 = vmatpush1.msra.mxu0 0.0
  %5364 = vmatprep.subr.mxu0 0.0
  %5365 = vmatpush1.msra.mxu0 0.0
  %5366 = vmatprep.subr.mxu0 0.0
  %5367 = vmatpush1.msra.mxu0 0.0
  %5368 = vmatprep.subr.mxu0 0.0
  %5369 = vmatpush1.msra.mxu0 0.0
  %5370 = vmatprep.mubr.f32.mxu0 0.0
  %5371 = vmatmul.mubr.f32.gmra.mrb[0].mxu0 %v5304
  %v5372 = vpop.f32.mrb[0].mxu0
  %v5373 = vadd.f32 0.0, %v5372
  %v5374 = vpop.f32.mrb[0].mxu0
  %5375 = vdwg.mxu0
  %5376 = vst [vmem:[%s18] sm:$0xf] %v5373
  // Predicated region
  $region74: #{_stack_rnn_forward_impl.1} parent=0 // pred_check
    _
  $region75: #{_stack_rnn_forward_impl.1} parent=0 // pred_check_branch
    %5378 = sbr.rel (0) target = $region77
  $region76: #{_stack_rnn_forward_impl.1} parent=0 // pred_region
    _
  $region77: #{_stack_rnn_forward_impl.1} parent=0 // pred_fallthru
    _
  // Predicated region
  $region78: #{_stack_rnn_forward_impl.1} parent=0 // pred_check
    _
  $region79: #{_stack_rnn_forward_impl.1} parent=0 // pred_check_branch
    %5380 = sbr.rel (0) target = $region81
  $region80: #{_stack_rnn_forward_impl.1} parent=0 // pred_region
    _
  $region81: #{_stack_rnn_forward_impl.1} parent=0 // pred_fallthru
    _
  // Predicated region
  $region82: #{_stack_rnn_forward_impl.1} parent=0 // pred_check
    _
  $region83: #{_stack_rnn_forward_impl.1} parent=0 // pred_check_branch
    %5382 = sbr.rel (0) target = $region85
  $region84: #{_stack_rnn_forward_impl.1} parent=0 // pred_region
    _
  $region85: #{_stack_rnn_forward_impl.1} parent=0 // pred_fallthru
    _
  // Predicated region
  $region86: #{_stack_rnn_forward_impl.1} parent=0 // pred_check
    _
  $region87: #{_stack_rnn_forward_impl.1} parent=0 // pred_check_branch
    %5384 = sbr.rel (0) target = $region89
  $region88: #{_stack_rnn_forward_impl.1} parent=0 // pred_region
    _
  $region89: #{_stack_rnn_forward_impl.1} parent=0 // pred_fallthru
    _
  // Predicated region
  $region90: #{_stack_rnn_forward_impl.1} parent=0 // pred_check
    _
  $region91: #{_stack_rnn_forward_impl.1} parent=0 // pred_check_branch
    %5386 = sbr.rel (0) target = $region93
  $region92: #{_stack_rnn_forward_impl.1} parent=0 // pred_region
    _
  $region93: #{_stack_rnn_forward_impl.1} parent=0 // pred_fallthru
    _
  // Predicated region
  $region94: #{_stack_rnn_forward_impl.1} parent=0 // pred_check
    _
  $region95: #{_stack_rnn_forward_impl.1} parent=0 // pred_check_branch
    %5388 = sbr.rel (0) target = $region97
  $region96: #{_stack_rnn_forward_impl.1} parent=0 // pred_region
    _
  $region97: #{_stack_rnn_forward_impl.1} parent=0 // pred_fallthru
    _
  // Predicated region
  $region98: #{_stack_rnn_forward_impl.1} parent=0 // pred_check
    _
  $region99: #{_stack_rnn_forward_impl.1} parent=0 // pred_check_branch
    %5390 = sbr.rel (0) target = $region101
  $region100: #{_stack_rnn_forward_impl.1} parent=0 // pred_region
    _
  $region101: #{_stack_rnn_forward_impl.1} parent=0 // pred_fallthru
    _
  // Predicated region
  $region102: #{_stack_rnn_forward_impl.1} parent=0 // pred_check
    _
  $region103: #{_stack_rnn_forward_impl.1} parent=0 // pred_check_branch
    %5392 = sbr.rel (0) target = $region105
  $region104: #{_stack_rnn_forward_impl.1} parent=0 // pred_region
    _
  $region105: #{_stack_rnn_forward_impl.1} parent=0 // pred_fallthru
    _
  // Predicated region
  $region106: #{_stack_rnn_forward_impl.1} parent=0 // pred_check
    _
  $region107: #{_stack_rnn_forward_impl.1} parent=0 // pred_check_branch
    %5394 = sbr.rel (0) target = $region109
  $region108: #{_stack_rnn_forward_impl.1} parent=0 // pred_region
    _
  $region109: #{_stack_rnn_forward_impl.1} parent=0 // pred_fallthru
    _
  // Predicated region
  $region110: #{_stack_rnn_forward_impl.1} parent=0 // pred_check
    _
  $region111: #{_stack_rnn_forward_impl.1} parent=0 // pred_check_branch
    %5396 = sbr.rel (0) target = $region113
  $region112: #{_stack_rnn_forward_impl.1} parent=0 // pred_region
    _
  $region113: #{_stack_rnn_forward_impl.1} parent=0 // pred_fallthru
    _
  // Predicated region
  $region114: #{_stack_rnn_forward_impl.1} parent=0 // pred_check
    _
  $region115: #{_stack_rnn_forward_impl.1} parent=0 // pred_check_branch
    %5398 = sbr.rel (0) target = $region117
  $region116: #{_stack_rnn_forward_impl.1} parent=0 // pred_region
    _
  $region117: #{_stack_rnn_forward_impl.1} parent=0 // pred_fallthru
    _
  // Predicated region
  $region118: #{_stack_rnn_forward_impl.1} parent=0 // pred_check
    _
  $region119: #{_stack_rnn_forward_impl.1} parent=0 // pred_check_branch
    %5400 = sbr.rel (0) target = $region121
  $region120: #{_stack_rnn_forward_impl.1} parent=0 // pred_region
    _
  $region121: #{_stack_rnn_forward_impl.1} parent=0 // pred_fallthru
    _
  // Predicated region
  $region122: #{_stack_rnn_forward_impl.1} parent=0 // pred_check
    _
  $region123: #{_stack_rnn_forward_impl.1} parent=0 // pred_check_branch
    %5402 = sbr.rel (0) target = $region125
  $region124: #{_stack_rnn_forward_impl.1} parent=0 // pred_region
    _
  $region125: #{_stack_rnn_forward_impl.1} parent=0 // pred_fallthru
    _
  // Predicated region
  $region126: #{_stack_rnn_forward_impl.1} parent=0 // pred_check
    _
  $region127: #{_stack_rnn_forward_impl.1} parent=0 // pred_check_branch
    %5404 = sbr.rel (0) target = $region129
  $region128: #{_stack_rnn_forward_impl.1} parent=0 // pred_region
    _
  $region129: #{_stack_rnn_forward_impl.1} parent=0 // pred_fallthru
    _
  // Predicated region
  $region130: #{_stack_rnn_forward_impl.1} parent=0 // pred_check
    _
  $region131: #{_stack_rnn_forward_impl.1} parent=0 // pred_check_branch
    %5406 = sbr.rel (0) target = $region133
  $region132: #{_stack_rnn_forward_impl.1} parent=0 // pred_region
    _
  $region133: #{_stack_rnn_forward_impl.1} parent=0 // pred_fallthru
    _
  // Predicated region
  $region134: #{_stack_rnn_forward_impl.1} parent=0 // pred_check
    _
  $region135: #{_stack_rnn_forward_impl.1} parent=0 // pred_check_branch
    %5408 = sbr.rel (0) target = $region137
  $region136: #{_stack_rnn_forward_impl.1} parent=0 // pred_region
    _
  $region137: #{_stack_rnn_forward_impl.1} parent=0 // pred_fallthru
    _
  // Predicated region
  $region138: #{_stack_rnn_forward_impl.1} parent=0 // pred_check
    _
  $region139: #{_stack_rnn_forward_impl.1} parent=0 // pred_check_branch
    %5410 = sbr.rel (0) target = $region141
  $region140: #{_stack_rnn_forward_impl.1} parent=0 // pred_region
    _
  $region141: #{_stack_rnn_forward_impl.1} parent=0 // pred_fallthru
    _
  // Predicated region
  $region142: #{_stack_rnn_forward_impl.1} parent=0 // pred_check
    _
  $region143: #{_stack_rnn_forward_impl.1} parent=0 // pred_check_branch
    %5412 = sbr.rel (0) target = $region145
  $region144: #{_stack_rnn_forward_impl.1} parent=0 // pred_region
    _
  $region145: #{_stack_rnn_forward_impl.1} parent=0 // pred_fallthru
    _
  // Predicated region
  $region146: #{_stack_rnn_forward_impl.1} parent=0 // pred_check
    _
  $region147: #{_stack_rnn_forward_impl.1} parent=0 // pred_check_branch
    %5414 = sbr.rel (0) target = $region149
  $region148: #{_stack_rnn_forward_impl.1} parent=0 // pred_region
    _
  $region149: #{_stack_rnn_forward_impl.1} parent=0 // pred_fallthru
    _
  // Predicated region
  $region150: #{_stack_rnn_forward_impl.1} parent=0 // pred_check
    _
  $region151: #{_stack_rnn_forward_impl.1} parent=0 // pred_check_branch
    %5416 = sbr.rel (0) target = $region153
  $region152: #{_stack_rnn_forward_impl.1} parent=0 // pred_region
    _
  $region153: #{_stack_rnn_forward_impl.1} parent=0 // pred_fallthru
    _

</llo_original>
